<compile_context>
chip_gen: v6e
topology: v6e:2x2x1
jax: 0.10.0
libtpu: 0.0.40
codegen_flags: <defaults>
</compile_context>

<pallas_src>
import functools

import numpy as np

import jax
import jax.numpy as jnp
from jax.experimental import pallas as pl
from jax.experimental.pallas import tpu as pltpu


# ----------------------------- Pallas kernel ------------------------------- #

def _cross(ax, ay, az, bx, by, bz):
    return ay * bz - az * by, az * bx - ax * bz, ax * by - ay * bx


def _d2c_kernel(angles, row_plans, theta_ref, pos_ref, out_ref):
    """Serial dihedral chain; conformers on lanes, atoms on sublanes.

    angles   : static tuple of K (i, j, k, l) atom-index tuples
    row_plans: static per-dihedral (lo_a, rows, sel_spec) moved-row plans
    theta_ref: (K, bn)     dihedral target values
    pos_ref  : (3, M, bn)  x/y/z coordinate planes
    out_ref  : (3, M, bn)  transformed planes (aliased with pos in HBM)
    """
    eps2 = 1e-24            # (F.normalize eps = 1e-12) ** 2

    # Positions live in the output VMEM buffer for the whole serial chain.
    out_ref[...] = pos_ref[...]

    # Hoisted transcendentals: one cos + one sin pass over the whole (K, bn)
    # theta block; the per-dihedral atan2/cos/sin chain is replaced by the
    # angle-addition identity below.
    th = theta_ref[...]
    cos_th_all = jnp.cos(th)
    sin_th_all = jnp.sin(th)

    M = out_ref.shape[1]
    rid = jax.lax.broadcasted_iota(jnp.int32, (M, 1), 0)   # static atom row ids

    def row(p, i):          # (1, bn) lane-dense row of atom i, plane p
        return out_ref[p, i:i + 1, :]

    K = len(angles)
    for k in range(K):      # K is small & static -> unrolled (serial chain)
        a0, a1, a2, a3 = angles[k]
        lo_a, rows, sel_spec = row_plans[k]

        p0x, p0y, p0z = row(0, a0), row(1, a0), row(2, a0)
        p1x, p1y, p1z = row(0, a1), row(1, a1), row(2, a1)
        p2x, p2y, p2z = row(0, a2), row(1, a2), row(2, a2)
        p3x, p3y, p3z = row(0, a3), row(1, a3), row(2, a3)

        rIJx, rIJy, rIJz = p1x - p0x, p1y - p0y, p1z - p0z
        rJKx, rJKy, rJKz = p2x - p1x, p2y - p1y, p2z - p1z   # rotation axis
        rKLx, rKLy, rKLz = p3x - p2x, p3y - p2y, p3z - p2z

        nIJKx, nIJKy, nIJKz = _cross(rIJx, rIJy, rIJz, rJKx, rJKy, rJKz)
        nJKLx, nJKLy, nJKLz = _cross(rJKx, rJKy, rJKz, rKLx, rKLy, rKLz)
        mx, my, mz = _cross(nIJKx, nIJKy, nIJKz, rJKx, rJKy, rJKz)

        dot_m_nJKL = mx * nJKLx + my * nJKLy + mz * nJKLz
        dot_n_n = nIJKx * nJKLx + nIJKy * nJKLy + nIJKz * nJKLz

        # normalized rotation axis = rJK / |rJK| via one EUP rsqrt (no divides)
        asq = rJKx * rJKx + rJKy * rJKy + rJKz * rJKz
        inv_an = jax.lax.rsqrt(jnp.maximum(asq, eps2))
        X, Y, Z = rJKx * inv_an, rJKy * inv_an, rJKz * inv_an

        # Scale-free current dihedral d:
        #   (xd, yd) = |nIJK||nJKL| * (cos d, sin d)   (since |m| = |nIJK||rJK|)
        xd = dot_n_n
        yd = dot_m_nJKL * inv_an
        h2 = xd * xd + yd * yd
        inv_h = jax.lax.rsqrt(jnp.maximum(h2, eps2))
        degen = h2 < eps2                       # collinear geometry fallback
        cos_d = jnp.where(degen, 1.0, xd * inv_h)
        sin_d = jnp.where(degen, 0.0, yd * inv_h)

        # Angle-addition: cos/sin(theta + d) without atan2/cos/sin per step.
        cos_th = cos_th_all[k:k + 1, :]
        sin_th = sin_th_all[k:k + 1, :]
        cosT = cos_th * cos_d - sin_th * sin_d
        sinT = sin_th * cos_d + cos_th * sin_d

        # Factored Rodrigues rotation matrix (same as transformPoint).
        t = 1.0 - cosT
        tX, tY, tZ = t * X, t * Y, t * Z
        sX, sY, sZ = sinT * X, sinT * Y, sinT * Z
        tXY, tXZ, tYZ = tX * Y, tX * Z, tY * Z
        r00 = tX * X + cosT
        r01 = tXY - sZ
        r02 = tXZ + sY
        r10 = tXY + sZ
        r11 = tY * Y + cosT
        r12 = tYZ - sX
        r20 = tXZ - sY
        r21 = tYZ + sX
        r22 = tZ * Z + cosT

        # Rotate only the statically-known moved-atom row slab (sublane aligned).
        xs = out_ref[0, lo_a:lo_a + rows, :]
        ys = out_ref[1, lo_a:lo_a + rows, :]
        zs = out_ref[2, lo_a:lo_a + rows, :]
        sx, sy, sz = xs - p1x, ys - p1y, zs - p1z
        nx = r00 * sx + r01 * sy + r02 * sz + p1x
        ny = r10 * sx + r11 * sy + r12 * sz + p1y
        nz = r20 * sx + r21 * sy + r22 * sz + p1z

        sel = None
        kind = sel_spec[0]
        if kind == "contig":
            lo, hi = sel_spec[1], sel_spec[2]
            rid_s = rid[lo_a:lo_a + rows, :]
            if lo > lo_a:
                sel = rid_s >= lo
            if hi < lo_a + rows:
                c = rid_s < hi
                sel = c if sel is None else (sel & c)
        elif kind == "dense":                   # general non-contiguous mask
            sel = jnp.asarray(sel_spec[1], dtype=jnp.float32).reshape(rows, 1) > 0.5
        # kind == "all": no select needed

        if sel is not None:
            nx = jnp.where(sel, nx, xs)
            ny = jnp.where(sel, ny, ys)
            nz = jnp.where(sel, nz, zs)

        out_ref[0, lo_a:lo_a + rows, :] = nx
        out_ref[1, lo_a:lo_a + rows, :] = ny
        out_ref[2, lo_a:lo_a + rows, :] = nz


# ------------------------- static moved-row planning ------------------------ #

def _plan_rows(move_mask_np, num_atoms):
    """Per-dihedral static (lo_a, rows, sel_spec) moved-atom row plans."""
    move_mask_np = np.asarray(move_mask_np)
    plans = []
    for k in range(move_mask_np.shape[0]):
        moved = [a for a in range(num_atoms) if float(move_mask_np[k, a]) > 0.0]
        assert moved, f"dihedral {k}: empty moved-atom set"
        lo, hi = moved[0], moved[-1] + 1
        lo_a = (lo // 8) * 8                                    # sublane aligned
        hi_a = min(num_atoms, ((hi + 7) // 8) * 8)
        rows = hi_a - lo_a
        contiguous = (len(moved) == hi - lo)
        if contiguous:
            if lo == lo_a and hi == hi_a:
                plans.append((lo_a, rows, ("all",)))
            else:
                plans.append((lo_a, rows, ("contig", lo, hi)))
        else:
            bools = tuple(1.0 if float(move_mask_np[k, a]) > 0.0 else 0.0
                          for a in range(lo_a, hi_a))
            plans.append((lo_a, rows, ("dense", bools)))
    return tuple(plans)


# ------------------------------- wrappers ----------------------------------- #

def dihedral2coord_planes(thetaT, pos3, angle_list, move_mask, *, bn=None):
    """Plane-resident API: thetaT (K, N), pos3 (3, M, N) -> (3, M, N) float32.

    Preferred entry point: callers that keep coordinates resident in (3, M, N)
    across steps pay zero relayout cost; the input planes are aliased with the
    output in HBM.
    """
    K, N = thetaT.shape
    M = pos3.shape[1]

    if bn is None:
        bn = 128 if N % 128 == 0 else N     # fixed lane block; grid = N // bn
    assert N % bn == 0
    assert bn == N or bn % 128 == 0, "lane block must be full N or multiple of 128"

    angles_t = tuple(tuple(int(v) for v in row) for row in angle_list)
    plans = _plan_rows(move_mask, M)
    assert len(plans) == K
    kernel = functools.partial(_d2c_kernel, angles_t, plans)

    return pl.pallas_call(
        kernel,
        out_shape=jax.ShapeDtypeStruct((3, M, N), jnp.float32),
        grid=(N // bn,),
        in_specs=[
            pl.BlockSpec((K, bn), lambda b: (0, b)),        # dihedral targets
            pl.BlockSpec((3, M, bn), lambda b: (0, 0, b)),  # stacked xyz planes
        ],
        out_specs=pl.BlockSpec((3, M, bn), lambda b: (0, 0, b)),
        input_output_aliases={1: 0},                        # planes fully overwritten
        compiler_params=pltpu.CompilerParams(
            dimension_semantics=("parallel",)),
    )(thetaT.astype(jnp.float32), pos3.astype(jnp.float32))


def dihedral2coord(theta, pos, angle_list, move_mask, *, bn=None):
    """(N, K), (N, M, 3) -> (N, M, 3) compatibility API matching the PyTorch forward.

    The transposes here are the caller-layout relayout cost; performance-
    sensitive callers should use `dihedral2coord_planes` and keep coordinates
    resident in the (3, M, N) plane layout.
    """
    pos3 = jnp.transpose(pos.astype(jnp.float32), (2, 1, 0))       # (3, M, N)
    thetaT = jnp.transpose(theta.astype(jnp.float32), (1, 0))      # (K, N)
    out3 = dihedral2coord_planes(thetaT, pos3, angle_list, move_mask, bn=bn)
    return jnp.transpose(out3, (2, 1, 0))                          # (N, M, 3)


# ----------------- synthetic molecule + toBeMovedIdxList -------------------- #

def build_chain_molecule(num_atoms):
    """Linear chain: atom a bonded to a+1; dihedral over each 4 consecutive atoms."""
    nbrs = [[] for _ in range(num_atoms)]
    for a in range(num_atoms - 1):
        nbrs[a].append(a + 1)
        nbrs[a + 1].append(a)
    angles = [(i, i + 1, i + 2, i + 3) for i in range(num_atoms - 3)]
    return nbrs, angles


def to_be_moved_mask(nbrs, angles, num_atoms):
    """Mirrors Dihedral2Coord.toBeMovedIdxList (DFS from jAtomId blocked at iAtomId)."""
    K = len(angles)
    mask = np.zeros((K, num_atoms), dtype=np.float32)
    cache = {}
    for k, (_, i_id, j_id, _) in enumerate(angles):
        if (i_id, j_id) not in cache:
            visited = [False] * num_atoms
            visited[i_id] = True
            visited[j_id] = True
            stack = [j_id]
            while stack:
                t = stack[-1]
                advanced = False
                for w in nbrs[t]:
                    if not visited[w]:
                        visited[w] = True
                        stack.append(w)
                        advanced = True
                        break
                if not advanced:
                    stack.pop()
            cache[i_id, j_id] = [a for a in range(num_atoms)
                                 if visited[a] and a != i_id and a != j_id]
        for a in cache[i_id, j_id]:
            mask[k, a] = 1.0
    return mask


# ------------------------------ reference ----------------------------------- #

def _reference(theta, pos, angle_list, move_mask):
    """Pure-JAX port of setDihedralRad/transformPoint for verification."""
    pos = pos.astype(jnp.float32)
    N = pos.shape[0]
    for k in range(theta.shape[1]):
        a0, a1, a2, a3 = (int(v) for v in angle_list[k])
        p0, p1, p2, p3 = pos[:, a0], pos[:, a1], pos[:, a2], pos[:, a3]
        rIJ, rJK, rKL = p1 - p0, p2 - p1, p3 - p2
        nIJK = jnp.cross(rIJ, rJK)
        nJKL = jnp.cross(rJK, rKL)
        m = jnp.cross(nIJK, rJK)
        yv = jnp.sum(m * nJKL, -1) / (jnp.linalg.norm(nJKL, axis=-1)
                                      * jnp.linalg.norm(m, axis=-1))
        xv = jnp.sum(nIJK * nJKL, -1) / (jnp.linalg.norm(nIJK, axis=-1)
                                         * jnp.linalg.norm(nJKL, axis=-1))
        values = theta[:, k] + jnp.arctan2(yv, xv)
        axis = p2 - p1
        axis = axis / jnp.maximum(
            jnp.linalg.norm(axis, axis=-1, keepdims=True), 1e-12)
        cos = jnp.cos(values)
        sin = jnp.sin(values)
        t = (1.0 - cos)[:, None, None]
        R = t * axis[:, :, None] * axis[:, None, :]
        X, Y, Z = axis[:, 0], axis[:, 1], axis[:, 2]
        mat1 = jnp.stack([cos, -sin * Z, sin * Y,
                          sin * Z, cos, -sin * X,
                          -sin * Y, sin * X, cos], axis=1).reshape(N, 3, 3)
        R = R + mat1
        shifted = pos - p1[:, None, :]
        rotated = jnp.einsum('nij,nmj->nmi', R, shifted) + p1[:, None, :]
        moved = (np.asarray(move_mask)[k][None, :, None] > 0)
        pos = jnp.where(moved, rotated, pos)
    return pos


# --------------------------------- main ------------------------------------- #

if __name__ == "__main__":
    M_ATOMS = 16                 # number of atoms per conformer
    N = 256                      # batch of conformers (lane-dense: multiple of 128)
    nbrs, angle_list = build_chain_molecule(M_ATOMS)
    K = len(angle_list)          # = 13 dihedral angles
    move_mask = to_be_moved_mask(nbrs, angle_list, M_ATOMS)   # numpy (K, M)

    key = jax.random.PRNGKey(0)
    k1, k2 = jax.random.split(key)
    pos = jax.random.normal(k1, (N, M_ATOMS, 3), dtype=jnp.float32) * 2.0
    theta = jax.random.uniform(k2, (N, K), dtype=jnp.float32,
                               minval=-jnp.pi, maxval=jnp.pi)

    out = dihedral2coord(theta, pos, angle_list, move_mask)
    out = jax.block_until_ready(out)

    ref = _reference(theta, pos, angle_list, move_mask)
    assert out.shape == (N, M_ATOMS, 3)
    err = float(jnp.max(jnp.abs(out - ref)))
    assert jnp.allclose(out, ref, atol=1e-3, rtol=1e-3), err
    print("KERNEL_OK")
</pallas_src>

<mosaic_0001>
module attributes {stable_mosaic.version = 11 : i64} {
  func.func @_d2c_kernel(%arg0: i32, %arg1: memref<13x128xf32, #tpu.memory_space<vmem>>, %arg2: memref<3x16x128xf32, #tpu.memory_space<vmem>>, %arg3: memref<3x16x128xf32, #tpu.memory_space<vmem>>) attributes {dimension_semantics = [#tpu.dimension_semantics<parallel>], iteration_bounds = array<i64: 2>, scalar_prefetch = 0 : i64, scratch_operands = 0 : i64, tpu.core_type = #tpu.core_type<tc>, window_params = [{transform_indices = @transform_0, window_bounds = array<i64: 13, 128>}, {transform_indices = @transform_1, window_bounds = array<i64: 3, 16, 128>}, {transform_indices = @transform_2, window_bounds = array<i64: 3, 16, 128>}]} {
    %c0 = arith.constant 0 : index
    %c0_0 = arith.constant 0 : index
    %c0_1 = arith.constant 0 : index
    %0 = vector.load %arg2[%c0, %c0_0, %c0_1] : memref<3x16x128xf32, #tpu.memory_space<vmem>>, vector<3x16x128xf32>
    %c0_2 = arith.constant 0 : index
    %c0_3 = arith.constant 0 : index
    %c0_4 = arith.constant 0 : index
    %1 = vector.load %arg3[%c0_2, %c0_3, %c0_4] : memref<3x16x128xf32, #tpu.memory_space<vmem>>, vector<3x16x128xf32>
    tpu.vector_store %arg3[%c0_2, %c0_3, %c0_4], %0 {strides = array<i32>} : memref<3x16x128xf32, #tpu.memory_space<vmem>>, vector<3x16x128xf32>,
    %c0_5 = arith.constant 0 : index
    %c0_6 = arith.constant 0 : index
    %2 = vector.load %arg1[%c0_5, %c0_6] : memref<13x128xf32, #tpu.memory_space<vmem>>, vector<13x128xf32>
    %3 = math.cos %2 : vector<13x128xf32>
    %4 = math.sin %2 : vector<13x128xf32>
    %5 = tpu.iota {dimensions = array<i32: 0>} : vector<16x1xi32>
    %c0_7 = arith.constant 0 : index
    %c0_8 = arith.constant 0 : index
    %c0_9 = arith.constant 0 : index
    %6 = vector.load %arg3[%c0_7, %c0_8, %c0_9] : memref<3x16x128xf32, #tpu.memory_space<vmem>>, vector<1x1x128xf32>
    %7 = vector.shape_cast %6 : vector<1x1x128xf32> to vector<1x128xf32>
    %c1 = arith.constant 1 : index
    %c0_10 = arith.constant 0 : index
    %c0_11 = arith.constant 0 : index
    %8 = vector.load %arg3[%c1, %c0_10, %c0_11] : memref<3x16x128xf32, #tpu.memory_space<vmem>>, vector<1x1x128xf32>
    %9 = vector.shape_cast %8 : vector<1x1x128xf32> to vector<1x128xf32>
    %c2 = arith.constant 2 : index
    %c0_12 = arith.constant 0 : index
    %c0_13 = arith.constant 0 : index
    %10 = vector.load %arg3[%c2, %c0_12, %c0_13] : memref<3x16x128xf32, #tpu.memory_space<vmem>>, vector<1x1x128xf32>
    %11 = vector.shape_cast %10 : vector<1x1x128xf32> to vector<1x128xf32>
    %c0_14 = arith.constant 0 : index
    %c1_15 = arith.constant 1 : index
    %c0_16 = arith.constant 0 : index
    %12 = vector.load %arg3[%c0_14, %c1_15, %c0_16] : memref<3x16x128xf32, #tpu.memory_space<vmem>>, vector<1x1x128xf32>
    %13 = vector.shape_cast %12 : vector<1x1x128xf32> to vector<1x128xf32>
    %c1_17 = arith.constant 1 : index
    %c1_18 = arith.constant 1 : index
    %c0_19 = arith.constant 0 : index
    %14 = vector.load %arg3[%c1_17, %c1_18, %c0_19] : memref<3x16x128xf32, #tpu.memory_space<vmem>>, vector<1x1x128xf32>
    %15 = vector.shape_cast %14 : vector<1x1x128xf32> to vector<1x128xf32>
    %c2_20 = arith.constant 2 : index
    %c1_21 = arith.constant 1 : index
    %c0_22 = arith.constant 0 : index
    %16 = vector.load %arg3[%c2_20, %c1_21, %c0_22] : memref<3x16x128xf32, #tpu.memory_space<vmem>>, vector<1x1x128xf32>
    %17 = vector.shape_cast %16 : vector<1x1x128xf32> to vector<1x128xf32>
    %c0_23 = arith.constant 0 : index
    %c2_24 = arith.constant 2 : index
    %c0_25 = arith.constant 0 : index
    %18 = vector.load %arg3[%c0_23, %c2_24, %c0_25] : memref<3x16x128xf32, #tpu.memory_space<vmem>>, vector<1x1x128xf32>
    %19 = vector.shape_cast %18 : vector<1x1x128xf32> to vector<1x128xf32>
    %c1_26 = arith.constant 1 : index
    %c2_27 = arith.constant 2 : index
    %c0_28 = arith.constant 0 : index
    %20 = vector.load %arg3[%c1_26, %c2_27, %c0_28] : memref<3x16x128xf32, #tpu.memory_space<vmem>>, vector<1x1x128xf32>
    %21 = vector.shape_cast %20 : vector<1x1x128xf32> to vector<1x128xf32>
    %c2_29 = arith.constant 2 : index
    %c2_30 = arith.constant 2 : index
    %c0_31 = arith.constant 0 : index
    %22 = vector.load %arg3[%c2_29, %c2_30, %c0_31] : memref<3x16x128xf32, #tpu.memory_space<vmem>>, vector<1x1x128xf32>
    %23 = vector.shape_cast %22 : vector<1x1x128xf32> to vector<1x128xf32>
    %c0_32 = arith.constant 0 : index
    %c3 = arith.constant 3 : index
    %c0_33 = arith.constant 0 : index
    %24 = vector.load %arg3[%c0_32, %c3, %c0_33] : memref<3x16x128xf32, #tpu.memory_space<vmem>>, vector<1x1x128xf32>
    %25 = vector.shape_cast %24 : vector<1x1x128xf32> to vector<1x128xf32>
    %c1_34 = arith.constant 1 : index
    %c3_35 = arith.constant 3 : index
    %c0_36 = arith.constant 0 : index
    %26 = vector.load %arg3[%c1_34, %c3_35, %c0_36] : memref<3x16x128xf32, #tpu.memory_space<vmem>>, vector<1x1x128xf32>
    %27 = vector.shape_cast %26 : vector<1x1x128xf32> to vector<1x128xf32>
    %c2_37 = arith.constant 2 : index
    %c3_38 = arith.constant 3 : index
    %c0_39 = arith.constant 0 : index
    %28 = vector.load %arg3[%c2_37, %c3_38, %c0_39] : memref<3x16x128xf32, #tpu.memory_space<vmem>>, vector<1x1x128xf32>
    %29 = vector.shape_cast %28 : vector<1x1x128xf32> to vector<1x128xf32>
    %30 = arith.subf %13, %7 : vector<1x128xf32>
    %31 = arith.subf %15, %9 : vector<1x128xf32>
    %32 = arith.subf %17, %11 : vector<1x128xf32>
    %33 = arith.subf %19, %13 : vector<1x128xf32>
    %34 = arith.subf %21, %15 : vector<1x128xf32>
    %35 = arith.subf %23, %17 : vector<1x128xf32>
    %36 = arith.subf %25, %19 : vector<1x128xf32>
    %37 = arith.subf %27, %21 : vector<1x128xf32>
    %38 = arith.subf %29, %23 : vector<1x128xf32>
    %39 = arith.mulf %31, %35 : vector<1x128xf32>
    %40 = arith.mulf %32, %34 : vector<1x128xf32>
    %41 = arith.subf %39, %40 : vector<1x128xf32>
    %42 = arith.mulf %32, %33 : vector<1x128xf32>
    %43 = arith.mulf %30, %35 : vector<1x128xf32>
    %44 = arith.subf %42, %43 : vector<1x128xf32>
    %45 = arith.mulf %30, %34 : vector<1x128xf32>
    %46 = arith.mulf %31, %33 : vector<1x128xf32>
    %47 = arith.subf %45, %46 : vector<1x128xf32>
    %48 = arith.mulf %34, %38 : vector<1x128xf32>
    %49 = arith.mulf %35, %37 : vector<1x128xf32>
    %50 = arith.subf %48, %49 : vector<1x128xf32>
    %51 = arith.mulf %35, %36 : vector<1x128xf32>
    %52 = arith.mulf %33, %38 : vector<1x128xf32>
    %53 = arith.subf %51, %52 : vector<1x128xf32>
    %54 = arith.mulf %33, %37 : vector<1x128xf32>
    %55 = arith.mulf %34, %36 : vector<1x128xf32>
    %56 = arith.subf %54, %55 : vector<1x128xf32>
    %57 = arith.mulf %44, %35 : vector<1x128xf32>
    %58 = arith.mulf %47, %34 : vector<1x128xf32>
    %59 = arith.subf %57, %58 : vector<1x128xf32>
    %60 = arith.mulf %47, %33 : vector<1x128xf32>
    %61 = arith.mulf %41, %35 : vector<1x128xf32>
    %62 = arith.subf %60, %61 : vector<1x128xf32>
    %63 = arith.mulf %41, %34 : vector<1x128xf32>
    %64 = arith.mulf %44, %33 : vector<1x128xf32>
    %65 = arith.subf %63, %64 : vector<1x128xf32>
    %66 = arith.mulf %59, %50 : vector<1x128xf32>
    %67 = arith.mulf %62, %53 : vector<1x128xf32>
    %68 = arith.addf %66, %67 : vector<1x128xf32>
    %69 = arith.mulf %65, %56 : vector<1x128xf32>
    %70 = arith.addf %68, %69 : vector<1x128xf32>
    %71 = arith.mulf %41, %50 : vector<1x128xf32>
    %72 = arith.mulf %44, %53 : vector<1x128xf32>
    %73 = arith.addf %71, %72 : vector<1x128xf32>
    %74 = arith.mulf %47, %56 : vector<1x128xf32>
    %75 = arith.addf %73, %74 : vector<1x128xf32>
    %76 = arith.mulf %33, %33 : vector<1x128xf32>
    %77 = arith.mulf %34, %34 : vector<1x128xf32>
    %78 = arith.addf %76, %77 : vector<1x128xf32>
    %79 = arith.mulf %35, %35 : vector<1x128xf32>
    %80 = arith.addf %78, %79 : vector<1x128xf32>
    %cst = arith.constant 1.000000e-24 : f32
    %81 = vector.broadcast %cst : f32 to vector<1x128xf32>
    %82 = arith.maximumf %80, %81 : vector<1x128xf32>
    %83 = math.rsqrt %82 : vector<1x128xf32>
    %84 = arith.mulf %33, %83 : vector<1x128xf32>
    %85 = arith.mulf %34, %83 : vector<1x128xf32>
    %86 = arith.mulf %35, %83 : vector<1x128xf32>
    %87 = arith.mulf %70, %83 : vector<1x128xf32>
    %88 = arith.mulf %75, %75 : vector<1x128xf32>
    %89 = arith.mulf %87, %87 : vector<1x128xf32>
    %90 = arith.addf %88, %89 : vector<1x128xf32>
    %cst_40 = arith.constant 1.000000e-24 : f32
    %91 = vector.broadcast %cst_40 : f32 to vector<1x128xf32>
    %92 = arith.maximumf %90, %91 : vector<1x128xf32>
    %93 = math.rsqrt %92 : vector<1x128xf32>
    %cst_41 = arith.constant 1.000000e-24 : f32
    %94 = vector.broadcast %cst_41 : f32 to vector<1x128xf32>
    %95 = arith.cmpf olt, %90, %94 : vector<1x128xf32>
    %96 = arith.mulf %75, %93 : vector<1x128xf32>
    %cst_42 = arith.constant 1.000000e+00 : f32
    %97 = vector.broadcast %cst_42 : f32 to vector<1x128xf32>
    %98 = arith.select %95, %97, %96 : vector<1x128xi1>, vector<1x128xf32>
    %99 = arith.mulf %87, %93 : vector<1x128xf32>
    %cst_43 = arith.constant 0.000000e+00 : f32
    %100 = vector.broadcast %cst_43 : f32 to vector<1x128xf32>
    %101 = arith.select %95, %100, %99 : vector<1x128xi1>, vector<1x128xf32>
    %102 = vector.extract_strided_slice %3 {offsets = [0, 0], sizes = [1, 128], strides = [1, 1]} : vector<13x128xf32> to vector<1x128xf32>
    %103 = vector.extract_strided_slice %4 {offsets = [0, 0], sizes = [1, 128], strides = [1, 1]} : vector<13x128xf32> to vector<1x128xf32>
    %104 = arith.mulf %102, %98 : vector<1x128xf32>
    %105 = arith.mulf %103, %101 : vector<1x128xf32>
    %106 = arith.subf %104, %105 : vector<1x128xf32>
    %107 = arith.mulf %103, %98 : vector<1x128xf32>
    %108 = arith.mulf %102, %101 : vector<1x128xf32>
    %109 = arith.addf %107, %108 : vector<1x128xf32>
    %cst_44 = arith.constant 1.000000e+00 : f32
    %110 = vector.broadcast %cst_44 : f32 to vector<1x128xf32>
    %111 = arith.subf %110, %106 : vector<1x128xf32>
    %112 = arith.mulf %111, %84 : vector<1x128xf32>
    %113 = arith.mulf %111, %85 : vector<1x128xf32>
    %114 = arith.mulf %111, %86 : vector<1x128xf32>
    %115 = arith.mulf %109, %84 : vector<1x128xf32>
    %116 = arith.mulf %109, %85 : vector<1x128xf32>
    %117 = arith.mulf %109, %86 : vector<1x128xf32>
    %118 = arith.mulf %112, %85 : vector<1x128xf32>
    %119 = arith.mulf %112, %86 : vector<1x128xf32>
    %120 = arith.mulf %113, %86 : vector<1x128xf32>
    %121 = arith.mulf %112, %84 : vector<1x128xf32>
    %122 = arith.addf %121, %106 : vector<1x128xf32>
    %123 = arith.subf %118, %117 : vector<1x128xf32>
    %124 = arith.addf %119, %116 : vector<1x128xf32>
    %125 = arith.addf %118, %117 : vector<1x128xf32>
    %126 = arith.mulf %113, %85 : vector<1x128xf32>
    %127 = arith.addf %126, %106 : vector<1x128xf32>
    %128 = arith.subf %120, %115 : vector<1x128xf32>
    %129 = arith.subf %119, %116 : vector<1x128xf32>
    %130 = arith.addf %120, %115 : vector<1x128xf32>
    %131 = arith.mulf %114, %86 : vector<1x128xf32>
    %132 = arith.addf %131, %106 : vector<1x128xf32>
    %c0_45 = arith.constant 0 : index
    %c0_46 = arith.constant 0 : index
    %c0_47 = arith.constant 0 : index
    %133 = vector.load %arg3[%c0_45, %c0_46, %c0_47] : memref<3x16x128xf32, #tpu.memory_space<vmem>>, vector<1x16x128xf32>
    %134 = vector.shape_cast %133 : vector<1x16x128xf32> to vector<16x128xf32>
    %c1_48 = arith.constant 1 : index
    %c0_49 = arith.constant 0 : index
    %c0_50 = arith.constant 0 : index
    %135 = vector.load %arg3[%c1_48, %c0_49, %c0_50] : memref<3x16x128xf32, #tpu.memory_space<vmem>>, vector<1x16x128xf32>
    %136 = vector.shape_cast %135 : vector<1x16x128xf32> to vector<16x128xf32>
    %c2_51 = arith.constant 2 : index
    %c0_52 = arith.constant 0 : index
    %c0_53 = arith.constant 0 : index
    %137 = vector.load %arg3[%c2_51, %c0_52, %c0_53] : memref<3x16x128xf32, #tpu.memory_space<vmem>>, vector<1x16x128xf32>
    %138 = vector.shape_cast %137 : vector<1x16x128xf32> to vector<16x128xf32>
    %139 = vector.broadcast %13 : vector<1x128xf32> to vector<16x128xf32>
    %140 = arith.subf %134, %139 : vector<16x128xf32>
    %141 = vector.broadcast %15 : vector<1x128xf32> to vector<16x128xf32>
    %142 = arith.subf %136, %141 : vector<16x128xf32>
    %143 = vector.broadcast %17 : vector<1x128xf32> to vector<16x128xf32>
    %144 = arith.subf %138, %143 : vector<16x128xf32>
    %145 = vector.broadcast %122 : vector<1x128xf32> to vector<16x128xf32>
    %146 = arith.mulf %145, %140 : vector<16x128xf32>
    %147 = vector.broadcast %123 : vector<1x128xf32> to vector<16x128xf32>
    %148 = arith.mulf %147, %142 : vector<16x128xf32>
    %149 = arith.addf %146, %148 : vector<16x128xf32>
    %150 = vector.broadcast %124 : vector<1x128xf32> to vector<16x128xf32>
    %151 = arith.mulf %150, %144 : vector<16x128xf32>
    %152 = arith.addf %149, %151 : vector<16x128xf32>
    %153 = vector.broadcast %13 : vector<1x128xf32> to vector<16x128xf32>
    %154 = arith.addf %152, %153 : vector<16x128xf32>
    %155 = vector.broadcast %125 : vector<1x128xf32> to vector<16x128xf32>
    %156 = arith.mulf %155, %140 : vector<16x128xf32>
    %157 = vector.broadcast %127 : vector<1x128xf32> to vector<16x128xf32>
    %158 = arith.mulf %157, %142 : vector<16x128xf32>
    %159 = arith.addf %156, %158 : vector<16x128xf32>
    %160 = vector.broadcast %128 : vector<1x128xf32> to vector<16x128xf32>
    %161 = arith.mulf %160, %144 : vector<16x128xf32>
    %162 = arith.addf %159, %161 : vector<16x128xf32>
    %163 = vector.broadcast %15 : vector<1x128xf32> to vector<16x128xf32>
    %164 = arith.addf %162, %163 : vector<16x128xf32>
    %165 = vector.broadcast %129 : vector<1x128xf32> to vector<16x128xf32>
    %166 = arith.mulf %165, %140 : vector<16x128xf32>
    %167 = vector.broadcast %130 : vector<1x128xf32> to vector<16x128xf32>
    %168 = arith.mulf %167, %142 : vector<16x128xf32>
    %169 = arith.addf %166, %168 : vector<16x128xf32>
    %170 = vector.broadcast %132 : vector<1x128xf32> to vector<16x128xf32>
    %171 = arith.mulf %170, %144 : vector<16x128xf32>
    %172 = arith.addf %169, %171 : vector<16x128xf32>
    %173 = vector.broadcast %17 : vector<1x128xf32> to vector<16x128xf32>
    %174 = arith.addf %172, %173 : vector<16x128xf32>
    %c3_i32 = arith.constant 3 : i32
    %175 = vector.broadcast %c3_i32 : i32 to vector<16x1xi32>
    %176 = arith.cmpi sge, %5, %175 : vector<16x1xi32>
    %177 = vector.shape_cast %176 : vector<16x1xi1> to vector<16x1xi1>
    %178 = vector.broadcast %177 : vector<16x1xi1> to vector<16x128xi1>
    %179 = arith.select %178, %154, %134 : vector<16x128xi1>, vector<16x128xf32>
    %180 = vector.shape_cast %176 : vector<16x1xi1> to vector<16x1xi1>
    %181 = vector.broadcast %180 : vector<16x1xi1> to vector<16x128xi1>
    %182 = arith.select %181, %164, %136 : vector<16x128xi1>, vector<16x128xf32>
    %183 = vector.shape_cast %176 : vector<16x1xi1> to vector<16x1xi1>
    %184 = vector.broadcast %183 : vector<16x1xi1> to vector<16x128xi1>
    %185 = arith.select %184, %174, %138 : vector<16x128xi1>, vector<16x128xf32>
    %c0_54 = arith.constant 0 : index
    %c0_55 = arith.constant 0 : index
    %c0_56 = arith.constant 0 : index
    %186 = vector.load %arg3[%c0_54, %c0_55, %c0_56] : memref<3x16x128xf32, #tpu.memory_space<vmem>>, vector<1x16x128xf32>
    %187 = vector.shape_cast %186 : vector<1x16x128xf32> to vector<16x128xf32>
    %188 = vector.shape_cast %179 : vector<16x128xf32> to vector<1x16x128xf32>
    tpu.vector_store %arg3[%c0_54, %c0_55, %c0_56], %188 {strides = array<i32>} : memref<3x16x128xf32, #tpu.memory_space<vmem>>, vector<1x16x128xf32>,
    %c1_57 = arith.constant 1 : index
    %c0_58 = arith.constant 0 : index
    %c0_59 = arith.constant 0 : index
    %189 = vector.load %arg3[%c1_57, %c0_58, %c0_59] : memref<3x16x128xf32, #tpu.memory_space<vmem>>, vector<1x16x128xf32>
    %190 = vector.shape_cast %189 : vector<1x16x128xf32> to vector<16x128xf32>
    %191 = vector.shape_cast %182 : vector<16x128xf32> to vector<1x16x128xf32>
    tpu.vector_store %arg3[%c1_57, %c0_58, %c0_59], %191 {strides = array<i32>} : memref<3x16x128xf32, #tpu.memory_space<vmem>>, vector<1x16x128xf32>,
    %c2_60 = arith.constant 2 : index
    %c0_61 = arith.constant 0 : index
    %c0_62 = arith.constant 0 : index
    %192 = vector.load %arg3[%c2_60, %c0_61, %c0_62] : memref<3x16x128xf32, #tpu.memory_space<vmem>>, vector<1x16x128xf32>
    %193 = vector.shape_cast %192 : vector<1x16x128xf32> to vector<16x128xf32>
    %194 = vector.shape_cast %185 : vector<16x128xf32> to vector<1x16x128xf32>
    tpu.vector_store %arg3[%c2_60, %c0_61, %c0_62], %194 {strides = array<i32>} : memref<3x16x128xf32, #tpu.memory_space<vmem>>, vector<1x16x128xf32>,
    %c0_63 = arith.constant 0 : index
    %c1_64 = arith.constant 1 : index
    %c0_65 = arith.constant 0 : index
    %195 = vector.load %arg3[%c0_63, %c1_64, %c0_65] : memref<3x16x128xf32, #tpu.memory_space<vmem>>, vector<1x1x128xf32>
    %196 = vector.shape_cast %195 : vector<1x1x128xf32> to vector<1x128xf32>
    %c1_66 = arith.constant 1 : index
    %c1_67 = arith.constant 1 : index
    %c0_68 = arith.constant 0 : index
    %197 = vector.load %arg3[%c1_66, %c1_67, %c0_68] : memref<3x16x128xf32, #tpu.memory_space<vmem>>, vector<1x1x128xf32>
    %198 = vector.shape_cast %197 : vector<1x1x128xf32> to vector<1x128xf32>
    %c2_69 = arith.constant 2 : index
    %c1_70 = arith.constant 1 : index
    %c0_71 = arith.constant 0 : index
    %199 = vector.load %arg3[%c2_69, %c1_70, %c0_71] : memref<3x16x128xf32, #tpu.memory_space<vmem>>, vector<1x1x128xf32>
    %200 = vector.shape_cast %199 : vector<1x1x128xf32> to vector<1x128xf32>
    %c0_72 = arith.constant 0 : index
    %c2_73 = arith.constant 2 : index
    %c0_74 = arith.constant 0 : index
    %201 = vector.load %arg3[%c0_72, %c2_73, %c0_74] : memref<3x16x128xf32, #tpu.memory_space<vmem>>, vector<1x1x128xf32>
    %202 = vector.shape_cast %201 : vector<1x1x128xf32> to vector<1x128xf32>
    %c1_75 = arith.constant 1 : index
    %c2_76 = arith.constant 2 : index
    %c0_77 = arith.constant 0 : index
    %203 = vector.load %arg3[%c1_75, %c2_76, %c0_77] : memref<3x16x128xf32, #tpu.memory_space<vmem>>, vector<1x1x128xf32>
    %204 = vector.shape_cast %203 : vector<1x1x128xf32> to vector<1x128xf32>
    %c2_78 = arith.constant 2 : index
    %c2_79 = arith.constant 2 : index
    %c0_80 = arith.constant 0 : index
    %205 = vector.load %arg3[%c2_78, %c2_79, %c0_80] : memref<3x16x128xf32, #tpu.memory_space<vmem>>, vector<1x1x128xf32>
    %206 = vector.shape_cast %205 : vector<1x1x128xf32> to vector<1x128xf32>
    %c0_81 = arith.constant 0 : index
    %c3_82 = arith.constant 3 : index
    %c0_83 = arith.constant 0 : index
    %207 = vector.load %arg3[%c0_81, %c3_82, %c0_83] : memref<3x16x128xf32, #tpu.memory_space<vmem>>, vector<1x1x128xf32>
    %208 = vector.shape_cast %207 : vector<1x1x128xf32> to vector<1x128xf32>
    %c1_84 = arith.constant 1 : index
    %c3_85 = arith.constant 3 : index
    %c0_86 = arith.constant 0 : index
    %209 = vector.load %arg3[%c1_84, %c3_85, %c0_86] : memref<3x16x128xf32, #tpu.memory_space<vmem>>, vector<1x1x128xf32>
    %210 = vector.shape_cast %209 : vector<1x1x128xf32> to vector<1x128xf32>
    %c2_87 = arith.constant 2 : index
    %c3_88 = arith.constant 3 : index
    %c0_89 = arith.constant 0 : index
    %211 = vector.load %arg3[%c2_87, %c3_88, %c0_89] : memref<3x16x128xf32, #tpu.memory_space<vmem>>, vector<1x1x128xf32>
    %212 = vector.shape_cast %211 : vector<1x1x128xf32> to vector<1x128xf32>
    %c0_90 = arith.constant 0 : index
    %c4 = arith.constant 4 : index
    %c0_91 = arith.constant 0 : index
    %213 = vector.load %arg3[%c0_90, %c4, %c0_91] : memref<3x16x128xf32, #tpu.memory_space<vmem>>, vector<1x1x128xf32>
    %214 = vector.shape_cast %213 : vector<1x1x128xf32> to vector<1x128xf32>
    %c1_92 = arith.constant 1 : index
    %c4_93 = arith.constant 4 : index
    %c0_94 = arith.constant 0 : index
    %215 = vector.load %arg3[%c1_92, %c4_93, %c0_94] : memref<3x16x128xf32, #tpu.memory_space<vmem>>, vector<1x1x128xf32>
    %216 = vector.shape_cast %215 : vector<1x1x128xf32> to vector<1x128xf32>
    %c2_95 = arith.constant 2 : index
    %c4_96 = arith.constant 4 : index
    %c0_97 = arith.constant 0 : index
    %217 = vector.load %arg3[%c2_95, %c4_96, %c0_97] : memref<3x16x128xf32, #tpu.memory_space<vmem>>, vector<1x1x128xf32>
    %218 = vector.shape_cast %217 : vector<1x1x128xf32> to vector<1x128xf32>
    %219 = arith.subf %202, %196 : vector<1x128xf32>
    %220 = arith.subf %204, %198 : vector<1x128xf32>
    %221 = arith.subf %206, %200 : vector<1x128xf32>
    %222 = arith.subf %208, %202 : vector<1x128xf32>
    %223 = arith.subf %210, %204 : vector<1x128xf32>
    %224 = arith.subf %212, %206 : vector<1x128xf32>
    %225 = arith.subf %214, %208 : vector<1x128xf32>
    %226 = arith.subf %216, %210 : vector<1x128xf32>
    %227 = arith.subf %218, %212 : vector<1x128xf32>
    %228 = arith.mulf %220, %224 : vector<1x128xf32>
    %229 = arith.mulf %221, %223 : vector<1x128xf32>
    %230 = arith.subf %228, %229 : vector<1x128xf32>
    %231 = arith.mulf %221, %222 : vector<1x128xf32>
    %232 = arith.mulf %219, %224 : vector<1x128xf32>
    %233 = arith.subf %231, %232 : vector<1x128xf32>
    %234 = arith.mulf %219, %223 : vector<1x128xf32>
    %235 = arith.mulf %220, %222 : vector<1x128xf32>
    %236 = arith.subf %234, %235 : vector<1x128xf32>
    %237 = arith.mulf %223, %227 : vector<1x128xf32>
    %238 = arith.mulf %224, %226 : vector<1x128xf32>
    %239 = arith.subf %237, %238 : vector<1x128xf32>
    %240 = arith.mulf %224, %225 : vector<1x128xf32>
    %241 = arith.mulf %222, %227 : vector<1x128xf32>
    %242 = arith.subf %240, %241 : vector<1x128xf32>
    %243 = arith.mulf %222, %226 : vector<1x128xf32>
    %244 = arith.mulf %223, %225 : vector<1x128xf32>
    %245 = arith.subf %243, %244 : vector<1x128xf32>
    %246 = arith.mulf %233, %224 : vector<1x128xf32>
    %247 = arith.mulf %236, %223 : vector<1x128xf32>
    %248 = arith.subf %246, %247 : vector<1x128xf32>
    %249 = arith.mulf %236, %222 : vector<1x128xf32>
    %250 = arith.mulf %230, %224 : vector<1x128xf32>
    %251 = arith.subf %249, %250 : vector<1x128xf32>
    %252 = arith.mulf %230, %223 : vector<1x128xf32>
    %253 = arith.mulf %233, %222 : vector<1x128xf32>
    %254 = arith.subf %252, %253 : vector<1x128xf32>
    %255 = arith.mulf %248, %239 : vector<1x128xf32>
    %256 = arith.mulf %251, %242 : vector<1x128xf32>
    %257 = arith.addf %255, %256 : vector<1x128xf32>
    %258 = arith.mulf %254, %245 : vector<1x128xf32>
    %259 = arith.addf %257, %258 : vector<1x128xf32>
    %260 = arith.mulf %230, %239 : vector<1x128xf32>
    %261 = arith.mulf %233, %242 : vector<1x128xf32>
    %262 = arith.addf %260, %261 : vector<1x128xf32>
    %263 = arith.mulf %236, %245 : vector<1x128xf32>
    %264 = arith.addf %262, %263 : vector<1x128xf32>
    %265 = arith.mulf %222, %222 : vector<1x128xf32>
    %266 = arith.mulf %223, %223 : vector<1x128xf32>
    %267 = arith.addf %265, %266 : vector<1x128xf32>
    %268 = arith.mulf %224, %224 : vector<1x128xf32>
    %269 = arith.addf %267, %268 : vector<1x128xf32>
    %cst_98 = arith.constant 1.000000e-24 : f32
    %270 = vector.broadcast %cst_98 : f32 to vector<1x128xf32>
    %271 = arith.maximumf %269, %270 : vector<1x128xf32>
    %272 = math.rsqrt %271 : vector<1x128xf32>
    %273 = arith.mulf %222, %272 : vector<1x128xf32>
    %274 = arith.mulf %223, %272 : vector<1x128xf32>
    %275 = arith.mulf %224, %272 : vector<1x128xf32>
    %276 = arith.mulf %259, %272 : vector<1x128xf32>
    %277 = arith.mulf %264, %264 : vector<1x128xf32>
    %278 = arith.mulf %276, %276 : vector<1x128xf32>
    %279 = arith.addf %277, %278 : vector<1x128xf32>
    %cst_99 = arith.constant 1.000000e-24 : f32
    %280 = vector.broadcast %cst_99 : f32 to vector<1x128xf32>
    %281 = arith.maximumf %279, %280 : vector<1x128xf32>
    %282 = math.rsqrt %281 : vector<1x128xf32>
    %cst_100 = arith.constant 1.000000e-24 : f32
    %283 = vector.broadcast %cst_100 : f32 to vector<1x128xf32>
    %284 = arith.cmpf olt, %279, %283 : vector<1x128xf32>
    %285 = arith.mulf %264, %282 : vector<1x128xf32>
    %cst_101 = arith.constant 1.000000e+00 : f32
    %286 = vector.broadcast %cst_101 : f32 to vector<1x128xf32>
    %287 = arith.select %284, %286, %285 : vector<1x128xi1>, vector<1x128xf32>
    %288 = arith.mulf %276, %282 : vector<1x128xf32>
    %cst_102 = arith.constant 0.000000e+00 : f32
    %289 = vector.broadcast %cst_102 : f32 to vector<1x128xf32>
    %290 = arith.select %284, %289, %288 : vector<1x128xi1>, vector<1x128xf32>
    %291 = vector.extract_strided_slice %3 {offsets = [1, 0], sizes = [1, 128], strides = [1, 1]} : vector<13x128xf32> to vector<1x128xf32>
    %292 = vector.extract_strided_slice %4 {offsets = [1, 0], sizes = [1, 128], strides = [1, 1]} : vector<13x128xf32> to vector<1x128xf32>
    %293 = arith.mulf %291, %287 : vector<1x128xf32>
    %294 = arith.mulf %292, %290 : vector<1x128xf32>
    %295 = arith.subf %293, %294 : vector<1x128xf32>
    %296 = arith.mulf %292, %287 : vector<1x128xf32>
    %297 = arith.mulf %291, %290 : vector<1x128xf32>
    %298 = arith.addf %296, %297 : vector<1x128xf32>
    %cst_103 = arith.constant 1.000000e+00 : f32
    %299 = vector.broadcast %cst_103 : f32 to vector<1x128xf32>
    %300 = arith.subf %299, %295 : vector<1x128xf32>
    %301 = arith.mulf %300, %273 : vector<1x128xf32>
    %302 = arith.mulf %300, %274 : vector<1x128xf32>
    %303 = arith.mulf %300, %275 : vector<1x128xf32>
    %304 = arith.mulf %298, %273 : vector<1x128xf32>
    %305 = arith.mulf %298, %274 : vector<1x128xf32>
    %306 = arith.mulf %298, %275 : vector<1x128xf32>
    %307 = arith.mulf %301, %274 : vector<1x128xf32>
    %308 = arith.mulf %301, %275 : vector<1x128xf32>
    %309 = arith.mulf %302, %275 : vector<1x128xf32>
    %310 = arith.mulf %301, %273 : vector<1x128xf32>
    %311 = arith.addf %310, %295 : vector<1x128xf32>
    %312 = arith.subf %307, %306 : vector<1x128xf32>
    %313 = arith.addf %308, %305 : vector<1x128xf32>
    %314 = arith.addf %307, %306 : vector<1x128xf32>
    %315 = arith.mulf %302, %274 : vector<1x128xf32>
    %316 = arith.addf %315, %295 : vector<1x128xf32>
    %317 = arith.subf %309, %304 : vector<1x128xf32>
    %318 = arith.subf %308, %305 : vector<1x128xf32>
    %319 = arith.addf %309, %304 : vector<1x128xf32>
    %320 = arith.mulf %303, %275 : vector<1x128xf32>
    %321 = arith.addf %320, %295 : vector<1x128xf32>
    %c0_104 = arith.constant 0 : index
    %c0_105 = arith.constant 0 : index
    %c0_106 = arith.constant 0 : index
    %322 = vector.load %arg3[%c0_104, %c0_105, %c0_106] : memref<3x16x128xf32, #tpu.memory_space<vmem>>, vector<1x16x128xf32>
    %323 = vector.shape_cast %322 : vector<1x16x128xf32> to vector<16x128xf32>
    %c1_107 = arith.constant 1 : index
    %c0_108 = arith.constant 0 : index
    %c0_109 = arith.constant 0 : index
    %324 = vector.load %arg3[%c1_107, %c0_108, %c0_109] : memref<3x16x128xf32, #tpu.memory_space<vmem>>, vector<1x16x128xf32>
    %325 = vector.shape_cast %324 : vector<1x16x128xf32> to vector<16x128xf32>
    %c2_110 = arith.constant 2 : index
    %c0_111 = arith.constant 0 : index
    %c0_112 = arith.constant 0 : index
    %326 = vector.load %arg3[%c2_110, %c0_111, %c0_112] : memref<3x16x128xf32, #tpu.memory_space<vmem>>, vector<1x16x128xf32>
    %327 = vector.shape_cast %326 : vector<1x16x128xf32> to vector<16x128xf32>
    %328 = vector.broadcast %202 : vector<1x128xf32> to vector<16x128xf32>
    %329 = arith.subf %323, %328 : vector<16x128xf32>
    %330 = vector.broadcast %204 : vector<1x128xf32> to vector<16x128xf32>
    %331 = arith.subf %325, %330 : vector<16x128xf32>
    %332 = vector.broadcast %206 : vector<1x128xf32> to vector<16x128xf32>
    %333 = arith.subf %327, %332 : vector<16x128xf32>
    %334 = vector.broadcast %311 : vector<1x128xf32> to vector<16x128xf32>
    %335 = arith.mulf %334, %329 : vector<16x128xf32>
    %336 = vector.broadcast %312 : vector<1x128xf32> to vector<16x128xf32>
    %337 = arith.mulf %336, %331 : vector<16x128xf32>
    %338 = arith.addf %335, %337 : vector<16x128xf32>
    %339 = vector.broadcast %313 : vector<1x128xf32> to vector<16x128xf32>
    %340 = arith.mulf %339, %333 : vector<16x128xf32>
    %341 = arith.addf %338, %340 : vector<16x128xf32>
    %342 = vector.broadcast %202 : vector<1x128xf32> to vector<16x128xf32>
    %343 = arith.addf %341, %342 : vector<16x128xf32>
    %344 = vector.broadcast %314 : vector<1x128xf32> to vector<16x128xf32>
    %345 = arith.mulf %344, %329 : vector<16x128xf32>
    %346 = vector.broadcast %316 : vector<1x128xf32> to vector<16x128xf32>
    %347 = arith.mulf %346, %331 : vector<16x128xf32>
    %348 = arith.addf %345, %347 : vector<16x128xf32>
    %349 = vector.broadcast %317 : vector<1x128xf32> to vector<16x128xf32>
    %350 = arith.mulf %349, %333 : vector<16x128xf32>
    %351 = arith.addf %348, %350 : vector<16x128xf32>
    %352 = vector.broadcast %204 : vector<1x128xf32> to vector<16x128xf32>
    %353 = arith.addf %351, %352 : vector<16x128xf32>
    %354 = vector.broadcast %318 : vector<1x128xf32> to vector<16x128xf32>
    %355 = arith.mulf %354, %329 : vector<16x128xf32>
    %356 = vector.broadcast %319 : vector<1x128xf32> to vector<16x128xf32>
    %357 = arith.mulf %356, %331 : vector<16x128xf32>
    %358 = arith.addf %355, %357 : vector<16x128xf32>
    %359 = vector.broadcast %321 : vector<1x128xf32> to vector<16x128xf32>
    %360 = arith.mulf %359, %333 : vector<16x128xf32>
    %361 = arith.addf %358, %360 : vector<16x128xf32>
    %362 = vector.broadcast %206 : vector<1x128xf32> to vector<16x128xf32>
    %363 = arith.addf %361, %362 : vector<16x128xf32>
    %c4_i32 = arith.constant 4 : i32
    %364 = vector.broadcast %c4_i32 : i32 to vector<16x1xi32>
    %365 = arith.cmpi sge, %5, %364 : vector<16x1xi32>
    %366 = vector.shape_cast %365 : vector<16x1xi1> to vector<16x1xi1>
    %367 = vector.broadcast %366 : vector<16x1xi1> to vector<16x128xi1>
    %368 = arith.select %367, %343, %323 : vector<16x128xi1>, vector<16x128xf32>
    %369 = vector.shape_cast %365 : vector<16x1xi1> to vector<16x1xi1>
    %370 = vector.broadcast %369 : vector<16x1xi1> to vector<16x128xi1>
    %371 = arith.select %370, %353, %325 : vector<16x128xi1>, vector<16x128xf32>
    %372 = vector.shape_cast %365 : vector<16x1xi1> to vector<16x1xi1>
    %373 = vector.broadcast %372 : vector<16x1xi1> to vector<16x128xi1>
    %374 = arith.select %373, %363, %327 : vector<16x128xi1>, vector<16x128xf32>
    %c0_113 = arith.constant 0 : index
    %c0_114 = arith.constant 0 : index
    %c0_115 = arith.constant 0 : index
    %375 = vector.load %arg3[%c0_113, %c0_114, %c0_115] : memref<3x16x128xf32, #tpu.memory_space<vmem>>, vector<1x16x128xf32>
    %376 = vector.shape_cast %375 : vector<1x16x128xf32> to vector<16x128xf32>
    %377 = vector.shape_cast %368 : vector<16x128xf32> to vector<1x16x128xf32>
    tpu.vector_store %arg3[%c0_113, %c0_114, %c0_115], %377 {strides = array<i32>} : memref<3x16x128xf32, #tpu.memory_space<vmem>>, vector<1x16x128xf32>,
    %c1_116 = arith.constant 1 : index
    %c0_117 = arith.constant 0 : index
    %c0_118 = arith.constant 0 : index
    %378 = vector.load %arg3[%c1_116, %c0_117, %c0_118] : memref<3x16x128xf32, #tpu.memory_space<vmem>>, vector<1x16x128xf32>
    %379 = vector.shape_cast %378 : vector<1x16x128xf32> to vector<16x128xf32>
    %380 = vector.shape_cast %371 : vector<16x128xf32> to vector<1x16x128xf32>
    tpu.vector_store %arg3[%c1_116, %c0_117, %c0_118], %380 {strides = array<i32>} : memref<3x16x128xf32, #tpu.memory_space<vmem>>, vector<1x16x128xf32>,
    %c2_119 = arith.constant 2 : index
    %c0_120 = arith.constant 0 : index
    %c0_121 = arith.constant 0 : index
    %381 = vector.load %arg3[%c2_119, %c0_120, %c0_121] : memref<3x16x128xf32, #tpu.memory_space<vmem>>, vector<1x16x128xf32>
    %382 = vector.shape_cast %381 : vector<1x16x128xf32> to vector<16x128xf32>
    %383 = vector.shape_cast %374 : vector<16x128xf32> to vector<1x16x128xf32>
    tpu.vector_store %arg3[%c2_119, %c0_120, %c0_121], %383 {strides = array<i32>} : memref<3x16x128xf32, #tpu.memory_space<vmem>>, vector<1x16x128xf32>,
    %c0_122 = arith.constant 0 : index
    %c2_123 = arith.constant 2 : index
    %c0_124 = arith.constant 0 : index
    %384 = vector.load %arg3[%c0_122, %c2_123, %c0_124] : memref<3x16x128xf32, #tpu.memory_space<vmem>>, vector<1x1x128xf32>
    %385 = vector.shape_cast %384 : vector<1x1x128xf32> to vector<1x128xf32>
    %c1_125 = arith.constant 1 : index
    %c2_126 = arith.constant 2 : index
    %c0_127 = arith.constant 0 : index
    %386 = vector.load %arg3[%c1_125, %c2_126, %c0_127] : memref<3x16x128xf32, #tpu.memory_space<vmem>>, vector<1x1x128xf32>
    %387 = vector.shape_cast %386 : vector<1x1x128xf32> to vector<1x128xf32>
    %c2_128 = arith.constant 2 : index
    %c2_129 = arith.constant 2 : index
    %c0_130 = arith.constant 0 : index
    %388 = vector.load %arg3[%c2_128, %c2_129, %c0_130] : memref<3x16x128xf32, #tpu.memory_space<vmem>>, vector<1x1x128xf32>
    %389 = vector.shape_cast %388 : vector<1x1x128xf32> to vector<1x128xf32>
    %c0_131 = arith.constant 0 : index
    %c3_132 = arith.constant 3 : index
    %c0_133 = arith.constant 0 : index
    %390 = vector.load %arg3[%c0_131, %c3_132, %c0_133] : memref<3x16x128xf32, #tpu.memory_space<vmem>>, vector<1x1x128xf32>
    %391 = vector.shape_cast %390 : vector<1x1x128xf32> to vector<1x128xf32>
    %c1_134 = arith.constant 1 : index
    %c3_135 = arith.constant 3 : index
    %c0_136 = arith.constant 0 : index
    %392 = vector.load %arg3[%c1_134, %c3_135, %c0_136] : memref<3x16x128xf32, #tpu.memory_space<vmem>>, vector<1x1x128xf32>
    %393 = vector.shape_cast %392 : vector<1x1x128xf32> to vector<1x128xf32>
    %c2_137 = arith.constant 2 : index
    %c3_138 = arith.constant 3 : index
    %c0_139 = arith.constant 0 : index
    %394 = vector.load %arg3[%c2_137, %c3_138, %c0_139] : memref<3x16x128xf32, #tpu.memory_space<vmem>>, vector<1x1x128xf32>
    %395 = vector.shape_cast %394 : vector<1x1x128xf32> to vector<1x128xf32>
    %c0_140 = arith.constant 0 : index
    %c4_141 = arith.constant 4 : index
    %c0_142 = arith.constant 0 : index
    %396 = vector.load %arg3[%c0_140, %c4_141, %c0_142] : memref<3x16x128xf32, #tpu.memory_space<vmem>>, vector<1x1x128xf32>
    %397 = vector.shape_cast %396 : vector<1x1x128xf32> to vector<1x128xf32>
    %c1_143 = arith.constant 1 : index
    %c4_144 = arith.constant 4 : index
    %c0_145 = arith.constant 0 : index
    %398 = vector.load %arg3[%c1_143, %c4_144, %c0_145] : memref<3x16x128xf32, #tpu.memory_space<vmem>>, vector<1x1x128xf32>
    %399 = vector.shape_cast %398 : vector<1x1x128xf32> to vector<1x128xf32>
    %c2_146 = arith.constant 2 : index
    %c4_147 = arith.constant 4 : index
    %c0_148 = arith.constant 0 : index
    %400 = vector.load %arg3[%c2_146, %c4_147, %c0_148] : memref<3x16x128xf32, #tpu.memory_space<vmem>>, vector<1x1x128xf32>
    %401 = vector.shape_cast %400 : vector<1x1x128xf32> to vector<1x128xf32>
    %c0_149 = arith.constant 0 : index
    %c5 = arith.constant 5 : index
    %c0_150 = arith.constant 0 : index
    %402 = vector.load %arg3[%c0_149, %c5, %c0_150] : memref<3x16x128xf32, #tpu.memory_space<vmem>>, vector<1x1x128xf32>
    %403 = vector.shape_cast %402 : vector<1x1x128xf32> to vector<1x128xf32>
    %c1_151 = arith.constant 1 : index
    %c5_152 = arith.constant 5 : index
    %c0_153 = arith.constant 0 : index
    %404 = vector.load %arg3[%c1_151, %c5_152, %c0_153] : memref<3x16x128xf32, #tpu.memory_space<vmem>>, vector<1x1x128xf32>
    %405 = vector.shape_cast %404 : vector<1x1x128xf32> to vector<1x128xf32>
    %c2_154 = arith.constant 2 : index
    %c5_155 = arith.constant 5 : index
    %c0_156 = arith.constant 0 : index
    %406 = vector.load %arg3[%c2_154, %c5_155, %c0_156] : memref<3x16x128xf32, #tpu.memory_space<vmem>>, vector<1x1x128xf32>
    %407 = vector.shape_cast %406 : vector<1x1x128xf32> to vector<1x128xf32>
    %408 = arith.subf %391, %385 : vector<1x128xf32>
    %409 = arith.subf %393, %387 : vector<1x128xf32>
    %410 = arith.subf %395, %389 : vector<1x128xf32>
    %411 = arith.subf %397, %391 : vector<1x128xf32>
    %412 = arith.subf %399, %393 : vector<1x128xf32>
    %413 = arith.subf %401, %395 : vector<1x128xf32>
    %414 = arith.subf %403, %397 : vector<1x128xf32>
    %415 = arith.subf %405, %399 : vector<1x128xf32>
    %416 = arith.subf %407, %401 : vector<1x128xf32>
    %417 = arith.mulf %409, %413 : vector<1x128xf32>
    %418 = arith.mulf %410, %412 : vector<1x128xf32>
    %419 = arith.subf %417, %418 : vector<1x128xf32>
    %420 = arith.mulf %410, %411 : vector<1x128xf32>
    %421 = arith.mulf %408, %413 : vector<1x128xf32>
    %422 = arith.subf %420, %421 : vector<1x128xf32>
    %423 = arith.mulf %408, %412 : vector<1x128xf32>
    %424 = arith.mulf %409, %411 : vector<1x128xf32>
    %425 = arith.subf %423, %424 : vector<1x128xf32>
    %426 = arith.mulf %412, %416 : vector<1x128xf32>
    %427 = arith.mulf %413, %415 : vector<1x128xf32>
    %428 = arith.subf %426, %427 : vector<1x128xf32>
    %429 = arith.mulf %413, %414 : vector<1x128xf32>
    %430 = arith.mulf %411, %416 : vector<1x128xf32>
    %431 = arith.subf %429, %430 : vector<1x128xf32>
    %432 = arith.mulf %411, %415 : vector<1x128xf32>
    %433 = arith.mulf %412, %414 : vector<1x128xf32>
    %434 = arith.subf %432, %433 : vector<1x128xf32>
    %435 = arith.mulf %422, %413 : vector<1x128xf32>
    %436 = arith.mulf %425, %412 : vector<1x128xf32>
    %437 = arith.subf %435, %436 : vector<1x128xf32>
    %438 = arith.mulf %425, %411 : vector<1x128xf32>
    %439 = arith.mulf %419, %413 : vector<1x128xf32>
    %440 = arith.subf %438, %439 : vector<1x128xf32>
    %441 = arith.mulf %419, %412 : vector<1x128xf32>
    %442 = arith.mulf %422, %411 : vector<1x128xf32>
    %443 = arith.subf %441, %442 : vector<1x128xf32>
    %444 = arith.mulf %437, %428 : vector<1x128xf32>
    %445 = arith.mulf %440, %431 : vector<1x128xf32>
    %446 = arith.addf %444, %445 : vector<1x128xf32>
    %447 = arith.mulf %443, %434 : vector<1x128xf32>
    %448 = arith.addf %446, %447 : vector<1x128xf32>
    %449 = arith.mulf %419, %428 : vector<1x128xf32>
    %450 = arith.mulf %422, %431 : vector<1x128xf32>
    %451 = arith.addf %449, %450 : vector<1x128xf32>
    %452 = arith.mulf %425, %434 : vector<1x128xf32>
    %453 = arith.addf %451, %452 : vector<1x128xf32>
    %454 = arith.mulf %411, %411 : vector<1x128xf32>
    %455 = arith.mulf %412, %412 : vector<1x128xf32>
    %456 = arith.addf %454, %455 : vector<1x128xf32>
    %457 = arith.mulf %413, %413 : vector<1x128xf32>
    %458 = arith.addf %456, %457 : vector<1x128xf32>
    %cst_157 = arith.constant 1.000000e-24 : f32
    %459 = vector.broadcast %cst_157 : f32 to vector<1x128xf32>
    %460 = arith.maximumf %458, %459 : vector<1x128xf32>
    %461 = math.rsqrt %460 : vector<1x128xf32>
    %462 = arith.mulf %411, %461 : vector<1x128xf32>
    %463 = arith.mulf %412, %461 : vector<1x128xf32>
    %464 = arith.mulf %413, %461 : vector<1x128xf32>
    %465 = arith.mulf %448, %461 : vector<1x128xf32>
    %466 = arith.mulf %453, %453 : vector<1x128xf32>
    %467 = arith.mulf %465, %465 : vector<1x128xf32>
    %468 = arith.addf %466, %467 : vector<1x128xf32>
    %cst_158 = arith.constant 1.000000e-24 : f32
    %469 = vector.broadcast %cst_158 : f32 to vector<1x128xf32>
    %470 = arith.maximumf %468, %469 : vector<1x128xf32>
    %471 = math.rsqrt %470 : vector<1x128xf32>
    %cst_159 = arith.constant 1.000000e-24 : f32
    %472 = vector.broadcast %cst_159 : f32 to vector<1x128xf32>
    %473 = arith.cmpf olt, %468, %472 : vector<1x128xf32>
    %474 = arith.mulf %453, %471 : vector<1x128xf32>
    %cst_160 = arith.constant 1.000000e+00 : f32
    %475 = vector.broadcast %cst_160 : f32 to vector<1x128xf32>
    %476 = arith.select %473, %475, %474 : vector<1x128xi1>, vector<1x128xf32>
    %477 = arith.mulf %465, %471 : vector<1x128xf32>
    %cst_161 = arith.constant 0.000000e+00 : f32
    %478 = vector.broadcast %cst_161 : f32 to vector<1x128xf32>
    %479 = arith.select %473, %478, %477 : vector<1x128xi1>, vector<1x128xf32>
    %480 = vector.extract_strided_slice %3 {offsets = [2, 0], sizes = [1, 128], strides = [1, 1]} : vector<13x128xf32> to vector<1x128xf32>
    %481 = vector.extract_strided_slice %4 {offsets = [2, 0], sizes = [1, 128], strides = [1, 1]} : vector<13x128xf32> to vector<1x128xf32>
    %482 = arith.mulf %480, %476 : vector<1x128xf32>
    %483 = arith.mulf %481, %479 : vector<1x128xf32>
    %484 = arith.subf %482, %483 : vector<1x128xf32>
    %485 = arith.mulf %481, %476 : vector<1x128xf32>
    %486 = arith.mulf %480, %479 : vector<1x128xf32>
    %487 = arith.addf %485, %486 : vector<1x128xf32>
    %cst_162 = arith.constant 1.000000e+00 : f32
    %488 = vector.broadcast %cst_162 : f32 to vector<1x128xf32>
    %489 = arith.subf %488, %484 : vector<1x128xf32>
    %490 = arith.mulf %489, %462 : vector<1x128xf32>
    %491 = arith.mulf %489, %463 : vector<1x128xf32>
    %492 = arith.mulf %489, %464 : vector<1x128xf32>
    %493 = arith.mulf %487, %462 : vector<1x128xf32>
    %494 = arith.mulf %487, %463 : vector<1x128xf32>
    %495 = arith.mulf %487, %464 : vector<1x128xf32>
    %496 = arith.mulf %490, %463 : vector<1x128xf32>
    %497 = arith.mulf %490, %464 : vector<1x128xf32>
    %498 = arith.mulf %491, %464 : vector<1x128xf32>
    %499 = arith.mulf %490, %462 : vector<1x128xf32>
    %500 = arith.addf %499, %484 : vector<1x128xf32>
    %501 = arith.subf %496, %495 : vector<1x128xf32>
    %502 = arith.addf %497, %494 : vector<1x128xf32>
    %503 = arith.addf %496, %495 : vector<1x128xf32>
    %504 = arith.mulf %491, %463 : vector<1x128xf32>
    %505 = arith.addf %504, %484 : vector<1x128xf32>
    %506 = arith.subf %498, %493 : vector<1x128xf32>
    %507 = arith.subf %497, %494 : vector<1x128xf32>
    %508 = arith.addf %498, %493 : vector<1x128xf32>
    %509 = arith.mulf %492, %464 : vector<1x128xf32>
    %510 = arith.addf %509, %484 : vector<1x128xf32>
    %c0_163 = arith.constant 0 : index
    %c0_164 = arith.constant 0 : index
    %c0_165 = arith.constant 0 : index
    %511 = vector.load %arg3[%c0_163, %c0_164, %c0_165] : memref<3x16x128xf32, #tpu.memory_space<vmem>>, vector<1x16x128xf32>
    %512 = vector.shape_cast %511 : vector<1x16x128xf32> to vector<16x128xf32>
    %c1_166 = arith.constant 1 : index
    %c0_167 = arith.constant 0 : index
    %c0_168 = arith.constant 0 : index
    %513 = vector.load %arg3[%c1_166, %c0_167, %c0_168] : memref<3x16x128xf32, #tpu.memory_space<vmem>>, vector<1x16x128xf32>
    %514 = vector.shape_cast %513 : vector<1x16x128xf32> to vector<16x128xf32>
    %c2_169 = arith.constant 2 : index
    %c0_170 = arith.constant 0 : index
    %c0_171 = arith.constant 0 : index
    %515 = vector.load %arg3[%c2_169, %c0_170, %c0_171] : memref<3x16x128xf32, #tpu.memory_space<vmem>>, vector<1x16x128xf32>
    %516 = vector.shape_cast %515 : vector<1x16x128xf32> to vector<16x128xf32>
    %517 = vector.broadcast %391 : vector<1x128xf32> to vector<16x128xf32>
    %518 = arith.subf %512, %517 : vector<16x128xf32>
    %519 = vector.broadcast %393 : vector<1x128xf32> to vector<16x128xf32>
    %520 = arith.subf %514, %519 : vector<16x128xf32>
    %521 = vector.broadcast %395 : vector<1x128xf32> to vector<16x128xf32>
    %522 = arith.subf %516, %521 : vector<16x128xf32>
    %523 = vector.broadcast %500 : vector<1x128xf32> to vector<16x128xf32>
    %524 = arith.mulf %523, %518 : vector<16x128xf32>
    %525 = vector.broadcast %501 : vector<1x128xf32> to vector<16x128xf32>
    %526 = arith.mulf %525, %520 : vector<16x128xf32>
    %527 = arith.addf %524, %526 : vector<16x128xf32>
    %528 = vector.broadcast %502 : vector<1x128xf32> to vector<16x128xf32>
    %529 = arith.mulf %528, %522 : vector<16x128xf32>
    %530 = arith.addf %527, %529 : vector<16x128xf32>
    %531 = vector.broadcast %391 : vector<1x128xf32> to vector<16x128xf32>
    %532 = arith.addf %530, %531 : vector<16x128xf32>
    %533 = vector.broadcast %503 : vector<1x128xf32> to vector<16x128xf32>
    %534 = arith.mulf %533, %518 : vector<16x128xf32>
    %535 = vector.broadcast %505 : vector<1x128xf32> to vector<16x128xf32>
    %536 = arith.mulf %535, %520 : vector<16x128xf32>
    %537 = arith.addf %534, %536 : vector<16x128xf32>
    %538 = vector.broadcast %506 : vector<1x128xf32> to vector<16x128xf32>
    %539 = arith.mulf %538, %522 : vector<16x128xf32>
    %540 = arith.addf %537, %539 : vector<16x128xf32>
    %541 = vector.broadcast %393 : vector<1x128xf32> to vector<16x128xf32>
    %542 = arith.addf %540, %541 : vector<16x128xf32>
    %543 = vector.broadcast %507 : vector<1x128xf32> to vector<16x128xf32>
    %544 = arith.mulf %543, %518 : vector<16x128xf32>
    %545 = vector.broadcast %508 : vector<1x128xf32> to vector<16x128xf32>
    %546 = arith.mulf %545, %520 : vector<16x128xf32>
    %547 = arith.addf %544, %546 : vector<16x128xf32>
    %548 = vector.broadcast %510 : vector<1x128xf32> to vector<16x128xf32>
    %549 = arith.mulf %548, %522 : vector<16x128xf32>
    %550 = arith.addf %547, %549 : vector<16x128xf32>
    %551 = vector.broadcast %395 : vector<1x128xf32> to vector<16x128xf32>
    %552 = arith.addf %550, %551 : vector<16x128xf32>
    %c5_i32 = arith.constant 5 : i32
    %553 = vector.broadcast %c5_i32 : i32 to vector<16x1xi32>
    %554 = arith.cmpi sge, %5, %553 : vector<16x1xi32>
    %555 = vector.shape_cast %554 : vector<16x1xi1> to vector<16x1xi1>
    %556 = vector.broadcast %555 : vector<16x1xi1> to vector<16x128xi1>
    %557 = arith.select %556, %532, %512 : vector<16x128xi1>, vector<16x128xf32>
    %558 = vector.shape_cast %554 : vector<16x1xi1> to vector<16x1xi1>
    %559 = vector.broadcast %558 : vector<16x1xi1> to vector<16x128xi1>
    %560 = arith.select %559, %542, %514 : vector<16x128xi1>, vector<16x128xf32>
    %561 = vector.shape_cast %554 : vector<16x1xi1> to vector<16x1xi1>
    %562 = vector.broadcast %561 : vector<16x1xi1> to vector<16x128xi1>
    %563 = arith.select %562, %552, %516 : vector<16x128xi1>, vector<16x128xf32>
    %c0_172 = arith.constant 0 : index
    %c0_173 = arith.constant 0 : index
    %c0_174 = arith.constant 0 : index
    %564 = vector.load %arg3[%c0_172, %c0_173, %c0_174] : memref<3x16x128xf32, #tpu.memory_space<vmem>>, vector<1x16x128xf32>
    %565 = vector.shape_cast %564 : vector<1x16x128xf32> to vector<16x128xf32>
    %566 = vector.shape_cast %557 : vector<16x128xf32> to vector<1x16x128xf32>
    tpu.vector_store %arg3[%c0_172, %c0_173, %c0_174], %566 {strides = array<i32>} : memref<3x16x128xf32, #tpu.memory_space<vmem>>, vector<1x16x128xf32>,
    %c1_175 = arith.constant 1 : index
    %c0_176 = arith.constant 0 : index
    %c0_177 = arith.constant 0 : index
    %567 = vector.load %arg3[%c1_175, %c0_176, %c0_177] : memref<3x16x128xf32, #tpu.memory_space<vmem>>, vector<1x16x128xf32>
    %568 = vector.shape_cast %567 : vector<1x16x128xf32> to vector<16x128xf32>
    %569 = vector.shape_cast %560 : vector<16x128xf32> to vector<1x16x128xf32>
    tpu.vector_store %arg3[%c1_175, %c0_176, %c0_177], %569 {strides = array<i32>} : memref<3x16x128xf32, #tpu.memory_space<vmem>>, vector<1x16x128xf32>,
    %c2_178 = arith.constant 2 : index
    %c0_179 = arith.constant 0 : index
    %c0_180 = arith.constant 0 : index
    %570 = vector.load %arg3[%c2_178, %c0_179, %c0_180] : memref<3x16x128xf32, #tpu.memory_space<vmem>>, vector<1x16x128xf32>
    %571 = vector.shape_cast %570 : vector<1x16x128xf32> to vector<16x128xf32>
    %572 = vector.shape_cast %563 : vector<16x128xf32> to vector<1x16x128xf32>
    tpu.vector_store %arg3[%c2_178, %c0_179, %c0_180], %572 {strides = array<i32>} : memref<3x16x128xf32, #tpu.memory_space<vmem>>, vector<1x16x128xf32>,
    %c0_181 = arith.constant 0 : index
    %c3_182 = arith.constant 3 : index
    %c0_183 = arith.constant 0 : index
    %573 = vector.load %arg3[%c0_181, %c3_182, %c0_183] : memref<3x16x128xf32, #tpu.memory_space<vmem>>, vector<1x1x128xf32>
    %574 = vector.shape_cast %573 : vector<1x1x128xf32> to vector<1x128xf32>
    %c1_184 = arith.constant 1 : index
    %c3_185 = arith.constant 3 : index
    %c0_186 = arith.constant 0 : index
    %575 = vector.load %arg3[%c1_184, %c3_185, %c0_186] : memref<3x16x128xf32, #tpu.memory_space<vmem>>, vector<1x1x128xf32>
    %576 = vector.shape_cast %575 : vector<1x1x128xf32> to vector<1x128xf32>
    %c2_187 = arith.constant 2 : index
    %c3_188 = arith.constant 3 : index
    %c0_189 = arith.constant 0 : index
    %577 = vector.load %arg3[%c2_187, %c3_188, %c0_189] : memref<3x16x128xf32, #tpu.memory_space<vmem>>, vector<1x1x128xf32>
    %578 = vector.shape_cast %577 : vector<1x1x128xf32> to vector<1x128xf32>
    %c0_190 = arith.constant 0 : index
    %c4_191 = arith.constant 4 : index
    %c0_192 = arith.constant 0 : index
    %579 = vector.load %arg3[%c0_190, %c4_191, %c0_192] : memref<3x16x128xf32, #tpu.memory_space<vmem>>, vector<1x1x128xf32>
    %580 = vector.shape_cast %579 : vector<1x1x128xf32> to vector<1x128xf32>
    %c1_193 = arith.constant 1 : index
    %c4_194 = arith.constant 4 : index
    %c0_195 = arith.constant 0 : index
    %581 = vector.load %arg3[%c1_193, %c4_194, %c0_195] : memref<3x16x128xf32, #tpu.memory_space<vmem>>, vector<1x1x128xf32>
    %582 = vector.shape_cast %581 : vector<1x1x128xf32> to vector<1x128xf32>
    %c2_196 = arith.constant 2 : index
    %c4_197 = arith.constant 4 : index
    %c0_198 = arith.constant 0 : index
    %583 = vector.load %arg3[%c2_196, %c4_197, %c0_198] : memref<3x16x128xf32, #tpu.memory_space<vmem>>, vector<1x1x128xf32>
    %584 = vector.shape_cast %583 : vector<1x1x128xf32> to vector<1x128xf32>
    %c0_199 = arith.constant 0 : index
    %c5_200 = arith.constant 5 : index
    %c0_201 = arith.constant 0 : index
    %585 = vector.load %arg3[%c0_199, %c5_200, %c0_201] : memref<3x16x128xf32, #tpu.memory_space<vmem>>, vector<1x1x128xf32>
    %586 = vector.shape_cast %585 : vector<1x1x128xf32> to vector<1x128xf32>
    %c1_202 = arith.constant 1 : index
    %c5_203 = arith.constant 5 : index
    %c0_204 = arith.constant 0 : index
    %587 = vector.load %arg3[%c1_202, %c5_203, %c0_204] : memref<3x16x128xf32, #tpu.memory_space<vmem>>, vector<1x1x128xf32>
    %588 = vector.shape_cast %587 : vector<1x1x128xf32> to vector<1x128xf32>
    %c2_205 = arith.constant 2 : index
    %c5_206 = arith.constant 5 : index
    %c0_207 = arith.constant 0 : index
    %589 = vector.load %arg3[%c2_205, %c5_206, %c0_207] : memref<3x16x128xf32, #tpu.memory_space<vmem>>, vector<1x1x128xf32>
    %590 = vector.shape_cast %589 : vector<1x1x128xf32> to vector<1x128xf32>
    %c0_208 = arith.constant 0 : index
    %c6 = arith.constant 6 : index
    %c0_209 = arith.constant 0 : index
    %591 = vector.load %arg3[%c0_208, %c6, %c0_209] : memref<3x16x128xf32, #tpu.memory_space<vmem>>, vector<1x1x128xf32>
    %592 = vector.shape_cast %591 : vector<1x1x128xf32> to vector<1x128xf32>
    %c1_210 = arith.constant 1 : index
    %c6_211 = arith.constant 6 : index
    %c0_212 = arith.constant 0 : index
    %593 = vector.load %arg3[%c1_210, %c6_211, %c0_212] : memref<3x16x128xf32, #tpu.memory_space<vmem>>, vector<1x1x128xf32>
    %594 = vector.shape_cast %593 : vector<1x1x128xf32> to vector<1x128xf32>
    %c2_213 = arith.constant 2 : index
    %c6_214 = arith.constant 6 : index
    %c0_215 = arith.constant 0 : index
    %595 = vector.load %arg3[%c2_213, %c6_214, %c0_215] : memref<3x16x128xf32, #tpu.memory_space<vmem>>, vector<1x1x128xf32>
    %596 = vector.shape_cast %595 : vector<1x1x128xf32> to vector<1x128xf32>
    %597 = arith.subf %580, %574 : vector<1x128xf32>
    %598 = arith.subf %582, %576 : vector<1x128xf32>
    %599 = arith.subf %584, %578 : vector<1x128xf32>
    %600 = arith.subf %586, %580 : vector<1x128xf32>
    %601 = arith.subf %588, %582 : vector<1x128xf32>
    %602 = arith.subf %590, %584 : vector<1x128xf32>
    %603 = arith.subf %592, %586 : vector<1x128xf32>
    %604 = arith.subf %594, %588 : vector<1x128xf32>
    %605 = arith.subf %596, %590 : vector<1x128xf32>
    %606 = arith.mulf %598, %602 : vector<1x128xf32>
    %607 = arith.mulf %599, %601 : vector<1x128xf32>
    %608 = arith.subf %606, %607 : vector<1x128xf32>
    %609 = arith.mulf %599, %600 : vector<1x128xf32>
    %610 = arith.mulf %597, %602 : vector<1x128xf32>
    %611 = arith.subf %609, %610 : vector<1x128xf32>
    %612 = arith.mulf %597, %601 : vector<1x128xf32>
    %613 = arith.mulf %598, %600 : vector<1x128xf32>
    %614 = arith.subf %612, %613 : vector<1x128xf32>
    %615 = arith.mulf %601, %605 : vector<1x128xf32>
    %616 = arith.mulf %602, %604 : vector<1x128xf32>
    %617 = arith.subf %615, %616 : vector<1x128xf32>
    %618 = arith.mulf %602, %603 : vector<1x128xf32>
    %619 = arith.mulf %600, %605 : vector<1x128xf32>
    %620 = arith.subf %618, %619 : vector<1x128xf32>
    %621 = arith.mulf %600, %604 : vector<1x128xf32>
    %622 = arith.mulf %601, %603 : vector<1x128xf32>
    %623 = arith.subf %621, %622 : vector<1x128xf32>
    %624 = arith.mulf %611, %602 : vector<1x128xf32>
    %625 = arith.mulf %614, %601 : vector<1x128xf32>
    %626 = arith.subf %624, %625 : vector<1x128xf32>
    %627 = arith.mulf %614, %600 : vector<1x128xf32>
    %628 = arith.mulf %608, %602 : vector<1x128xf32>
    %629 = arith.subf %627, %628 : vector<1x128xf32>
    %630 = arith.mulf %608, %601 : vector<1x128xf32>
    %631 = arith.mulf %611, %600 : vector<1x128xf32>
    %632 = arith.subf %630, %631 : vector<1x128xf32>
    %633 = arith.mulf %626, %617 : vector<1x128xf32>
    %634 = arith.mulf %629, %620 : vector<1x128xf32>
    %635 = arith.addf %633, %634 : vector<1x128xf32>
    %636 = arith.mulf %632, %623 : vector<1x128xf32>
    %637 = arith.addf %635, %636 : vector<1x128xf32>
    %638 = arith.mulf %608, %617 : vector<1x128xf32>
    %639 = arith.mulf %611, %620 : vector<1x128xf32>
    %640 = arith.addf %638, %639 : vector<1x128xf32>
    %641 = arith.mulf %614, %623 : vector<1x128xf32>
    %642 = arith.addf %640, %641 : vector<1x128xf32>
    %643 = arith.mulf %600, %600 : vector<1x128xf32>
    %644 = arith.mulf %601, %601 : vector<1x128xf32>
    %645 = arith.addf %643, %644 : vector<1x128xf32>
    %646 = arith.mulf %602, %602 : vector<1x128xf32>
    %647 = arith.addf %645, %646 : vector<1x128xf32>
    %cst_216 = arith.constant 1.000000e-24 : f32
    %648 = vector.broadcast %cst_216 : f32 to vector<1x128xf32>
    %649 = arith.maximumf %647, %648 : vector<1x128xf32>
    %650 = math.rsqrt %649 : vector<1x128xf32>
    %651 = arith.mulf %600, %650 : vector<1x128xf32>
    %652 = arith.mulf %601, %650 : vector<1x128xf32>
    %653 = arith.mulf %602, %650 : vector<1x128xf32>
    %654 = arith.mulf %637, %650 : vector<1x128xf32>
    %655 = arith.mulf %642, %642 : vector<1x128xf32>
    %656 = arith.mulf %654, %654 : vector<1x128xf32>
    %657 = arith.addf %655, %656 : vector<1x128xf32>
    %cst_217 = arith.constant 1.000000e-24 : f32
    %658 = vector.broadcast %cst_217 : f32 to vector<1x128xf32>
    %659 = arith.maximumf %657, %658 : vector<1x128xf32>
    %660 = math.rsqrt %659 : vector<1x128xf32>
    %cst_218 = arith.constant 1.000000e-24 : f32
    %661 = vector.broadcast %cst_218 : f32 to vector<1x128xf32>
    %662 = arith.cmpf olt, %657, %661 : vector<1x128xf32>
    %663 = arith.mulf %642, %660 : vector<1x128xf32>
    %cst_219 = arith.constant 1.000000e+00 : f32
    %664 = vector.broadcast %cst_219 : f32 to vector<1x128xf32>
    %665 = arith.select %662, %664, %663 : vector<1x128xi1>, vector<1x128xf32>
    %666 = arith.mulf %654, %660 : vector<1x128xf32>
    %cst_220 = arith.constant 0.000000e+00 : f32
    %667 = vector.broadcast %cst_220 : f32 to vector<1x128xf32>
    %668 = arith.select %662, %667, %666 : vector<1x128xi1>, vector<1x128xf32>
    %669 = vector.extract_strided_slice %3 {offsets = [3, 0], sizes = [1, 128], strides = [1, 1]} : vector<13x128xf32> to vector<1x128xf32>
    %670 = vector.extract_strided_slice %4 {offsets = [3, 0], sizes = [1, 128], strides = [1, 1]} : vector<13x128xf32> to vector<1x128xf32>
    %671 = arith.mulf %669, %665 : vector<1x128xf32>
    %672 = arith.mulf %670, %668 : vector<1x128xf32>
    %673 = arith.subf %671, %672 : vector<1x128xf32>
    %674 = arith.mulf %670, %665 : vector<1x128xf32>
    %675 = arith.mulf %669, %668 : vector<1x128xf32>
    %676 = arith.addf %674, %675 : vector<1x128xf32>
    %cst_221 = arith.constant 1.000000e+00 : f32
    %677 = vector.broadcast %cst_221 : f32 to vector<1x128xf32>
    %678 = arith.subf %677, %673 : vector<1x128xf32>
    %679 = arith.mulf %678, %651 : vector<1x128xf32>
    %680 = arith.mulf %678, %652 : vector<1x128xf32>
    %681 = arith.mulf %678, %653 : vector<1x128xf32>
    %682 = arith.mulf %676, %651 : vector<1x128xf32>
    %683 = arith.mulf %676, %652 : vector<1x128xf32>
    %684 = arith.mulf %676, %653 : vector<1x128xf32>
    %685 = arith.mulf %679, %652 : vector<1x128xf32>
    %686 = arith.mulf %679, %653 : vector<1x128xf32>
    %687 = arith.mulf %680, %653 : vector<1x128xf32>
    %688 = arith.mulf %679, %651 : vector<1x128xf32>
    %689 = arith.addf %688, %673 : vector<1x128xf32>
    %690 = arith.subf %685, %684 : vector<1x128xf32>
    %691 = arith.addf %686, %683 : vector<1x128xf32>
    %692 = arith.addf %685, %684 : vector<1x128xf32>
    %693 = arith.mulf %680, %652 : vector<1x128xf32>
    %694 = arith.addf %693, %673 : vector<1x128xf32>
    %695 = arith.subf %687, %682 : vector<1x128xf32>
    %696 = arith.subf %686, %683 : vector<1x128xf32>
    %697 = arith.addf %687, %682 : vector<1x128xf32>
    %698 = arith.mulf %681, %653 : vector<1x128xf32>
    %699 = arith.addf %698, %673 : vector<1x128xf32>
    %c0_222 = arith.constant 0 : index
    %c0_223 = arith.constant 0 : index
    %c0_224 = arith.constant 0 : index
    %700 = vector.load %arg3[%c0_222, %c0_223, %c0_224] : memref<3x16x128xf32, #tpu.memory_space<vmem>>, vector<1x16x128xf32>
    %701 = vector.shape_cast %700 : vector<1x16x128xf32> to vector<16x128xf32>
    %c1_225 = arith.constant 1 : index
    %c0_226 = arith.constant 0 : index
    %c0_227 = arith.constant 0 : index
    %702 = vector.load %arg3[%c1_225, %c0_226, %c0_227] : memref<3x16x128xf32, #tpu.memory_space<vmem>>, vector<1x16x128xf32>
    %703 = vector.shape_cast %702 : vector<1x16x128xf32> to vector<16x128xf32>
    %c2_228 = arith.constant 2 : index
    %c0_229 = arith.constant 0 : index
    %c0_230 = arith.constant 0 : index
    %704 = vector.load %arg3[%c2_228, %c0_229, %c0_230] : memref<3x16x128xf32, #tpu.memory_space<vmem>>, vector<1x16x128xf32>
    %705 = vector.shape_cast %704 : vector<1x16x128xf32> to vector<16x128xf32>
    %706 = vector.broadcast %580 : vector<1x128xf32> to vector<16x128xf32>
    %707 = arith.subf %701, %706 : vector<16x128xf32>
    %708 = vector.broadcast %582 : vector<1x128xf32> to vector<16x128xf32>
    %709 = arith.subf %703, %708 : vector<16x128xf32>
    %710 = vector.broadcast %584 : vector<1x128xf32> to vector<16x128xf32>
    %711 = arith.subf %705, %710 : vector<16x128xf32>
    %712 = vector.broadcast %689 : vector<1x128xf32> to vector<16x128xf32>
    %713 = arith.mulf %712, %707 : vector<16x128xf32>
    %714 = vector.broadcast %690 : vector<1x128xf32> to vector<16x128xf32>
    %715 = arith.mulf %714, %709 : vector<16x128xf32>
    %716 = arith.addf %713, %715 : vector<16x128xf32>
    %717 = vector.broadcast %691 : vector<1x128xf32> to vector<16x128xf32>
    %718 = arith.mulf %717, %711 : vector<16x128xf32>
    %719 = arith.addf %716, %718 : vector<16x128xf32>
    %720 = vector.broadcast %580 : vector<1x128xf32> to vector<16x128xf32>
    %721 = arith.addf %719, %720 : vector<16x128xf32>
    %722 = vector.broadcast %692 : vector<1x128xf32> to vector<16x128xf32>
    %723 = arith.mulf %722, %707 : vector<16x128xf32>
    %724 = vector.broadcast %694 : vector<1x128xf32> to vector<16x128xf32>
    %725 = arith.mulf %724, %709 : vector<16x128xf32>
    %726 = arith.addf %723, %725 : vector<16x128xf32>
    %727 = vector.broadcast %695 : vector<1x128xf32> to vector<16x128xf32>
    %728 = arith.mulf %727, %711 : vector<16x128xf32>
    %729 = arith.addf %726, %728 : vector<16x128xf32>
    %730 = vector.broadcast %582 : vector<1x128xf32> to vector<16x128xf32>
    %731 = arith.addf %729, %730 : vector<16x128xf32>
    %732 = vector.broadcast %696 : vector<1x128xf32> to vector<16x128xf32>
    %733 = arith.mulf %732, %707 : vector<16x128xf32>
    %734 = vector.broadcast %697 : vector<1x128xf32> to vector<16x128xf32>
    %735 = arith.mulf %734, %709 : vector<16x128xf32>
    %736 = arith.addf %733, %735 : vector<16x128xf32>
    %737 = vector.broadcast %699 : vector<1x128xf32> to vector<16x128xf32>
    %738 = arith.mulf %737, %711 : vector<16x128xf32>
    %739 = arith.addf %736, %738 : vector<16x128xf32>
    %740 = vector.broadcast %584 : vector<1x128xf32> to vector<16x128xf32>
    %741 = arith.addf %739, %740 : vector<16x128xf32>
    %c6_i32 = arith.constant 6 : i32
    %742 = vector.broadcast %c6_i32 : i32 to vector<16x1xi32>
    %743 = arith.cmpi sge, %5, %742 : vector<16x1xi32>
    %744 = vector.shape_cast %743 : vector<16x1xi1> to vector<16x1xi1>
    %745 = vector.broadcast %744 : vector<16x1xi1> to vector<16x128xi1>
    %746 = arith.select %745, %721, %701 : vector<16x128xi1>, vector<16x128xf32>
    %747 = vector.shape_cast %743 : vector<16x1xi1> to vector<16x1xi1>
    %748 = vector.broadcast %747 : vector<16x1xi1> to vector<16x128xi1>
    %749 = arith.select %748, %731, %703 : vector<16x128xi1>, vector<16x128xf32>
    %750 = vector.shape_cast %743 : vector<16x1xi1> to vector<16x1xi1>
    %751 = vector.broadcast %750 : vector<16x1xi1> to vector<16x128xi1>
    %752 = arith.select %751, %741, %705 : vector<16x128xi1>, vector<16x128xf32>
    %c0_231 = arith.constant 0 : index
    %c0_232 = arith.constant 0 : index
    %c0_233 = arith.constant 0 : index
    %753 = vector.load %arg3[%c0_231, %c0_232, %c0_233] : memref<3x16x128xf32, #tpu.memory_space<vmem>>, vector<1x16x128xf32>
    %754 = vector.shape_cast %753 : vector<1x16x128xf32> to vector<16x128xf32>
    %755 = vector.shape_cast %746 : vector<16x128xf32> to vector<1x16x128xf32>
    tpu.vector_store %arg3[%c0_231, %c0_232, %c0_233], %755 {strides = array<i32>} : memref<3x16x128xf32, #tpu.memory_space<vmem>>, vector<1x16x128xf32>,
    %c1_234 = arith.constant 1 : index
    %c0_235 = arith.constant 0 : index
    %c0_236 = arith.constant 0 : index
    %756 = vector.load %arg3[%c1_234, %c0_235, %c0_236] : memref<3x16x128xf32, #tpu.memory_space<vmem>>, vector<1x16x128xf32>
    %757 = vector.shape_cast %756 : vector<1x16x128xf32> to vector<16x128xf32>
    %758 = vector.shape_cast %749 : vector<16x128xf32> to vector<1x16x128xf32>
    tpu.vector_store %arg3[%c1_234, %c0_235, %c0_236], %758 {strides = array<i32>} : memref<3x16x128xf32, #tpu.memory_space<vmem>>, vector<1x16x128xf32>,
    %c2_237 = arith.constant 2 : index
    %c0_238 = arith.constant 0 : index
    %c0_239 = arith.constant 0 : index
    %759 = vector.load %arg3[%c2_237, %c0_238, %c0_239] : memref<3x16x128xf32, #tpu.memory_space<vmem>>, vector<1x16x128xf32>
    %760 = vector.shape_cast %759 : vector<1x16x128xf32> to vector<16x128xf32>
    %761 = vector.shape_cast %752 : vector<16x128xf32> to vector<1x16x128xf32>
    tpu.vector_store %arg3[%c2_237, %c0_238, %c0_239], %761 {strides = array<i32>} : memref<3x16x128xf32, #tpu.memory_space<vmem>>, vector<1x16x128xf32>,
    %c0_240 = arith.constant 0 : index
    %c4_241 = arith.constant 4 : index
    %c0_242 = arith.constant 0 : index
    %762 = vector.load %arg3[%c0_240, %c4_241, %c0_242] : memref<3x16x128xf32, #tpu.memory_space<vmem>>, vector<1x1x128xf32>
    %763 = vector.shape_cast %762 : vector<1x1x128xf32> to vector<1x128xf32>
    %c1_243 = arith.constant 1 : index
    %c4_244 = arith.constant 4 : index
    %c0_245 = arith.constant 0 : index
    %764 = vector.load %arg3[%c1_243, %c4_244, %c0_245] : memref<3x16x128xf32, #tpu.memory_space<vmem>>, vector<1x1x128xf32>
    %765 = vector.shape_cast %764 : vector<1x1x128xf32> to vector<1x128xf32>
    %c2_246 = arith.constant 2 : index
    %c4_247 = arith.constant 4 : index
    %c0_248 = arith.constant 0 : index
    %766 = vector.load %arg3[%c2_246, %c4_247, %c0_248] : memref<3x16x128xf32, #tpu.memory_space<vmem>>, vector<1x1x128xf32>
    %767 = vector.shape_cast %766 : vector<1x1x128xf32> to vector<1x128xf32>
    %c0_249 = arith.constant 0 : index
    %c5_250 = arith.constant 5 : index
    %c0_251 = arith.constant 0 : index
    %768 = vector.load %arg3[%c0_249, %c5_250, %c0_251] : memref<3x16x128xf32, #tpu.memory_space<vmem>>, vector<1x1x128xf32>
    %769 = vector.shape_cast %768 : vector<1x1x128xf32> to vector<1x128xf32>
    %c1_252 = arith.constant 1 : index
    %c5_253 = arith.constant 5 : index
    %c0_254 = arith.constant 0 : index
    %770 = vector.load %arg3[%c1_252, %c5_253, %c0_254] : memref<3x16x128xf32, #tpu.memory_space<vmem>>, vector<1x1x128xf32>
    %771 = vector.shape_cast %770 : vector<1x1x128xf32> to vector<1x128xf32>
    %c2_255 = arith.constant 2 : index
    %c5_256 = arith.constant 5 : index
    %c0_257 = arith.constant 0 : index
    %772 = vector.load %arg3[%c2_255, %c5_256, %c0_257] : memref<3x16x128xf32, #tpu.memory_space<vmem>>, vector<1x1x128xf32>
    %773 = vector.shape_cast %772 : vector<1x1x128xf32> to vector<1x128xf32>
    %c0_258 = arith.constant 0 : index
    %c6_259 = arith.constant 6 : index
    %c0_260 = arith.constant 0 : index
    %774 = vector.load %arg3[%c0_258, %c6_259, %c0_260] : memref<3x16x128xf32, #tpu.memory_space<vmem>>, vector<1x1x128xf32>
    %775 = vector.shape_cast %774 : vector<1x1x128xf32> to vector<1x128xf32>
    %c1_261 = arith.constant 1 : index
    %c6_262 = arith.constant 6 : index
    %c0_263 = arith.constant 0 : index
    %776 = vector.load %arg3[%c1_261, %c6_262, %c0_263] : memref<3x16x128xf32, #tpu.memory_space<vmem>>, vector<1x1x128xf32>
    %777 = vector.shape_cast %776 : vector<1x1x128xf32> to vector<1x128xf32>
    %c2_264 = arith.constant 2 : index
    %c6_265 = arith.constant 6 : index
    %c0_266 = arith.constant 0 : index
    %778 = vector.load %arg3[%c2_264, %c6_265, %c0_266] : memref<3x16x128xf32, #tpu.memory_space<vmem>>, vector<1x1x128xf32>
    %779 = vector.shape_cast %778 : vector<1x1x128xf32> to vector<1x128xf32>
    %c0_267 = arith.constant 0 : index
    %c7 = arith.constant 7 : index
    %c0_268 = arith.constant 0 : index
    %780 = vector.load %arg3[%c0_267, %c7, %c0_268] : memref<3x16x128xf32, #tpu.memory_space<vmem>>, vector<1x1x128xf32>
    %781 = vector.shape_cast %780 : vector<1x1x128xf32> to vector<1x128xf32>
    %c1_269 = arith.constant 1 : index
    %c7_270 = arith.constant 7 : index
    %c0_271 = arith.constant 0 : index
    %782 = vector.load %arg3[%c1_269, %c7_270, %c0_271] : memref<3x16x128xf32, #tpu.memory_space<vmem>>, vector<1x1x128xf32>
    %783 = vector.shape_cast %782 : vector<1x1x128xf32> to vector<1x128xf32>
    %c2_272 = arith.constant 2 : index
    %c7_273 = arith.constant 7 : index
    %c0_274 = arith.constant 0 : index
    %784 = vector.load %arg3[%c2_272, %c7_273, %c0_274] : memref<3x16x128xf32, #tpu.memory_space<vmem>>, vector<1x1x128xf32>
    %785 = vector.shape_cast %784 : vector<1x1x128xf32> to vector<1x128xf32>
    %786 = arith.subf %769, %763 : vector<1x128xf32>
    %787 = arith.subf %771, %765 : vector<1x128xf32>
    %788 = arith.subf %773, %767 : vector<1x128xf32>
    %789 = arith.subf %775, %769 : vector<1x128xf32>
    %790 = arith.subf %777, %771 : vector<1x128xf32>
    %791 = arith.subf %779, %773 : vector<1x128xf32>
    %792 = arith.subf %781, %775 : vector<1x128xf32>
    %793 = arith.subf %783, %777 : vector<1x128xf32>
    %794 = arith.subf %785, %779 : vector<1x128xf32>
    %795 = arith.mulf %787, %791 : vector<1x128xf32>
    %796 = arith.mulf %788, %790 : vector<1x128xf32>
    %797 = arith.subf %795, %796 : vector<1x128xf32>
    %798 = arith.mulf %788, %789 : vector<1x128xf32>
    %799 = arith.mulf %786, %791 : vector<1x128xf32>
    %800 = arith.subf %798, %799 : vector<1x128xf32>
    %801 = arith.mulf %786, %790 : vector<1x128xf32>
    %802 = arith.mulf %787, %789 : vector<1x128xf32>
    %803 = arith.subf %801, %802 : vector<1x128xf32>
    %804 = arith.mulf %790, %794 : vector<1x128xf32>
    %805 = arith.mulf %791, %793 : vector<1x128xf32>
    %806 = arith.subf %804, %805 : vector<1x128xf32>
    %807 = arith.mulf %791, %792 : vector<1x128xf32>
    %808 = arith.mulf %789, %794 : vector<1x128xf32>
    %809 = arith.subf %807, %808 : vector<1x128xf32>
    %810 = arith.mulf %789, %793 : vector<1x128xf32>
    %811 = arith.mulf %790, %792 : vector<1x128xf32>
    %812 = arith.subf %810, %811 : vector<1x128xf32>
    %813 = arith.mulf %800, %791 : vector<1x128xf32>
    %814 = arith.mulf %803, %790 : vector<1x128xf32>
    %815 = arith.subf %813, %814 : vector<1x128xf32>
    %816 = arith.mulf %803, %789 : vector<1x128xf32>
    %817 = arith.mulf %797, %791 : vector<1x128xf32>
    %818 = arith.subf %816, %817 : vector<1x128xf32>
    %819 = arith.mulf %797, %790 : vector<1x128xf32>
    %820 = arith.mulf %800, %789 : vector<1x128xf32>
    %821 = arith.subf %819, %820 : vector<1x128xf32>
    %822 = arith.mulf %815, %806 : vector<1x128xf32>
    %823 = arith.mulf %818, %809 : vector<1x128xf32>
    %824 = arith.addf %822, %823 : vector<1x128xf32>
    %825 = arith.mulf %821, %812 : vector<1x128xf32>
    %826 = arith.addf %824, %825 : vector<1x128xf32>
    %827 = arith.mulf %797, %806 : vector<1x128xf32>
    %828 = arith.mulf %800, %809 : vector<1x128xf32>
    %829 = arith.addf %827, %828 : vector<1x128xf32>
    %830 = arith.mulf %803, %812 : vector<1x128xf32>
    %831 = arith.addf %829, %830 : vector<1x128xf32>
    %832 = arith.mulf %789, %789 : vector<1x128xf32>
    %833 = arith.mulf %790, %790 : vector<1x128xf32>
    %834 = arith.addf %832, %833 : vector<1x128xf32>
    %835 = arith.mulf %791, %791 : vector<1x128xf32>
    %836 = arith.addf %834, %835 : vector<1x128xf32>
    %cst_275 = arith.constant 1.000000e-24 : f32
    %837 = vector.broadcast %cst_275 : f32 to vector<1x128xf32>
    %838 = arith.maximumf %836, %837 : vector<1x128xf32>
    %839 = math.rsqrt %838 : vector<1x128xf32>
    %840 = arith.mulf %789, %839 : vector<1x128xf32>
    %841 = arith.mulf %790, %839 : vector<1x128xf32>
    %842 = arith.mulf %791, %839 : vector<1x128xf32>
    %843 = arith.mulf %826, %839 : vector<1x128xf32>
    %844 = arith.mulf %831, %831 : vector<1x128xf32>
    %845 = arith.mulf %843, %843 : vector<1x128xf32>
    %846 = arith.addf %844, %845 : vector<1x128xf32>
    %cst_276 = arith.constant 1.000000e-24 : f32
    %847 = vector.broadcast %cst_276 : f32 to vector<1x128xf32>
    %848 = arith.maximumf %846, %847 : vector<1x128xf32>
    %849 = math.rsqrt %848 : vector<1x128xf32>
    %cst_277 = arith.constant 1.000000e-24 : f32
    %850 = vector.broadcast %cst_277 : f32 to vector<1x128xf32>
    %851 = arith.cmpf olt, %846, %850 : vector<1x128xf32>
    %852 = arith.mulf %831, %849 : vector<1x128xf32>
    %cst_278 = arith.constant 1.000000e+00 : f32
    %853 = vector.broadcast %cst_278 : f32 to vector<1x128xf32>
    %854 = arith.select %851, %853, %852 : vector<1x128xi1>, vector<1x128xf32>
    %855 = arith.mulf %843, %849 : vector<1x128xf32>
    %cst_279 = arith.constant 0.000000e+00 : f32
    %856 = vector.broadcast %cst_279 : f32 to vector<1x128xf32>
    %857 = arith.select %851, %856, %855 : vector<1x128xi1>, vector<1x128xf32>
    %858 = vector.extract_strided_slice %3 {offsets = [4, 0], sizes = [1, 128], strides = [1, 1]} : vector<13x128xf32> to vector<1x128xf32>
    %859 = vector.extract_strided_slice %4 {offsets = [4, 0], sizes = [1, 128], strides = [1, 1]} : vector<13x128xf32> to vector<1x128xf32>
    %860 = arith.mulf %858, %854 : vector<1x128xf32>
    %861 = arith.mulf %859, %857 : vector<1x128xf32>
    %862 = arith.subf %860, %861 : vector<1x128xf32>
    %863 = arith.mulf %859, %854 : vector<1x128xf32>
    %864 = arith.mulf %858, %857 : vector<1x128xf32>
    %865 = arith.addf %863, %864 : vector<1x128xf32>
    %cst_280 = arith.constant 1.000000e+00 : f32
    %866 = vector.broadcast %cst_280 : f32 to vector<1x128xf32>
    %867 = arith.subf %866, %862 : vector<1x128xf32>
    %868 = arith.mulf %867, %840 : vector<1x128xf32>
    %869 = arith.mulf %867, %841 : vector<1x128xf32>
    %870 = arith.mulf %867, %842 : vector<1x128xf32>
    %871 = arith.mulf %865, %840 : vector<1x128xf32>
    %872 = arith.mulf %865, %841 : vector<1x128xf32>
    %873 = arith.mulf %865, %842 : vector<1x128xf32>
    %874 = arith.mulf %868, %841 : vector<1x128xf32>
    %875 = arith.mulf %868, %842 : vector<1x128xf32>
    %876 = arith.mulf %869, %842 : vector<1x128xf32>
    %877 = arith.mulf %868, %840 : vector<1x128xf32>
    %878 = arith.addf %877, %862 : vector<1x128xf32>
    %879 = arith.subf %874, %873 : vector<1x128xf32>
    %880 = arith.addf %875, %872 : vector<1x128xf32>
    %881 = arith.addf %874, %873 : vector<1x128xf32>
    %882 = arith.mulf %869, %841 : vector<1x128xf32>
    %883 = arith.addf %882, %862 : vector<1x128xf32>
    %884 = arith.subf %876, %871 : vector<1x128xf32>
    %885 = arith.subf %875, %872 : vector<1x128xf32>
    %886 = arith.addf %876, %871 : vector<1x128xf32>
    %887 = arith.mulf %870, %842 : vector<1x128xf32>
    %888 = arith.addf %887, %862 : vector<1x128xf32>
    %c0_281 = arith.constant 0 : index
    %c0_282 = arith.constant 0 : index
    %c0_283 = arith.constant 0 : index
    %889 = vector.load %arg3[%c0_281, %c0_282, %c0_283] : memref<3x16x128xf32, #tpu.memory_space<vmem>>, vector<1x16x128xf32>
    %890 = vector.shape_cast %889 : vector<1x16x128xf32> to vector<16x128xf32>
    %c1_284 = arith.constant 1 : index
    %c0_285 = arith.constant 0 : index
    %c0_286 = arith.constant 0 : index
    %891 = vector.load %arg3[%c1_284, %c0_285, %c0_286] : memref<3x16x128xf32, #tpu.memory_space<vmem>>, vector<1x16x128xf32>
    %892 = vector.shape_cast %891 : vector<1x16x128xf32> to vector<16x128xf32>
    %c2_287 = arith.constant 2 : index
    %c0_288 = arith.constant 0 : index
    %c0_289 = arith.constant 0 : index
    %893 = vector.load %arg3[%c2_287, %c0_288, %c0_289] : memref<3x16x128xf32, #tpu.memory_space<vmem>>, vector<1x16x128xf32>
    %894 = vector.shape_cast %893 : vector<1x16x128xf32> to vector<16x128xf32>
    %895 = vector.broadcast %769 : vector<1x128xf32> to vector<16x128xf32>
    %896 = arith.subf %890, %895 : vector<16x128xf32>
    %897 = vector.broadcast %771 : vector<1x128xf32> to vector<16x128xf32>
    %898 = arith.subf %892, %897 : vector<16x128xf32>
    %899 = vector.broadcast %773 : vector<1x128xf32> to vector<16x128xf32>
    %900 = arith.subf %894, %899 : vector<16x128xf32>
    %901 = vector.broadcast %878 : vector<1x128xf32> to vector<16x128xf32>
    %902 = arith.mulf %901, %896 : vector<16x128xf32>
    %903 = vector.broadcast %879 : vector<1x128xf32> to vector<16x128xf32>
    %904 = arith.mulf %903, %898 : vector<16x128xf32>
    %905 = arith.addf %902, %904 : vector<16x128xf32>
    %906 = vector.broadcast %880 : vector<1x128xf32> to vector<16x128xf32>
    %907 = arith.mulf %906, %900 : vector<16x128xf32>
    %908 = arith.addf %905, %907 : vector<16x128xf32>
    %909 = vector.broadcast %769 : vector<1x128xf32> to vector<16x128xf32>
    %910 = arith.addf %908, %909 : vector<16x128xf32>
    %911 = vector.broadcast %881 : vector<1x128xf32> to vector<16x128xf32>
    %912 = arith.mulf %911, %896 : vector<16x128xf32>
    %913 = vector.broadcast %883 : vector<1x128xf32> to vector<16x128xf32>
    %914 = arith.mulf %913, %898 : vector<16x128xf32>
    %915 = arith.addf %912, %914 : vector<16x128xf32>
    %916 = vector.broadcast %884 : vector<1x128xf32> to vector<16x128xf32>
    %917 = arith.mulf %916, %900 : vector<16x128xf32>
    %918 = arith.addf %915, %917 : vector<16x128xf32>
    %919 = vector.broadcast %771 : vector<1x128xf32> to vector<16x128xf32>
    %920 = arith.addf %918, %919 : vector<16x128xf32>
    %921 = vector.broadcast %885 : vector<1x128xf32> to vector<16x128xf32>
    %922 = arith.mulf %921, %896 : vector<16x128xf32>
    %923 = vector.broadcast %886 : vector<1x128xf32> to vector<16x128xf32>
    %924 = arith.mulf %923, %898 : vector<16x128xf32>
    %925 = arith.addf %922, %924 : vector<16x128xf32>
    %926 = vector.broadcast %888 : vector<1x128xf32> to vector<16x128xf32>
    %927 = arith.mulf %926, %900 : vector<16x128xf32>
    %928 = arith.addf %925, %927 : vector<16x128xf32>
    %929 = vector.broadcast %773 : vector<1x128xf32> to vector<16x128xf32>
    %930 = arith.addf %928, %929 : vector<16x128xf32>
    %c7_i32 = arith.constant 7 : i32
    %931 = vector.broadcast %c7_i32 : i32 to vector<16x1xi32>
    %932 = arith.cmpi sge, %5, %931 : vector<16x1xi32>
    %933 = vector.shape_cast %932 : vector<16x1xi1> to vector<16x1xi1>
    %934 = vector.broadcast %933 : vector<16x1xi1> to vector<16x128xi1>
    %935 = arith.select %934, %910, %890 : vector<16x128xi1>, vector<16x128xf32>
    %936 = vector.shape_cast %932 : vector<16x1xi1> to vector<16x1xi1>
    %937 = vector.broadcast %936 : vector<16x1xi1> to vector<16x128xi1>
    %938 = arith.select %937, %920, %892 : vector<16x128xi1>, vector<16x128xf32>
    %939 = vector.shape_cast %932 : vector<16x1xi1> to vector<16x1xi1>
    %940 = vector.broadcast %939 : vector<16x1xi1> to vector<16x128xi1>
    %941 = arith.select %940, %930, %894 : vector<16x128xi1>, vector<16x128xf32>
    %c0_290 = arith.constant 0 : index
    %c0_291 = arith.constant 0 : index
    %c0_292 = arith.constant 0 : index
    %942 = vector.load %arg3[%c0_290, %c0_291, %c0_292] : memref<3x16x128xf32, #tpu.memory_space<vmem>>, vector<1x16x128xf32>
    %943 = vector.shape_cast %942 : vector<1x16x128xf32> to vector<16x128xf32>
    %944 = vector.shape_cast %935 : vector<16x128xf32> to vector<1x16x128xf32>
    tpu.vector_store %arg3[%c0_290, %c0_291, %c0_292], %944 {strides = array<i32>} : memref<3x16x128xf32, #tpu.memory_space<vmem>>, vector<1x16x128xf32>,
    %c1_293 = arith.constant 1 : index
    %c0_294 = arith.constant 0 : index
    %c0_295 = arith.constant 0 : index
    %945 = vector.load %arg3[%c1_293, %c0_294, %c0_295] : memref<3x16x128xf32, #tpu.memory_space<vmem>>, vector<1x16x128xf32>
    %946 = vector.shape_cast %945 : vector<1x16x128xf32> to vector<16x128xf32>
    %947 = vector.shape_cast %938 : vector<16x128xf32> to vector<1x16x128xf32>
    tpu.vector_store %arg3[%c1_293, %c0_294, %c0_295], %947 {strides = array<i32>} : memref<3x16x128xf32, #tpu.memory_space<vmem>>, vector<1x16x128xf32>,
    %c2_296 = arith.constant 2 : index
    %c0_297 = arith.constant 0 : index
    %c0_298 = arith.constant 0 : index
    %948 = vector.load %arg3[%c2_296, %c0_297, %c0_298] : memref<3x16x128xf32, #tpu.memory_space<vmem>>, vector<1x16x128xf32>
    %949 = vector.shape_cast %948 : vector<1x16x128xf32> to vector<16x128xf32>
    %950 = vector.shape_cast %941 : vector<16x128xf32> to vector<1x16x128xf32>
    tpu.vector_store %arg3[%c2_296, %c0_297, %c0_298], %950 {strides = array<i32>} : memref<3x16x128xf32, #tpu.memory_space<vmem>>, vector<1x16x128xf32>,
    %c0_299 = arith.constant 0 : index
    %c5_300 = arith.constant 5 : index
    %c0_301 = arith.constant 0 : index
    %951 = vector.load %arg3[%c0_299, %c5_300, %c0_301] : memref<3x16x128xf32, #tpu.memory_space<vmem>>, vector<1x1x128xf32>
    %952 = vector.shape_cast %951 : vector<1x1x128xf32> to vector<1x128xf32>
    %c1_302 = arith.constant 1 : index
    %c5_303 = arith.constant 5 : index
    %c0_304 = arith.constant 0 : index
    %953 = vector.load %arg3[%c1_302, %c5_303, %c0_304] : memref<3x16x128xf32, #tpu.memory_space<vmem>>, vector<1x1x128xf32>
    %954 = vector.shape_cast %953 : vector<1x1x128xf32> to vector<1x128xf32>
    %c2_305 = arith.constant 2 : index
    %c5_306 = arith.constant 5 : index
    %c0_307 = arith.constant 0 : index
    %955 = vector.load %arg3[%c2_305, %c5_306, %c0_307] : memref<3x16x128xf32, #tpu.memory_space<vmem>>, vector<1x1x128xf32>
    %956 = vector.shape_cast %955 : vector<1x1x128xf32> to vector<1x128xf32>
    %c0_308 = arith.constant 0 : index
    %c6_309 = arith.constant 6 : index
    %c0_310 = arith.constant 0 : index
    %957 = vector.load %arg3[%c0_308, %c6_309, %c0_310] : memref<3x16x128xf32, #tpu.memory_space<vmem>>, vector<1x1x128xf32>
    %958 = vector.shape_cast %957 : vector<1x1x128xf32> to vector<1x128xf32>
    %c1_311 = arith.constant 1 : index
    %c6_312 = arith.constant 6 : index
    %c0_313 = arith.constant 0 : index
    %959 = vector.load %arg3[%c1_311, %c6_312, %c0_313] : memref<3x16x128xf32, #tpu.memory_space<vmem>>, vector<1x1x128xf32>
    %960 = vector.shape_cast %959 : vector<1x1x128xf32> to vector<1x128xf32>
    %c2_314 = arith.constant 2 : index
    %c6_315 = arith.constant 6 : index
    %c0_316 = arith.constant 0 : index
    %961 = vector.load %arg3[%c2_314, %c6_315, %c0_316] : memref<3x16x128xf32, #tpu.memory_space<vmem>>, vector<1x1x128xf32>
    %962 = vector.shape_cast %961 : vector<1x1x128xf32> to vector<1x128xf32>
    %c0_317 = arith.constant 0 : index
    %c7_318 = arith.constant 7 : index
    %c0_319 = arith.constant 0 : index
    %963 = vector.load %arg3[%c0_317, %c7_318, %c0_319] : memref<3x16x128xf32, #tpu.memory_space<vmem>>, vector<1x1x128xf32>
    %964 = vector.shape_cast %963 : vector<1x1x128xf32> to vector<1x128xf32>
    %c1_320 = arith.constant 1 : index
    %c7_321 = arith.constant 7 : index
    %c0_322 = arith.constant 0 : index
    %965 = vector.load %arg3[%c1_320, %c7_321, %c0_322] : memref<3x16x128xf32, #tpu.memory_space<vmem>>, vector<1x1x128xf32>
    %966 = vector.shape_cast %965 : vector<1x1x128xf32> to vector<1x128xf32>
    %c2_323 = arith.constant 2 : index
    %c7_324 = arith.constant 7 : index
    %c0_325 = arith.constant 0 : index
    %967 = vector.load %arg3[%c2_323, %c7_324, %c0_325] : memref<3x16x128xf32, #tpu.memory_space<vmem>>, vector<1x1x128xf32>
    %968 = vector.shape_cast %967 : vector<1x1x128xf32> to vector<1x128xf32>
    %c0_326 = arith.constant 0 : index
    %c8 = arith.constant 8 : index
    %c0_327 = arith.constant 0 : index
    %969 = vector.load %arg3[%c0_326, %c8, %c0_327] : memref<3x16x128xf32, #tpu.memory_space<vmem>>, vector<1x1x128xf32>
    %970 = vector.shape_cast %969 : vector<1x1x128xf32> to vector<1x128xf32>
    %c1_328 = arith.constant 1 : index
    %c8_329 = arith.constant 8 : index
    %c0_330 = arith.constant 0 : index
    %971 = vector.load %arg3[%c1_328, %c8_329, %c0_330] : memref<3x16x128xf32, #tpu.memory_space<vmem>>, vector<1x1x128xf32>
    %972 = vector.shape_cast %971 : vector<1x1x128xf32> to vector<1x128xf32>
    %c2_331 = arith.constant 2 : index
    %c8_332 = arith.constant 8 : index
    %c0_333 = arith.constant 0 : index
    %973 = vector.load %arg3[%c2_331, %c8_332, %c0_333] : memref<3x16x128xf32, #tpu.memory_space<vmem>>, vector<1x1x128xf32>
    %974 = vector.shape_cast %973 : vector<1x1x128xf32> to vector<1x128xf32>
    %975 = arith.subf %958, %952 : vector<1x128xf32>
    %976 = arith.subf %960, %954 : vector<1x128xf32>
    %977 = arith.subf %962, %956 : vector<1x128xf32>
    %978 = arith.subf %964, %958 : vector<1x128xf32>
    %979 = arith.subf %966, %960 : vector<1x128xf32>
    %980 = arith.subf %968, %962 : vector<1x128xf32>
    %981 = arith.subf %970, %964 : vector<1x128xf32>
    %982 = arith.subf %972, %966 : vector<1x128xf32>
    %983 = arith.subf %974, %968 : vector<1x128xf32>
    %984 = arith.mulf %976, %980 : vector<1x128xf32>
    %985 = arith.mulf %977, %979 : vector<1x128xf32>
    %986 = arith.subf %984, %985 : vector<1x128xf32>
    %987 = arith.mulf %977, %978 : vector<1x128xf32>
    %988 = arith.mulf %975, %980 : vector<1x128xf32>
    %989 = arith.subf %987, %988 : vector<1x128xf32>
    %990 = arith.mulf %975, %979 : vector<1x128xf32>
    %991 = arith.mulf %976, %978 : vector<1x128xf32>
    %992 = arith.subf %990, %991 : vector<1x128xf32>
    %993 = arith.mulf %979, %983 : vector<1x128xf32>
    %994 = arith.mulf %980, %982 : vector<1x128xf32>
    %995 = arith.subf %993, %994 : vector<1x128xf32>
    %996 = arith.mulf %980, %981 : vector<1x128xf32>
    %997 = arith.mulf %978, %983 : vector<1x128xf32>
    %998 = arith.subf %996, %997 : vector<1x128xf32>
    %999 = arith.mulf %978, %982 : vector<1x128xf32>
    %1000 = arith.mulf %979, %981 : vector<1x128xf32>
    %1001 = arith.subf %999, %1000 : vector<1x128xf32>
    %1002 = arith.mulf %989, %980 : vector<1x128xf32>
    %1003 = arith.mulf %992, %979 : vector<1x128xf32>
    %1004 = arith.subf %1002, %1003 : vector<1x128xf32>
    %1005 = arith.mulf %992, %978 : vector<1x128xf32>
    %1006 = arith.mulf %986, %980 : vector<1x128xf32>
    %1007 = arith.subf %1005, %1006 : vector<1x128xf32>
    %1008 = arith.mulf %986, %979 : vector<1x128xf32>
    %1009 = arith.mulf %989, %978 : vector<1x128xf32>
    %1010 = arith.subf %1008, %1009 : vector<1x128xf32>
    %1011 = arith.mulf %1004, %995 : vector<1x128xf32>
    %1012 = arith.mulf %1007, %998 : vector<1x128xf32>
    %1013 = arith.addf %1011, %1012 : vector<1x128xf32>
    %1014 = arith.mulf %1010, %1001 : vector<1x128xf32>
    %1015 = arith.addf %1013, %1014 : vector<1x128xf32>
    %1016 = arith.mulf %986, %995 : vector<1x128xf32>
    %1017 = arith.mulf %989, %998 : vector<1x128xf32>
    %1018 = arith.addf %1016, %1017 : vector<1x128xf32>
    %1019 = arith.mulf %992, %1001 : vector<1x128xf32>
    %1020 = arith.addf %1018, %1019 : vector<1x128xf32>
    %1021 = arith.mulf %978, %978 : vector<1x128xf32>
    %1022 = arith.mulf %979, %979 : vector<1x128xf32>
    %1023 = arith.addf %1021, %1022 : vector<1x128xf32>
    %1024 = arith.mulf %980, %980 : vector<1x128xf32>
    %1025 = arith.addf %1023, %1024 : vector<1x128xf32>
    %cst_334 = arith.constant 1.000000e-24 : f32
    %1026 = vector.broadcast %cst_334 : f32 to vector<1x128xf32>
    %1027 = arith.maximumf %1025, %1026 : vector<1x128xf32>
    %1028 = math.rsqrt %1027 : vector<1x128xf32>
    %1029 = arith.mulf %978, %1028 : vector<1x128xf32>
    %1030 = arith.mulf %979, %1028 : vector<1x128xf32>
    %1031 = arith.mulf %980, %1028 : vector<1x128xf32>
    %1032 = arith.mulf %1015, %1028 : vector<1x128xf32>
    %1033 = arith.mulf %1020, %1020 : vector<1x128xf32>
    %1034 = arith.mulf %1032, %1032 : vector<1x128xf32>
    %1035 = arith.addf %1033, %1034 : vector<1x128xf32>
    %cst_335 = arith.constant 1.000000e-24 : f32
    %1036 = vector.broadcast %cst_335 : f32 to vector<1x128xf32>
    %1037 = arith.maximumf %1035, %1036 : vector<1x128xf32>
    %1038 = math.rsqrt %1037 : vector<1x128xf32>
    %cst_336 = arith.constant 1.000000e-24 : f32
    %1039 = vector.broadcast %cst_336 : f32 to vector<1x128xf32>
    %1040 = arith.cmpf olt, %1035, %1039 : vector<1x128xf32>
    %1041 = arith.mulf %1020, %1038 : vector<1x128xf32>
    %cst_337 = arith.constant 1.000000e+00 : f32
    %1042 = vector.broadcast %cst_337 : f32 to vector<1x128xf32>
    %1043 = arith.select %1040, %1042, %1041 : vector<1x128xi1>, vector<1x128xf32>
    %1044 = arith.mulf %1032, %1038 : vector<1x128xf32>
    %cst_338 = arith.constant 0.000000e+00 : f32
    %1045 = vector.broadcast %cst_338 : f32 to vector<1x128xf32>
    %1046 = arith.select %1040, %1045, %1044 : vector<1x128xi1>, vector<1x128xf32>
    %1047 = vector.extract_strided_slice %3 {offsets = [5, 0], sizes = [1, 128], strides = [1, 1]} : vector<13x128xf32> to vector<1x128xf32>
    %1048 = vector.extract_strided_slice %4 {offsets = [5, 0], sizes = [1, 128], strides = [1, 1]} : vector<13x128xf32> to vector<1x128xf32>
    %1049 = arith.mulf %1047, %1043 : vector<1x128xf32>
    %1050 = arith.mulf %1048, %1046 : vector<1x128xf32>
    %1051 = arith.subf %1049, %1050 : vector<1x128xf32>
    %1052 = arith.mulf %1048, %1043 : vector<1x128xf32>
    %1053 = arith.mulf %1047, %1046 : vector<1x128xf32>
    %1054 = arith.addf %1052, %1053 : vector<1x128xf32>
    %cst_339 = arith.constant 1.000000e+00 : f32
    %1055 = vector.broadcast %cst_339 : f32 to vector<1x128xf32>
    %1056 = arith.subf %1055, %1051 : vector<1x128xf32>
    %1057 = arith.mulf %1056, %1029 : vector<1x128xf32>
    %1058 = arith.mulf %1056, %1030 : vector<1x128xf32>
    %1059 = arith.mulf %1056, %1031 : vector<1x128xf32>
    %1060 = arith.mulf %1054, %1029 : vector<1x128xf32>
    %1061 = arith.mulf %1054, %1030 : vector<1x128xf32>
    %1062 = arith.mulf %1054, %1031 : vector<1x128xf32>
    %1063 = arith.mulf %1057, %1030 : vector<1x128xf32>
    %1064 = arith.mulf %1057, %1031 : vector<1x128xf32>
    %1065 = arith.mulf %1058, %1031 : vector<1x128xf32>
    %1066 = arith.mulf %1057, %1029 : vector<1x128xf32>
    %1067 = arith.addf %1066, %1051 : vector<1x128xf32>
    %1068 = arith.subf %1063, %1062 : vector<1x128xf32>
    %1069 = arith.addf %1064, %1061 : vector<1x128xf32>
    %1070 = arith.addf %1063, %1062 : vector<1x128xf32>
    %1071 = arith.mulf %1058, %1030 : vector<1x128xf32>
    %1072 = arith.addf %1071, %1051 : vector<1x128xf32>
    %1073 = arith.subf %1065, %1060 : vector<1x128xf32>
    %1074 = arith.subf %1064, %1061 : vector<1x128xf32>
    %1075 = arith.addf %1065, %1060 : vector<1x128xf32>
    %1076 = arith.mulf %1059, %1031 : vector<1x128xf32>
    %1077 = arith.addf %1076, %1051 : vector<1x128xf32>
    %c0_340 = arith.constant 0 : index
    %c8_341 = arith.constant 8 : index
    %c0_342 = arith.constant 0 : index
    %1078 = vector.load %arg3[%c0_340, %c8_341, %c0_342] : memref<3x16x128xf32, #tpu.memory_space<vmem>>, vector<1x8x128xf32>
    %1079 = vector.shape_cast %1078 : vector<1x8x128xf32> to vector<8x128xf32>
    %c1_343 = arith.constant 1 : index
    %c8_344 = arith.constant 8 : index
    %c0_345 = arith.constant 0 : index
    %1080 = vector.load %arg3[%c1_343, %c8_344, %c0_345] : memref<3x16x128xf32, #tpu.memory_space<vmem>>, vector<1x8x128xf32>
    %1081 = vector.shape_cast %1080 : vector<1x8x128xf32> to vector<8x128xf32>
    %c2_346 = arith.constant 2 : index
    %c8_347 = arith.constant 8 : index
    %c0_348 = arith.constant 0 : index
    %1082 = vector.load %arg3[%c2_346, %c8_347, %c0_348] : memref<3x16x128xf32, #tpu.memory_space<vmem>>, vector<1x8x128xf32>
    %1083 = vector.shape_cast %1082 : vector<1x8x128xf32> to vector<8x128xf32>
    %1084 = vector.broadcast %958 : vector<1x128xf32> to vector<8x128xf32>
    %1085 = arith.subf %1079, %1084 : vector<8x128xf32>
    %1086 = vector.broadcast %960 : vector<1x128xf32> to vector<8x128xf32>
    %1087 = arith.subf %1081, %1086 : vector<8x128xf32>
    %1088 = vector.broadcast %962 : vector<1x128xf32> to vector<8x128xf32>
    %1089 = arith.subf %1083, %1088 : vector<8x128xf32>
    %1090 = vector.broadcast %1067 : vector<1x128xf32> to vector<8x128xf32>
    %1091 = arith.mulf %1090, %1085 : vector<8x128xf32>
    %1092 = vector.broadcast %1068 : vector<1x128xf32> to vector<8x128xf32>
    %1093 = arith.mulf %1092, %1087 : vector<8x128xf32>
    %1094 = arith.addf %1091, %1093 : vector<8x128xf32>
    %1095 = vector.broadcast %1069 : vector<1x128xf32> to vector<8x128xf32>
    %1096 = arith.mulf %1095, %1089 : vector<8x128xf32>
    %1097 = arith.addf %1094, %1096 : vector<8x128xf32>
    %1098 = vector.broadcast %958 : vector<1x128xf32> to vector<8x128xf32>
    %1099 = arith.addf %1097, %1098 : vector<8x128xf32>
    %1100 = vector.broadcast %1070 : vector<1x128xf32> to vector<8x128xf32>
    %1101 = arith.mulf %1100, %1085 : vector<8x128xf32>
    %1102 = vector.broadcast %1072 : vector<1x128xf32> to vector<8x128xf32>
    %1103 = arith.mulf %1102, %1087 : vector<8x128xf32>
    %1104 = arith.addf %1101, %1103 : vector<8x128xf32>
    %1105 = vector.broadcast %1073 : vector<1x128xf32> to vector<8x128xf32>
    %1106 = arith.mulf %1105, %1089 : vector<8x128xf32>
    %1107 = arith.addf %1104, %1106 : vector<8x128xf32>
    %1108 = vector.broadcast %960 : vector<1x128xf32> to vector<8x128xf32>
    %1109 = arith.addf %1107, %1108 : vector<8x128xf32>
    %1110 = vector.broadcast %1074 : vector<1x128xf32> to vector<8x128xf32>
    %1111 = arith.mulf %1110, %1085 : vector<8x128xf32>
    %1112 = vector.broadcast %1075 : vector<1x128xf32> to vector<8x128xf32>
    %1113 = arith.mulf %1112, %1087 : vector<8x128xf32>
    %1114 = arith.addf %1111, %1113 : vector<8x128xf32>
    %1115 = vector.broadcast %1077 : vector<1x128xf32> to vector<8x128xf32>
    %1116 = arith.mulf %1115, %1089 : vector<8x128xf32>
    %1117 = arith.addf %1114, %1116 : vector<8x128xf32>
    %1118 = vector.broadcast %962 : vector<1x128xf32> to vector<8x128xf32>
    %1119 = arith.addf %1117, %1118 : vector<8x128xf32>
    %c0_349 = arith.constant 0 : index
    %c8_350 = arith.constant 8 : index
    %c0_351 = arith.constant 0 : index
    %1120 = vector.load %arg3[%c0_349, %c8_350, %c0_351] : memref<3x16x128xf32, #tpu.memory_space<vmem>>, vector<1x8x128xf32>
    %1121 = vector.shape_cast %1120 : vector<1x8x128xf32> to vector<8x128xf32>
    %1122 = vector.shape_cast %1099 : vector<8x128xf32> to vector<1x8x128xf32>
    tpu.vector_store %arg3[%c0_349, %c8_350, %c0_351], %1122 {strides = array<i32>} : memref<3x16x128xf32, #tpu.memory_space<vmem>>, vector<1x8x128xf32>,
    %c1_352 = arith.constant 1 : index
    %c8_353 = arith.constant 8 : index
    %c0_354 = arith.constant 0 : index
    %1123 = vector.load %arg3[%c1_352, %c8_353, %c0_354] : memref<3x16x128xf32, #tpu.memory_space<vmem>>, vector<1x8x128xf32>
    %1124 = vector.shape_cast %1123 : vector<1x8x128xf32> to vector<8x128xf32>
    %1125 = vector.shape_cast %1109 : vector<8x128xf32> to vector<1x8x128xf32>
    tpu.vector_store %arg3[%c1_352, %c8_353, %c0_354], %1125 {strides = array<i32>} : memref<3x16x128xf32, #tpu.memory_space<vmem>>, vector<1x8x128xf32>,
    %c2_355 = arith.constant 2 : index
    %c8_356 = arith.constant 8 : index
    %c0_357 = arith.constant 0 : index
    %1126 = vector.load %arg3[%c2_355, %c8_356, %c0_357] : memref<3x16x128xf32, #tpu.memory_space<vmem>>, vector<1x8x128xf32>
    %1127 = vector.shape_cast %1126 : vector<1x8x128xf32> to vector<8x128xf32>
    %1128 = vector.shape_cast %1119 : vector<8x128xf32> to vector<1x8x128xf32>
    tpu.vector_store %arg3[%c2_355, %c8_356, %c0_357], %1128 {strides = array<i32>} : memref<3x16x128xf32, #tpu.memory_space<vmem>>, vector<1x8x128xf32>,
    %c0_358 = arith.constant 0 : index
    %c6_359 = arith.constant 6 : index
    %c0_360 = arith.constant 0 : index
    %1129 = vector.load %arg3[%c0_358, %c6_359, %c0_360] : memref<3x16x128xf32, #tpu.memory_space<vmem>>, vector<1x1x128xf32>
    %1130 = vector.shape_cast %1129 : vector<1x1x128xf32> to vector<1x128xf32>
    %c1_361 = arith.constant 1 : index
    %c6_362 = arith.constant 6 : index
    %c0_363 = arith.constant 0 : index
    %1131 = vector.load %arg3[%c1_361, %c6_362, %c0_363] : memref<3x16x128xf32, #tpu.memory_space<vmem>>, vector<1x1x128xf32>
    %1132 = vector.shape_cast %1131 : vector<1x1x128xf32> to vector<1x128xf32>
    %c2_364 = arith.constant 2 : index
    %c6_365 = arith.constant 6 : index
    %c0_366 = arith.constant 0 : index
    %1133 = vector.load %arg3[%c2_364, %c6_365, %c0_366] : memref<3x16x128xf32, #tpu.memory_space<vmem>>, vector<1x1x128xf32>
    %1134 = vector.shape_cast %1133 : vector<1x1x128xf32> to vector<1x128xf32>
    %c0_367 = arith.constant 0 : index
    %c7_368 = arith.constant 7 : index
    %c0_369 = arith.constant 0 : index
    %1135 = vector.load %arg3[%c0_367, %c7_368, %c0_369] : memref<3x16x128xf32, #tpu.memory_space<vmem>>, vector<1x1x128xf32>
    %1136 = vector.shape_cast %1135 : vector<1x1x128xf32> to vector<1x128xf32>
    %c1_370 = arith.constant 1 : index
    %c7_371 = arith.constant 7 : index
    %c0_372 = arith.constant 0 : index
    %1137 = vector.load %arg3[%c1_370, %c7_371, %c0_372] : memref<3x16x128xf32, #tpu.memory_space<vmem>>, vector<1x1x128xf32>
    %1138 = vector.shape_cast %1137 : vector<1x1x128xf32> to vector<1x128xf32>
    %c2_373 = arith.constant 2 : index
    %c7_374 = arith.constant 7 : index
    %c0_375 = arith.constant 0 : index
    %1139 = vector.load %arg3[%c2_373, %c7_374, %c0_375] : memref<3x16x128xf32, #tpu.memory_space<vmem>>, vector<1x1x128xf32>
    %1140 = vector.shape_cast %1139 : vector<1x1x128xf32> to vector<1x128xf32>
    %c0_376 = arith.constant 0 : index
    %c8_377 = arith.constant 8 : index
    %c0_378 = arith.constant 0 : index
    %1141 = vector.load %arg3[%c0_376, %c8_377, %c0_378] : memref<3x16x128xf32, #tpu.memory_space<vmem>>, vector<1x1x128xf32>
    %1142 = vector.shape_cast %1141 : vector<1x1x128xf32> to vector<1x128xf32>
    %c1_379 = arith.constant 1 : index
    %c8_380 = arith.constant 8 : index
    %c0_381 = arith.constant 0 : index
    %1143 = vector.load %arg3[%c1_379, %c8_380, %c0_381] : memref<3x16x128xf32, #tpu.memory_space<vmem>>, vector<1x1x128xf32>
    %1144 = vector.shape_cast %1143 : vector<1x1x128xf32> to vector<1x128xf32>
    %c2_382 = arith.constant 2 : index
    %c8_383 = arith.constant 8 : index
    %c0_384 = arith.constant 0 : index
    %1145 = vector.load %arg3[%c2_382, %c8_383, %c0_384] : memref<3x16x128xf32, #tpu.memory_space<vmem>>, vector<1x1x128xf32>
    %1146 = vector.shape_cast %1145 : vector<1x1x128xf32> to vector<1x128xf32>
    %c0_385 = arith.constant 0 : index
    %c9 = arith.constant 9 : index
    %c0_386 = arith.constant 0 : index
    %1147 = vector.load %arg3[%c0_385, %c9, %c0_386] : memref<3x16x128xf32, #tpu.memory_space<vmem>>, vector<1x1x128xf32>
    %1148 = vector.shape_cast %1147 : vector<1x1x128xf32> to vector<1x128xf32>
    %c1_387 = arith.constant 1 : index
    %c9_388 = arith.constant 9 : index
    %c0_389 = arith.constant 0 : index
    %1149 = vector.load %arg3[%c1_387, %c9_388, %c0_389] : memref<3x16x128xf32, #tpu.memory_space<vmem>>, vector<1x1x128xf32>
    %1150 = vector.shape_cast %1149 : vector<1x1x128xf32> to vector<1x128xf32>
    %c2_390 = arith.constant 2 : index
    %c9_391 = arith.constant 9 : index
    %c0_392 = arith.constant 0 : index
    %1151 = vector.load %arg3[%c2_390, %c9_391, %c0_392] : memref<3x16x128xf32, #tpu.memory_space<vmem>>, vector<1x1x128xf32>
    %1152 = vector.shape_cast %1151 : vector<1x1x128xf32> to vector<1x128xf32>
    %1153 = arith.subf %1136, %1130 : vector<1x128xf32>
    %1154 = arith.subf %1138, %1132 : vector<1x128xf32>
    %1155 = arith.subf %1140, %1134 : vector<1x128xf32>
    %1156 = arith.subf %1142, %1136 : vector<1x128xf32>
    %1157 = arith.subf %1144, %1138 : vector<1x128xf32>
    %1158 = arith.subf %1146, %1140 : vector<1x128xf32>
    %1159 = arith.subf %1148, %1142 : vector<1x128xf32>
    %1160 = arith.subf %1150, %1144 : vector<1x128xf32>
    %1161 = arith.subf %1152, %1146 : vector<1x128xf32>
    %1162 = arith.mulf %1154, %1158 : vector<1x128xf32>
    %1163 = arith.mulf %1155, %1157 : vector<1x128xf32>
    %1164 = arith.subf %1162, %1163 : vector<1x128xf32>
    %1165 = arith.mulf %1155, %1156 : vector<1x128xf32>
    %1166 = arith.mulf %1153, %1158 : vector<1x128xf32>
    %1167 = arith.subf %1165, %1166 : vector<1x128xf32>
    %1168 = arith.mulf %1153, %1157 : vector<1x128xf32>
    %1169 = arith.mulf %1154, %1156 : vector<1x128xf32>
    %1170 = arith.subf %1168, %1169 : vector<1x128xf32>
    %1171 = arith.mulf %1157, %1161 : vector<1x128xf32>
    %1172 = arith.mulf %1158, %1160 : vector<1x128xf32>
    %1173 = arith.subf %1171, %1172 : vector<1x128xf32>
    %1174 = arith.mulf %1158, %1159 : vector<1x128xf32>
    %1175 = arith.mulf %1156, %1161 : vector<1x128xf32>
    %1176 = arith.subf %1174, %1175 : vector<1x128xf32>
    %1177 = arith.mulf %1156, %1160 : vector<1x128xf32>
    %1178 = arith.mulf %1157, %1159 : vector<1x128xf32>
    %1179 = arith.subf %1177, %1178 : vector<1x128xf32>
    %1180 = arith.mulf %1167, %1158 : vector<1x128xf32>
    %1181 = arith.mulf %1170, %1157 : vector<1x128xf32>
    %1182 = arith.subf %1180, %1181 : vector<1x128xf32>
    %1183 = arith.mulf %1170, %1156 : vector<1x128xf32>
    %1184 = arith.mulf %1164, %1158 : vector<1x128xf32>
    %1185 = arith.subf %1183, %1184 : vector<1x128xf32>
    %1186 = arith.mulf %1164, %1157 : vector<1x128xf32>
    %1187 = arith.mulf %1167, %1156 : vector<1x128xf32>
    %1188 = arith.subf %1186, %1187 : vector<1x128xf32>
    %1189 = arith.mulf %1182, %1173 : vector<1x128xf32>
    %1190 = arith.mulf %1185, %1176 : vector<1x128xf32>
    %1191 = arith.addf %1189, %1190 : vector<1x128xf32>
    %1192 = arith.mulf %1188, %1179 : vector<1x128xf32>
    %1193 = arith.addf %1191, %1192 : vector<1x128xf32>
    %1194 = arith.mulf %1164, %1173 : vector<1x128xf32>
    %1195 = arith.mulf %1167, %1176 : vector<1x128xf32>
    %1196 = arith.addf %1194, %1195 : vector<1x128xf32>
    %1197 = arith.mulf %1170, %1179 : vector<1x128xf32>
    %1198 = arith.addf %1196, %1197 : vector<1x128xf32>
    %1199 = arith.mulf %1156, %1156 : vector<1x128xf32>
    %1200 = arith.mulf %1157, %1157 : vector<1x128xf32>
    %1201 = arith.addf %1199, %1200 : vector<1x128xf32>
    %1202 = arith.mulf %1158, %1158 : vector<1x128xf32>
    %1203 = arith.addf %1201, %1202 : vector<1x128xf32>
    %cst_393 = arith.constant 1.000000e-24 : f32
    %1204 = vector.broadcast %cst_393 : f32 to vector<1x128xf32>
    %1205 = arith.maximumf %1203, %1204 : vector<1x128xf32>
    %1206 = math.rsqrt %1205 : vector<1x128xf32>
    %1207 = arith.mulf %1156, %1206 : vector<1x128xf32>
    %1208 = arith.mulf %1157, %1206 : vector<1x128xf32>
    %1209 = arith.mulf %1158, %1206 : vector<1x128xf32>
    %1210 = arith.mulf %1193, %1206 : vector<1x128xf32>
    %1211 = arith.mulf %1198, %1198 : vector<1x128xf32>
    %1212 = arith.mulf %1210, %1210 : vector<1x128xf32>
    %1213 = arith.addf %1211, %1212 : vector<1x128xf32>
    %cst_394 = arith.constant 1.000000e-24 : f32
    %1214 = vector.broadcast %cst_394 : f32 to vector<1x128xf32>
    %1215 = arith.maximumf %1213, %1214 : vector<1x128xf32>
    %1216 = math.rsqrt %1215 : vector<1x128xf32>
    %cst_395 = arith.constant 1.000000e-24 : f32
    %1217 = vector.broadcast %cst_395 : f32 to vector<1x128xf32>
    %1218 = arith.cmpf olt, %1213, %1217 : vector<1x128xf32>
    %1219 = arith.mulf %1198, %1216 : vector<1x128xf32>
    %cst_396 = arith.constant 1.000000e+00 : f32
    %1220 = vector.broadcast %cst_396 : f32 to vector<1x128xf32>
    %1221 = arith.select %1218, %1220, %1219 : vector<1x128xi1>, vector<1x128xf32>
    %1222 = arith.mulf %1210, %1216 : vector<1x128xf32>
    %cst_397 = arith.constant 0.000000e+00 : f32
    %1223 = vector.broadcast %cst_397 : f32 to vector<1x128xf32>
    %1224 = arith.select %1218, %1223, %1222 : vector<1x128xi1>, vector<1x128xf32>
    %1225 = vector.extract_strided_slice %3 {offsets = [6, 0], sizes = [1, 128], strides = [1, 1]} : vector<13x128xf32> to vector<1x128xf32>
    %1226 = vector.extract_strided_slice %4 {offsets = [6, 0], sizes = [1, 128], strides = [1, 1]} : vector<13x128xf32> to vector<1x128xf32>
    %1227 = arith.mulf %1225, %1221 : vector<1x128xf32>
    %1228 = arith.mulf %1226, %1224 : vector<1x128xf32>
    %1229 = arith.subf %1227, %1228 : vector<1x128xf32>
    %1230 = arith.mulf %1226, %1221 : vector<1x128xf32>
    %1231 = arith.mulf %1225, %1224 : vector<1x128xf32>
    %1232 = arith.addf %1230, %1231 : vector<1x128xf32>
    %cst_398 = arith.constant 1.000000e+00 : f32
    %1233 = vector.broadcast %cst_398 : f32 to vector<1x128xf32>
    %1234 = arith.subf %1233, %1229 : vector<1x128xf32>
    %1235 = arith.mulf %1234, %1207 : vector<1x128xf32>
    %1236 = arith.mulf %1234, %1208 : vector<1x128xf32>
    %1237 = arith.mulf %1234, %1209 : vector<1x128xf32>
    %1238 = arith.mulf %1232, %1207 : vector<1x128xf32>
    %1239 = arith.mulf %1232, %1208 : vector<1x128xf32>
    %1240 = arith.mulf %1232, %1209 : vector<1x128xf32>
    %1241 = arith.mulf %1235, %1208 : vector<1x128xf32>
    %1242 = arith.mulf %1235, %1209 : vector<1x128xf32>
    %1243 = arith.mulf %1236, %1209 : vector<1x128xf32>
    %1244 = arith.mulf %1235, %1207 : vector<1x128xf32>
    %1245 = arith.addf %1244, %1229 : vector<1x128xf32>
    %1246 = arith.subf %1241, %1240 : vector<1x128xf32>
    %1247 = arith.addf %1242, %1239 : vector<1x128xf32>
    %1248 = arith.addf %1241, %1240 : vector<1x128xf32>
    %1249 = arith.mulf %1236, %1208 : vector<1x128xf32>
    %1250 = arith.addf %1249, %1229 : vector<1x128xf32>
    %1251 = arith.subf %1243, %1238 : vector<1x128xf32>
    %1252 = arith.subf %1242, %1239 : vector<1x128xf32>
    %1253 = arith.addf %1243, %1238 : vector<1x128xf32>
    %1254 = arith.mulf %1237, %1209 : vector<1x128xf32>
    %1255 = arith.addf %1254, %1229 : vector<1x128xf32>
    %c0_399 = arith.constant 0 : index
    %c8_400 = arith.constant 8 : index
    %c0_401 = arith.constant 0 : index
    %1256 = vector.load %arg3[%c0_399, %c8_400, %c0_401] : memref<3x16x128xf32, #tpu.memory_space<vmem>>, vector<1x8x128xf32>
    %1257 = vector.shape_cast %1256 : vector<1x8x128xf32> to vector<8x128xf32>
    %c1_402 = arith.constant 1 : index
    %c8_403 = arith.constant 8 : index
    %c0_404 = arith.constant 0 : index
    %1258 = vector.load %arg3[%c1_402, %c8_403, %c0_404] : memref<3x16x128xf32, #tpu.memory_space<vmem>>, vector<1x8x128xf32>
    %1259 = vector.shape_cast %1258 : vector<1x8x128xf32> to vector<8x128xf32>
    %c2_405 = arith.constant 2 : index
    %c8_406 = arith.constant 8 : index
    %c0_407 = arith.constant 0 : index
    %1260 = vector.load %arg3[%c2_405, %c8_406, %c0_407] : memref<3x16x128xf32, #tpu.memory_space<vmem>>, vector<1x8x128xf32>
    %1261 = vector.shape_cast %1260 : vector<1x8x128xf32> to vector<8x128xf32>
    %1262 = vector.broadcast %1136 : vector<1x128xf32> to vector<8x128xf32>
    %1263 = arith.subf %1257, %1262 : vector<8x128xf32>
    %1264 = vector.broadcast %1138 : vector<1x128xf32> to vector<8x128xf32>
    %1265 = arith.subf %1259, %1264 : vector<8x128xf32>
    %1266 = vector.broadcast %1140 : vector<1x128xf32> to vector<8x128xf32>
    %1267 = arith.subf %1261, %1266 : vector<8x128xf32>
    %1268 = vector.broadcast %1245 : vector<1x128xf32> to vector<8x128xf32>
    %1269 = arith.mulf %1268, %1263 : vector<8x128xf32>
    %1270 = vector.broadcast %1246 : vector<1x128xf32> to vector<8x128xf32>
    %1271 = arith.mulf %1270, %1265 : vector<8x128xf32>
    %1272 = arith.addf %1269, %1271 : vector<8x128xf32>
    %1273 = vector.broadcast %1247 : vector<1x128xf32> to vector<8x128xf32>
    %1274 = arith.mulf %1273, %1267 : vector<8x128xf32>
    %1275 = arith.addf %1272, %1274 : vector<8x128xf32>
    %1276 = vector.broadcast %1136 : vector<1x128xf32> to vector<8x128xf32>
    %1277 = arith.addf %1275, %1276 : vector<8x128xf32>
    %1278 = vector.broadcast %1248 : vector<1x128xf32> to vector<8x128xf32>
    %1279 = arith.mulf %1278, %1263 : vector<8x128xf32>
    %1280 = vector.broadcast %1250 : vector<1x128xf32> to vector<8x128xf32>
    %1281 = arith.mulf %1280, %1265 : vector<8x128xf32>
    %1282 = arith.addf %1279, %1281 : vector<8x128xf32>
    %1283 = vector.broadcast %1251 : vector<1x128xf32> to vector<8x128xf32>
    %1284 = arith.mulf %1283, %1267 : vector<8x128xf32>
    %1285 = arith.addf %1282, %1284 : vector<8x128xf32>
    %1286 = vector.broadcast %1138 : vector<1x128xf32> to vector<8x128xf32>
    %1287 = arith.addf %1285, %1286 : vector<8x128xf32>
    %1288 = vector.broadcast %1252 : vector<1x128xf32> to vector<8x128xf32>
    %1289 = arith.mulf %1288, %1263 : vector<8x128xf32>
    %1290 = vector.broadcast %1253 : vector<1x128xf32> to vector<8x128xf32>
    %1291 = arith.mulf %1290, %1265 : vector<8x128xf32>
    %1292 = arith.addf %1289, %1291 : vector<8x128xf32>
    %1293 = vector.broadcast %1255 : vector<1x128xf32> to vector<8x128xf32>
    %1294 = arith.mulf %1293, %1267 : vector<8x128xf32>
    %1295 = arith.addf %1292, %1294 : vector<8x128xf32>
    %1296 = vector.broadcast %1140 : vector<1x128xf32> to vector<8x128xf32>
    %1297 = arith.addf %1295, %1296 : vector<8x128xf32>
    %1298 = vector.extract_strided_slice %5 {offsets = [8, 0], sizes = [8, 1], strides = [1, 1]} : vector<16x1xi32> to vector<8x1xi32>
    %c9_i32 = arith.constant 9 : i32
    %1299 = vector.broadcast %c9_i32 : i32 to vector<8x1xi32>
    %1300 = arith.cmpi sge, %1298, %1299 : vector<8x1xi32>
    %1301 = vector.shape_cast %1300 : vector<8x1xi1> to vector<8x1xi1>
    %1302 = vector.broadcast %1301 : vector<8x1xi1> to vector<8x128xi1>
    %1303 = arith.select %1302, %1277, %1257 : vector<8x128xi1>, vector<8x128xf32>
    %1304 = vector.shape_cast %1300 : vector<8x1xi1> to vector<8x1xi1>
    %1305 = vector.broadcast %1304 : vector<8x1xi1> to vector<8x128xi1>
    %1306 = arith.select %1305, %1287, %1259 : vector<8x128xi1>, vector<8x128xf32>
    %1307 = vector.shape_cast %1300 : vector<8x1xi1> to vector<8x1xi1>
    %1308 = vector.broadcast %1307 : vector<8x1xi1> to vector<8x128xi1>
    %1309 = arith.select %1308, %1297, %1261 : vector<8x128xi1>, vector<8x128xf32>
    %c0_408 = arith.constant 0 : index
    %c8_409 = arith.constant 8 : index
    %c0_410 = arith.constant 0 : index
    %1310 = vector.load %arg3[%c0_408, %c8_409, %c0_410] : memref<3x16x128xf32, #tpu.memory_space<vmem>>, vector<1x8x128xf32>
    %1311 = vector.shape_cast %1310 : vector<1x8x128xf32> to vector<8x128xf32>
    %1312 = vector.shape_cast %1303 : vector<8x128xf32> to vector<1x8x128xf32>
    tpu.vector_store %arg3[%c0_408, %c8_409, %c0_410], %1312 {strides = array<i32>} : memref<3x16x128xf32, #tpu.memory_space<vmem>>, vector<1x8x128xf32>,
    %c1_411 = arith.constant 1 : index
    %c8_412 = arith.constant 8 : index
    %c0_413 = arith.constant 0 : index
    %1313 = vector.load %arg3[%c1_411, %c8_412, %c0_413] : memref<3x16x128xf32, #tpu.memory_space<vmem>>, vector<1x8x128xf32>
    %1314 = vector.shape_cast %1313 : vector<1x8x128xf32> to vector<8x128xf32>
    %1315 = vector.shape_cast %1306 : vector<8x128xf32> to vector<1x8x128xf32>
    tpu.vector_store %arg3[%c1_411, %c8_412, %c0_413], %1315 {strides = array<i32>} : memref<3x16x128xf32, #tpu.memory_space<vmem>>, vector<1x8x128xf32>,
    %c2_414 = arith.constant 2 : index
    %c8_415 = arith.constant 8 : index
    %c0_416 = arith.constant 0 : index
    %1316 = vector.load %arg3[%c2_414, %c8_415, %c0_416] : memref<3x16x128xf32, #tpu.memory_space<vmem>>, vector<1x8x128xf32>
    %1317 = vector.shape_cast %1316 : vector<1x8x128xf32> to vector<8x128xf32>
    %1318 = vector.shape_cast %1309 : vector<8x128xf32> to vector<1x8x128xf32>
    tpu.vector_store %arg3[%c2_414, %c8_415, %c0_416], %1318 {strides = array<i32>} : memref<3x16x128xf32, #tpu.memory_space<vmem>>, vector<1x8x128xf32>,
    %c0_417 = arith.constant 0 : index
    %c7_418 = arith.constant 7 : index
    %c0_419 = arith.constant 0 : index
    %1319 = vector.load %arg3[%c0_417, %c7_418, %c0_419] : memref<3x16x128xf32, #tpu.memory_space<vmem>>, vector<1x1x128xf32>
    %1320 = vector.shape_cast %1319 : vector<1x1x128xf32> to vector<1x128xf32>
    %c1_420 = arith.constant 1 : index
    %c7_421 = arith.constant 7 : index
    %c0_422 = arith.constant 0 : index
    %1321 = vector.load %arg3[%c1_420, %c7_421, %c0_422] : memref<3x16x128xf32, #tpu.memory_space<vmem>>, vector<1x1x128xf32>
    %1322 = vector.shape_cast %1321 : vector<1x1x128xf32> to vector<1x128xf32>
    %c2_423 = arith.constant 2 : index
    %c7_424 = arith.constant 7 : index
    %c0_425 = arith.constant 0 : index
    %1323 = vector.load %arg3[%c2_423, %c7_424, %c0_425] : memref<3x16x128xf32, #tpu.memory_space<vmem>>, vector<1x1x128xf32>
    %1324 = vector.shape_cast %1323 : vector<1x1x128xf32> to vector<1x128xf32>
    %c0_426 = arith.constant 0 : index
    %c8_427 = arith.constant 8 : index
    %c0_428 = arith.constant 0 : index
    %1325 = vector.load %arg3[%c0_426, %c8_427, %c0_428] : memref<3x16x128xf32, #tpu.memory_space<vmem>>, vector<1x1x128xf32>
    %1326 = vector.shape_cast %1325 : vector<1x1x128xf32> to vector<1x128xf32>
    %c1_429 = arith.constant 1 : index
    %c8_430 = arith.constant 8 : index
    %c0_431 = arith.constant 0 : index
    %1327 = vector.load %arg3[%c1_429, %c8_430, %c0_431] : memref<3x16x128xf32, #tpu.memory_space<vmem>>, vector<1x1x128xf32>
    %1328 = vector.shape_cast %1327 : vector<1x1x128xf32> to vector<1x128xf32>
    %c2_432 = arith.constant 2 : index
    %c8_433 = arith.constant 8 : index
    %c0_434 = arith.constant 0 : index
    %1329 = vector.load %arg3[%c2_432, %c8_433, %c0_434] : memref<3x16x128xf32, #tpu.memory_space<vmem>>, vector<1x1x128xf32>
    %1330 = vector.shape_cast %1329 : vector<1x1x128xf32> to vector<1x128xf32>
    %c0_435 = arith.constant 0 : index
    %c9_436 = arith.constant 9 : index
    %c0_437 = arith.constant 0 : index
    %1331 = vector.load %arg3[%c0_435, %c9_436, %c0_437] : memref<3x16x128xf32, #tpu.memory_space<vmem>>, vector<1x1x128xf32>
    %1332 = vector.shape_cast %1331 : vector<1x1x128xf32> to vector<1x128xf32>
    %c1_438 = arith.constant 1 : index
    %c9_439 = arith.constant 9 : index
    %c0_440 = arith.constant 0 : index
    %1333 = vector.load %arg3[%c1_438, %c9_439, %c0_440] : memref<3x16x128xf32, #tpu.memory_space<vmem>>, vector<1x1x128xf32>
    %1334 = vector.shape_cast %1333 : vector<1x1x128xf32> to vector<1x128xf32>
    %c2_441 = arith.constant 2 : index
    %c9_442 = arith.constant 9 : index
    %c0_443 = arith.constant 0 : index
    %1335 = vector.load %arg3[%c2_441, %c9_442, %c0_443] : memref<3x16x128xf32, #tpu.memory_space<vmem>>, vector<1x1x128xf32>
    %1336 = vector.shape_cast %1335 : vector<1x1x128xf32> to vector<1x128xf32>
    %c0_444 = arith.constant 0 : index
    %c10 = arith.constant 10 : index
    %c0_445 = arith.constant 0 : index
    %1337 = vector.load %arg3[%c0_444, %c10, %c0_445] : memref<3x16x128xf32, #tpu.memory_space<vmem>>, vector<1x1x128xf32>
    %1338 = vector.shape_cast %1337 : vector<1x1x128xf32> to vector<1x128xf32>
    %c1_446 = arith.constant 1 : index
    %c10_447 = arith.constant 10 : index
    %c0_448 = arith.constant 0 : index
    %1339 = vector.load %arg3[%c1_446, %c10_447, %c0_448] : memref<3x16x128xf32, #tpu.memory_space<vmem>>, vector<1x1x128xf32>
    %1340 = vector.shape_cast %1339 : vector<1x1x128xf32> to vector<1x128xf32>
    %c2_449 = arith.constant 2 : index
    %c10_450 = arith.constant 10 : index
    %c0_451 = arith.constant 0 : index
    %1341 = vector.load %arg3[%c2_449, %c10_450, %c0_451] : memref<3x16x128xf32, #tpu.memory_space<vmem>>, vector<1x1x128xf32>
    %1342 = vector.shape_cast %1341 : vector<1x1x128xf32> to vector<1x128xf32>
    %1343 = arith.subf %1326, %1320 : vector<1x128xf32>
    %1344 = arith.subf %1328, %1322 : vector<1x128xf32>
    %1345 = arith.subf %1330, %1324 : vector<1x128xf32>
    %1346 = arith.subf %1332, %1326 : vector<1x128xf32>
    %1347 = arith.subf %1334, %1328 : vector<1x128xf32>
    %1348 = arith.subf %1336, %1330 : vector<1x128xf32>
    %1349 = arith.subf %1338, %1332 : vector<1x128xf32>
    %1350 = arith.subf %1340, %1334 : vector<1x128xf32>
    %1351 = arith.subf %1342, %1336 : vector<1x128xf32>
    %1352 = arith.mulf %1344, %1348 : vector<1x128xf32>
    %1353 = arith.mulf %1345, %1347 : vector<1x128xf32>
    %1354 = arith.subf %1352, %1353 : vector<1x128xf32>
    %1355 = arith.mulf %1345, %1346 : vector<1x128xf32>
    %1356 = arith.mulf %1343, %1348 : vector<1x128xf32>
    %1357 = arith.subf %1355, %1356 : vector<1x128xf32>
    %1358 = arith.mulf %1343, %1347 : vector<1x128xf32>
    %1359 = arith.mulf %1344, %1346 : vector<1x128xf32>
    %1360 = arith.subf %1358, %1359 : vector<1x128xf32>
    %1361 = arith.mulf %1347, %1351 : vector<1x128xf32>
    %1362 = arith.mulf %1348, %1350 : vector<1x128xf32>
    %1363 = arith.subf %1361, %1362 : vector<1x128xf32>
    %1364 = arith.mulf %1348, %1349 : vector<1x128xf32>
    %1365 = arith.mulf %1346, %1351 : vector<1x128xf32>
    %1366 = arith.subf %1364, %1365 : vector<1x128xf32>
    %1367 = arith.mulf %1346, %1350 : vector<1x128xf32>
    %1368 = arith.mulf %1347, %1349 : vector<1x128xf32>
    %1369 = arith.subf %1367, %1368 : vector<1x128xf32>
    %1370 = arith.mulf %1357, %1348 : vector<1x128xf32>
    %1371 = arith.mulf %1360, %1347 : vector<1x128xf32>
    %1372 = arith.subf %1370, %1371 : vector<1x128xf32>
    %1373 = arith.mulf %1360, %1346 : vector<1x128xf32>
    %1374 = arith.mulf %1354, %1348 : vector<1x128xf32>
    %1375 = arith.subf %1373, %1374 : vector<1x128xf32>
    %1376 = arith.mulf %1354, %1347 : vector<1x128xf32>
    %1377 = arith.mulf %1357, %1346 : vector<1x128xf32>
    %1378 = arith.subf %1376, %1377 : vector<1x128xf32>
    %1379 = arith.mulf %1372, %1363 : vector<1x128xf32>
    %1380 = arith.mulf %1375, %1366 : vector<1x128xf32>
    %1381 = arith.addf %1379, %1380 : vector<1x128xf32>
    %1382 = arith.mulf %1378, %1369 : vector<1x128xf32>
    %1383 = arith.addf %1381, %1382 : vector<1x128xf32>
    %1384 = arith.mulf %1354, %1363 : vector<1x128xf32>
    %1385 = arith.mulf %1357, %1366 : vector<1x128xf32>
    %1386 = arith.addf %1384, %1385 : vector<1x128xf32>
    %1387 = arith.mulf %1360, %1369 : vector<1x128xf32>
    %1388 = arith.addf %1386, %1387 : vector<1x128xf32>
    %1389 = arith.mulf %1346, %1346 : vector<1x128xf32>
    %1390 = arith.mulf %1347, %1347 : vector<1x128xf32>
    %1391 = arith.addf %1389, %1390 : vector<1x128xf32>
    %1392 = arith.mulf %1348, %1348 : vector<1x128xf32>
    %1393 = arith.addf %1391, %1392 : vector<1x128xf32>
    %cst_452 = arith.constant 1.000000e-24 : f32
    %1394 = vector.broadcast %cst_452 : f32 to vector<1x128xf32>
    %1395 = arith.maximumf %1393, %1394 : vector<1x128xf32>
    %1396 = math.rsqrt %1395 : vector<1x128xf32>
    %1397 = arith.mulf %1346, %1396 : vector<1x128xf32>
    %1398 = arith.mulf %1347, %1396 : vector<1x128xf32>
    %1399 = arith.mulf %1348, %1396 : vector<1x128xf32>
    %1400 = arith.mulf %1383, %1396 : vector<1x128xf32>
    %1401 = arith.mulf %1388, %1388 : vector<1x128xf32>
    %1402 = arith.mulf %1400, %1400 : vector<1x128xf32>
    %1403 = arith.addf %1401, %1402 : vector<1x128xf32>
    %cst_453 = arith.constant 1.000000e-24 : f32
    %1404 = vector.broadcast %cst_453 : f32 to vector<1x128xf32>
    %1405 = arith.maximumf %1403, %1404 : vector<1x128xf32>
    %1406 = math.rsqrt %1405 : vector<1x128xf32>
    %cst_454 = arith.constant 1.000000e-24 : f32
    %1407 = vector.broadcast %cst_454 : f32 to vector<1x128xf32>
    %1408 = arith.cmpf olt, %1403, %1407 : vector<1x128xf32>
    %1409 = arith.mulf %1388, %1406 : vector<1x128xf32>
    %cst_455 = arith.constant 1.000000e+00 : f32
    %1410 = vector.broadcast %cst_455 : f32 to vector<1x128xf32>
    %1411 = arith.select %1408, %1410, %1409 : vector<1x128xi1>, vector<1x128xf32>
    %1412 = arith.mulf %1400, %1406 : vector<1x128xf32>
    %cst_456 = arith.constant 0.000000e+00 : f32
    %1413 = vector.broadcast %cst_456 : f32 to vector<1x128xf32>
    %1414 = arith.select %1408, %1413, %1412 : vector<1x128xi1>, vector<1x128xf32>
    %1415 = vector.extract_strided_slice %3 {offsets = [7, 0], sizes = [1, 128], strides = [1, 1]} : vector<13x128xf32> to vector<1x128xf32>
    %1416 = vector.extract_strided_slice %4 {offsets = [7, 0], sizes = [1, 128], strides = [1, 1]} : vector<13x128xf32> to vector<1x128xf32>
    %1417 = arith.mulf %1415, %1411 : vector<1x128xf32>
    %1418 = arith.mulf %1416, %1414 : vector<1x128xf32>
    %1419 = arith.subf %1417, %1418 : vector<1x128xf32>
    %1420 = arith.mulf %1416, %1411 : vector<1x128xf32>
    %1421 = arith.mulf %1415, %1414 : vector<1x128xf32>
    %1422 = arith.addf %1420, %1421 : vector<1x128xf32>
    %cst_457 = arith.constant 1.000000e+00 : f32
    %1423 = vector.broadcast %cst_457 : f32 to vector<1x128xf32>
    %1424 = arith.subf %1423, %1419 : vector<1x128xf32>
    %1425 = arith.mulf %1424, %1397 : vector<1x128xf32>
    %1426 = arith.mulf %1424, %1398 : vector<1x128xf32>
    %1427 = arith.mulf %1424, %1399 : vector<1x128xf32>
    %1428 = arith.mulf %1422, %1397 : vector<1x128xf32>
    %1429 = arith.mulf %1422, %1398 : vector<1x128xf32>
    %1430 = arith.mulf %1422, %1399 : vector<1x128xf32>
    %1431 = arith.mulf %1425, %1398 : vector<1x128xf32>
    %1432 = arith.mulf %1425, %1399 : vector<1x128xf32>
    %1433 = arith.mulf %1426, %1399 : vector<1x128xf32>
    %1434 = arith.mulf %1425, %1397 : vector<1x128xf32>
    %1435 = arith.addf %1434, %1419 : vector<1x128xf32>
    %1436 = arith.subf %1431, %1430 : vector<1x128xf32>
    %1437 = arith.addf %1432, %1429 : vector<1x128xf32>
    %1438 = arith.addf %1431, %1430 : vector<1x128xf32>
    %1439 = arith.mulf %1426, %1398 : vector<1x128xf32>
    %1440 = arith.addf %1439, %1419 : vector<1x128xf32>
    %1441 = arith.subf %1433, %1428 : vector<1x128xf32>
    %1442 = arith.subf %1432, %1429 : vector<1x128xf32>
    %1443 = arith.addf %1433, %1428 : vector<1x128xf32>
    %1444 = arith.mulf %1427, %1399 : vector<1x128xf32>
    %1445 = arith.addf %1444, %1419 : vector<1x128xf32>
    %c0_458 = arith.constant 0 : index
    %c8_459 = arith.constant 8 : index
    %c0_460 = arith.constant 0 : index
    %1446 = vector.load %arg3[%c0_458, %c8_459, %c0_460] : memref<3x16x128xf32, #tpu.memory_space<vmem>>, vector<1x8x128xf32>
    %1447 = vector.shape_cast %1446 : vector<1x8x128xf32> to vector<8x128xf32>
    %c1_461 = arith.constant 1 : index
    %c8_462 = arith.constant 8 : index
    %c0_463 = arith.constant 0 : index
    %1448 = vector.load %arg3[%c1_461, %c8_462, %c0_463] : memref<3x16x128xf32, #tpu.memory_space<vmem>>, vector<1x8x128xf32>
    %1449 = vector.shape_cast %1448 : vector<1x8x128xf32> to vector<8x128xf32>
    %c2_464 = arith.constant 2 : index
    %c8_465 = arith.constant 8 : index
    %c0_466 = arith.constant 0 : index
    %1450 = vector.load %arg3[%c2_464, %c8_465, %c0_466] : memref<3x16x128xf32, #tpu.memory_space<vmem>>, vector<1x8x128xf32>
    %1451 = vector.shape_cast %1450 : vector<1x8x128xf32> to vector<8x128xf32>
    %1452 = vector.broadcast %1326 : vector<1x128xf32> to vector<8x128xf32>
    %1453 = arith.subf %1447, %1452 : vector<8x128xf32>
    %1454 = vector.broadcast %1328 : vector<1x128xf32> to vector<8x128xf32>
    %1455 = arith.subf %1449, %1454 : vector<8x128xf32>
    %1456 = vector.broadcast %1330 : vector<1x128xf32> to vector<8x128xf32>
    %1457 = arith.subf %1451, %1456 : vector<8x128xf32>
    %1458 = vector.broadcast %1435 : vector<1x128xf32> to vector<8x128xf32>
    %1459 = arith.mulf %1458, %1453 : vector<8x128xf32>
    %1460 = vector.broadcast %1436 : vector<1x128xf32> to vector<8x128xf32>
    %1461 = arith.mulf %1460, %1455 : vector<8x128xf32>
    %1462 = arith.addf %1459, %1461 : vector<8x128xf32>
    %1463 = vector.broadcast %1437 : vector<1x128xf32> to vector<8x128xf32>
    %1464 = arith.mulf %1463, %1457 : vector<8x128xf32>
    %1465 = arith.addf %1462, %1464 : vector<8x128xf32>
    %1466 = vector.broadcast %1326 : vector<1x128xf32> to vector<8x128xf32>
    %1467 = arith.addf %1465, %1466 : vector<8x128xf32>
    %1468 = vector.broadcast %1438 : vector<1x128xf32> to vector<8x128xf32>
    %1469 = arith.mulf %1468, %1453 : vector<8x128xf32>
    %1470 = vector.broadcast %1440 : vector<1x128xf32> to vector<8x128xf32>
    %1471 = arith.mulf %1470, %1455 : vector<8x128xf32>
    %1472 = arith.addf %1469, %1471 : vector<8x128xf32>
    %1473 = vector.broadcast %1441 : vector<1x128xf32> to vector<8x128xf32>
    %1474 = arith.mulf %1473, %1457 : vector<8x128xf32>
    %1475 = arith.addf %1472, %1474 : vector<8x128xf32>
    %1476 = vector.broadcast %1328 : vector<1x128xf32> to vector<8x128xf32>
    %1477 = arith.addf %1475, %1476 : vector<8x128xf32>
    %1478 = vector.broadcast %1442 : vector<1x128xf32> to vector<8x128xf32>
    %1479 = arith.mulf %1478, %1453 : vector<8x128xf32>
    %1480 = vector.broadcast %1443 : vector<1x128xf32> to vector<8x128xf32>
    %1481 = arith.mulf %1480, %1455 : vector<8x128xf32>
    %1482 = arith.addf %1479, %1481 : vector<8x128xf32>
    %1483 = vector.broadcast %1445 : vector<1x128xf32> to vector<8x128xf32>
    %1484 = arith.mulf %1483, %1457 : vector<8x128xf32>
    %1485 = arith.addf %1482, %1484 : vector<8x128xf32>
    %1486 = vector.broadcast %1330 : vector<1x128xf32> to vector<8x128xf32>
    %1487 = arith.addf %1485, %1486 : vector<8x128xf32>
    %1488 = vector.extract_strided_slice %5 {offsets = [8, 0], sizes = [8, 1], strides = [1, 1]} : vector<16x1xi32> to vector<8x1xi32>
    %c10_i32 = arith.constant 10 : i32
    %1489 = vector.broadcast %c10_i32 : i32 to vector<8x1xi32>
    %1490 = arith.cmpi sge, %1488, %1489 : vector<8x1xi32>
    %1491 = vector.shape_cast %1490 : vector<8x1xi1> to vector<8x1xi1>
    %1492 = vector.broadcast %1491 : vector<8x1xi1> to vector<8x128xi1>
    %1493 = arith.select %1492, %1467, %1447 : vector<8x128xi1>, vector<8x128xf32>
    %1494 = vector.shape_cast %1490 : vector<8x1xi1> to vector<8x1xi1>
    %1495 = vector.broadcast %1494 : vector<8x1xi1> to vector<8x128xi1>
    %1496 = arith.select %1495, %1477, %1449 : vector<8x128xi1>, vector<8x128xf32>
    %1497 = vector.shape_cast %1490 : vector<8x1xi1> to vector<8x1xi1>
    %1498 = vector.broadcast %1497 : vector<8x1xi1> to vector<8x128xi1>
    %1499 = arith.select %1498, %1487, %1451 : vector<8x128xi1>, vector<8x128xf32>
    %c0_467 = arith.constant 0 : index
    %c8_468 = arith.constant 8 : index
    %c0_469 = arith.constant 0 : index
    %1500 = vector.load %arg3[%c0_467, %c8_468, %c0_469] : memref<3x16x128xf32, #tpu.memory_space<vmem>>, vector<1x8x128xf32>
    %1501 = vector.shape_cast %1500 : vector<1x8x128xf32> to vector<8x128xf32>
    %1502 = vector.shape_cast %1493 : vector<8x128xf32> to vector<1x8x128xf32>
    tpu.vector_store %arg3[%c0_467, %c8_468, %c0_469], %1502 {strides = array<i32>} : memref<3x16x128xf32, #tpu.memory_space<vmem>>, vector<1x8x128xf32>,
    %c1_470 = arith.constant 1 : index
    %c8_471 = arith.constant 8 : index
    %c0_472 = arith.constant 0 : index
    %1503 = vector.load %arg3[%c1_470, %c8_471, %c0_472] : memref<3x16x128xf32, #tpu.memory_space<vmem>>, vector<1x8x128xf32>
    %1504 = vector.shape_cast %1503 : vector<1x8x128xf32> to vector<8x128xf32>
    %1505 = vector.shape_cast %1496 : vector<8x128xf32> to vector<1x8x128xf32>
    tpu.vector_store %arg3[%c1_470, %c8_471, %c0_472], %1505 {strides = array<i32>} : memref<3x16x128xf32, #tpu.memory_space<vmem>>, vector<1x8x128xf32>,
    %c2_473 = arith.constant 2 : index
    %c8_474 = arith.constant 8 : index
    %c0_475 = arith.constant 0 : index
    %1506 = vector.load %arg3[%c2_473, %c8_474, %c0_475] : memref<3x16x128xf32, #tpu.memory_space<vmem>>, vector<1x8x128xf32>
    %1507 = vector.shape_cast %1506 : vector<1x8x128xf32> to vector<8x128xf32>
    %1508 = vector.shape_cast %1499 : vector<8x128xf32> to vector<1x8x128xf32>
    tpu.vector_store %arg3[%c2_473, %c8_474, %c0_475], %1508 {strides = array<i32>} : memref<3x16x128xf32, #tpu.memory_space<vmem>>, vector<1x8x128xf32>,
    %c0_476 = arith.constant 0 : index
    %c8_477 = arith.constant 8 : index
    %c0_478 = arith.constant 0 : index
    %1509 = vector.load %arg3[%c0_476, %c8_477, %c0_478] : memref<3x16x128xf32, #tpu.memory_space<vmem>>, vector<1x1x128xf32>
    %1510 = vector.shape_cast %1509 : vector<1x1x128xf32> to vector<1x128xf32>
    %c1_479 = arith.constant 1 : index
    %c8_480 = arith.constant 8 : index
    %c0_481 = arith.constant 0 : index
    %1511 = vector.load %arg3[%c1_479, %c8_480, %c0_481] : memref<3x16x128xf32, #tpu.memory_space<vmem>>, vector<1x1x128xf32>
    %1512 = vector.shape_cast %1511 : vector<1x1x128xf32> to vector<1x128xf32>
    %c2_482 = arith.constant 2 : index
    %c8_483 = arith.constant 8 : index
    %c0_484 = arith.constant 0 : index
    %1513 = vector.load %arg3[%c2_482, %c8_483, %c0_484] : memref<3x16x128xf32, #tpu.memory_space<vmem>>, vector<1x1x128xf32>
    %1514 = vector.shape_cast %1513 : vector<1x1x128xf32> to vector<1x128xf32>
    %c0_485 = arith.constant 0 : index
    %c9_486 = arith.constant 9 : index
    %c0_487 = arith.constant 0 : index
    %1515 = vector.load %arg3[%c0_485, %c9_486, %c0_487] : memref<3x16x128xf32, #tpu.memory_space<vmem>>, vector<1x1x128xf32>
    %1516 = vector.shape_cast %1515 : vector<1x1x128xf32> to vector<1x128xf32>
    %c1_488 = arith.constant 1 : index
    %c9_489 = arith.constant 9 : index
    %c0_490 = arith.constant 0 : index
    %1517 = vector.load %arg3[%c1_488, %c9_489, %c0_490] : memref<3x16x128xf32, #tpu.memory_space<vmem>>, vector<1x1x128xf32>
    %1518 = vector.shape_cast %1517 : vector<1x1x128xf32> to vector<1x128xf32>
    %c2_491 = arith.constant 2 : index
    %c9_492 = arith.constant 9 : index
    %c0_493 = arith.constant 0 : index
    %1519 = vector.load %arg3[%c2_491, %c9_492, %c0_493] : memref<3x16x128xf32, #tpu.memory_space<vmem>>, vector<1x1x128xf32>
    %1520 = vector.shape_cast %1519 : vector<1x1x128xf32> to vector<1x128xf32>
    %c0_494 = arith.constant 0 : index
    %c10_495 = arith.constant 10 : index
    %c0_496 = arith.constant 0 : index
    %1521 = vector.load %arg3[%c0_494, %c10_495, %c0_496] : memref<3x16x128xf32, #tpu.memory_space<vmem>>, vector<1x1x128xf32>
    %1522 = vector.shape_cast %1521 : vector<1x1x128xf32> to vector<1x128xf32>
    %c1_497 = arith.constant 1 : index
    %c10_498 = arith.constant 10 : index
    %c0_499 = arith.constant 0 : index
    %1523 = vector.load %arg3[%c1_497, %c10_498, %c0_499] : memref<3x16x128xf32, #tpu.memory_space<vmem>>, vector<1x1x128xf32>
    %1524 = vector.shape_cast %1523 : vector<1x1x128xf32> to vector<1x128xf32>
    %c2_500 = arith.constant 2 : index
    %c10_501 = arith.constant 10 : index
    %c0_502 = arith.constant 0 : index
    %1525 = vector.load %arg3[%c2_500, %c10_501, %c0_502] : memref<3x16x128xf32, #tpu.memory_space<vmem>>, vector<1x1x128xf32>
    %1526 = vector.shape_cast %1525 : vector<1x1x128xf32> to vector<1x128xf32>
    %c0_503 = arith.constant 0 : index
    %c11 = arith.constant 11 : index
    %c0_504 = arith.constant 0 : index
    %1527 = vector.load %arg3[%c0_503, %c11, %c0_504] : memref<3x16x128xf32, #tpu.memory_space<vmem>>, vector<1x1x128xf32>
    %1528 = vector.shape_cast %1527 : vector<1x1x128xf32> to vector<1x128xf32>
    %c1_505 = arith.constant 1 : index
    %c11_506 = arith.constant 11 : index
    %c0_507 = arith.constant 0 : index
    %1529 = vector.load %arg3[%c1_505, %c11_506, %c0_507] : memref<3x16x128xf32, #tpu.memory_space<vmem>>, vector<1x1x128xf32>
    %1530 = vector.shape_cast %1529 : vector<1x1x128xf32> to vector<1x128xf32>
    %c2_508 = arith.constant 2 : index
    %c11_509 = arith.constant 11 : index
    %c0_510 = arith.constant 0 : index
    %1531 = vector.load %arg3[%c2_508, %c11_509, %c0_510] : memref<3x16x128xf32, #tpu.memory_space<vmem>>, vector<1x1x128xf32>
    %1532 = vector.shape_cast %1531 : vector<1x1x128xf32> to vector<1x128xf32>
    %1533 = arith.subf %1516, %1510 : vector<1x128xf32>
    %1534 = arith.subf %1518, %1512 : vector<1x128xf32>
    %1535 = arith.subf %1520, %1514 : vector<1x128xf32>
    %1536 = arith.subf %1522, %1516 : vector<1x128xf32>
    %1537 = arith.subf %1524, %1518 : vector<1x128xf32>
    %1538 = arith.subf %1526, %1520 : vector<1x128xf32>
    %1539 = arith.subf %1528, %1522 : vector<1x128xf32>
    %1540 = arith.subf %1530, %1524 : vector<1x128xf32>
    %1541 = arith.subf %1532, %1526 : vector<1x128xf32>
    %1542 = arith.mulf %1534, %1538 : vector<1x128xf32>
    %1543 = arith.mulf %1535, %1537 : vector<1x128xf32>
    %1544 = arith.subf %1542, %1543 : vector<1x128xf32>
    %1545 = arith.mulf %1535, %1536 : vector<1x128xf32>
    %1546 = arith.mulf %1533, %1538 : vector<1x128xf32>
    %1547 = arith.subf %1545, %1546 : vector<1x128xf32>
    %1548 = arith.mulf %1533, %1537 : vector<1x128xf32>
    %1549 = arith.mulf %1534, %1536 : vector<1x128xf32>
    %1550 = arith.subf %1548, %1549 : vector<1x128xf32>
    %1551 = arith.mulf %1537, %1541 : vector<1x128xf32>
    %1552 = arith.mulf %1538, %1540 : vector<1x128xf32>
    %1553 = arith.subf %1551, %1552 : vector<1x128xf32>
    %1554 = arith.mulf %1538, %1539 : vector<1x128xf32>
    %1555 = arith.mulf %1536, %1541 : vector<1x128xf32>
    %1556 = arith.subf %1554, %1555 : vector<1x128xf32>
    %1557 = arith.mulf %1536, %1540 : vector<1x128xf32>
    %1558 = arith.mulf %1537, %1539 : vector<1x128xf32>
    %1559 = arith.subf %1557, %1558 : vector<1x128xf32>
    %1560 = arith.mulf %1547, %1538 : vector<1x128xf32>
    %1561 = arith.mulf %1550, %1537 : vector<1x128xf32>
    %1562 = arith.subf %1560, %1561 : vector<1x128xf32>
    %1563 = arith.mulf %1550, %1536 : vector<1x128xf32>
    %1564 = arith.mulf %1544, %1538 : vector<1x128xf32>
    %1565 = arith.subf %1563, %1564 : vector<1x128xf32>
    %1566 = arith.mulf %1544, %1537 : vector<1x128xf32>
    %1567 = arith.mulf %1547, %1536 : vector<1x128xf32>
    %1568 = arith.subf %1566, %1567 : vector<1x128xf32>
    %1569 = arith.mulf %1562, %1553 : vector<1x128xf32>
    %1570 = arith.mulf %1565, %1556 : vector<1x128xf32>
    %1571 = arith.addf %1569, %1570 : vector<1x128xf32>
    %1572 = arith.mulf %1568, %1559 : vector<1x128xf32>
    %1573 = arith.addf %1571, %1572 : vector<1x128xf32>
    %1574 = arith.mulf %1544, %1553 : vector<1x128xf32>
    %1575 = arith.mulf %1547, %1556 : vector<1x128xf32>
    %1576 = arith.addf %1574, %1575 : vector<1x128xf32>
    %1577 = arith.mulf %1550, %1559 : vector<1x128xf32>
    %1578 = arith.addf %1576, %1577 : vector<1x128xf32>
    %1579 = arith.mulf %1536, %1536 : vector<1x128xf32>
    %1580 = arith.mulf %1537, %1537 : vector<1x128xf32>
    %1581 = arith.addf %1579, %1580 : vector<1x128xf32>
    %1582 = arith.mulf %1538, %1538 : vector<1x128xf32>
    %1583 = arith.addf %1581, %1582 : vector<1x128xf32>
    %cst_511 = arith.constant 1.000000e-24 : f32
    %1584 = vector.broadcast %cst_511 : f32 to vector<1x128xf32>
    %1585 = arith.maximumf %1583, %1584 : vector<1x128xf32>
    %1586 = math.rsqrt %1585 : vector<1x128xf32>
    %1587 = arith.mulf %1536, %1586 : vector<1x128xf32>
    %1588 = arith.mulf %1537, %1586 : vector<1x128xf32>
    %1589 = arith.mulf %1538, %1586 : vector<1x128xf32>
    %1590 = arith.mulf %1573, %1586 : vector<1x128xf32>
    %1591 = arith.mulf %1578, %1578 : vector<1x128xf32>
    %1592 = arith.mulf %1590, %1590 : vector<1x128xf32>
    %1593 = arith.addf %1591, %1592 : vector<1x128xf32>
    %cst_512 = arith.constant 1.000000e-24 : f32
    %1594 = vector.broadcast %cst_512 : f32 to vector<1x128xf32>
    %1595 = arith.maximumf %1593, %1594 : vector<1x128xf32>
    %1596 = math.rsqrt %1595 : vector<1x128xf32>
    %cst_513 = arith.constant 1.000000e-24 : f32
    %1597 = vector.broadcast %cst_513 : f32 to vector<1x128xf32>
    %1598 = arith.cmpf olt, %1593, %1597 : vector<1x128xf32>
    %1599 = arith.mulf %1578, %1596 : vector<1x128xf32>
    %cst_514 = arith.constant 1.000000e+00 : f32
    %1600 = vector.broadcast %cst_514 : f32 to vector<1x128xf32>
    %1601 = arith.select %1598, %1600, %1599 : vector<1x128xi1>, vector<1x128xf32>
    %1602 = arith.mulf %1590, %1596 : vector<1x128xf32>
    %cst_515 = arith.constant 0.000000e+00 : f32
    %1603 = vector.broadcast %cst_515 : f32 to vector<1x128xf32>
    %1604 = arith.select %1598, %1603, %1602 : vector<1x128xi1>, vector<1x128xf32>
    %1605 = vector.extract_strided_slice %3 {offsets = [8, 0], sizes = [1, 128], strides = [1, 1]} : vector<13x128xf32> to vector<1x128xf32>
    %1606 = vector.extract_strided_slice %4 {offsets = [8, 0], sizes = [1, 128], strides = [1, 1]} : vector<13x128xf32> to vector<1x128xf32>
    %1607 = arith.mulf %1605, %1601 : vector<1x128xf32>
    %1608 = arith.mulf %1606, %1604 : vector<1x128xf32>
    %1609 = arith.subf %1607, %1608 : vector<1x128xf32>
    %1610 = arith.mulf %1606, %1601 : vector<1x128xf32>
    %1611 = arith.mulf %1605, %1604 : vector<1x128xf32>
    %1612 = arith.addf %1610, %1611 : vector<1x128xf32>
    %cst_516 = arith.constant 1.000000e+00 : f32
    %1613 = vector.broadcast %cst_516 : f32 to vector<1x128xf32>
    %1614 = arith.subf %1613, %1609 : vector<1x128xf32>
    %1615 = arith.mulf %1614, %1587 : vector<1x128xf32>
    %1616 = arith.mulf %1614, %1588 : vector<1x128xf32>
    %1617 = arith.mulf %1614, %1589 : vector<1x128xf32>
    %1618 = arith.mulf %1612, %1587 : vector<1x128xf32>
    %1619 = arith.mulf %1612, %1588 : vector<1x128xf32>
    %1620 = arith.mulf %1612, %1589 : vector<1x128xf32>
    %1621 = arith.mulf %1615, %1588 : vector<1x128xf32>
    %1622 = arith.mulf %1615, %1589 : vector<1x128xf32>
    %1623 = arith.mulf %1616, %1589 : vector<1x128xf32>
    %1624 = arith.mulf %1615, %1587 : vector<1x128xf32>
    %1625 = arith.addf %1624, %1609 : vector<1x128xf32>
    %1626 = arith.subf %1621, %1620 : vector<1x128xf32>
    %1627 = arith.addf %1622, %1619 : vector<1x128xf32>
    %1628 = arith.addf %1621, %1620 : vector<1x128xf32>
    %1629 = arith.mulf %1616, %1588 : vector<1x128xf32>
    %1630 = arith.addf %1629, %1609 : vector<1x128xf32>
    %1631 = arith.subf %1623, %1618 : vector<1x128xf32>
    %1632 = arith.subf %1622, %1619 : vector<1x128xf32>
    %1633 = arith.addf %1623, %1618 : vector<1x128xf32>
    %1634 = arith.mulf %1617, %1589 : vector<1x128xf32>
    %1635 = arith.addf %1634, %1609 : vector<1x128xf32>
    %c0_517 = arith.constant 0 : index
    %c8_518 = arith.constant 8 : index
    %c0_519 = arith.constant 0 : index
    %1636 = vector.load %arg3[%c0_517, %c8_518, %c0_519] : memref<3x16x128xf32, #tpu.memory_space<vmem>>, vector<1x8x128xf32>
    %1637 = vector.shape_cast %1636 : vector<1x8x128xf32> to vector<8x128xf32>
    %c1_520 = arith.constant 1 : index
    %c8_521 = arith.constant 8 : index
    %c0_522 = arith.constant 0 : index
    %1638 = vector.load %arg3[%c1_520, %c8_521, %c0_522] : memref<3x16x128xf32, #tpu.memory_space<vmem>>, vector<1x8x128xf32>
    %1639 = vector.shape_cast %1638 : vector<1x8x128xf32> to vector<8x128xf32>
    %c2_523 = arith.constant 2 : index
    %c8_524 = arith.constant 8 : index
    %c0_525 = arith.constant 0 : index
    %1640 = vector.load %arg3[%c2_523, %c8_524, %c0_525] : memref<3x16x128xf32, #tpu.memory_space<vmem>>, vector<1x8x128xf32>
    %1641 = vector.shape_cast %1640 : vector<1x8x128xf32> to vector<8x128xf32>
    %1642 = vector.broadcast %1516 : vector<1x128xf32> to vector<8x128xf32>
    %1643 = arith.subf %1637, %1642 : vector<8x128xf32>
    %1644 = vector.broadcast %1518 : vector<1x128xf32> to vector<8x128xf32>
    %1645 = arith.subf %1639, %1644 : vector<8x128xf32>
    %1646 = vector.broadcast %1520 : vector<1x128xf32> to vector<8x128xf32>
    %1647 = arith.subf %1641, %1646 : vector<8x128xf32>
    %1648 = vector.broadcast %1625 : vector<1x128xf32> to vector<8x128xf32>
    %1649 = arith.mulf %1648, %1643 : vector<8x128xf32>
    %1650 = vector.broadcast %1626 : vector<1x128xf32> to vector<8x128xf32>
    %1651 = arith.mulf %1650, %1645 : vector<8x128xf32>
    %1652 = arith.addf %1649, %1651 : vector<8x128xf32>
    %1653 = vector.broadcast %1627 : vector<1x128xf32> to vector<8x128xf32>
    %1654 = arith.mulf %1653, %1647 : vector<8x128xf32>
    %1655 = arith.addf %1652, %1654 : vector<8x128xf32>
    %1656 = vector.broadcast %1516 : vector<1x128xf32> to vector<8x128xf32>
    %1657 = arith.addf %1655, %1656 : vector<8x128xf32>
    %1658 = vector.broadcast %1628 : vector<1x128xf32> to vector<8x128xf32>
    %1659 = arith.mulf %1658, %1643 : vector<8x128xf32>
    %1660 = vector.broadcast %1630 : vector<1x128xf32> to vector<8x128xf32>
    %1661 = arith.mulf %1660, %1645 : vector<8x128xf32>
    %1662 = arith.addf %1659, %1661 : vector<8x128xf32>
    %1663 = vector.broadcast %1631 : vector<1x128xf32> to vector<8x128xf32>
    %1664 = arith.mulf %1663, %1647 : vector<8x128xf32>
    %1665 = arith.addf %1662, %1664 : vector<8x128xf32>
    %1666 = vector.broadcast %1518 : vector<1x128xf32> to vector<8x128xf32>
    %1667 = arith.addf %1665, %1666 : vector<8x128xf32>
    %1668 = vector.broadcast %1632 : vector<1x128xf32> to vector<8x128xf32>
    %1669 = arith.mulf %1668, %1643 : vector<8x128xf32>
    %1670 = vector.broadcast %1633 : vector<1x128xf32> to vector<8x128xf32>
    %1671 = arith.mulf %1670, %1645 : vector<8x128xf32>
    %1672 = arith.addf %1669, %1671 : vector<8x128xf32>
    %1673 = vector.broadcast %1635 : vector<1x128xf32> to vector<8x128xf32>
    %1674 = arith.mulf %1673, %1647 : vector<8x128xf32>
    %1675 = arith.addf %1672, %1674 : vector<8x128xf32>
    %1676 = vector.broadcast %1520 : vector<1x128xf32> to vector<8x128xf32>
    %1677 = arith.addf %1675, %1676 : vector<8x128xf32>
    %1678 = vector.extract_strided_slice %5 {offsets = [8, 0], sizes = [8, 1], strides = [1, 1]} : vector<16x1xi32> to vector<8x1xi32>
    %c11_i32 = arith.constant 11 : i32
    %1679 = vector.broadcast %c11_i32 : i32 to vector<8x1xi32>
    %1680 = arith.cmpi sge, %1678, %1679 : vector<8x1xi32>
    %1681 = vector.shape_cast %1680 : vector<8x1xi1> to vector<8x1xi1>
    %1682 = vector.broadcast %1681 : vector<8x1xi1> to vector<8x128xi1>
    %1683 = arith.select %1682, %1657, %1637 : vector<8x128xi1>, vector<8x128xf32>
    %1684 = vector.shape_cast %1680 : vector<8x1xi1> to vector<8x1xi1>
    %1685 = vector.broadcast %1684 : vector<8x1xi1> to vector<8x128xi1>
    %1686 = arith.select %1685, %1667, %1639 : vector<8x128xi1>, vector<8x128xf32>
    %1687 = vector.shape_cast %1680 : vector<8x1xi1> to vector<8x1xi1>
    %1688 = vector.broadcast %1687 : vector<8x1xi1> to vector<8x128xi1>
    %1689 = arith.select %1688, %1677, %1641 : vector<8x128xi1>, vector<8x128xf32>
    %c0_526 = arith.constant 0 : index
    %c8_527 = arith.constant 8 : index
    %c0_528 = arith.constant 0 : index
    %1690 = vector.load %arg3[%c0_526, %c8_527, %c0_528] : memref<3x16x128xf32, #tpu.memory_space<vmem>>, vector<1x8x128xf32>
    %1691 = vector.shape_cast %1690 : vector<1x8x128xf32> to vector<8x128xf32>
    %1692 = vector.shape_cast %1683 : vector<8x128xf32> to vector<1x8x128xf32>
    tpu.vector_store %arg3[%c0_526, %c8_527, %c0_528], %1692 {strides = array<i32>} : memref<3x16x128xf32, #tpu.memory_space<vmem>>, vector<1x8x128xf32>,
    %c1_529 = arith.constant 1 : index
    %c8_530 = arith.constant 8 : index
    %c0_531 = arith.constant 0 : index
    %1693 = vector.load %arg3[%c1_529, %c8_530, %c0_531] : memref<3x16x128xf32, #tpu.memory_space<vmem>>, vector<1x8x128xf32>
    %1694 = vector.shape_cast %1693 : vector<1x8x128xf32> to vector<8x128xf32>
    %1695 = vector.shape_cast %1686 : vector<8x128xf32> to vector<1x8x128xf32>
    tpu.vector_store %arg3[%c1_529, %c8_530, %c0_531], %1695 {strides = array<i32>} : memref<3x16x128xf32, #tpu.memory_space<vmem>>, vector<1x8x128xf32>,
    %c2_532 = arith.constant 2 : index
    %c8_533 = arith.constant 8 : index
    %c0_534 = arith.constant 0 : index
    %1696 = vector.load %arg3[%c2_532, %c8_533, %c0_534] : memref<3x16x128xf32, #tpu.memory_space<vmem>>, vector<1x8x128xf32>
    %1697 = vector.shape_cast %1696 : vector<1x8x128xf32> to vector<8x128xf32>
    %1698 = vector.shape_cast %1689 : vector<8x128xf32> to vector<1x8x128xf32>
    tpu.vector_store %arg3[%c2_532, %c8_533, %c0_534], %1698 {strides = array<i32>} : memref<3x16x128xf32, #tpu.memory_space<vmem>>, vector<1x8x128xf32>,
    %c0_535 = arith.constant 0 : index
    %c9_536 = arith.constant 9 : index
    %c0_537 = arith.constant 0 : index
    %1699 = vector.load %arg3[%c0_535, %c9_536, %c0_537] : memref<3x16x128xf32, #tpu.memory_space<vmem>>, vector<1x1x128xf32>
    %1700 = vector.shape_cast %1699 : vector<1x1x128xf32> to vector<1x128xf32>
    %c1_538 = arith.constant 1 : index
    %c9_539 = arith.constant 9 : index
    %c0_540 = arith.constant 0 : index
    %1701 = vector.load %arg3[%c1_538, %c9_539, %c0_540] : memref<3x16x128xf32, #tpu.memory_space<vmem>>, vector<1x1x128xf32>
    %1702 = vector.shape_cast %1701 : vector<1x1x128xf32> to vector<1x128xf32>
    %c2_541 = arith.constant 2 : index
    %c9_542 = arith.constant 9 : index
    %c0_543 = arith.constant 0 : index
    %1703 = vector.load %arg3[%c2_541, %c9_542, %c0_543] : memref<3x16x128xf32, #tpu.memory_space<vmem>>, vector<1x1x128xf32>
    %1704 = vector.shape_cast %1703 : vector<1x1x128xf32> to vector<1x128xf32>
    %c0_544 = arith.constant 0 : index
    %c10_545 = arith.constant 10 : index
    %c0_546 = arith.constant 0 : index
    %1705 = vector.load %arg3[%c0_544, %c10_545, %c0_546] : memref<3x16x128xf32, #tpu.memory_space<vmem>>, vector<1x1x128xf32>
    %1706 = vector.shape_cast %1705 : vector<1x1x128xf32> to vector<1x128xf32>
    %c1_547 = arith.constant 1 : index
    %c10_548 = arith.constant 10 : index
    %c0_549 = arith.constant 0 : index
    %1707 = vector.load %arg3[%c1_547, %c10_548, %c0_549] : memref<3x16x128xf32, #tpu.memory_space<vmem>>, vector<1x1x128xf32>
    %1708 = vector.shape_cast %1707 : vector<1x1x128xf32> to vector<1x128xf32>
    %c2_550 = arith.constant 2 : index
    %c10_551 = arith.constant 10 : index
    %c0_552 = arith.constant 0 : index
    %1709 = vector.load %arg3[%c2_550, %c10_551, %c0_552] : memref<3x16x128xf32, #tpu.memory_space<vmem>>, vector<1x1x128xf32>
    %1710 = vector.shape_cast %1709 : vector<1x1x128xf32> to vector<1x128xf32>
    %c0_553 = arith.constant 0 : index
    %c11_554 = arith.constant 11 : index
    %c0_555 = arith.constant 0 : index
    %1711 = vector.load %arg3[%c0_553, %c11_554, %c0_555] : memref<3x16x128xf32, #tpu.memory_space<vmem>>, vector<1x1x128xf32>
    %1712 = vector.shape_cast %1711 : vector<1x1x128xf32> to vector<1x128xf32>
    %c1_556 = arith.constant 1 : index
    %c11_557 = arith.constant 11 : index
    %c0_558 = arith.constant 0 : index
    %1713 = vector.load %arg3[%c1_556, %c11_557, %c0_558] : memref<3x16x128xf32, #tpu.memory_space<vmem>>, vector<1x1x128xf32>
    %1714 = vector.shape_cast %1713 : vector<1x1x128xf32> to vector<1x128xf32>
    %c2_559 = arith.constant 2 : index
    %c11_560 = arith.constant 11 : index
    %c0_561 = arith.constant 0 : index
    %1715 = vector.load %arg3[%c2_559, %c11_560, %c0_561] : memref<3x16x128xf32, #tpu.memory_space<vmem>>, vector<1x1x128xf32>
    %1716 = vector.shape_cast %1715 : vector<1x1x128xf32> to vector<1x128xf32>
    %c0_562 = arith.constant 0 : index
    %c12 = arith.constant 12 : index
    %c0_563 = arith.constant 0 : index
    %1717 = vector.load %arg3[%c0_562, %c12, %c0_563] : memref<3x16x128xf32, #tpu.memory_space<vmem>>, vector<1x1x128xf32>
    %1718 = vector.shape_cast %1717 : vector<1x1x128xf32> to vector<1x128xf32>
    %c1_564 = arith.constant 1 : index
    %c12_565 = arith.constant 12 : index
    %c0_566 = arith.constant 0 : index
    %1719 = vector.load %arg3[%c1_564, %c12_565, %c0_566] : memref<3x16x128xf32, #tpu.memory_space<vmem>>, vector<1x1x128xf32>
    %1720 = vector.shape_cast %1719 : vector<1x1x128xf32> to vector<1x128xf32>
    %c2_567 = arith.constant 2 : index
    %c12_568 = arith.constant 12 : index
    %c0_569 = arith.constant 0 : index
    %1721 = vector.load %arg3[%c2_567, %c12_568, %c0_569] : memref<3x16x128xf32, #tpu.memory_space<vmem>>, vector<1x1x128xf32>
    %1722 = vector.shape_cast %1721 : vector<1x1x128xf32> to vector<1x128xf32>
    %1723 = arith.subf %1706, %1700 : vector<1x128xf32>
    %1724 = arith.subf %1708, %1702 : vector<1x128xf32>
    %1725 = arith.subf %1710, %1704 : vector<1x128xf32>
    %1726 = arith.subf %1712, %1706 : vector<1x128xf32>
    %1727 = arith.subf %1714, %1708 : vector<1x128xf32>
    %1728 = arith.subf %1716, %1710 : vector<1x128xf32>
    %1729 = arith.subf %1718, %1712 : vector<1x128xf32>
    %1730 = arith.subf %1720, %1714 : vector<1x128xf32>
    %1731 = arith.subf %1722, %1716 : vector<1x128xf32>
    %1732 = arith.mulf %1724, %1728 : vector<1x128xf32>
    %1733 = arith.mulf %1725, %1727 : vector<1x128xf32>
    %1734 = arith.subf %1732, %1733 : vector<1x128xf32>
    %1735 = arith.mulf %1725, %1726 : vector<1x128xf32>
    %1736 = arith.mulf %1723, %1728 : vector<1x128xf32>
    %1737 = arith.subf %1735, %1736 : vector<1x128xf32>
    %1738 = arith.mulf %1723, %1727 : vector<1x128xf32>
    %1739 = arith.mulf %1724, %1726 : vector<1x128xf32>
    %1740 = arith.subf %1738, %1739 : vector<1x128xf32>
    %1741 = arith.mulf %1727, %1731 : vector<1x128xf32>
    %1742 = arith.mulf %1728, %1730 : vector<1x128xf32>
    %1743 = arith.subf %1741, %1742 : vector<1x128xf32>
    %1744 = arith.mulf %1728, %1729 : vector<1x128xf32>
    %1745 = arith.mulf %1726, %1731 : vector<1x128xf32>
    %1746 = arith.subf %1744, %1745 : vector<1x128xf32>
    %1747 = arith.mulf %1726, %1730 : vector<1x128xf32>
    %1748 = arith.mulf %1727, %1729 : vector<1x128xf32>
    %1749 = arith.subf %1747, %1748 : vector<1x128xf32>
    %1750 = arith.mulf %1737, %1728 : vector<1x128xf32>
    %1751 = arith.mulf %1740, %1727 : vector<1x128xf32>
    %1752 = arith.subf %1750, %1751 : vector<1x128xf32>
    %1753 = arith.mulf %1740, %1726 : vector<1x128xf32>
    %1754 = arith.mulf %1734, %1728 : vector<1x128xf32>
    %1755 = arith.subf %1753, %1754 : vector<1x128xf32>
    %1756 = arith.mulf %1734, %1727 : vector<1x128xf32>
    %1757 = arith.mulf %1737, %1726 : vector<1x128xf32>
    %1758 = arith.subf %1756, %1757 : vector<1x128xf32>
    %1759 = arith.mulf %1752, %1743 : vector<1x128xf32>
    %1760 = arith.mulf %1755, %1746 : vector<1x128xf32>
    %1761 = arith.addf %1759, %1760 : vector<1x128xf32>
    %1762 = arith.mulf %1758, %1749 : vector<1x128xf32>
    %1763 = arith.addf %1761, %1762 : vector<1x128xf32>
    %1764 = arith.mulf %1734, %1743 : vector<1x128xf32>
    %1765 = arith.mulf %1737, %1746 : vector<1x128xf32>
    %1766 = arith.addf %1764, %1765 : vector<1x128xf32>
    %1767 = arith.mulf %1740, %1749 : vector<1x128xf32>
    %1768 = arith.addf %1766, %1767 : vector<1x128xf32>
    %1769 = arith.mulf %1726, %1726 : vector<1x128xf32>
    %1770 = arith.mulf %1727, %1727 : vector<1x128xf32>
    %1771 = arith.addf %1769, %1770 : vector<1x128xf32>
    %1772 = arith.mulf %1728, %1728 : vector<1x128xf32>
    %1773 = arith.addf %1771, %1772 : vector<1x128xf32>
    %cst_570 = arith.constant 1.000000e-24 : f32
    %1774 = vector.broadcast %cst_570 : f32 to vector<1x128xf32>
    %1775 = arith.maximumf %1773, %1774 : vector<1x128xf32>
    %1776 = math.rsqrt %1775 : vector<1x128xf32>
    %1777 = arith.mulf %1726, %1776 : vector<1x128xf32>
    %1778 = arith.mulf %1727, %1776 : vector<1x128xf32>
    %1779 = arith.mulf %1728, %1776 : vector<1x128xf32>
    %1780 = arith.mulf %1763, %1776 : vector<1x128xf32>
    %1781 = arith.mulf %1768, %1768 : vector<1x128xf32>
    %1782 = arith.mulf %1780, %1780 : vector<1x128xf32>
    %1783 = arith.addf %1781, %1782 : vector<1x128xf32>
    %cst_571 = arith.constant 1.000000e-24 : f32
    %1784 = vector.broadcast %cst_571 : f32 to vector<1x128xf32>
    %1785 = arith.maximumf %1783, %1784 : vector<1x128xf32>
    %1786 = math.rsqrt %1785 : vector<1x128xf32>
    %cst_572 = arith.constant 1.000000e-24 : f32
    %1787 = vector.broadcast %cst_572 : f32 to vector<1x128xf32>
    %1788 = arith.cmpf olt, %1783, %1787 : vector<1x128xf32>
    %1789 = arith.mulf %1768, %1786 : vector<1x128xf32>
    %cst_573 = arith.constant 1.000000e+00 : f32
    %1790 = vector.broadcast %cst_573 : f32 to vector<1x128xf32>
    %1791 = arith.select %1788, %1790, %1789 : vector<1x128xi1>, vector<1x128xf32>
    %1792 = arith.mulf %1780, %1786 : vector<1x128xf32>
    %cst_574 = arith.constant 0.000000e+00 : f32
    %1793 = vector.broadcast %cst_574 : f32 to vector<1x128xf32>
    %1794 = arith.select %1788, %1793, %1792 : vector<1x128xi1>, vector<1x128xf32>
    %1795 = vector.extract_strided_slice %3 {offsets = [9, 0], sizes = [1, 128], strides = [1, 1]} : vector<13x128xf32> to vector<1x128xf32>
    %1796 = vector.extract_strided_slice %4 {offsets = [9, 0], sizes = [1, 128], strides = [1, 1]} : vector<13x128xf32> to vector<1x128xf32>
    %1797 = arith.mulf %1795, %1791 : vector<1x128xf32>
    %1798 = arith.mulf %1796, %1794 : vector<1x128xf32>
    %1799 = arith.subf %1797, %1798 : vector<1x128xf32>
    %1800 = arith.mulf %1796, %1791 : vector<1x128xf32>
    %1801 = arith.mulf %1795, %1794 : vector<1x128xf32>
    %1802 = arith.addf %1800, %1801 : vector<1x128xf32>
    %cst_575 = arith.constant 1.000000e+00 : f32
    %1803 = vector.broadcast %cst_575 : f32 to vector<1x128xf32>
    %1804 = arith.subf %1803, %1799 : vector<1x128xf32>
    %1805 = arith.mulf %1804, %1777 : vector<1x128xf32>
    %1806 = arith.mulf %1804, %1778 : vector<1x128xf32>
    %1807 = arith.mulf %1804, %1779 : vector<1x128xf32>
    %1808 = arith.mulf %1802, %1777 : vector<1x128xf32>
    %1809 = arith.mulf %1802, %1778 : vector<1x128xf32>
    %1810 = arith.mulf %1802, %1779 : vector<1x128xf32>
    %1811 = arith.mulf %1805, %1778 : vector<1x128xf32>
    %1812 = arith.mulf %1805, %1779 : vector<1x128xf32>
    %1813 = arith.mulf %1806, %1779 : vector<1x128xf32>
    %1814 = arith.mulf %1805, %1777 : vector<1x128xf32>
    %1815 = arith.addf %1814, %1799 : vector<1x128xf32>
    %1816 = arith.subf %1811, %1810 : vector<1x128xf32>
    %1817 = arith.addf %1812, %1809 : vector<1x128xf32>
    %1818 = arith.addf %1811, %1810 : vector<1x128xf32>
    %1819 = arith.mulf %1806, %1778 : vector<1x128xf32>
    %1820 = arith.addf %1819, %1799 : vector<1x128xf32>
    %1821 = arith.subf %1813, %1808 : vector<1x128xf32>
    %1822 = arith.subf %1812, %1809 : vector<1x128xf32>
    %1823 = arith.addf %1813, %1808 : vector<1x128xf32>
    %1824 = arith.mulf %1807, %1779 : vector<1x128xf32>
    %1825 = arith.addf %1824, %1799 : vector<1x128xf32>
    %c0_576 = arith.constant 0 : index
    %c8_577 = arith.constant 8 : index
    %c0_578 = arith.constant 0 : index
    %1826 = vector.load %arg3[%c0_576, %c8_577, %c0_578] : memref<3x16x128xf32, #tpu.memory_space<vmem>>, vector<1x8x128xf32>
    %1827 = vector.shape_cast %1826 : vector<1x8x128xf32> to vector<8x128xf32>
    %c1_579 = arith.constant 1 : index
    %c8_580 = arith.constant 8 : index
    %c0_581 = arith.constant 0 : index
    %1828 = vector.load %arg3[%c1_579, %c8_580, %c0_581] : memref<3x16x128xf32, #tpu.memory_space<vmem>>, vector<1x8x128xf32>
    %1829 = vector.shape_cast %1828 : vector<1x8x128xf32> to vector<8x128xf32>
    %c2_582 = arith.constant 2 : index
    %c8_583 = arith.constant 8 : index
    %c0_584 = arith.constant 0 : index
    %1830 = vector.load %arg3[%c2_582, %c8_583, %c0_584] : memref<3x16x128xf32, #tpu.memory_space<vmem>>, vector<1x8x128xf32>
    %1831 = vector.shape_cast %1830 : vector<1x8x128xf32> to vector<8x128xf32>
    %1832 = vector.broadcast %1706 : vector<1x128xf32> to vector<8x128xf32>
    %1833 = arith.subf %1827, %1832 : vector<8x128xf32>
    %1834 = vector.broadcast %1708 : vector<1x128xf32> to vector<8x128xf32>
    %1835 = arith.subf %1829, %1834 : vector<8x128xf32>
    %1836 = vector.broadcast %1710 : vector<1x128xf32> to vector<8x128xf32>
    %1837 = arith.subf %1831, %1836 : vector<8x128xf32>
    %1838 = vector.broadcast %1815 : vector<1x128xf32> to vector<8x128xf32>
    %1839 = arith.mulf %1838, %1833 : vector<8x128xf32>
    %1840 = vector.broadcast %1816 : vector<1x128xf32> to vector<8x128xf32>
    %1841 = arith.mulf %1840, %1835 : vector<8x128xf32>
    %1842 = arith.addf %1839, %1841 : vector<8x128xf32>
    %1843 = vector.broadcast %1817 : vector<1x128xf32> to vector<8x128xf32>
    %1844 = arith.mulf %1843, %1837 : vector<8x128xf32>
    %1845 = arith.addf %1842, %1844 : vector<8x128xf32>
    %1846 = vector.broadcast %1706 : vector<1x128xf32> to vector<8x128xf32>
    %1847 = arith.addf %1845, %1846 : vector<8x128xf32>
    %1848 = vector.broadcast %1818 : vector<1x128xf32> to vector<8x128xf32>
    %1849 = arith.mulf %1848, %1833 : vector<8x128xf32>
    %1850 = vector.broadcast %1820 : vector<1x128xf32> to vector<8x128xf32>
    %1851 = arith.mulf %1850, %1835 : vector<8x128xf32>
    %1852 = arith.addf %1849, %1851 : vector<8x128xf32>
    %1853 = vector.broadcast %1821 : vector<1x128xf32> to vector<8x128xf32>
    %1854 = arith.mulf %1853, %1837 : vector<8x128xf32>
    %1855 = arith.addf %1852, %1854 : vector<8x128xf32>
    %1856 = vector.broadcast %1708 : vector<1x128xf32> to vector<8x128xf32>
    %1857 = arith.addf %1855, %1856 : vector<8x128xf32>
    %1858 = vector.broadcast %1822 : vector<1x128xf32> to vector<8x128xf32>
    %1859 = arith.mulf %1858, %1833 : vector<8x128xf32>
    %1860 = vector.broadcast %1823 : vector<1x128xf32> to vector<8x128xf32>
    %1861 = arith.mulf %1860, %1835 : vector<8x128xf32>
    %1862 = arith.addf %1859, %1861 : vector<8x128xf32>
    %1863 = vector.broadcast %1825 : vector<1x128xf32> to vector<8x128xf32>
    %1864 = arith.mulf %1863, %1837 : vector<8x128xf32>
    %1865 = arith.addf %1862, %1864 : vector<8x128xf32>
    %1866 = vector.broadcast %1710 : vector<1x128xf32> to vector<8x128xf32>
    %1867 = arith.addf %1865, %1866 : vector<8x128xf32>
    %1868 = vector.extract_strided_slice %5 {offsets = [8, 0], sizes = [8, 1], strides = [1, 1]} : vector<16x1xi32> to vector<8x1xi32>
    %c12_i32 = arith.constant 12 : i32
    %1869 = vector.broadcast %c12_i32 : i32 to vector<8x1xi32>
    %1870 = arith.cmpi sge, %1868, %1869 : vector<8x1xi32>
    %1871 = vector.shape_cast %1870 : vector<8x1xi1> to vector<8x1xi1>
    %1872 = vector.broadcast %1871 : vector<8x1xi1> to vector<8x128xi1>
    %1873 = arith.select %1872, %1847, %1827 : vector<8x128xi1>, vector<8x128xf32>
    %1874 = vector.shape_cast %1870 : vector<8x1xi1> to vector<8x1xi1>
    %1875 = vector.broadcast %1874 : vector<8x1xi1> to vector<8x128xi1>
    %1876 = arith.select %1875, %1857, %1829 : vector<8x128xi1>, vector<8x128xf32>
    %1877 = vector.shape_cast %1870 : vector<8x1xi1> to vector<8x1xi1>
    %1878 = vector.broadcast %1877 : vector<8x1xi1> to vector<8x128xi1>
    %1879 = arith.select %1878, %1867, %1831 : vector<8x128xi1>, vector<8x128xf32>
    %c0_585 = arith.constant 0 : index
    %c8_586 = arith.constant 8 : index
    %c0_587 = arith.constant 0 : index
    %1880 = vector.load %arg3[%c0_585, %c8_586, %c0_587] : memref<3x16x128xf32, #tpu.memory_space<vmem>>, vector<1x8x128xf32>
    %1881 = vector.shape_cast %1880 : vector<1x8x128xf32> to vector<8x128xf32>
    %1882 = vector.shape_cast %1873 : vector<8x128xf32> to vector<1x8x128xf32>
    tpu.vector_store %arg3[%c0_585, %c8_586, %c0_587], %1882 {strides = array<i32>} : memref<3x16x128xf32, #tpu.memory_space<vmem>>, vector<1x8x128xf32>,
    %c1_588 = arith.constant 1 : index
    %c8_589 = arith.constant 8 : index
    %c0_590 = arith.constant 0 : index
    %1883 = vector.load %arg3[%c1_588, %c8_589, %c0_590] : memref<3x16x128xf32, #tpu.memory_space<vmem>>, vector<1x8x128xf32>
    %1884 = vector.shape_cast %1883 : vector<1x8x128xf32> to vector<8x128xf32>
    %1885 = vector.shape_cast %1876 : vector<8x128xf32> to vector<1x8x128xf32>
    tpu.vector_store %arg3[%c1_588, %c8_589, %c0_590], %1885 {strides = array<i32>} : memref<3x16x128xf32, #tpu.memory_space<vmem>>, vector<1x8x128xf32>,
    %c2_591 = arith.constant 2 : index
    %c8_592 = arith.constant 8 : index
    %c0_593 = arith.constant 0 : index
    %1886 = vector.load %arg3[%c2_591, %c8_592, %c0_593] : memref<3x16x128xf32, #tpu.memory_space<vmem>>, vector<1x8x128xf32>
    %1887 = vector.shape_cast %1886 : vector<1x8x128xf32> to vector<8x128xf32>
    %1888 = vector.shape_cast %1879 : vector<8x128xf32> to vector<1x8x128xf32>
    tpu.vector_store %arg3[%c2_591, %c8_592, %c0_593], %1888 {strides = array<i32>} : memref<3x16x128xf32, #tpu.memory_space<vmem>>, vector<1x8x128xf32>,
    %c0_594 = arith.constant 0 : index
    %c10_595 = arith.constant 10 : index
    %c0_596 = arith.constant 0 : index
    %1889 = vector.load %arg3[%c0_594, %c10_595, %c0_596] : memref<3x16x128xf32, #tpu.memory_space<vmem>>, vector<1x1x128xf32>
    %1890 = vector.shape_cast %1889 : vector<1x1x128xf32> to vector<1x128xf32>
    %c1_597 = arith.constant 1 : index
    %c10_598 = arith.constant 10 : index
    %c0_599 = arith.constant 0 : index
    %1891 = vector.load %arg3[%c1_597, %c10_598, %c0_599] : memref<3x16x128xf32, #tpu.memory_space<vmem>>, vector<1x1x128xf32>
    %1892 = vector.shape_cast %1891 : vector<1x1x128xf32> to vector<1x128xf32>
    %c2_600 = arith.constant 2 : index
    %c10_601 = arith.constant 10 : index
    %c0_602 = arith.constant 0 : index
    %1893 = vector.load %arg3[%c2_600, %c10_601, %c0_602] : memref<3x16x128xf32, #tpu.memory_space<vmem>>, vector<1x1x128xf32>
    %1894 = vector.shape_cast %1893 : vector<1x1x128xf32> to vector<1x128xf32>
    %c0_603 = arith.constant 0 : index
    %c11_604 = arith.constant 11 : index
    %c0_605 = arith.constant 0 : index
    %1895 = vector.load %arg3[%c0_603, %c11_604, %c0_605] : memref<3x16x128xf32, #tpu.memory_space<vmem>>, vector<1x1x128xf32>
    %1896 = vector.shape_cast %1895 : vector<1x1x128xf32> to vector<1x128xf32>
    %c1_606 = arith.constant 1 : index
    %c11_607 = arith.constant 11 : index
    %c0_608 = arith.constant 0 : index
    %1897 = vector.load %arg3[%c1_606, %c11_607, %c0_608] : memref<3x16x128xf32, #tpu.memory_space<vmem>>, vector<1x1x128xf32>
    %1898 = vector.shape_cast %1897 : vector<1x1x128xf32> to vector<1x128xf32>
    %c2_609 = arith.constant 2 : index
    %c11_610 = arith.constant 11 : index
    %c0_611 = arith.constant 0 : index
    %1899 = vector.load %arg3[%c2_609, %c11_610, %c0_611] : memref<3x16x128xf32, #tpu.memory_space<vmem>>, vector<1x1x128xf32>
    %1900 = vector.shape_cast %1899 : vector<1x1x128xf32> to vector<1x128xf32>
    %c0_612 = arith.constant 0 : index
    %c12_613 = arith.constant 12 : index
    %c0_614 = arith.constant 0 : index
    %1901 = vector.load %arg3[%c0_612, %c12_613, %c0_614] : memref<3x16x128xf32, #tpu.memory_space<vmem>>, vector<1x1x128xf32>
    %1902 = vector.shape_cast %1901 : vector<1x1x128xf32> to vector<1x128xf32>
    %c1_615 = arith.constant 1 : index
    %c12_616 = arith.constant 12 : index
    %c0_617 = arith.constant 0 : index
    %1903 = vector.load %arg3[%c1_615, %c12_616, %c0_617] : memref<3x16x128xf32, #tpu.memory_space<vmem>>, vector<1x1x128xf32>
    %1904 = vector.shape_cast %1903 : vector<1x1x128xf32> to vector<1x128xf32>
    %c2_618 = arith.constant 2 : index
    %c12_619 = arith.constant 12 : index
    %c0_620 = arith.constant 0 : index
    %1905 = vector.load %arg3[%c2_618, %c12_619, %c0_620] : memref<3x16x128xf32, #tpu.memory_space<vmem>>, vector<1x1x128xf32>
    %1906 = vector.shape_cast %1905 : vector<1x1x128xf32> to vector<1x128xf32>
    %c0_621 = arith.constant 0 : index
    %c13 = arith.constant 13 : index
    %c0_622 = arith.constant 0 : index
    %1907 = vector.load %arg3[%c0_621, %c13, %c0_622] : memref<3x16x128xf32, #tpu.memory_space<vmem>>, vector<1x1x128xf32>
    %1908 = vector.shape_cast %1907 : vector<1x1x128xf32> to vector<1x128xf32>
    %c1_623 = arith.constant 1 : index
    %c13_624 = arith.constant 13 : index
    %c0_625 = arith.constant 0 : index
    %1909 = vector.load %arg3[%c1_623, %c13_624, %c0_625] : memref<3x16x128xf32, #tpu.memory_space<vmem>>, vector<1x1x128xf32>
    %1910 = vector.shape_cast %1909 : vector<1x1x128xf32> to vector<1x128xf32>
    %c2_626 = arith.constant 2 : index
    %c13_627 = arith.constant 13 : index
    %c0_628 = arith.constant 0 : index
    %1911 = vector.load %arg3[%c2_626, %c13_627, %c0_628] : memref<3x16x128xf32, #tpu.memory_space<vmem>>, vector<1x1x128xf32>
    %1912 = vector.shape_cast %1911 : vector<1x1x128xf32> to vector<1x128xf32>
    %1913 = arith.subf %1896, %1890 : vector<1x128xf32>
    %1914 = arith.subf %1898, %1892 : vector<1x128xf32>
    %1915 = arith.subf %1900, %1894 : vector<1x128xf32>
    %1916 = arith.subf %1902, %1896 : vector<1x128xf32>
    %1917 = arith.subf %1904, %1898 : vector<1x128xf32>
    %1918 = arith.subf %1906, %1900 : vector<1x128xf32>
    %1919 = arith.subf %1908, %1902 : vector<1x128xf32>
    %1920 = arith.subf %1910, %1904 : vector<1x128xf32>
    %1921 = arith.subf %1912, %1906 : vector<1x128xf32>
    %1922 = arith.mulf %1914, %1918 : vector<1x128xf32>
    %1923 = arith.mulf %1915, %1917 : vector<1x128xf32>
    %1924 = arith.subf %1922, %1923 : vector<1x128xf32>
    %1925 = arith.mulf %1915, %1916 : vector<1x128xf32>
    %1926 = arith.mulf %1913, %1918 : vector<1x128xf32>
    %1927 = arith.subf %1925, %1926 : vector<1x128xf32>
    %1928 = arith.mulf %1913, %1917 : vector<1x128xf32>
    %1929 = arith.mulf %1914, %1916 : vector<1x128xf32>
    %1930 = arith.subf %1928, %1929 : vector<1x128xf32>
    %1931 = arith.mulf %1917, %1921 : vector<1x128xf32>
    %1932 = arith.mulf %1918, %1920 : vector<1x128xf32>
    %1933 = arith.subf %1931, %1932 : vector<1x128xf32>
    %1934 = arith.mulf %1918, %1919 : vector<1x128xf32>
    %1935 = arith.mulf %1916, %1921 : vector<1x128xf32>
    %1936 = arith.subf %1934, %1935 : vector<1x128xf32>
    %1937 = arith.mulf %1916, %1920 : vector<1x128xf32>
    %1938 = arith.mulf %1917, %1919 : vector<1x128xf32>
    %1939 = arith.subf %1937, %1938 : vector<1x128xf32>
    %1940 = arith.mulf %1927, %1918 : vector<1x128xf32>
    %1941 = arith.mulf %1930, %1917 : vector<1x128xf32>
    %1942 = arith.subf %1940, %1941 : vector<1x128xf32>
    %1943 = arith.mulf %1930, %1916 : vector<1x128xf32>
    %1944 = arith.mulf %1924, %1918 : vector<1x128xf32>
    %1945 = arith.subf %1943, %1944 : vector<1x128xf32>
    %1946 = arith.mulf %1924, %1917 : vector<1x128xf32>
    %1947 = arith.mulf %1927, %1916 : vector<1x128xf32>
    %1948 = arith.subf %1946, %1947 : vector<1x128xf32>
    %1949 = arith.mulf %1942, %1933 : vector<1x128xf32>
    %1950 = arith.mulf %1945, %1936 : vector<1x128xf32>
    %1951 = arith.addf %1949, %1950 : vector<1x128xf32>
    %1952 = arith.mulf %1948, %1939 : vector<1x128xf32>
    %1953 = arith.addf %1951, %1952 : vector<1x128xf32>
    %1954 = arith.mulf %1924, %1933 : vector<1x128xf32>
    %1955 = arith.mulf %1927, %1936 : vector<1x128xf32>
    %1956 = arith.addf %1954, %1955 : vector<1x128xf32>
    %1957 = arith.mulf %1930, %1939 : vector<1x128xf32>
    %1958 = arith.addf %1956, %1957 : vector<1x128xf32>
    %1959 = arith.mulf %1916, %1916 : vector<1x128xf32>
    %1960 = arith.mulf %1917, %1917 : vector<1x128xf32>
    %1961 = arith.addf %1959, %1960 : vector<1x128xf32>
    %1962 = arith.mulf %1918, %1918 : vector<1x128xf32>
    %1963 = arith.addf %1961, %1962 : vector<1x128xf32>
    %cst_629 = arith.constant 1.000000e-24 : f32
    %1964 = vector.broadcast %cst_629 : f32 to vector<1x128xf32>
    %1965 = arith.maximumf %1963, %1964 : vector<1x128xf32>
    %1966 = math.rsqrt %1965 : vector<1x128xf32>
    %1967 = arith.mulf %1916, %1966 : vector<1x128xf32>
    %1968 = arith.mulf %1917, %1966 : vector<1x128xf32>
    %1969 = arith.mulf %1918, %1966 : vector<1x128xf32>
    %1970 = arith.mulf %1953, %1966 : vector<1x128xf32>
    %1971 = arith.mulf %1958, %1958 : vector<1x128xf32>
    %1972 = arith.mulf %1970, %1970 : vector<1x128xf32>
    %1973 = arith.addf %1971, %1972 : vector<1x128xf32>
    %cst_630 = arith.constant 1.000000e-24 : f32
    %1974 = vector.broadcast %cst_630 : f32 to vector<1x128xf32>
    %1975 = arith.maximumf %1973, %1974 : vector<1x128xf32>
    %1976 = math.rsqrt %1975 : vector<1x128xf32>
    %cst_631 = arith.constant 1.000000e-24 : f32
    %1977 = vector.broadcast %cst_631 : f32 to vector<1x128xf32>
    %1978 = arith.cmpf olt, %1973, %1977 : vector<1x128xf32>
    %1979 = arith.mulf %1958, %1976 : vector<1x128xf32>
    %cst_632 = arith.constant 1.000000e+00 : f32
    %1980 = vector.broadcast %cst_632 : f32 to vector<1x128xf32>
    %1981 = arith.select %1978, %1980, %1979 : vector<1x128xi1>, vector<1x128xf32>
    %1982 = arith.mulf %1970, %1976 : vector<1x128xf32>
    %cst_633 = arith.constant 0.000000e+00 : f32
    %1983 = vector.broadcast %cst_633 : f32 to vector<1x128xf32>
    %1984 = arith.select %1978, %1983, %1982 : vector<1x128xi1>, vector<1x128xf32>
    %1985 = vector.extract_strided_slice %3 {offsets = [10, 0], sizes = [1, 128], strides = [1, 1]} : vector<13x128xf32> to vector<1x128xf32>
    %1986 = vector.extract_strided_slice %4 {offsets = [10, 0], sizes = [1, 128], strides = [1, 1]} : vector<13x128xf32> to vector<1x128xf32>
    %1987 = arith.mulf %1985, %1981 : vector<1x128xf32>
    %1988 = arith.mulf %1986, %1984 : vector<1x128xf32>
    %1989 = arith.subf %1987, %1988 : vector<1x128xf32>
    %1990 = arith.mulf %1986, %1981 : vector<1x128xf32>
    %1991 = arith.mulf %1985, %1984 : vector<1x128xf32>
    %1992 = arith.addf %1990, %1991 : vector<1x128xf32>
    %cst_634 = arith.constant 1.000000e+00 : f32
    %1993 = vector.broadcast %cst_634 : f32 to vector<1x128xf32>
    %1994 = arith.subf %1993, %1989 : vector<1x128xf32>
    %1995 = arith.mulf %1994, %1967 : vector<1x128xf32>
    %1996 = arith.mulf %1994, %1968 : vector<1x128xf32>
    %1997 = arith.mulf %1994, %1969 : vector<1x128xf32>
    %1998 = arith.mulf %1992, %1967 : vector<1x128xf32>
    %1999 = arith.mulf %1992, %1968 : vector<1x128xf32>
    %2000 = arith.mulf %1992, %1969 : vector<1x128xf32>
    %2001 = arith.mulf %1995, %1968 : vector<1x128xf32>
    %2002 = arith.mulf %1995, %1969 : vector<1x128xf32>
    %2003 = arith.mulf %1996, %1969 : vector<1x128xf32>
    %2004 = arith.mulf %1995, %1967 : vector<1x128xf32>
    %2005 = arith.addf %2004, %1989 : vector<1x128xf32>
    %2006 = arith.subf %2001, %2000 : vector<1x128xf32>
    %2007 = arith.addf %2002, %1999 : vector<1x128xf32>
    %2008 = arith.addf %2001, %2000 : vector<1x128xf32>
    %2009 = arith.mulf %1996, %1968 : vector<1x128xf32>
    %2010 = arith.addf %2009, %1989 : vector<1x128xf32>
    %2011 = arith.subf %2003, %1998 : vector<1x128xf32>
    %2012 = arith.subf %2002, %1999 : vector<1x128xf32>
    %2013 = arith.addf %2003, %1998 : vector<1x128xf32>
    %2014 = arith.mulf %1997, %1969 : vector<1x128xf32>
    %2015 = arith.addf %2014, %1989 : vector<1x128xf32>
    %c0_635 = arith.constant 0 : index
    %c8_636 = arith.constant 8 : index
    %c0_637 = arith.constant 0 : index
    %2016 = vector.load %arg3[%c0_635, %c8_636, %c0_637] : memref<3x16x128xf32, #tpu.memory_space<vmem>>, vector<1x8x128xf32>
    %2017 = vector.shape_cast %2016 : vector<1x8x128xf32> to vector<8x128xf32>
    %c1_638 = arith.constant 1 : index
    %c8_639 = arith.constant 8 : index
    %c0_640 = arith.constant 0 : index
    %2018 = vector.load %arg3[%c1_638, %c8_639, %c0_640] : memref<3x16x128xf32, #tpu.memory_space<vmem>>, vector<1x8x128xf32>
    %2019 = vector.shape_cast %2018 : vector<1x8x128xf32> to vector<8x128xf32>
    %c2_641 = arith.constant 2 : index
    %c8_642 = arith.constant 8 : index
    %c0_643 = arith.constant 0 : index
    %2020 = vector.load %arg3[%c2_641, %c8_642, %c0_643] : memref<3x16x128xf32, #tpu.memory_space<vmem>>, vector<1x8x128xf32>
    %2021 = vector.shape_cast %2020 : vector<1x8x128xf32> to vector<8x128xf32>
    %2022 = vector.broadcast %1896 : vector<1x128xf32> to vector<8x128xf32>
    %2023 = arith.subf %2017, %2022 : vector<8x128xf32>
    %2024 = vector.broadcast %1898 : vector<1x128xf32> to vector<8x128xf32>
    %2025 = arith.subf %2019, %2024 : vector<8x128xf32>
    %2026 = vector.broadcast %1900 : vector<1x128xf32> to vector<8x128xf32>
    %2027 = arith.subf %2021, %2026 : vector<8x128xf32>
    %2028 = vector.broadcast %2005 : vector<1x128xf32> to vector<8x128xf32>
    %2029 = arith.mulf %2028, %2023 : vector<8x128xf32>
    %2030 = vector.broadcast %2006 : vector<1x128xf32> to vector<8x128xf32>
    %2031 = arith.mulf %2030, %2025 : vector<8x128xf32>
    %2032 = arith.addf %2029, %2031 : vector<8x128xf32>
    %2033 = vector.broadcast %2007 : vector<1x128xf32> to vector<8x128xf32>
    %2034 = arith.mulf %2033, %2027 : vector<8x128xf32>
    %2035 = arith.addf %2032, %2034 : vector<8x128xf32>
    %2036 = vector.broadcast %1896 : vector<1x128xf32> to vector<8x128xf32>
    %2037 = arith.addf %2035, %2036 : vector<8x128xf32>
    %2038 = vector.broadcast %2008 : vector<1x128xf32> to vector<8x128xf32>
    %2039 = arith.mulf %2038, %2023 : vector<8x128xf32>
    %2040 = vector.broadcast %2010 : vector<1x128xf32> to vector<8x128xf32>
    %2041 = arith.mulf %2040, %2025 : vector<8x128xf32>
    %2042 = arith.addf %2039, %2041 : vector<8x128xf32>
    %2043 = vector.broadcast %2011 : vector<1x128xf32> to vector<8x128xf32>
    %2044 = arith.mulf %2043, %2027 : vector<8x128xf32>
    %2045 = arith.addf %2042, %2044 : vector<8x128xf32>
    %2046 = vector.broadcast %1898 : vector<1x128xf32> to vector<8x128xf32>
    %2047 = arith.addf %2045, %2046 : vector<8x128xf32>
    %2048 = vector.broadcast %2012 : vector<1x128xf32> to vector<8x128xf32>
    %2049 = arith.mulf %2048, %2023 : vector<8x128xf32>
    %2050 = vector.broadcast %2013 : vector<1x128xf32> to vector<8x128xf32>
    %2051 = arith.mulf %2050, %2025 : vector<8x128xf32>
    %2052 = arith.addf %2049, %2051 : vector<8x128xf32>
    %2053 = vector.broadcast %2015 : vector<1x128xf32> to vector<8x128xf32>
    %2054 = arith.mulf %2053, %2027 : vector<8x128xf32>
    %2055 = arith.addf %2052, %2054 : vector<8x128xf32>
    %2056 = vector.broadcast %1900 : vector<1x128xf32> to vector<8x128xf32>
    %2057 = arith.addf %2055, %2056 : vector<8x128xf32>
    %2058 = vector.extract_strided_slice %5 {offsets = [8, 0], sizes = [8, 1], strides = [1, 1]} : vector<16x1xi32> to vector<8x1xi32>
    %c13_i32 = arith.constant 13 : i32
    %2059 = vector.broadcast %c13_i32 : i32 to vector<8x1xi32>
    %2060 = arith.cmpi sge, %2058, %2059 : vector<8x1xi32>
    %2061 = vector.shape_cast %2060 : vector<8x1xi1> to vector<8x1xi1>
    %2062 = vector.broadcast %2061 : vector<8x1xi1> to vector<8x128xi1>
    %2063 = arith.select %2062, %2037, %2017 : vector<8x128xi1>, vector<8x128xf32>
    %2064 = vector.shape_cast %2060 : vector<8x1xi1> to vector<8x1xi1>
    %2065 = vector.broadcast %2064 : vector<8x1xi1> to vector<8x128xi1>
    %2066 = arith.select %2065, %2047, %2019 : vector<8x128xi1>, vector<8x128xf32>
    %2067 = vector.shape_cast %2060 : vector<8x1xi1> to vector<8x1xi1>
    %2068 = vector.broadcast %2067 : vector<8x1xi1> to vector<8x128xi1>
    %2069 = arith.select %2068, %2057, %2021 : vector<8x128xi1>, vector<8x128xf32>
    %c0_644 = arith.constant 0 : index
    %c8_645 = arith.constant 8 : index
    %c0_646 = arith.constant 0 : index
    %2070 = vector.load %arg3[%c0_644, %c8_645, %c0_646] : memref<3x16x128xf32, #tpu.memory_space<vmem>>, vector<1x8x128xf32>
    %2071 = vector.shape_cast %2070 : vector<1x8x128xf32> to vector<8x128xf32>
    %2072 = vector.shape_cast %2063 : vector<8x128xf32> to vector<1x8x128xf32>
    tpu.vector_store %arg3[%c0_644, %c8_645, %c0_646], %2072 {strides = array<i32>} : memref<3x16x128xf32, #tpu.memory_space<vmem>>, vector<1x8x128xf32>,
    %c1_647 = arith.constant 1 : index
    %c8_648 = arith.constant 8 : index
    %c0_649 = arith.constant 0 : index
    %2073 = vector.load %arg3[%c1_647, %c8_648, %c0_649] : memref<3x16x128xf32, #tpu.memory_space<vmem>>, vector<1x8x128xf32>
    %2074 = vector.shape_cast %2073 : vector<1x8x128xf32> to vector<8x128xf32>
    %2075 = vector.shape_cast %2066 : vector<8x128xf32> to vector<1x8x128xf32>
    tpu.vector_store %arg3[%c1_647, %c8_648, %c0_649], %2075 {strides = array<i32>} : memref<3x16x128xf32, #tpu.memory_space<vmem>>, vector<1x8x128xf32>,
    %c2_650 = arith.constant 2 : index
    %c8_651 = arith.constant 8 : index
    %c0_652 = arith.constant 0 : index
    %2076 = vector.load %arg3[%c2_650, %c8_651, %c0_652] : memref<3x16x128xf32, #tpu.memory_space<vmem>>, vector<1x8x128xf32>
    %2077 = vector.shape_cast %2076 : vector<1x8x128xf32> to vector<8x128xf32>
    %2078 = vector.shape_cast %2069 : vector<8x128xf32> to vector<1x8x128xf32>
    tpu.vector_store %arg3[%c2_650, %c8_651, %c0_652], %2078 {strides = array<i32>} : memref<3x16x128xf32, #tpu.memory_space<vmem>>, vector<1x8x128xf32>,
    %c0_653 = arith.constant 0 : index
    %c11_654 = arith.constant 11 : index
    %c0_655 = arith.constant 0 : index
    %2079 = vector.load %arg3[%c0_653, %c11_654, %c0_655] : memref<3x16x128xf32, #tpu.memory_space<vmem>>, vector<1x1x128xf32>
    %2080 = vector.shape_cast %2079 : vector<1x1x128xf32> to vector<1x128xf32>
    %c1_656 = arith.constant 1 : index
    %c11_657 = arith.constant 11 : index
    %c0_658 = arith.constant 0 : index
    %2081 = vector.load %arg3[%c1_656, %c11_657, %c0_658] : memref<3x16x128xf32, #tpu.memory_space<vmem>>, vector<1x1x128xf32>
    %2082 = vector.shape_cast %2081 : vector<1x1x128xf32> to vector<1x128xf32>
    %c2_659 = arith.constant 2 : index
    %c11_660 = arith.constant 11 : index
    %c0_661 = arith.constant 0 : index
    %2083 = vector.load %arg3[%c2_659, %c11_660, %c0_661] : memref<3x16x128xf32, #tpu.memory_space<vmem>>, vector<1x1x128xf32>
    %2084 = vector.shape_cast %2083 : vector<1x1x128xf32> to vector<1x128xf32>
    %c0_662 = arith.constant 0 : index
    %c12_663 = arith.constant 12 : index
    %c0_664 = arith.constant 0 : index
    %2085 = vector.load %arg3[%c0_662, %c12_663, %c0_664] : memref<3x16x128xf32, #tpu.memory_space<vmem>>, vector<1x1x128xf32>
    %2086 = vector.shape_cast %2085 : vector<1x1x128xf32> to vector<1x128xf32>
    %c1_665 = arith.constant 1 : index
    %c12_666 = arith.constant 12 : index
    %c0_667 = arith.constant 0 : index
    %2087 = vector.load %arg3[%c1_665, %c12_666, %c0_667] : memref<3x16x128xf32, #tpu.memory_space<vmem>>, vector<1x1x128xf32>
    %2088 = vector.shape_cast %2087 : vector<1x1x128xf32> to vector<1x128xf32>
    %c2_668 = arith.constant 2 : index
    %c12_669 = arith.constant 12 : index
    %c0_670 = arith.constant 0 : index
    %2089 = vector.load %arg3[%c2_668, %c12_669, %c0_670] : memref<3x16x128xf32, #tpu.memory_space<vmem>>, vector<1x1x128xf32>
    %2090 = vector.shape_cast %2089 : vector<1x1x128xf32> to vector<1x128xf32>
    %c0_671 = arith.constant 0 : index
    %c13_672 = arith.constant 13 : index
    %c0_673 = arith.constant 0 : index
    %2091 = vector.load %arg3[%c0_671, %c13_672, %c0_673] : memref<3x16x128xf32, #tpu.memory_space<vmem>>, vector<1x1x128xf32>
    %2092 = vector.shape_cast %2091 : vector<1x1x128xf32> to vector<1x128xf32>
    %c1_674 = arith.constant 1 : index
    %c13_675 = arith.constant 13 : index
    %c0_676 = arith.constant 0 : index
    %2093 = vector.load %arg3[%c1_674, %c13_675, %c0_676] : memref<3x16x128xf32, #tpu.memory_space<vmem>>, vector<1x1x128xf32>
    %2094 = vector.shape_cast %2093 : vector<1x1x128xf32> to vector<1x128xf32>
    %c2_677 = arith.constant 2 : index
    %c13_678 = arith.constant 13 : index
    %c0_679 = arith.constant 0 : index
    %2095 = vector.load %arg3[%c2_677, %c13_678, %c0_679] : memref<3x16x128xf32, #tpu.memory_space<vmem>>, vector<1x1x128xf32>
    %2096 = vector.shape_cast %2095 : vector<1x1x128xf32> to vector<1x128xf32>
    %c0_680 = arith.constant 0 : index
    %c14 = arith.constant 14 : index
    %c0_681 = arith.constant 0 : index
    %2097 = vector.load %arg3[%c0_680, %c14, %c0_681] : memref<3x16x128xf32, #tpu.memory_space<vmem>>, vector<1x1x128xf32>
    %2098 = vector.shape_cast %2097 : vector<1x1x128xf32> to vector<1x128xf32>
    %c1_682 = arith.constant 1 : index
    %c14_683 = arith.constant 14 : index
    %c0_684 = arith.constant 0 : index
    %2099 = vector.load %arg3[%c1_682, %c14_683, %c0_684] : memref<3x16x128xf32, #tpu.memory_space<vmem>>, vector<1x1x128xf32>
    %2100 = vector.shape_cast %2099 : vector<1x1x128xf32> to vector<1x128xf32>
    %c2_685 = arith.constant 2 : index
    %c14_686 = arith.constant 14 : index
    %c0_687 = arith.constant 0 : index
    %2101 = vector.load %arg3[%c2_685, %c14_686, %c0_687] : memref<3x16x128xf32, #tpu.memory_space<vmem>>, vector<1x1x128xf32>
    %2102 = vector.shape_cast %2101 : vector<1x1x128xf32> to vector<1x128xf32>
    %2103 = arith.subf %2086, %2080 : vector<1x128xf32>
    %2104 = arith.subf %2088, %2082 : vector<1x128xf32>
    %2105 = arith.subf %2090, %2084 : vector<1x128xf32>
    %2106 = arith.subf %2092, %2086 : vector<1x128xf32>
    %2107 = arith.subf %2094, %2088 : vector<1x128xf32>
    %2108 = arith.subf %2096, %2090 : vector<1x128xf32>
    %2109 = arith.subf %2098, %2092 : vector<1x128xf32>
    %2110 = arith.subf %2100, %2094 : vector<1x128xf32>
    %2111 = arith.subf %2102, %2096 : vector<1x128xf32>
    %2112 = arith.mulf %2104, %2108 : vector<1x128xf32>
    %2113 = arith.mulf %2105, %2107 : vector<1x128xf32>
    %2114 = arith.subf %2112, %2113 : vector<1x128xf32>
    %2115 = arith.mulf %2105, %2106 : vector<1x128xf32>
    %2116 = arith.mulf %2103, %2108 : vector<1x128xf32>
    %2117 = arith.subf %2115, %2116 : vector<1x128xf32>
    %2118 = arith.mulf %2103, %2107 : vector<1x128xf32>
    %2119 = arith.mulf %2104, %2106 : vector<1x128xf32>
    %2120 = arith.subf %2118, %2119 : vector<1x128xf32>
    %2121 = arith.mulf %2107, %2111 : vector<1x128xf32>
    %2122 = arith.mulf %2108, %2110 : vector<1x128xf32>
    %2123 = arith.subf %2121, %2122 : vector<1x128xf32>
    %2124 = arith.mulf %2108, %2109 : vector<1x128xf32>
    %2125 = arith.mulf %2106, %2111 : vector<1x128xf32>
    %2126 = arith.subf %2124, %2125 : vector<1x128xf32>
    %2127 = arith.mulf %2106, %2110 : vector<1x128xf32>
    %2128 = arith.mulf %2107, %2109 : vector<1x128xf32>
    %2129 = arith.subf %2127, %2128 : vector<1x128xf32>
    %2130 = arith.mulf %2117, %2108 : vector<1x128xf32>
    %2131 = arith.mulf %2120, %2107 : vector<1x128xf32>
    %2132 = arith.subf %2130, %2131 : vector<1x128xf32>
    %2133 = arith.mulf %2120, %2106 : vector<1x128xf32>
    %2134 = arith.mulf %2114, %2108 : vector<1x128xf32>
    %2135 = arith.subf %2133, %2134 : vector<1x128xf32>
    %2136 = arith.mulf %2114, %2107 : vector<1x128xf32>
    %2137 = arith.mulf %2117, %2106 : vector<1x128xf32>
    %2138 = arith.subf %2136, %2137 : vector<1x128xf32>
    %2139 = arith.mulf %2132, %2123 : vector<1x128xf32>
    %2140 = arith.mulf %2135, %2126 : vector<1x128xf32>
    %2141 = arith.addf %2139, %2140 : vector<1x128xf32>
    %2142 = arith.mulf %2138, %2129 : vector<1x128xf32>
    %2143 = arith.addf %2141, %2142 : vector<1x128xf32>
    %2144 = arith.mulf %2114, %2123 : vector<1x128xf32>
    %2145 = arith.mulf %2117, %2126 : vector<1x128xf32>
    %2146 = arith.addf %2144, %2145 : vector<1x128xf32>
    %2147 = arith.mulf %2120, %2129 : vector<1x128xf32>
    %2148 = arith.addf %2146, %2147 : vector<1x128xf32>
    %2149 = arith.mulf %2106, %2106 : vector<1x128xf32>
    %2150 = arith.mulf %2107, %2107 : vector<1x128xf32>
    %2151 = arith.addf %2149, %2150 : vector<1x128xf32>
    %2152 = arith.mulf %2108, %2108 : vector<1x128xf32>
    %2153 = arith.addf %2151, %2152 : vector<1x128xf32>
    %cst_688 = arith.constant 1.000000e-24 : f32
    %2154 = vector.broadcast %cst_688 : f32 to vector<1x128xf32>
    %2155 = arith.maximumf %2153, %2154 : vector<1x128xf32>
    %2156 = math.rsqrt %2155 : vector<1x128xf32>
    %2157 = arith.mulf %2106, %2156 : vector<1x128xf32>
    %2158 = arith.mulf %2107, %2156 : vector<1x128xf32>
    %2159 = arith.mulf %2108, %2156 : vector<1x128xf32>
    %2160 = arith.mulf %2143, %2156 : vector<1x128xf32>
    %2161 = arith.mulf %2148, %2148 : vector<1x128xf32>
    %2162 = arith.mulf %2160, %2160 : vector<1x128xf32>
    %2163 = arith.addf %2161, %2162 : vector<1x128xf32>
    %cst_689 = arith.constant 1.000000e-24 : f32
    %2164 = vector.broadcast %cst_689 : f32 to vector<1x128xf32>
    %2165 = arith.maximumf %2163, %2164 : vector<1x128xf32>
    %2166 = math.rsqrt %2165 : vector<1x128xf32>
    %cst_690 = arith.constant 1.000000e-24 : f32
    %2167 = vector.broadcast %cst_690 : f32 to vector<1x128xf32>
    %2168 = arith.cmpf olt, %2163, %2167 : vector<1x128xf32>
    %2169 = arith.mulf %2148, %2166 : vector<1x128xf32>
    %cst_691 = arith.constant 1.000000e+00 : f32
    %2170 = vector.broadcast %cst_691 : f32 to vector<1x128xf32>
    %2171 = arith.select %2168, %2170, %2169 : vector<1x128xi1>, vector<1x128xf32>
    %2172 = arith.mulf %2160, %2166 : vector<1x128xf32>
    %cst_692 = arith.constant 0.000000e+00 : f32
    %2173 = vector.broadcast %cst_692 : f32 to vector<1x128xf32>
    %2174 = arith.select %2168, %2173, %2172 : vector<1x128xi1>, vector<1x128xf32>
    %2175 = vector.extract_strided_slice %3 {offsets = [11, 0], sizes = [1, 128], strides = [1, 1]} : vector<13x128xf32> to vector<1x128xf32>
    %2176 = vector.extract_strided_slice %4 {offsets = [11, 0], sizes = [1, 128], strides = [1, 1]} : vector<13x128xf32> to vector<1x128xf32>
    %2177 = arith.mulf %2175, %2171 : vector<1x128xf32>
    %2178 = arith.mulf %2176, %2174 : vector<1x128xf32>
    %2179 = arith.subf %2177, %2178 : vector<1x128xf32>
    %2180 = arith.mulf %2176, %2171 : vector<1x128xf32>
    %2181 = arith.mulf %2175, %2174 : vector<1x128xf32>
    %2182 = arith.addf %2180, %2181 : vector<1x128xf32>
    %cst_693 = arith.constant 1.000000e+00 : f32
    %2183 = vector.broadcast %cst_693 : f32 to vector<1x128xf32>
    %2184 = arith.subf %2183, %2179 : vector<1x128xf32>
    %2185 = arith.mulf %2184, %2157 : vector<1x128xf32>
    %2186 = arith.mulf %2184, %2158 : vector<1x128xf32>
    %2187 = arith.mulf %2184, %2159 : vector<1x128xf32>
    %2188 = arith.mulf %2182, %2157 : vector<1x128xf32>
    %2189 = arith.mulf %2182, %2158 : vector<1x128xf32>
    %2190 = arith.mulf %2182, %2159 : vector<1x128xf32>
    %2191 = arith.mulf %2185, %2158 : vector<1x128xf32>
    %2192 = arith.mulf %2185, %2159 : vector<1x128xf32>
    %2193 = arith.mulf %2186, %2159 : vector<1x128xf32>
    %2194 = arith.mulf %2185, %2157 : vector<1x128xf32>
    %2195 = arith.addf %2194, %2179 : vector<1x128xf32>
    %2196 = arith.subf %2191, %2190 : vector<1x128xf32>
    %2197 = arith.addf %2192, %2189 : vector<1x128xf32>
    %2198 = arith.addf %2191, %2190 : vector<1x128xf32>
    %2199 = arith.mulf %2186, %2158 : vector<1x128xf32>
    %2200 = arith.addf %2199, %2179 : vector<1x128xf32>
    %2201 = arith.subf %2193, %2188 : vector<1x128xf32>
    %2202 = arith.subf %2192, %2189 : vector<1x128xf32>
    %2203 = arith.addf %2193, %2188 : vector<1x128xf32>
    %2204 = arith.mulf %2187, %2159 : vector<1x128xf32>
    %2205 = arith.addf %2204, %2179 : vector<1x128xf32>
    %c0_694 = arith.constant 0 : index
    %c8_695 = arith.constant 8 : index
    %c0_696 = arith.constant 0 : index
    %2206 = vector.load %arg3[%c0_694, %c8_695, %c0_696] : memref<3x16x128xf32, #tpu.memory_space<vmem>>, vector<1x8x128xf32>
    %2207 = vector.shape_cast %2206 : vector<1x8x128xf32> to vector<8x128xf32>
    %c1_697 = arith.constant 1 : index
    %c8_698 = arith.constant 8 : index
    %c0_699 = arith.constant 0 : index
    %2208 = vector.load %arg3[%c1_697, %c8_698, %c0_699] : memref<3x16x128xf32, #tpu.memory_space<vmem>>, vector<1x8x128xf32>
    %2209 = vector.shape_cast %2208 : vector<1x8x128xf32> to vector<8x128xf32>
    %c2_700 = arith.constant 2 : index
    %c8_701 = arith.constant 8 : index
    %c0_702 = arith.constant 0 : index
    %2210 = vector.load %arg3[%c2_700, %c8_701, %c0_702] : memref<3x16x128xf32, #tpu.memory_space<vmem>>, vector<1x8x128xf32>
    %2211 = vector.shape_cast %2210 : vector<1x8x128xf32> to vector<8x128xf32>
    %2212 = vector.broadcast %2086 : vector<1x128xf32> to vector<8x128xf32>
    %2213 = arith.subf %2207, %2212 : vector<8x128xf32>
    %2214 = vector.broadcast %2088 : vector<1x128xf32> to vector<8x128xf32>
    %2215 = arith.subf %2209, %2214 : vector<8x128xf32>
    %2216 = vector.broadcast %2090 : vector<1x128xf32> to vector<8x128xf32>
    %2217 = arith.subf %2211, %2216 : vector<8x128xf32>
    %2218 = vector.broadcast %2195 : vector<1x128xf32> to vector<8x128xf32>
    %2219 = arith.mulf %2218, %2213 : vector<8x128xf32>
    %2220 = vector.broadcast %2196 : vector<1x128xf32> to vector<8x128xf32>
    %2221 = arith.mulf %2220, %2215 : vector<8x128xf32>
    %2222 = arith.addf %2219, %2221 : vector<8x128xf32>
    %2223 = vector.broadcast %2197 : vector<1x128xf32> to vector<8x128xf32>
    %2224 = arith.mulf %2223, %2217 : vector<8x128xf32>
    %2225 = arith.addf %2222, %2224 : vector<8x128xf32>
    %2226 = vector.broadcast %2086 : vector<1x128xf32> to vector<8x128xf32>
    %2227 = arith.addf %2225, %2226 : vector<8x128xf32>
    %2228 = vector.broadcast %2198 : vector<1x128xf32> to vector<8x128xf32>
    %2229 = arith.mulf %2228, %2213 : vector<8x128xf32>
    %2230 = vector.broadcast %2200 : vector<1x128xf32> to vector<8x128xf32>
    %2231 = arith.mulf %2230, %2215 : vector<8x128xf32>
    %2232 = arith.addf %2229, %2231 : vector<8x128xf32>
    %2233 = vector.broadcast %2201 : vector<1x128xf32> to vector<8x128xf32>
    %2234 = arith.mulf %2233, %2217 : vector<8x128xf32>
    %2235 = arith.addf %2232, %2234 : vector<8x128xf32>
    %2236 = vector.broadcast %2088 : vector<1x128xf32> to vector<8x128xf32>
    %2237 = arith.addf %2235, %2236 : vector<8x128xf32>
    %2238 = vector.broadcast %2202 : vector<1x128xf32> to vector<8x128xf32>
    %2239 = arith.mulf %2238, %2213 : vector<8x128xf32>
    %2240 = vector.broadcast %2203 : vector<1x128xf32> to vector<8x128xf32>
    %2241 = arith.mulf %2240, %2215 : vector<8x128xf32>
    %2242 = arith.addf %2239, %2241 : vector<8x128xf32>
    %2243 = vector.broadcast %2205 : vector<1x128xf32> to vector<8x128xf32>
    %2244 = arith.mulf %2243, %2217 : vector<8x128xf32>
    %2245 = arith.addf %2242, %2244 : vector<8x128xf32>
    %2246 = vector.broadcast %2090 : vector<1x128xf32> to vector<8x128xf32>
    %2247 = arith.addf %2245, %2246 : vector<8x128xf32>
    %2248 = vector.extract_strided_slice %5 {offsets = [8, 0], sizes = [8, 1], strides = [1, 1]} : vector<16x1xi32> to vector<8x1xi32>
    %c14_i32 = arith.constant 14 : i32
    %2249 = vector.broadcast %c14_i32 : i32 to vector<8x1xi32>
    %2250 = arith.cmpi sge, %2248, %2249 : vector<8x1xi32>
    %2251 = vector.shape_cast %2250 : vector<8x1xi1> to vector<8x1xi1>
    %2252 = vector.broadcast %2251 : vector<8x1xi1> to vector<8x128xi1>
    %2253 = arith.select %2252, %2227, %2207 : vector<8x128xi1>, vector<8x128xf32>
    %2254 = vector.shape_cast %2250 : vector<8x1xi1> to vector<8x1xi1>
    %2255 = vector.broadcast %2254 : vector<8x1xi1> to vector<8x128xi1>
    %2256 = arith.select %2255, %2237, %2209 : vector<8x128xi1>, vector<8x128xf32>
    %2257 = vector.shape_cast %2250 : vector<8x1xi1> to vector<8x1xi1>
    %2258 = vector.broadcast %2257 : vector<8x1xi1> to vector<8x128xi1>
    %2259 = arith.select %2258, %2247, %2211 : vector<8x128xi1>, vector<8x128xf32>
    %c0_703 = arith.constant 0 : index
    %c8_704 = arith.constant 8 : index
    %c0_705 = arith.constant 0 : index
    %2260 = vector.load %arg3[%c0_703, %c8_704, %c0_705] : memref<3x16x128xf32, #tpu.memory_space<vmem>>, vector<1x8x128xf32>
    %2261 = vector.shape_cast %2260 : vector<1x8x128xf32> to vector<8x128xf32>
    %2262 = vector.shape_cast %2253 : vector<8x128xf32> to vector<1x8x128xf32>
    tpu.vector_store %arg3[%c0_703, %c8_704, %c0_705], %2262 {strides = array<i32>} : memref<3x16x128xf32, #tpu.memory_space<vmem>>, vector<1x8x128xf32>,
    %c1_706 = arith.constant 1 : index
    %c8_707 = arith.constant 8 : index
    %c0_708 = arith.constant 0 : index
    %2263 = vector.load %arg3[%c1_706, %c8_707, %c0_708] : memref<3x16x128xf32, #tpu.memory_space<vmem>>, vector<1x8x128xf32>
    %2264 = vector.shape_cast %2263 : vector<1x8x128xf32> to vector<8x128xf32>
    %2265 = vector.shape_cast %2256 : vector<8x128xf32> to vector<1x8x128xf32>
    tpu.vector_store %arg3[%c1_706, %c8_707, %c0_708], %2265 {strides = array<i32>} : memref<3x16x128xf32, #tpu.memory_space<vmem>>, vector<1x8x128xf32>,
    %c2_709 = arith.constant 2 : index
    %c8_710 = arith.constant 8 : index
    %c0_711 = arith.constant 0 : index
    %2266 = vector.load %arg3[%c2_709, %c8_710, %c0_711] : memref<3x16x128xf32, #tpu.memory_space<vmem>>, vector<1x8x128xf32>
    %2267 = vector.shape_cast %2266 : vector<1x8x128xf32> to vector<8x128xf32>
    %2268 = vector.shape_cast %2259 : vector<8x128xf32> to vector<1x8x128xf32>
    tpu.vector_store %arg3[%c2_709, %c8_710, %c0_711], %2268 {strides = array<i32>} : memref<3x16x128xf32, #tpu.memory_space<vmem>>, vector<1x8x128xf32>,
    %c0_712 = arith.constant 0 : index
    %c12_713 = arith.constant 12 : index
    %c0_714 = arith.constant 0 : index
    %2269 = vector.load %arg3[%c0_712, %c12_713, %c0_714] : memref<3x16x128xf32, #tpu.memory_space<vmem>>, vector<1x1x128xf32>
    %2270 = vector.shape_cast %2269 : vector<1x1x128xf32> to vector<1x128xf32>
    %c1_715 = arith.constant 1 : index
    %c12_716 = arith.constant 12 : index
    %c0_717 = arith.constant 0 : index
    %2271 = vector.load %arg3[%c1_715, %c12_716, %c0_717] : memref<3x16x128xf32, #tpu.memory_space<vmem>>, vector<1x1x128xf32>
    %2272 = vector.shape_cast %2271 : vector<1x1x128xf32> to vector<1x128xf32>
    %c2_718 = arith.constant 2 : index
    %c12_719 = arith.constant 12 : index
    %c0_720 = arith.constant 0 : index
    %2273 = vector.load %arg3[%c2_718, %c12_719, %c0_720] : memref<3x16x128xf32, #tpu.memory_space<vmem>>, vector<1x1x128xf32>
    %2274 = vector.shape_cast %2273 : vector<1x1x128xf32> to vector<1x128xf32>
    %c0_721 = arith.constant 0 : index
    %c13_722 = arith.constant 13 : index
    %c0_723 = arith.constant 0 : index
    %2275 = vector.load %arg3[%c0_721, %c13_722, %c0_723] : memref<3x16x128xf32, #tpu.memory_space<vmem>>, vector<1x1x128xf32>
    %2276 = vector.shape_cast %2275 : vector<1x1x128xf32> to vector<1x128xf32>
    %c1_724 = arith.constant 1 : index
    %c13_725 = arith.constant 13 : index
    %c0_726 = arith.constant 0 : index
    %2277 = vector.load %arg3[%c1_724, %c13_725, %c0_726] : memref<3x16x128xf32, #tpu.memory_space<vmem>>, vector<1x1x128xf32>
    %2278 = vector.shape_cast %2277 : vector<1x1x128xf32> to vector<1x128xf32>
    %c2_727 = arith.constant 2 : index
    %c13_728 = arith.constant 13 : index
    %c0_729 = arith.constant 0 : index
    %2279 = vector.load %arg3[%c2_727, %c13_728, %c0_729] : memref<3x16x128xf32, #tpu.memory_space<vmem>>, vector<1x1x128xf32>
    %2280 = vector.shape_cast %2279 : vector<1x1x128xf32> to vector<1x128xf32>
    %c0_730 = arith.constant 0 : index
    %c14_731 = arith.constant 14 : index
    %c0_732 = arith.constant 0 : index
    %2281 = vector.load %arg3[%c0_730, %c14_731, %c0_732] : memref<3x16x128xf32, #tpu.memory_space<vmem>>, vector<1x1x128xf32>
    %2282 = vector.shape_cast %2281 : vector<1x1x128xf32> to vector<1x128xf32>
    %c1_733 = arith.constant 1 : index
    %c14_734 = arith.constant 14 : index
    %c0_735 = arith.constant 0 : index
    %2283 = vector.load %arg3[%c1_733, %c14_734, %c0_735] : memref<3x16x128xf32, #tpu.memory_space<vmem>>, vector<1x1x128xf32>
    %2284 = vector.shape_cast %2283 : vector<1x1x128xf32> to vector<1x128xf32>
    %c2_736 = arith.constant 2 : index
    %c14_737 = arith.constant 14 : index
    %c0_738 = arith.constant 0 : index
    %2285 = vector.load %arg3[%c2_736, %c14_737, %c0_738] : memref<3x16x128xf32, #tpu.memory_space<vmem>>, vector<1x1x128xf32>
    %2286 = vector.shape_cast %2285 : vector<1x1x128xf32> to vector<1x128xf32>
    %c0_739 = arith.constant 0 : index
    %c15 = arith.constant 15 : index
    %c0_740 = arith.constant 0 : index
    %2287 = vector.load %arg3[%c0_739, %c15, %c0_740] : memref<3x16x128xf32, #tpu.memory_space<vmem>>, vector<1x1x128xf32>
    %2288 = vector.shape_cast %2287 : vector<1x1x128xf32> to vector<1x128xf32>
    %c1_741 = arith.constant 1 : index
    %c15_742 = arith.constant 15 : index
    %c0_743 = arith.constant 0 : index
    %2289 = vector.load %arg3[%c1_741, %c15_742, %c0_743] : memref<3x16x128xf32, #tpu.memory_space<vmem>>, vector<1x1x128xf32>
    %2290 = vector.shape_cast %2289 : vector<1x1x128xf32> to vector<1x128xf32>
    %c2_744 = arith.constant 2 : index
    %c15_745 = arith.constant 15 : index
    %c0_746 = arith.constant 0 : index
    %2291 = vector.load %arg3[%c2_744, %c15_745, %c0_746] : memref<3x16x128xf32, #tpu.memory_space<vmem>>, vector<1x1x128xf32>
    %2292 = vector.shape_cast %2291 : vector<1x1x128xf32> to vector<1x128xf32>
    %2293 = arith.subf %2276, %2270 : vector<1x128xf32>
    %2294 = arith.subf %2278, %2272 : vector<1x128xf32>
    %2295 = arith.subf %2280, %2274 : vector<1x128xf32>
    %2296 = arith.subf %2282, %2276 : vector<1x128xf32>
    %2297 = arith.subf %2284, %2278 : vector<1x128xf32>
    %2298 = arith.subf %2286, %2280 : vector<1x128xf32>
    %2299 = arith.subf %2288, %2282 : vector<1x128xf32>
    %2300 = arith.subf %2290, %2284 : vector<1x128xf32>
    %2301 = arith.subf %2292, %2286 : vector<1x128xf32>
    %2302 = arith.mulf %2294, %2298 : vector<1x128xf32>
    %2303 = arith.mulf %2295, %2297 : vector<1x128xf32>
    %2304 = arith.subf %2302, %2303 : vector<1x128xf32>
    %2305 = arith.mulf %2295, %2296 : vector<1x128xf32>
    %2306 = arith.mulf %2293, %2298 : vector<1x128xf32>
    %2307 = arith.subf %2305, %2306 : vector<1x128xf32>
    %2308 = arith.mulf %2293, %2297 : vector<1x128xf32>
    %2309 = arith.mulf %2294, %2296 : vector<1x128xf32>
    %2310 = arith.subf %2308, %2309 : vector<1x128xf32>
    %2311 = arith.mulf %2297, %2301 : vector<1x128xf32>
    %2312 = arith.mulf %2298, %2300 : vector<1x128xf32>
    %2313 = arith.subf %2311, %2312 : vector<1x128xf32>
    %2314 = arith.mulf %2298, %2299 : vector<1x128xf32>
    %2315 = arith.mulf %2296, %2301 : vector<1x128xf32>
    %2316 = arith.subf %2314, %2315 : vector<1x128xf32>
    %2317 = arith.mulf %2296, %2300 : vector<1x128xf32>
    %2318 = arith.mulf %2297, %2299 : vector<1x128xf32>
    %2319 = arith.subf %2317, %2318 : vector<1x128xf32>
    %2320 = arith.mulf %2307, %2298 : vector<1x128xf32>
    %2321 = arith.mulf %2310, %2297 : vector<1x128xf32>
    %2322 = arith.subf %2320, %2321 : vector<1x128xf32>
    %2323 = arith.mulf %2310, %2296 : vector<1x128xf32>
    %2324 = arith.mulf %2304, %2298 : vector<1x128xf32>
    %2325 = arith.subf %2323, %2324 : vector<1x128xf32>
    %2326 = arith.mulf %2304, %2297 : vector<1x128xf32>
    %2327 = arith.mulf %2307, %2296 : vector<1x128xf32>
    %2328 = arith.subf %2326, %2327 : vector<1x128xf32>
    %2329 = arith.mulf %2322, %2313 : vector<1x128xf32>
    %2330 = arith.mulf %2325, %2316 : vector<1x128xf32>
    %2331 = arith.addf %2329, %2330 : vector<1x128xf32>
    %2332 = arith.mulf %2328, %2319 : vector<1x128xf32>
    %2333 = arith.addf %2331, %2332 : vector<1x128xf32>
    %2334 = arith.mulf %2304, %2313 : vector<1x128xf32>
    %2335 = arith.mulf %2307, %2316 : vector<1x128xf32>
    %2336 = arith.addf %2334, %2335 : vector<1x128xf32>
    %2337 = arith.mulf %2310, %2319 : vector<1x128xf32>
    %2338 = arith.addf %2336, %2337 : vector<1x128xf32>
    %2339 = arith.mulf %2296, %2296 : vector<1x128xf32>
    %2340 = arith.mulf %2297, %2297 : vector<1x128xf32>
    %2341 = arith.addf %2339, %2340 : vector<1x128xf32>
    %2342 = arith.mulf %2298, %2298 : vector<1x128xf32>
    %2343 = arith.addf %2341, %2342 : vector<1x128xf32>
    %cst_747 = arith.constant 1.000000e-24 : f32
    %2344 = vector.broadcast %cst_747 : f32 to vector<1x128xf32>
    %2345 = arith.maximumf %2343, %2344 : vector<1x128xf32>
    %2346 = math.rsqrt %2345 : vector<1x128xf32>
    %2347 = arith.mulf %2296, %2346 : vector<1x128xf32>
    %2348 = arith.mulf %2297, %2346 : vector<1x128xf32>
    %2349 = arith.mulf %2298, %2346 : vector<1x128xf32>
    %2350 = arith.mulf %2333, %2346 : vector<1x128xf32>
    %2351 = arith.mulf %2338, %2338 : vector<1x128xf32>
    %2352 = arith.mulf %2350, %2350 : vector<1x128xf32>
    %2353 = arith.addf %2351, %2352 : vector<1x128xf32>
    %cst_748 = arith.constant 1.000000e-24 : f32
    %2354 = vector.broadcast %cst_748 : f32 to vector<1x128xf32>
    %2355 = arith.maximumf %2353, %2354 : vector<1x128xf32>
    %2356 = math.rsqrt %2355 : vector<1x128xf32>
    %cst_749 = arith.constant 1.000000e-24 : f32
    %2357 = vector.broadcast %cst_749 : f32 to vector<1x128xf32>
    %2358 = arith.cmpf olt, %2353, %2357 : vector<1x128xf32>
    %2359 = arith.mulf %2338, %2356 : vector<1x128xf32>
    %cst_750 = arith.constant 1.000000e+00 : f32
    %2360 = vector.broadcast %cst_750 : f32 to vector<1x128xf32>
    %2361 = arith.select %2358, %2360, %2359 : vector<1x128xi1>, vector<1x128xf32>
    %2362 = arith.mulf %2350, %2356 : vector<1x128xf32>
    %cst_751 = arith.constant 0.000000e+00 : f32
    %2363 = vector.broadcast %cst_751 : f32 to vector<1x128xf32>
    %2364 = arith.select %2358, %2363, %2362 : vector<1x128xi1>, vector<1x128xf32>
    %2365 = vector.extract_strided_slice %3 {offsets = [12, 0], sizes = [1, 128], strides = [1, 1]} : vector<13x128xf32> to vector<1x128xf32>
    %2366 = vector.extract_strided_slice %4 {offsets = [12, 0], sizes = [1, 128], strides = [1, 1]} : vector<13x128xf32> to vector<1x128xf32>
    %2367 = arith.mulf %2365, %2361 : vector<1x128xf32>
    %2368 = arith.mulf %2366, %2364 : vector<1x128xf32>
    %2369 = arith.subf %2367, %2368 : vector<1x128xf32>
    %2370 = arith.mulf %2366, %2361 : vector<1x128xf32>
    %2371 = arith.mulf %2365, %2364 : vector<1x128xf32>
    %2372 = arith.addf %2370, %2371 : vector<1x128xf32>
    %cst_752 = arith.constant 1.000000e+00 : f32
    %2373 = vector.broadcast %cst_752 : f32 to vector<1x128xf32>
    %2374 = arith.subf %2373, %2369 : vector<1x128xf32>
    %2375 = arith.mulf %2374, %2347 : vector<1x128xf32>
    %2376 = arith.mulf %2374, %2348 : vector<1x128xf32>
    %2377 = arith.mulf %2374, %2349 : vector<1x128xf32>
    %2378 = arith.mulf %2372, %2347 : vector<1x128xf32>
    %2379 = arith.mulf %2372, %2348 : vector<1x128xf32>
    %2380 = arith.mulf %2372, %2349 : vector<1x128xf32>
    %2381 = arith.mulf %2375, %2348 : vector<1x128xf32>
    %2382 = arith.mulf %2375, %2349 : vector<1x128xf32>
    %2383 = arith.mulf %2376, %2349 : vector<1x128xf32>
    %2384 = arith.mulf %2375, %2347 : vector<1x128xf32>
    %2385 = arith.addf %2384, %2369 : vector<1x128xf32>
    %2386 = arith.subf %2381, %2380 : vector<1x128xf32>
    %2387 = arith.addf %2382, %2379 : vector<1x128xf32>
    %2388 = arith.addf %2381, %2380 : vector<1x128xf32>
    %2389 = arith.mulf %2376, %2348 : vector<1x128xf32>
    %2390 = arith.addf %2389, %2369 : vector<1x128xf32>
    %2391 = arith.subf %2383, %2378 : vector<1x128xf32>
    %2392 = arith.subf %2382, %2379 : vector<1x128xf32>
    %2393 = arith.addf %2383, %2378 : vector<1x128xf32>
    %2394 = arith.mulf %2377, %2349 : vector<1x128xf32>
    %2395 = arith.addf %2394, %2369 : vector<1x128xf32>
    %c0_753 = arith.constant 0 : index
    %c8_754 = arith.constant 8 : index
    %c0_755 = arith.constant 0 : index
    %2396 = vector.load %arg3[%c0_753, %c8_754, %c0_755] : memref<3x16x128xf32, #tpu.memory_space<vmem>>, vector<1x8x128xf32>
    %2397 = vector.shape_cast %2396 : vector<1x8x128xf32> to vector<8x128xf32>
    %c1_756 = arith.constant 1 : index
    %c8_757 = arith.constant 8 : index
    %c0_758 = arith.constant 0 : index
    %2398 = vector.load %arg3[%c1_756, %c8_757, %c0_758] : memref<3x16x128xf32, #tpu.memory_space<vmem>>, vector<1x8x128xf32>
    %2399 = vector.shape_cast %2398 : vector<1x8x128xf32> to vector<8x128xf32>
    %c2_759 = arith.constant 2 : index
    %c8_760 = arith.constant 8 : index
    %c0_761 = arith.constant 0 : index
    %2400 = vector.load %arg3[%c2_759, %c8_760, %c0_761] : memref<3x16x128xf32, #tpu.memory_space<vmem>>, vector<1x8x128xf32>
    %2401 = vector.shape_cast %2400 : vector<1x8x128xf32> to vector<8x128xf32>
    %2402 = vector.broadcast %2276 : vector<1x128xf32> to vector<8x128xf32>
    %2403 = arith.subf %2397, %2402 : vector<8x128xf32>
    %2404 = vector.broadcast %2278 : vector<1x128xf32> to vector<8x128xf32>
    %2405 = arith.subf %2399, %2404 : vector<8x128xf32>
    %2406 = vector.broadcast %2280 : vector<1x128xf32> to vector<8x128xf32>
    %2407 = arith.subf %2401, %2406 : vector<8x128xf32>
    %2408 = vector.broadcast %2385 : vector<1x128xf32> to vector<8x128xf32>
    %2409 = arith.mulf %2408, %2403 : vector<8x128xf32>
    %2410 = vector.broadcast %2386 : vector<1x128xf32> to vector<8x128xf32>
    %2411 = arith.mulf %2410, %2405 : vector<8x128xf32>
    %2412 = arith.addf %2409, %2411 : vector<8x128xf32>
    %2413 = vector.broadcast %2387 : vector<1x128xf32> to vector<8x128xf32>
    %2414 = arith.mulf %2413, %2407 : vector<8x128xf32>
    %2415 = arith.addf %2412, %2414 : vector<8x128xf32>
    %2416 = vector.broadcast %2276 : vector<1x128xf32> to vector<8x128xf32>
    %2417 = arith.addf %2415, %2416 : vector<8x128xf32>
    %2418 = vector.broadcast %2388 : vector<1x128xf32> to vector<8x128xf32>
    %2419 = arith.mulf %2418, %2403 : vector<8x128xf32>
    %2420 = vector.broadcast %2390 : vector<1x128xf32> to vector<8x128xf32>
    %2421 = arith.mulf %2420, %2405 : vector<8x128xf32>
    %2422 = arith.addf %2419, %2421 : vector<8x128xf32>
    %2423 = vector.broadcast %2391 : vector<1x128xf32> to vector<8x128xf32>
    %2424 = arith.mulf %2423, %2407 : vector<8x128xf32>
    %2425 = arith.addf %2422, %2424 : vector<8x128xf32>
    %2426 = vector.broadcast %2278 : vector<1x128xf32> to vector<8x128xf32>
    %2427 = arith.addf %2425, %2426 : vector<8x128xf32>
    %2428 = vector.broadcast %2392 : vector<1x128xf32> to vector<8x128xf32>
    %2429 = arith.mulf %2428, %2403 : vector<8x128xf32>
    %2430 = vector.broadcast %2393 : vector<1x128xf32> to vector<8x128xf32>
    %2431 = arith.mulf %2430, %2405 : vector<8x128xf32>
    %2432 = arith.addf %2429, %2431 : vector<8x128xf32>
    %2433 = vector.broadcast %2395 : vector<1x128xf32> to vector<8x128xf32>
    %2434 = arith.mulf %2433, %2407 : vector<8x128xf32>
    %2435 = arith.addf %2432, %2434 : vector<8x128xf32>
    %2436 = vector.broadcast %2280 : vector<1x128xf32> to vector<8x128xf32>
    %2437 = arith.addf %2435, %2436 : vector<8x128xf32>
    %2438 = vector.extract_strided_slice %5 {offsets = [8, 0], sizes = [8, 1], strides = [1, 1]} : vector<16x1xi32> to vector<8x1xi32>
    %c15_i32 = arith.constant 15 : i32
    %2439 = vector.broadcast %c15_i32 : i32 to vector<8x1xi32>
    %2440 = arith.cmpi sge, %2438, %2439 : vector<8x1xi32>
    %2441 = vector.shape_cast %2440 : vector<8x1xi1> to vector<8x1xi1>
    %2442 = vector.broadcast %2441 : vector<8x1xi1> to vector<8x128xi1>
    %2443 = arith.select %2442, %2417, %2397 : vector<8x128xi1>, vector<8x128xf32>
    %2444 = vector.shape_cast %2440 : vector<8x1xi1> to vector<8x1xi1>
    %2445 = vector.broadcast %2444 : vector<8x1xi1> to vector<8x128xi1>
    %2446 = arith.select %2445, %2427, %2399 : vector<8x128xi1>, vector<8x128xf32>
    %2447 = vector.shape_cast %2440 : vector<8x1xi1> to vector<8x1xi1>
    %2448 = vector.broadcast %2447 : vector<8x1xi1> to vector<8x128xi1>
    %2449 = arith.select %2448, %2437, %2401 : vector<8x128xi1>, vector<8x128xf32>
    %c0_762 = arith.constant 0 : index
    %c8_763 = arith.constant 8 : index
    %c0_764 = arith.constant 0 : index
    %2450 = vector.load %arg3[%c0_762, %c8_763, %c0_764] : memref<3x16x128xf32, #tpu.memory_space<vmem>>, vector<1x8x128xf32>
    %2451 = vector.shape_cast %2450 : vector<1x8x128xf32> to vector<8x128xf32>
    %2452 = vector.shape_cast %2443 : vector<8x128xf32> to vector<1x8x128xf32>
    tpu.vector_store %arg3[%c0_762, %c8_763, %c0_764], %2452 {strides = array<i32>} : memref<3x16x128xf32, #tpu.memory_space<vmem>>, vector<1x8x128xf32>,
    %c1_765 = arith.constant 1 : index
    %c8_766 = arith.constant 8 : index
    %c0_767 = arith.constant 0 : index
    %2453 = vector.load %arg3[%c1_765, %c8_766, %c0_767] : memref<3x16x128xf32, #tpu.memory_space<vmem>>, vector<1x8x128xf32>
    %2454 = vector.shape_cast %2453 : vector<1x8x128xf32> to vector<8x128xf32>
    %2455 = vector.shape_cast %2446 : vector<8x128xf32> to vector<1x8x128xf32>
    tpu.vector_store %arg3[%c1_765, %c8_766, %c0_767], %2455 {strides = array<i32>} : memref<3x16x128xf32, #tpu.memory_space<vmem>>, vector<1x8x128xf32>,
    %c2_768 = arith.constant 2 : index
    %c8_769 = arith.constant 8 : index
    %c0_770 = arith.constant 0 : index
    %2456 = vector.load %arg3[%c2_768, %c8_769, %c0_770] : memref<3x16x128xf32, #tpu.memory_space<vmem>>, vector<1x8x128xf32>
    %2457 = vector.shape_cast %2456 : vector<1x8x128xf32> to vector<8x128xf32>
    %2458 = vector.shape_cast %2449 : vector<8x128xf32> to vector<1x8x128xf32>
    tpu.vector_store %arg3[%c2_768, %c8_769, %c0_770], %2458 {strides = array<i32>} : memref<3x16x128xf32, #tpu.memory_space<vmem>>, vector<1x8x128xf32>,
    return
  }
  func.func @transform_0(%arg0: i32) -> (i32, i32) {
    %c0_i32 = arith.constant 0 : i32
    %c0_i32_0 = arith.constant 0 : i32
    return %c0_i32, %arg0 : i32, i32
  }
  func.func @transform_1(%arg0: i32) -> (i32, i32, i32) {
    %c0_i32 = arith.constant 0 : i32
    %c0_i32_0 = arith.constant 0 : i32
    %c0_i32_1 = arith.constant 0 : i32
    return %c0_i32, %c0_i32_0, %arg0 : i32, i32, i32
  }
  func.func @transform_2(%arg0: i32) -> (i32, i32, i32) {
    %c0_i32 = arith.constant 0 : i32
    %c0_i32_0 = arith.constant 0 : i32
    %c0_i32_1 = arith.constant 0 : i32
    return %c0_i32, %c0_i32_0, %arg0 : i32, i32, i32
  }
}

</mosaic_0001>

<llo_original>
// kernel: tpu_custom_call.1
$region0: #{tpu_custom_call.1}
  #allocation0 [shape = 'u32[]', space=smem, size = 0x4, offset = 0x4, fixed_abs, tag = 'smem constant byte address 0x4 - core index']
  #allocation1 [shape = 'u32[144,128]{1,0:T(1,128)}', space=vmem, size = 0x12000, scoped, tag = 'internal scratch']
  %s0 = inlined_call_operand.vmem [shape: f32[13,256], index: 0, kind: input, shape index: {}]
  %s1 = inlined_call_operand.hbm [shape: f32[3,16,256], index: 1, kind: input, shape index: {}, may-alias: {1,2}]
  %s2 = inlined_call_operand.hbm [shape: f32[3,16,256], index: 2, kind: output, shape index: {}, may-alias: {1,2}]
  %s3 = sld [smem:[#allocation0]]
  $region83: #{tpu_custom_call.1} parent=0
    _
  %s5 = ssub.s32 1, %s3
  %s6 = scalar_select 0, %s5, %s3
  $region1: #{tpu_custom_call.1} parent=0
    #allocation2 [shape = 'u8[16384]{0}', space=vmem, size = 0x4000, scoped, tag = 'input window, operand 0']
    #allocation3 [shape = 'u8[49152]{0}', space=vmem, size = 0xc000, scoped, tag = 'input window, operand 1']
    #allocation4 [shape = 's32[2]{0}', space=sflag, size = 0x8, scoped, tag = 'scoped memory for tpu_custom_call.1']
    #allocation5 [shape = 's32[2]{0}', space=sflag, size = 0x8, scoped, tag = 'scoped memory for tpu_custom_call.1']
    #allocation6 [shape = 'u8[49152]{0}', space=vmem, size = 0xc000, scoped, tag = 'output window, operand 0']
    %7 = vsyncpa [#allocation4], 0
    %s8 = scalar_lea.sflag [#allocation4], 1
    %9 = vsyncpa %s8, 0
    %10 = vsyncpa [#allocation5], 0
    %s11 = scalar_lea.sflag [#allocation5], 1
    %12 = vsyncpa %s11, 0
    loop: start=0, step=1, limit=4
    $region2: #{tpu_custom_call.1} parent=1 // loop_pre_header
      _
    $region3: #{tpu_custom_call.1} parent=1 // loop_header
      %s14 = sphi 0, %s18
      %p15 = scmp.ge.s32.totalorder %s14, 4
      %s24 = sphi 0, %s26
      %s27 = sphi 0, %s24
      %s28 = sphi 0, %s27
      %s44 = sphi 0, %s28
      %s50 = sphi 0, %s52
      %s53 = sphi 0, %s50
      %s54 = sphi 0, %s53
      %s70 = sphi 0, %s54
      %s76 = sphi 0, %s78
      %s79 = sphi 0, %s76
      %s80 = sphi 0, %s79
      %s96 = sphi 0, %s80
    $region4: #{tpu_custom_call.1} parent=1 // loop_header_branch
      %17 = sbr.rel (%p15) target = $region8
    $region5: #{tpu_custom_call.1} parent=1 // loop_body
      %s19 = ssub.s32 %s14, 1
      %s20 = ssub.s32 %s14, 2
      %s21 = sadd.s32 %s14, 1
      %s22 = ssub.s32 %s14, %s21
      %p23 = scmp.eq.s32.totalorder %s22, 0
      %s25 = sadd.s32 %s24, 1
      %s26 = scalar_select %p23, %s24, %s25
      %p29 = pneg %p23
      %p30 = scmp.eq.s32.totalorder %s14, 1
      %p31 = por %p29, %p30
      %p32 = scmp.ne.s32.totalorder %s24, %s27
      %p33 = scmp.eq.s32.totalorder %s14, 0
      %p34 = por %p32, %p33
      %p35 = scmp.ne.s32.totalorder %s24, %s27
      %p36 = scmp.eq.s32.totalorder %s19, 1
      %p37 = por %p35, %p36
      %p38 = scmp.ne.s32.totalorder %s27, %s28
      %p39 = scmp.eq.s32.totalorder %s19, 0
      %p40 = por %p38, %p39
      %p41 = scmp.ne.s32.totalorder %s27, %s28
      %p42 = scmp.eq.s32.totalorder %s20, 1
      %p43 = por %p41, %p42
      %p45 = scmp.ne.s32.totalorder %s28, %s44
      %p46 = scmp.eq.s32.totalorder %s20, 0
      %p47 = por %p45, %p46
      %s48 = ssub.s32 %s14, %s21
      %p49 = scmp.eq.s32.totalorder %s48, 0
      %s51 = sadd.s32 %s50, 1
      %s52 = scalar_select %p49, %s50, %s51
      %p55 = pneg %p49
      %p56 = scmp.eq.s32.totalorder %s14, 1
      %p57 = por %p55, %p56
      %p58 = scmp.ne.s32.totalorder %s50, %s53
      %p59 = scmp.eq.s32.totalorder %s14, 0
      %p60 = por %p58, %p59
      %p61 = scmp.ne.s32.totalorder %s50, %s53
      %p62 = scmp.eq.s32.totalorder %s19, 1
      %p63 = por %p61, %p62
      %p64 = scmp.ne.s32.totalorder %s53, %s54
      %p65 = scmp.eq.s32.totalorder %s19, 0
      %p66 = por %p64, %p65
      %p67 = scmp.ne.s32.totalorder %s53, %s54
      %p68 = scmp.eq.s32.totalorder %s20, 1
      %p69 = por %p67, %p68
      %p71 = scmp.ne.s32.totalorder %s54, %s70
      %p72 = scmp.eq.s32.totalorder %s20, 0
      %p73 = por %p71, %p72
      %s74 = ssub.s32 %s14, %s21
      %p75 = scmp.eq.s32.totalorder %s74, 0
      %s77 = sadd.s32 %s76, 1
      %s78 = scalar_select %p75, %s76, %s77
      %p81 = pneg %p75
      %p82 = scmp.eq.s32.totalorder %s14, 1
      %p83 = por %p81, %p82
      %p84 = scmp.ne.s32.totalorder %s76, %s79
      %p85 = scmp.eq.s32.totalorder %s14, 0
      %p86 = por %p84, %p85
      %p87 = scmp.ne.s32.totalorder %s76, %s79
      %p88 = scmp.eq.s32.totalorder %s19, 1
      %p89 = por %p87, %p88
      %p90 = scmp.ne.s32.totalorder %s79, %s80
      %p91 = scmp.eq.s32.totalorder %s19, 0
      %p92 = por %p90, %p91
      %p93 = scmp.ne.s32.totalorder %s79, %s80
      %p94 = scmp.eq.s32.totalorder %s20, 1
      %p95 = por %p93, %p94
      %p97 = scmp.ne.s32.totalorder %s80, %s96
      %p98 = scmp.eq.s32.totalorder %s20, 0
      %p99 = por %p97, %p98
      %p100 = scmp.le.s32.totalorder 1, %s14
      %p101 = scmp.lt.s32.totalorder %s14, 3
      %p102 = pnand %p100, %p101
      %p103 = pneg %p102
      // Predicated region
      $region9: #{tpu_custom_call.1} parent=5 // pred_check
        _
      $region10: #{tpu_custom_call.1} parent=5 // pred_check_branch
        %105 = sbr.rel (%p102) target = $region12
      $region11: #{tpu_custom_call.1} parent=5 // pred_region
        %s106 = ssub.s32 %s14, 1
      $region12: #{tpu_custom_call.1} parent=5 // pred_fallthru
        _
      %p107 = scmp.lt.s32.totalorder %s14, 2
      // Predicated region
      $region13: #{tpu_custom_call.1} parent=5 // pred_check
        %p108 = pneg %p107
      $region14: #{tpu_custom_call.1} parent=5 // pred_check_branch
        %110 = sbr.rel (%p108) target = $region16
      $region15: #{tpu_custom_call.1} parent=5 // pred_region
        // Predicated region
        $region17: #{tpu_custom_call.1} parent=15 // pred_check
          %p111 = pneg %p34
        $region18: #{tpu_custom_call.1} parent=15 // pred_check_branch
          %113 = sbr.rel (%p111) target = $region20
        $region19: #{tpu_custom_call.1} parent=15 // pred_region
          %s114 = sand.u32 %s24, 1
          %s115 = sand.u32 %s24, 1
          %s116 = smul.addr %s115, 16
          %s117 = scalar_lea.vmem [#allocation2], %s116
          %s118 = smul.addr %s14, 8
          %s119 = scalar_lea.vmem %s0, %s118
          // Predicated region
          $region21: #{tpu_custom_call.1} parent=19 // pred_check
            _
          $region22: #{tpu_custom_call.1} parent=19 // pred_check_branch
            %121 = sbr.rel (0) target = $region24
          $region23: #{tpu_custom_call.1} parent=19 // pred_region
            // Predicated region
            $region25: #{tpu_custom_call.1} parent=23 // pred_check
              _
            $region26: #{tpu_custom_call.1} parent=23 // pred_check_branch
              %123 = sbr.rel (0) target = $region28
            $region27: #{tpu_custom_call.1} parent=23 // pred_region
              // Predicated region
              $region40: #{tpu_custom_call.1} parent=27 // pred_check
                _
              $region41: #{tpu_custom_call.1} parent=27 // pred_check_branch
                %141 = sbr.rel (0) target = $region43
              $region42: #{tpu_custom_call.1} parent=27 // pred_region
                loop: start=0, step=1, limit=1
                $region44: #{tpu_custom_call.1} parent=42 // loop_pre_header
                  _
                $region45: #{tpu_custom_call.1} parent=42 // loop_header
                  %s143 = sphi 0, %s147
                  %p144 = scmp.ge.s32.totalorder %s143, 1
                  %s148 = sphi %s119, %s119
                  %s149 = sphi %s117, %s117
                $region46: #{tpu_custom_call.1} parent=42 // loop_header_branch
                  %146 = sbr.rel (%p144) target = $region50
                $region47: #{tpu_custom_call.1} parent=42 // loop_body
                  %v150 = vld [vmem:[%s148] sm:$0xff]
                  %151 = vst [vmem:[%s149] sm:$0xff] %v150
                  %v152 = vld [vmem:[%s148 + $0x10] sm:$0xff]
                  %153 = vst [vmem:[%s149 + $0x8] sm:$0xff] %v152
                $region48: #{tpu_custom_call.1} parent=42 // loop_footer
                  %s147 = sadd.s32 1, %s143
                $region49: #{tpu_custom_call.1} parent=42 // loop_footer_branch
                  %142 = sbr.rel target = $region45
                $region50: #{tpu_custom_call.1} parent=42 // loop_exit
                  _
              $region43: #{tpu_custom_call.1} parent=27 // pred_fallthru
                _
              // Predicated region
              $region51: #{tpu_custom_call.1} parent=27 // pred_check
                _
              $region52: #{tpu_custom_call.1} parent=27 // pred_check_branch
                %155 = sbr.rel target = $region54
              $region53: #{tpu_custom_call.1} parent=27 // pred_region
                _
              $region54: #{tpu_custom_call.1} parent=27 // pred_fallthru
                _
            $region28: #{tpu_custom_call.1} parent=23 // pred_fallthru
              _
            // Predicated region
            $region29: #{tpu_custom_call.1} parent=23 // pred_check
              _
            $region30: #{tpu_custom_call.1} parent=23 // pred_check_branch
              %125 = sbr.rel target = $region32
            $region31: #{tpu_custom_call.1} parent=23 // pred_region
              %s127 = ssub.s32 256, 1
              loop: start=0, step=1, limit=1
              $region33: #{tpu_custom_call.1} parent=31 // loop_pre_header
                _
              $region34: #{tpu_custom_call.1} parent=31 // loop_header
                %s129 = sphi 0, %s133
                %p130 = scmp.ge.s32.totalorder %s129, 1
                %s134 = sphi %s119, %s119
                %s135 = sphi %s117, %s117
              $region35: #{tpu_custom_call.1} parent=31 // loop_header_branch
                %132 = sbr.rel (%p130) target = $region39
              $region36: #{tpu_custom_call.1} parent=31 // loop_body
                %v136 = vld [vmem:[%s134] sm:%s127]
                %137 = vst [vmem:[%s135] sm:%s127] %v136
                %v138 = vld [vmem:[%s134 + $0x10] sm:%s127]
                %139 = vst [vmem:[%s135 + $0x8] sm:%s127] %v138
              $region37: #{tpu_custom_call.1} parent=31 // loop_footer
                %s133 = sadd.s32 1, %s129
              $region38: #{tpu_custom_call.1} parent=31 // loop_footer_branch
                %128 = sbr.rel target = $region34
              $region39: #{tpu_custom_call.1} parent=31 // loop_exit
                _
            $region32: #{tpu_custom_call.1} parent=23 // pred_fallthru
              _
          $region24: #{tpu_custom_call.1} parent=19 // pred_fallthru
            _
          %156 = vnop
        $region20: #{tpu_custom_call.1} parent=15 // pred_fallthru
          _
        // Predicated region
        $region55: #{tpu_custom_call.1} parent=15 // pred_check
          %p157 = pneg %p60
        $region56: #{tpu_custom_call.1} parent=15 // pred_check_branch
          %159 = sbr.rel (%p157) target = $region58
        $region57: #{tpu_custom_call.1} parent=15 // pred_region
          %s160 = sand.u32 %s50, 1
          %s161 = scalar_lea.sflag [#allocation4], %s160
          %s162 = sand.u32 %s50, 1
          %s163 = smul.addr %s162, 48
          %s164 = scalar_lea.vmem [#allocation3], %s163
          %s166 = ssub.s32 768, 768
          %167 = vsyncadd %s161, %s166
          %s168 = smul.addr %s14, 128
          %s169 = scalar_lea.hbm %s1, %s168
          %s170 = sshll.u32 %s164, 4
          %s171 = int_to_ptr.vmem [resolvable:$true] %s170
          %176 = dma.hbm_to_vmem [thread:$0]  %s169, 768, %s171, %s161, 256, 128, 8
        $region58: #{tpu_custom_call.1} parent=15 // pred_fallthru
          _
      $region16: #{tpu_custom_call.1} parent=5 // pred_fallthru
        _
      %p177 = scmp.le.s32.totalorder 1, %s14
      %p178 = scmp.lt.s32.totalorder %s14, 3
      %p179 = pnand %p177, %p178
      %p180 = pneg %p179
      // Predicated region
      $region59: #{tpu_custom_call.1} parent=5 // pred_check
        _
      $region60: #{tpu_custom_call.1} parent=5 // pred_check_branch
        %182 = sbr.rel (%p179) target = $region62
      $region61: #{tpu_custom_call.1} parent=5 // pred_region
        %s183 = ssub.s32 %s14, 1
        %s184 = sand.u32 %s27, 1
        %s185 = sand.u32 %s27, 1
        %s186 = smul.addr %s185, 16
        %s187 = scalar_lea.vmem [#allocation2], %s186
        // Predicated region
        $region63: #{tpu_custom_call.1} parent=61 // pred_check
          %p188 = pneg %p40
        $region64: #{tpu_custom_call.1} parent=61 // pred_check_branch
          %190 = sbr.rel (%p188) target = $region66
        $region65: #{tpu_custom_call.1} parent=61 // pred_region
          _
        $region66: #{tpu_custom_call.1} parent=61 // pred_fallthru
          _
        %s191 = sand.u32 %s53, 1
        %s192 = scalar_lea.sflag [#allocation4], %s191
        %s193 = sand.u32 %s53, 1
        %s194 = smul.addr %s193, 48
        %s195 = scalar_lea.vmem [#allocation3], %s194
        // Predicated region
        $region67: #{tpu_custom_call.1} parent=61 // pred_check
          %p196 = pneg %p66
        $region68: #{tpu_custom_call.1} parent=61 // pred_check_branch
          %198 = sbr.rel (%p196) target = $region70
        $region69: #{tpu_custom_call.1} parent=61 // pred_region
          %199 = dma.done %s192, 768
        $region70: #{tpu_custom_call.1} parent=61 // pred_fallthru
          _
        %s200 = sand.u32 %s27, 1
        %s201 = sand.u32 %s27, 1
        %s202 = smul.addr %s201, 16
        %s203 = scalar_lea.vmem [#allocation2], %s202
        %p204 = pneg %p40
        %p205 = pneg %p37
        %s206 = sand.u32 %s53, 1
        %s207 = scalar_lea.sflag [#allocation4], %s206
        %s208 = sand.u32 %s53, 1
        %s209 = smul.addr %s208, 48
        %s210 = scalar_lea.vmem [#allocation3], %s209
        %p211 = pneg %p66
        %p212 = pneg %p63
        %p213 = pneg %p92
        %p214 = pneg %p89
        %s215 = sand.u32 %s79, 1
        %s216 = scalar_lea.sflag [#allocation5], %s215
        %s217 = sand.u32 %s79, 1
        %s218 = smul.addr %s217, 48
        %s219 = scalar_lea.vmem [#allocation6], %s218
        %v220 = vld [vmem:[%s195] sm:$0xff]
        %v221 = vld [vmem:[%s195 + $0x8] sm:$0xff]
        %v222 = vld [vmem:[%s195 + $0x10] sm:$0xff]
        %v223 = vld [vmem:[%s195 + $0x18] sm:$0xff]
        %v224 = vld [vmem:[%s195 + $0x20] sm:$0xff]
        %v225 = vld [vmem:[%s195 + $0x28] sm:$0xff]
        %226 = vst [vmem:[%s219] sm:$0xff] %v220
        %227 = vst [vmem:[%s219 + $0x8] sm:$0xff] %v221
        %228 = vst [vmem:[%s219 + $0x10] sm:$0xff] %v222
        %229 = vst [vmem:[%s219 + $0x18] sm:$0xff] %v223
        %230 = vst [vmem:[%s219 + $0x20] sm:$0xff] %v224
        %231 = vst [vmem:[%s219 + $0x28] sm:$0xff] %v225
        %v232 = vld [vmem:[%s187] sm:$0xff]
        %v233 = vld [vmem:[%s187 + $0x8] sm:$0x1f]
        %v234 = vand.u32 2147483647, %v232
        %vm235 = vcmp.le.f32.partialorder %v234, 0.7853982
        %vm236 = vcmp.lt.s32.totalorder %v232, 0
        %v237 = vand.u32 %v232, 2139095040
        %v238 = vshrl.u32 %v237, 23
        %v239 = vsub.s32 %v238, 127
        %v240 = vand.u32 2147483647, %v232
        %v241 = vand.u32 %v240, 8388607
        %v242 = vor.u32 %v241, 8388608
        %v243 = vsub.s32 0, %v242
        %v244 = vadd.s32 %v239, 1
        %vm245 = vcmp.gt.s32.totalorder %v244, 0
        %v246 = vsel %vm245, %v244, 0
        %v247 = vshrl.u32 %v246, 5
        %v248 = vand.u32 %v246, 31
        %v249 = vsub.s32 32, %v248
        %v250 = vshrl.u32 683565275, %v249
        %v251 = vshll.u32 683565275, %v248
        %v252 = vshrl.u32 2475754826, %v249
        %v253 = vor.u32 %v251, %v252
        %v254 = vshll.u32 2475754826, %v248
        %v255 = vshrl.u32 2131351028, %v249
        %v256 = vor.u32 %v254, %v255
        %v257 = vshll.u32 2131351028, %v248
        %v258 = vshrl.u32 2102212464, %v249
        %v259 = vor.u32 %v257, %v258
        %v260 = vshll.u32 2102212464, %v248
        %v261 = vshrl.u32 920167782, %v249
        %v262 = vor.u32 %v260, %v261
        %v263 = vshll.u32 920167782, %v248
        %v264 = vshrl.u32 1326507024, %v249
        %v265 = vor.u32 %v263, %v264
        %vm266 = vcmp.lt.s32.totalorder %v247, 1
        %vm267 = vcmp.lt.s32.totalorder %v247, 2
        %vm268 = vcmp.lt.s32.totalorder %v247, 3
        %vm269 = vcmp.lt.s32.totalorder %v247, 4
        %v270 = vsel %vm266, %v250, %v253
        %v271 = vsel %vm269, %v259, 2102212464
        %v272 = vsel %vm268, %v256, %v271
        %v273 = vsel %vm267, %v270, %v272
        %v274 = vsel %vm266, %v253, %v256
        %v275 = vsel %vm269, %v262, 920167782
        %v276 = vsel %vm268, %v259, %v275
        %v277 = vsel %vm267, %v274, %v276
        %v278 = vsel %vm266, %v256, %v259
        %v279 = vsel %vm269, %v265, 1326507024
        %v280 = vsel %vm268, %v262, %v279
        %v281 = vsel %vm267, %v278, %v280
        %v282 = vshll.u32 %v242, 8
        %v283 = vmul.u32.u64.compose %v282, %v281
        %v284 = vextract.low.u32 %v283
        %v285 = vextract.high.u32 %v283
        %v286 = vmul.u32.u64.compose %v282, %v277
        %v287 = vextract.low.u32 %v286
        %v288 = vextract.high.u32 %v286
        %v289 = vmul.u32 %v282, %v273
        %v290 = vadd.s32 %v285, %v287
        %vm291 = vc.u32 %v285, %v287
        %v292 = vadd.s32 %v288, 1
        %v293 = vsel %vm291, %v292, %v288
        %v294 = vadd.s32 %v289, %v293
        %v295 = vadd.s32 %v294, 536870912
        %v296 = vshrl.u32 %v295, 30
        %v297 = vshll.u32 %v296, 30
        %v298 = vsub.s32 %v294, %v297
        %vm299 = vcmp.lt.s32.totalorder %v298, 0
        %v300 = vsub.s32 0, %v298
        %v301 = vsel %vm299, %v300, %v298
        %v302 = vclz %v301
        %v303 = vsub.s32 %v302, 2
        %vm304 = vcmp.gt.s32.totalorder 0, %v303
        %v305 = vsel %vm304, 0, %v303
        %v306 = vsub.s32 32, %v305
        %v307 = vshll.u32 %v298, %v305
        %v308 = vshrl.u32 %v290, %v306
        %v309 = vor.u32 %v307, %v308
        %v310 = vsub.s32 4294967266, %v305
        %v311 = vadd.s32 %v310, 127
        %v312 = vshll.u32 %v311, 23
        %v313 = vor.u32 4788187, %v312
        %v314 = vand.u32 2147483647, %v313
        %v316 = vcvt.s32.f32 %v309
        %v317 = vmul.f32 %v316, %v314
        %v318 = vxor.u32 %v317, 2147483648
        %v319 = vsel %vm236, %v318, %v317
        %v320 = vsub.s32 4, %v296
        %v321 = vsel %vm236, %v320, %v296
        %v322 = vsel %vm235, %v232, %v319
        %v323 = vsel %vm235, 0, %v321
        %v324 = vcosq.f32.pop %v322
        %v325 = vsinq.f32.pop %v322
        %vm326 = vweird.f32 %v232
        %v327 = vand.u32 %v323, 3
        %vm328 = vcmp.lt.s32.totalorder %v327, 2
        %vm329 = vcmp.eq.s32.totalorder %v327, 0
        %v330 = vxor.u32 %v325, 2147483648
        %v331 = vsel %vm329, %v324, %v330
        %vm332 = vcmp.eq.s32.totalorder %v327, 2
        %v333 = vxor.u32 %v324, 2147483648
        %v334 = vsel %vm332, %v333, %v325
        %v335 = vsel %vm328, %v331, %v334
        %v336 = vsel %vm326, nan, %v335
        %v337 = vand.u32 2147483647, %v233
        %vm338 = vcmp.le.f32.partialorder %v337, 0.7853982
        %vm339 = vcmp.lt.s32.totalorder %v233, 0
        %v340 = vand.u32 %v233, 2139095040
        %v341 = vshrl.u32 %v340, 23
        %v342 = vsub.s32 %v341, 127
        %v343 = vand.u32 2147483647, %v233
        %v344 = vand.u32 %v343, 8388607
        %v345 = vor.u32 %v344, 8388608
        %v346 = vsub.s32 0, %v345
        %v347 = vadd.s32 %v342, 1
        %vm348 = vcmp.gt.s32.totalorder %v347, 0
        %v349 = vsel %vm348, %v347, 0
        %v350 = vshrl.u32 %v349, 5
        %v351 = vand.u32 %v349, 31
        %v352 = vsub.s32 32, %v351
        %v353 = vshrl.u32 683565275, %v352
        %v354 = vshll.u32 683565275, %v351
        %v355 = vshrl.u32 2475754826, %v352
        %v356 = vor.u32 %v354, %v355
        %v357 = vshll.u32 2475754826, %v351
        %v358 = vshrl.u32 2131351028, %v352
        %v359 = vor.u32 %v357, %v358
        %v360 = vshll.u32 2131351028, %v351
        %v361 = vshrl.u32 2102212464, %v352
        %v362 = vor.u32 %v360, %v361
        %v363 = vshll.u32 2102212464, %v351
        %v364 = vshrl.u32 920167782, %v352
        %v365 = vor.u32 %v363, %v364
        %v366 = vshll.u32 920167782, %v351
        %v367 = vshrl.u32 1326507024, %v352
        %v368 = vor.u32 %v366, %v367
        %vm369 = vcmp.lt.s32.totalorder %v350, 1
        %vm370 = vcmp.lt.s32.totalorder %v350, 2
        %vm371 = vcmp.lt.s32.totalorder %v350, 3
        %vm372 = vcmp.lt.s32.totalorder %v350, 4
        %v373 = vsel %vm369, %v353, %v356
        %v374 = vsel %vm372, %v362, 2102212464
        %v375 = vsel %vm371, %v359, %v374
        %v376 = vsel %vm370, %v373, %v375
        %v377 = vsel %vm369, %v356, %v359
        %v378 = vsel %vm372, %v365, 920167782
        %v379 = vsel %vm371, %v362, %v378
        %v380 = vsel %vm370, %v377, %v379
        %v381 = vsel %vm369, %v359, %v362
        %v382 = vsel %vm372, %v368, 1326507024
        %v383 = vsel %vm371, %v365, %v382
        %v384 = vsel %vm370, %v381, %v383
        %v385 = vshll.u32 %v345, 8
        %v386 = vmul.u32.u64.compose %v385, %v384
        %v387 = vextract.low.u32 %v386
        %v388 = vextract.high.u32 %v386
        %v389 = vmul.u32.u64.compose %v385, %v380
        %v390 = vextract.low.u32 %v389
        %v391 = vextract.high.u32 %v389
        %v392 = vmul.u32 %v385, %v376
        %v393 = vadd.s32 %v388, %v390
        %vm394 = vc.u32 %v388, %v390
        %v395 = vadd.s32 %v391, 1
        %v396 = vsel %vm394, %v395, %v391
        %v397 = vadd.s32 %v392, %v396
        %v398 = vadd.s32 %v397, 536870912
        %v399 = vshrl.u32 %v398, 30
        %v400 = vshll.u32 %v399, 30
        %v401 = vsub.s32 %v397, %v400
        %vm402 = vcmp.lt.s32.totalorder %v401, 0
        %v403 = vsub.s32 0, %v401
        %v404 = vsel %vm402, %v403, %v401
        %v405 = vclz %v404
        %v406 = vsub.s32 %v405, 2
        %vm407 = vcmp.gt.s32.totalorder 0, %v406
        %v408 = vsel %vm407, 0, %v406
        %v409 = vsub.s32 32, %v408
        %v410 = vshll.u32 %v401, %v408
        %v411 = vshrl.u32 %v393, %v409
        %v412 = vor.u32 %v410, %v411
        %v413 = vsub.s32 4294967266, %v408
        %v414 = vadd.s32 %v413, 127
        %v415 = vshll.u32 %v414, 23
        %v416 = vor.u32 4788187, %v415
        %v417 = vand.u32 2147483647, %v416
        %v419 = vcvt.s32.f32 %v412
        %v420 = vmul.f32 %v419, %v417
        %v421 = vxor.u32 %v420, 2147483648
        %v422 = vsel %vm339, %v421, %v420
        %v423 = vsub.s32 4, %v399
        %v424 = vsel %vm339, %v423, %v399
        %v425 = vsel %vm338, %v233, %v422
        %v426 = vsel %vm338, 0, %v424
        %v427 = vcosq.f32.pop %v425
        %v428 = vsinq.f32.pop %v425
        %vm429 = vweird.f32 %v233
        %v430 = vand.u32 %v426, 3
        %vm431 = vcmp.lt.s32.totalorder %v430, 2
        %vm432 = vcmp.eq.s32.totalorder %v430, 0
        %v433 = vxor.u32 %v428, 2147483648
        %v434 = vsel %vm432, %v427, %v433
        %vm435 = vcmp.eq.s32.totalorder %v430, 2
        %v436 = vxor.u32 %v427, 2147483648
        %v437 = vsel %vm435, %v436, %v428
        %v438 = vsel %vm431, %v434, %v437
        %v439 = vsel %vm429, nan, %v438
        %v440 = vand.u32 2147483647, %v232
        %vm441 = vcmp.le.f32.partialorder %v440, 0.7853982
        %vm442 = vcmp.lt.s32.totalorder %v232, 0
        %v443 = vand.u32 %v232, 2139095040
        %v444 = vshrl.u32 %v443, 23
        %v445 = vsub.s32 %v444, 127
        %v446 = vand.u32 2147483647, %v232
        %v447 = vand.u32 %v446, 8388607
        %v448 = vor.u32 %v447, 8388608
        %v449 = vsub.s32 0, %v448
        %v450 = vadd.s32 %v445, 1
        %vm451 = vcmp.gt.s32.totalorder %v450, 0
        %v452 = vsel %vm451, %v450, 0
        %v453 = vshrl.u32 %v452, 5
        %v454 = vand.u32 %v452, 31
        %v455 = vsub.s32 32, %v454
        %v456 = vshrl.u32 683565275, %v455
        %v457 = vshll.u32 683565275, %v454
        %v458 = vshrl.u32 2475754826, %v455
        %v459 = vor.u32 %v457, %v458
        %v460 = vshll.u32 2475754826, %v454
        %v461 = vshrl.u32 2131351028, %v455
        %v462 = vor.u32 %v460, %v461
        %v463 = vshll.u32 2131351028, %v454
        %v464 = vshrl.u32 2102212464, %v455
        %v465 = vor.u32 %v463, %v464
        %v466 = vshll.u32 2102212464, %v454
        %v467 = vshrl.u32 920167782, %v455
        %v468 = vor.u32 %v466, %v467
        %v469 = vshll.u32 920167782, %v454
        %v470 = vshrl.u32 1326507024, %v455
        %v471 = vor.u32 %v469, %v470
        %vm472 = vcmp.lt.s32.totalorder %v453, 1
        %vm473 = vcmp.lt.s32.totalorder %v453, 2
        %vm474 = vcmp.lt.s32.totalorder %v453, 3
        %vm475 = vcmp.lt.s32.totalorder %v453, 4
        %v476 = vsel %vm472, %v456, %v459
        %v477 = vsel %vm475, %v465, 2102212464
        %v478 = vsel %vm474, %v462, %v477
        %v479 = vsel %vm473, %v476, %v478
        %v480 = vsel %vm472, %v459, %v462
        %v481 = vsel %vm475, %v468, 920167782
        %v482 = vsel %vm474, %v465, %v481
        %v483 = vsel %vm473, %v480, %v482
        %v484 = vsel %vm472, %v462, %v465
        %v485 = vsel %vm475, %v471, 1326507024
        %v486 = vsel %vm474, %v468, %v485
        %v487 = vsel %vm473, %v484, %v486
        %v488 = vshll.u32 %v448, 8
        %v489 = vmul.u32.u64.compose %v488, %v487
        %v490 = vextract.low.u32 %v489
        %v491 = vextract.high.u32 %v489
        %v492 = vmul.u32.u64.compose %v488, %v483
        %v493 = vextract.low.u32 %v492
        %v494 = vextract.high.u32 %v492
        %v495 = vmul.u32 %v488, %v479
        %v496 = vadd.s32 %v491, %v493
        %vm497 = vc.u32 %v491, %v493
        %v498 = vadd.s32 %v494, 1
        %v499 = vsel %vm497, %v498, %v494
        %v500 = vadd.s32 %v495, %v499
        %v501 = vadd.s32 %v500, 536870912
        %v502 = vshrl.u32 %v501, 30
        %v503 = vshll.u32 %v502, 30
        %v504 = vsub.s32 %v500, %v503
        %vm505 = vcmp.lt.s32.totalorder %v504, 0
        %v506 = vsub.s32 0, %v504
        %v507 = vsel %vm505, %v506, %v504
        %v508 = vclz %v507
        %v509 = vsub.s32 %v508, 2
        %vm510 = vcmp.gt.s32.totalorder 0, %v509
        %v511 = vsel %vm510, 0, %v509
        %v512 = vsub.s32 32, %v511
        %v513 = vshll.u32 %v504, %v511
        %v514 = vshrl.u32 %v496, %v512
        %v515 = vor.u32 %v513, %v514
        %v516 = vsub.s32 4294967266, %v511
        %v517 = vadd.s32 %v516, 127
        %v518 = vshll.u32 %v517, 23
        %v519 = vor.u32 4788187, %v518
        %v520 = vand.u32 2147483647, %v519
        %v522 = vcvt.s32.f32 %v515
        %v523 = vmul.f32 %v522, %v520
        %v524 = vxor.u32 %v523, 2147483648
        %v525 = vsel %vm442, %v524, %v523
        %v526 = vsub.s32 4, %v502
        %v527 = vsel %vm442, %v526, %v502
        %v528 = vsel %vm441, %v232, %v525
        %v529 = vsel %vm441, 0, %v527
        %v530 = vcosq.f32.pop %v528
        %v531 = vsinq.f32.pop %v528
        %vm532 = vweird.f32 %v232
        %v533 = vadd.s32 %v529, 3
        %v534 = vand.u32 %v533, 3
        %vm535 = vcmp.lt.s32.totalorder %v534, 2
        %vm536 = vcmp.eq.s32.totalorder %v534, 0
        %v537 = vxor.u32 %v531, 2147483648
        %v538 = vsel %vm536, %v530, %v537
        %vm539 = vcmp.eq.s32.totalorder %v534, 2
        %v540 = vxor.u32 %v530, 2147483648
        %v541 = vsel %vm539, %v540, %v531
        %v542 = vsel %vm535, %v538, %v541
        %v543 = vsel %vm532, nan, %v542
        %v544 = vand.u32 2147483647, %v233
        %vm545 = vcmp.le.f32.partialorder %v544, 0.7853982
        %vm546 = vcmp.lt.s32.totalorder %v233, 0
        %v547 = vand.u32 %v233, 2139095040
        %v548 = vshrl.u32 %v547, 23
        %v549 = vsub.s32 %v548, 127
        %v550 = vand.u32 2147483647, %v233
        %v551 = vand.u32 %v550, 8388607
        %v552 = vor.u32 %v551, 8388608
        %v553 = vsub.s32 0, %v552
        %v554 = vadd.s32 %v549, 1
        %vm555 = vcmp.gt.s32.totalorder %v554, 0
        %v556 = vsel %vm555, %v554, 0
        %v557 = vshrl.u32 %v556, 5
        %v558 = vand.u32 %v556, 31
        %v559 = vsub.s32 32, %v558
        %v560 = vshrl.u32 683565275, %v559
        %v561 = vshll.u32 683565275, %v558
        %v562 = vshrl.u32 2475754826, %v559
        %v563 = vor.u32 %v561, %v562
        %v564 = vshll.u32 2475754826, %v558
        %v565 = vshrl.u32 2131351028, %v559
        %v566 = vor.u32 %v564, %v565
        %v567 = vshll.u32 2131351028, %v558
        %v568 = vshrl.u32 2102212464, %v559
        %v569 = vor.u32 %v567, %v568
        %v570 = vshll.u32 2102212464, %v558
        %v571 = vshrl.u32 920167782, %v559
        %v572 = vor.u32 %v570, %v571
        %v573 = vshll.u32 920167782, %v558
        %v574 = vshrl.u32 1326507024, %v559
        %v575 = vor.u32 %v573, %v574
        %vm576 = vcmp.lt.s32.totalorder %v557, 1
        %vm577 = vcmp.lt.s32.totalorder %v557, 2
        %vm578 = vcmp.lt.s32.totalorder %v557, 3
        %vm579 = vcmp.lt.s32.totalorder %v557, 4
        %v580 = vsel %vm576, %v560, %v563
        %v581 = vsel %vm579, %v569, 2102212464
        %v582 = vsel %vm578, %v566, %v581
        %v583 = vsel %vm577, %v580, %v582
        %v584 = vsel %vm576, %v563, %v566
        %v585 = vsel %vm579, %v572, 920167782
        %v586 = vsel %vm578, %v569, %v585
        %v587 = vsel %vm577, %v584, %v586
        %v588 = vsel %vm576, %v566, %v569
        %v589 = vsel %vm579, %v575, 1326507024
        %v590 = vsel %vm578, %v572, %v589
        %v591 = vsel %vm577, %v588, %v590
        %v592 = vshll.u32 %v552, 8
        %v593 = vmul.u32.u64.compose %v592, %v591
        %v594 = vextract.low.u32 %v593
        %v595 = vextract.high.u32 %v593
        %v596 = vmul.u32.u64.compose %v592, %v587
        %v597 = vextract.low.u32 %v596
        %v598 = vextract.high.u32 %v596
        %v599 = vmul.u32 %v592, %v583
        %v600 = vadd.s32 %v595, %v597
        %vm601 = vc.u32 %v595, %v597
        %v602 = vadd.s32 %v598, 1
        %v603 = vsel %vm601, %v602, %v598
        %v604 = vadd.s32 %v599, %v603
        %v605 = vadd.s32 %v604, 536870912
        %v606 = vshrl.u32 %v605, 30
        %v607 = vshll.u32 %v606, 30
        %v608 = vsub.s32 %v604, %v607
        %vm609 = vcmp.lt.s32.totalorder %v608, 0
        %v610 = vsub.s32 0, %v608
        %v611 = vsel %vm609, %v610, %v608
        %v612 = vclz %v611
        %v613 = vsub.s32 %v612, 2
        %vm614 = vcmp.gt.s32.totalorder 0, %v613
        %v615 = vsel %vm614, 0, %v613
        %v616 = vsub.s32 32, %v615
        %v617 = vshll.u32 %v608, %v615
        %v618 = vshrl.u32 %v600, %v616
        %v619 = vor.u32 %v617, %v618
        %v620 = vsub.s32 4294967266, %v615
        %v621 = vadd.s32 %v620, 127
        %v622 = vshll.u32 %v621, 23
        %v623 = vor.u32 4788187, %v622
        %v624 = vand.u32 2147483647, %v623
        %v626 = vcvt.s32.f32 %v619
        %v627 = vmul.f32 %v626, %v624
        %v628 = vxor.u32 %v627, 2147483648
        %v629 = vsel %vm546, %v628, %v627
        %v630 = vsub.s32 4, %v606
        %v631 = vsel %vm546, %v630, %v606
        %v632 = vsel %vm545, %v233, %v629
        %v633 = vsel %vm545, 0, %v631
        %v634 = vcosq.f32.pop %v632
        %v635 = vsinq.f32.pop %v632
        %vm636 = vweird.f32 %v233
        %v637 = vadd.s32 %v633, 3
        %v638 = vand.u32 %v637, 3
        %vm639 = vcmp.lt.s32.totalorder %v638, 2
        %vm640 = vcmp.eq.s32.totalorder %v638, 0
        %v641 = vxor.u32 %v635, 2147483648
        %v642 = vsel %vm640, %v634, %v641
        %vm643 = vcmp.eq.s32.totalorder %v638, 2
        %v644 = vxor.u32 %v634, 2147483648
        %v645 = vsel %vm643, %v644, %v635
        %v646 = vsel %vm639, %v642, %v645
        %v647 = vsel %vm636, nan, %v646
        %v648 = vlaneseq
        %v649 = vshrl.u32 %v648, 7
        %v650 = vadd.s32 %v649, 8
        %v651 = vld [vmem:[%s219] sm:$0x1]
        %s652 = scalar_lea.vmem %s219, 16 [#allocation6]
        %v653 = vld [vmem:[%s652] sm:$0x1]
        %s654 = scalar_lea.vmem %s219, 32 [#allocation6]
        %v655 = vld [vmem:[%s654] sm:$0x1]
        %v656 = vld [vmem:[%s219 + $0x1] sm:$0x1]
        %v657 = vld [vmem:[%s652 + $0x1] sm:$0x1]
        %v658 = vld [vmem:[%s654 + $0x1] sm:$0x1]
        %v659 = vld [vmem:[%s219 + $0x2] sm:$0x1]
        %v660 = vld [vmem:[%s652 + $0x2] sm:$0x1]
        %v661 = vld [vmem:[%s654 + $0x2] sm:$0x1]
        %v662 = vld [vmem:[%s219 + $0x3] sm:$0x1]
        %v663 = vld [vmem:[%s652 + $0x3] sm:$0x1]
        %v664 = vld [vmem:[%s654 + $0x3] sm:$0x1]
        %v665 = vsub.f32 %v656, %v651
        %v666 = vsub.f32 %v657, %v653
        %v667 = vsub.f32 %v658, %v655
        %v668 = vsub.f32 %v659, %v656
        %v669 = vsub.f32 %v660, %v657
        %v670 = vsub.f32 %v661, %v658
        %v671 = vsub.f32 %v662, %v659
        %v672 = vsub.f32 %v663, %v660
        %v673 = vsub.f32 %v664, %v661
        %v674 = vmul.f32 %v666, %v670
        %v675 = vmul.f32 %v667, %v669
        %v676 = vsub.f32 %v674, %v675
        %v677 = vmul.f32 %v667, %v668
        %v678 = vmul.f32 %v665, %v670
        %v679 = vsub.f32 %v677, %v678
        %v680 = vmul.f32 %v665, %v669
        %v681 = vmul.f32 %v666, %v668
        %v682 = vsub.f32 %v680, %v681
        %v683 = vmul.f32 %v669, %v673
        %v684 = vmul.f32 %v670, %v672
        %v685 = vsub.f32 %v683, %v684
        %v686 = vmul.f32 %v670, %v671
        %v687 = vmul.f32 %v668, %v673
        %v688 = vsub.f32 %v686, %v687
        %v689 = vmul.f32 %v668, %v672
        %v690 = vmul.f32 %v669, %v671
        %v691 = vsub.f32 %v689, %v690
        %v692 = vmul.f32 %v679, %v670
        %v693 = vmul.f32 %v682, %v669
        %v694 = vsub.f32 %v692, %v693
        %v695 = vmul.f32 %v682, %v668
        %v696 = vmul.f32 %v676, %v670
        %v697 = vsub.f32 %v695, %v696
        %v698 = vmul.f32 %v676, %v669
        %v699 = vmul.f32 %v679, %v668
        %v700 = vsub.f32 %v698, %v699
        %v701 = vmul.f32 %v694, %v685
        %v702 = vmul.f32 %v697, %v688
        %v703 = vadd.f32 %v701, %v702
        %v704 = vmul.f32 %v700, %v691
        %v705 = vadd.f32 %v703, %v704
        %v706 = vmul.f32 %v676, %v685
        %v707 = vmul.f32 %v679, %v688
        %v708 = vadd.f32 %v706, %v707
        %v709 = vmul.f32 %v682, %v691
        %v710 = vadd.f32 %v708, %v709
        %v711 = vmul.f32 %v668, %v668
        %v712 = vmul.f32 %v669, %v669
        %v713 = vadd.f32 %v711, %v712
        %v714 = vmul.f32 %v670, %v670
        %v715 = vadd.f32 %v713, %v714
        %v716 = vmax.f32 %v715, 1e-24
        %v717 = vrsqrt.pop %v716
        %v718 = vmul.f32 %v668, %v717
        %v719 = vmul.f32 %v669, %v717
        %v720 = vmul.f32 %v670, %v717
        %v721 = vmul.f32 %v705, %v717
        %v722 = vmul.f32 %v710, %v710
        %v723 = vmul.f32 %v721, %v721
        %v724 = vadd.f32 %v722, %v723
        %v725 = vmax.f32 %v724, 1e-24
        %v726 = vrsqrt.pop %v725
        %vm727 = vcmp.lt.f32.partialorder %v724, 1e-24
        %v728 = vmul.f32 %v710, %v726
        %v729 = vsel %vm727, 1.0, %v728
        %v730 = vmul.f32 %v721, %v726
        %v731 = vsel %vm727, 0.0, %v730
        %v732 = vmul.f32 %v336, %v729
        %v733 = vmul.f32 %v543, %v731
        %v734 = vsub.f32 %v732, %v733
        %v735 = vmul.f32 %v543, %v729
        %v736 = vmul.f32 %v336, %v731
        %v737 = vadd.f32 %v735, %v736
        %v738 = vsub.f32 1.0, %v734
        %v739 = vmul.f32 %v738, %v718
        %v740 = vmul.f32 %v738, %v719
        %v741 = vmul.f32 %v738, %v720
        %v742 = vmul.f32 %v737, %v718
        %v743 = vmul.f32 %v737, %v719
        %v744 = vmul.f32 %v737, %v720
        %v745 = vmul.f32 %v739, %v719
        %v746 = vmul.f32 %v739, %v720
        %v747 = vmul.f32 %v740, %v720
        %v748 = vmul.f32 %v739, %v718
        %v749 = vadd.f32 %v748, %v734
        %v750 = vsub.f32 %v745, %v744
        %v751 = vadd.f32 %v746, %v743
        %v752 = vadd.f32 %v745, %v744
        %v753 = vmul.f32 %v740, %v719
        %v754 = vadd.f32 %v753, %v734
        %v755 = vsub.f32 %v747, %v742
        %v756 = vsub.f32 %v746, %v743
        %v757 = vadd.f32 %v747, %v742
        %v758 = vmul.f32 %v741, %v720
        %v759 = vadd.f32 %v758, %v734
        %v760 = vld [vmem:[%s219] sm:$0xff]
        %v761 = vld [vmem:[%s219 + $0x8] sm:$0xff]
        %v762 = vld [vmem:[%s652] sm:$0xff]
        %v763 = vld [vmem:[%s652 + $0x8] sm:$0xff]
        %v764 = vld [vmem:[%s654] sm:$0xff]
        %v765 = vld [vmem:[%s654 + $0x8] sm:$0xff]
        %v766 = vlaneseq
        %v767 = vshrl.u32 %v766, 7
        %v768 = vsub.s32 0, %v767
        %v769 = vrot.slane %v656, %v768
        %v770 = vsub.f32 %v760, %v769
        %v771 = vsub.f32 %v761, %v769
        %v772 = vlaneseq
        %v773 = vshrl.u32 %v772, 7
        %v774 = vsub.s32 0, %v773
        %v775 = vrot.slane %v657, %v774
        %v776 = vsub.f32 %v762, %v775
        %v777 = vsub.f32 %v763, %v775
        %v778 = vlaneseq
        %v779 = vshrl.u32 %v778, 7
        %v780 = vsub.s32 0, %v779
        %v781 = vrot.slane %v658, %v780
        %v782 = vsub.f32 %v764, %v781
        %v783 = vsub.f32 %v765, %v781
        %v784 = vlaneseq
        %v785 = vshrl.u32 %v784, 7
        %v786 = vsub.s32 0, %v785
        %v787 = vrot.slane %v749, %v786
        %v788 = vmul.f32 %v787, %v770
        %v789 = vmul.f32 %v787, %v771
        %v790 = vlaneseq
        %v791 = vshrl.u32 %v790, 7
        %v792 = vsub.s32 0, %v791
        %v793 = vrot.slane %v750, %v792
        %v794 = vmul.f32 %v793, %v776
        %v795 = vmul.f32 %v793, %v777
        %v796 = vadd.f32 %v788, %v794
        %v797 = vadd.f32 %v789, %v795
        %v798 = vlaneseq
        %v799 = vshrl.u32 %v798, 7
        %v800 = vsub.s32 0, %v799
        %v801 = vrot.slane %v751, %v800
        %v802 = vmul.f32 %v801, %v782
        %v803 = vmul.f32 %v801, %v783
        %v804 = vadd.f32 %v796, %v802
        %v805 = vadd.f32 %v797, %v803
        %v806 = vadd.f32 %v804, %v769
        %v807 = vadd.f32 %v805, %v769
        %v808 = vlaneseq
        %v809 = vshrl.u32 %v808, 7
        %v810 = vsub.s32 0, %v809
        %v811 = vrot.slane %v752, %v810
        %v812 = vmul.f32 %v811, %v770
        %v813 = vmul.f32 %v811, %v771
        %v814 = vlaneseq
        %v815 = vshrl.u32 %v814, 7
        %v816 = vsub.s32 0, %v815
        %v817 = vrot.slane %v754, %v816
        %v818 = vmul.f32 %v817, %v776
        %v819 = vmul.f32 %v817, %v777
        %v820 = vadd.f32 %v812, %v818
        %v821 = vadd.f32 %v813, %v819
        %v822 = vlaneseq
        %v823 = vshrl.u32 %v822, 7
        %v824 = vsub.s32 0, %v823
        %v825 = vrot.slane %v755, %v824
        %v826 = vmul.f32 %v825, %v782
        %v827 = vmul.f32 %v825, %v783
        %v828 = vadd.f32 %v820, %v826
        %v829 = vadd.f32 %v821, %v827
        %v830 = vadd.f32 %v828, %v775
        %v831 = vadd.f32 %v829, %v775
        %v832 = vlaneseq
        %v833 = vshrl.u32 %v832, 7
        %v834 = vsub.s32 0, %v833
        %v835 = vrot.slane %v756, %v834
        %v836 = vmul.f32 %v835, %v770
        %v837 = vmul.f32 %v835, %v771
        %v838 = vlaneseq
        %v839 = vshrl.u32 %v838, 7
        %v840 = vsub.s32 0, %v839
        %v841 = vrot.slane %v757, %v840
        %v842 = vmul.f32 %v841, %v776
        %v843 = vmul.f32 %v841, %v777
        %v844 = vadd.f32 %v836, %v842
        %v845 = vadd.f32 %v837, %v843
        %v846 = vlaneseq
        %v847 = vshrl.u32 %v846, 7
        %v848 = vsub.s32 0, %v847
        %v849 = vrot.slane %v759, %v848
        %v850 = vmul.f32 %v849, %v782
        %v851 = vmul.f32 %v849, %v783
        %v852 = vadd.f32 %v844, %v850
        %v853 = vadd.f32 %v845, %v851
        %v854 = vadd.f32 %v852, %v781
        %v855 = vadd.f32 %v853, %v781
        %vm856 = vcmp.ge.s32.totalorder %v649, 3
        %vm857 = vcmp.ge.s32.totalorder %v650, 3
        %v858 = vsel %vm856, 1, 0
        %v859 = vsel %vm857, 1, 0
        %vm860 = vcmp.eq.s32.totalorder %v858, 1
        %vm861 = vcmp.eq.s32.totalorder %v859, 1
        %v862 = vsel %vm860, %v806, %v760
        %v863 = vsel %vm861, %v807, %v761
        %v864 = vsel %vm860, %v830, %v762
        %v865 = vsel %vm861, %v831, %v763
        %v866 = vsel %vm860, %v854, %v764
        %v867 = vsel %vm861, %v855, %v765
        %868 = vst [vmem:[%s219] sm:$0xff] %v862
        %869 = vst [vmem:[%s219 + $0x8] sm:$0xff] %v863
        %870 = vst [vmem:[%s652] sm:$0xff] %v864
        %871 = vst [vmem:[%s652 + $0x8] sm:$0xff] %v865
        %872 = vst [vmem:[%s654] sm:$0xff] %v866
        %873 = vst [vmem:[%s654 + $0x8] sm:$0xff] %v867
        %v874 = vld [vmem:[%s219 + $0x1] sm:$0x1]
        %v875 = vld [vmem:[%s652 + $0x1] sm:$0x1]
        %v876 = vld [vmem:[%s654 + $0x1] sm:$0x1]
        %v877 = vld [vmem:[%s219 + $0x2] sm:$0x1]
        %v878 = vld [vmem:[%s652 + $0x2] sm:$0x1]
        %v879 = vld [vmem:[%s654 + $0x2] sm:$0x1]
        %v880 = vld [vmem:[%s219 + $0x3] sm:$0x1]
        %v881 = vld [vmem:[%s652 + $0x3] sm:$0x1]
        %v882 = vld [vmem:[%s654 + $0x3] sm:$0x1]
        %v883 = vld [vmem:[%s219 + $0x4] sm:$0x1]
        %v884 = vld [vmem:[%s652 + $0x4] sm:$0x1]
        %v885 = vld [vmem:[%s654 + $0x4] sm:$0x1]
        %v886 = vsub.f32 %v877, %v874
        %v887 = vsub.f32 %v878, %v875
        %v888 = vsub.f32 %v879, %v876
        %v889 = vsub.f32 %v880, %v877
        %v890 = vsub.f32 %v881, %v878
        %v891 = vsub.f32 %v882, %v879
        %v892 = vsub.f32 %v883, %v880
        %v893 = vsub.f32 %v884, %v881
        %v894 = vsub.f32 %v885, %v882
        %v895 = vmul.f32 %v887, %v891
        %v896 = vmul.f32 %v888, %v890
        %v897 = vsub.f32 %v895, %v896
        %v898 = vmul.f32 %v888, %v889
        %v899 = vmul.f32 %v886, %v891
        %v900 = vsub.f32 %v898, %v899
        %v901 = vmul.f32 %v886, %v890
        %v902 = vmul.f32 %v887, %v889
        %v903 = vsub.f32 %v901, %v902
        %v904 = vmul.f32 %v890, %v894
        %v905 = vmul.f32 %v891, %v893
        %v906 = vsub.f32 %v904, %v905
        %v907 = vmul.f32 %v891, %v892
        %v908 = vmul.f32 %v889, %v894
        %v909 = vsub.f32 %v907, %v908
        %v910 = vmul.f32 %v889, %v893
        %v911 = vmul.f32 %v890, %v892
        %v912 = vsub.f32 %v910, %v911
        %v913 = vmul.f32 %v900, %v891
        %v914 = vmul.f32 %v903, %v890
        %v915 = vsub.f32 %v913, %v914
        %v916 = vmul.f32 %v903, %v889
        %v917 = vmul.f32 %v897, %v891
        %v918 = vsub.f32 %v916, %v917
        %v919 = vmul.f32 %v897, %v890
        %v920 = vmul.f32 %v900, %v889
        %v921 = vsub.f32 %v919, %v920
        %v922 = vmul.f32 %v915, %v906
        %v923 = vmul.f32 %v918, %v909
        %v924 = vadd.f32 %v922, %v923
        %v925 = vmul.f32 %v921, %v912
        %v926 = vadd.f32 %v924, %v925
        %v927 = vmul.f32 %v897, %v906
        %v928 = vmul.f32 %v900, %v909
        %v929 = vadd.f32 %v927, %v928
        %v930 = vmul.f32 %v903, %v912
        %v931 = vadd.f32 %v929, %v930
        %v932 = vmul.f32 %v889, %v889
        %v933 = vmul.f32 %v890, %v890
        %v934 = vadd.f32 %v932, %v933
        %v935 = vmul.f32 %v891, %v891
        %v936 = vadd.f32 %v934, %v935
        %v937 = vmax.f32 %v936, 1e-24
        %v938 = vrsqrt.pop %v937
        %v939 = vmul.f32 %v889, %v938
        %v940 = vmul.f32 %v890, %v938
        %v941 = vmul.f32 %v891, %v938
        %v942 = vmul.f32 %v926, %v938
        %v943 = vmul.f32 %v931, %v931
        %v944 = vmul.f32 %v942, %v942
        %v945 = vadd.f32 %v943, %v944
        %v946 = vmax.f32 %v945, 1e-24
        %v947 = vrsqrt.pop %v946
        %vm948 = vcmp.lt.f32.partialorder %v945, 1e-24
        %v949 = vmul.f32 %v931, %v947
        %v950 = vsel %vm948, 1.0, %v949
        %v951 = vmul.f32 %v942, %v947
        %v952 = vsel %vm948, 0.0, %v951
        %v954 = vrot.slane %v950, 7
        %v956 = vmul.f32 %v336, %v954
        %v958 = vrot.slane %v952, 7
        %v960 = vmul.f32 %v543, %v958
        %v961 = vsub.f32 %v956, %v960
        %v962 = vmul.f32 %v543, %v954
        %v963 = vmul.f32 %v336, %v958
        %v964 = vadd.f32 %v962, %v963
        %v965 = vsub.f32 1.0, %v961
        %v967 = vrot.slane %v939, 7
        %v969 = vmul.f32 %v965, %v967
        %v971 = vrot.slane %v940, 7
        %v973 = vmul.f32 %v965, %v971
        %v975 = vrot.slane %v941, 7
        %v977 = vmul.f32 %v965, %v975
        %v978 = vmul.f32 %v964, %v967
        %v979 = vmul.f32 %v964, %v971
        %v980 = vmul.f32 %v964, %v975
        %v981 = vmul.f32 %v969, %v971
        %v982 = vmul.f32 %v969, %v975
        %v983 = vmul.f32 %v973, %v975
        %v984 = vmul.f32 %v969, %v967
        %v985 = vadd.f32 %v984, %v961
        %v986 = vsub.f32 %v981, %v980
        %v987 = vadd.f32 %v982, %v979
        %v988 = vadd.f32 %v981, %v980
        %v989 = vmul.f32 %v973, %v971
        %v990 = vadd.f32 %v989, %v961
        %v991 = vsub.f32 %v983, %v978
        %v992 = vsub.f32 %v982, %v979
        %v993 = vadd.f32 %v983, %v978
        %v994 = vmul.f32 %v977, %v975
        %v995 = vadd.f32 %v994, %v961
        %v996 = vld [vmem:[%s219] sm:$0xff]
        %v997 = vld [vmem:[%s219 + $0x8] sm:$0xff]
        %v998 = vld [vmem:[%s652] sm:$0xff]
        %v999 = vld [vmem:[%s652 + $0x8] sm:$0xff]
        %v1000 = vld [vmem:[%s654] sm:$0xff]
        %v1001 = vld [vmem:[%s654 + $0x8] sm:$0xff]
        %v1002 = vlaneseq
        %v1003 = vshrl.u32 %v1002, 7
        %v1004 = vsub.s32 0, %v1003
        %v1005 = vrot.slane %v877, %v1004
        %v1006 = vsub.f32 %v996, %v1005
        %v1007 = vsub.f32 %v997, %v1005
        %v1008 = vlaneseq
        %v1009 = vshrl.u32 %v1008, 7
        %v1010 = vsub.s32 0, %v1009
        %v1011 = vrot.slane %v878, %v1010
        %v1012 = vsub.f32 %v998, %v1011
        %v1013 = vsub.f32 %v999, %v1011
        %v1014 = vlaneseq
        %v1015 = vshrl.u32 %v1014, 7
        %v1016 = vsub.s32 0, %v1015
        %v1017 = vrot.slane %v879, %v1016
        %v1018 = vsub.f32 %v1000, %v1017
        %v1019 = vsub.f32 %v1001, %v1017
        %v1020 = vlaneseq
        %v1021 = vshrl.u32 %v1020, 7
        %v1022 = vsub.s32 1, %v1021
        %v1023 = vrot.slane %v985, %v1022
        %v1024 = vmul.f32 %v1023, %v1006
        %v1025 = vmul.f32 %v1023, %v1007
        %v1026 = vlaneseq
        %v1027 = vshrl.u32 %v1026, 7
        %v1028 = vsub.s32 1, %v1027
        %v1029 = vrot.slane %v986, %v1028
        %v1030 = vmul.f32 %v1029, %v1012
        %v1031 = vmul.f32 %v1029, %v1013
        %v1032 = vadd.f32 %v1024, %v1030
        %v1033 = vadd.f32 %v1025, %v1031
        %v1034 = vlaneseq
        %v1035 = vshrl.u32 %v1034, 7
        %v1036 = vsub.s32 1, %v1035
        %v1037 = vrot.slane %v987, %v1036
        %v1038 = vmul.f32 %v1037, %v1018
        %v1039 = vmul.f32 %v1037, %v1019
        %v1040 = vadd.f32 %v1032, %v1038
        %v1041 = vadd.f32 %v1033, %v1039
        %v1042 = vadd.f32 %v1040, %v1005
        %v1043 = vadd.f32 %v1041, %v1005
        %v1044 = vlaneseq
        %v1045 = vshrl.u32 %v1044, 7
        %v1046 = vsub.s32 1, %v1045
        %v1047 = vrot.slane %v988, %v1046
        %v1048 = vmul.f32 %v1047, %v1006
        %v1049 = vmul.f32 %v1047, %v1007
        %v1050 = vlaneseq
        %v1051 = vshrl.u32 %v1050, 7
        %v1052 = vsub.s32 1, %v1051
        %v1053 = vrot.slane %v990, %v1052
        %v1054 = vmul.f32 %v1053, %v1012
        %v1055 = vmul.f32 %v1053, %v1013
        %v1056 = vadd.f32 %v1048, %v1054
        %v1057 = vadd.f32 %v1049, %v1055
        %v1058 = vlaneseq
        %v1059 = vshrl.u32 %v1058, 7
        %v1060 = vsub.s32 1, %v1059
        %v1061 = vrot.slane %v991, %v1060
        %v1062 = vmul.f32 %v1061, %v1018
        %v1063 = vmul.f32 %v1061, %v1019
        %v1064 = vadd.f32 %v1056, %v1062
        %v1065 = vadd.f32 %v1057, %v1063
        %v1066 = vadd.f32 %v1064, %v1011
        %v1067 = vadd.f32 %v1065, %v1011
        %v1068 = vlaneseq
        %v1069 = vshrl.u32 %v1068, 7
        %v1070 = vsub.s32 1, %v1069
        %v1071 = vrot.slane %v992, %v1070
        %v1072 = vmul.f32 %v1071, %v1006
        %v1073 = vmul.f32 %v1071, %v1007
        %v1074 = vlaneseq
        %v1075 = vshrl.u32 %v1074, 7
        %v1076 = vsub.s32 1, %v1075
        %v1077 = vrot.slane %v993, %v1076
        %v1078 = vmul.f32 %v1077, %v1012
        %v1079 = vmul.f32 %v1077, %v1013
        %v1080 = vadd.f32 %v1072, %v1078
        %v1081 = vadd.f32 %v1073, %v1079
        %v1082 = vlaneseq
        %v1083 = vshrl.u32 %v1082, 7
        %v1084 = vsub.s32 1, %v1083
        %v1085 = vrot.slane %v995, %v1084
        %v1086 = vmul.f32 %v1085, %v1018
        %v1087 = vmul.f32 %v1085, %v1019
        %v1088 = vadd.f32 %v1080, %v1086
        %v1089 = vadd.f32 %v1081, %v1087
        %v1090 = vadd.f32 %v1088, %v1017
        %v1091 = vadd.f32 %v1089, %v1017
        %vm1092 = vcmp.ge.s32.totalorder %v649, 4
        %vm1093 = vcmp.ge.s32.totalorder %v650, 4
        %v1094 = vsel %vm1092, 1, 0
        %v1095 = vsel %vm1093, 1, 0
        %vm1096 = vcmp.eq.s32.totalorder %v1094, 1
        %vm1097 = vcmp.eq.s32.totalorder %v1095, 1
        %v1098 = vsel %vm1096, %v1042, %v996
        %v1099 = vsel %vm1097, %v1043, %v997
        %v1100 = vsel %vm1096, %v1066, %v998
        %v1101 = vsel %vm1097, %v1067, %v999
        %v1102 = vsel %vm1096, %v1090, %v1000
        %v1103 = vsel %vm1097, %v1091, %v1001
        %1104 = vst [vmem:[%s219] sm:$0xff] %v1098
        %1105 = vst [vmem:[%s219 + $0x8] sm:$0xff] %v1099
        %1106 = vst [vmem:[%s652] sm:$0xff] %v1100
        %1107 = vst [vmem:[%s652 + $0x8] sm:$0xff] %v1101
        %1108 = vst [vmem:[%s654] sm:$0xff] %v1102
        %1109 = vst [vmem:[%s654 + $0x8] sm:$0xff] %v1103
        %v1110 = vld [vmem:[%s219 + $0x2] sm:$0x1]
        %v1111 = vld [vmem:[%s652 + $0x2] sm:$0x1]
        %v1112 = vld [vmem:[%s654 + $0x2] sm:$0x1]
        %v1113 = vld [vmem:[%s219 + $0x3] sm:$0x1]
        %v1114 = vld [vmem:[%s652 + $0x3] sm:$0x1]
        %v1115 = vld [vmem:[%s654 + $0x3] sm:$0x1]
        %v1116 = vld [vmem:[%s219 + $0x4] sm:$0x1]
        %v1117 = vld [vmem:[%s652 + $0x4] sm:$0x1]
        %v1118 = vld [vmem:[%s654 + $0x4] sm:$0x1]
        %v1119 = vld [vmem:[%s219 + $0x5] sm:$0x1]
        %v1120 = vld [vmem:[%s652 + $0x5] sm:$0x1]
        %v1121 = vld [vmem:[%s654 + $0x5] sm:$0x1]
        %v1122 = vsub.f32 %v1113, %v1110
        %v1123 = vsub.f32 %v1114, %v1111
        %v1124 = vsub.f32 %v1115, %v1112
        %v1125 = vsub.f32 %v1116, %v1113
        %v1126 = vsub.f32 %v1117, %v1114
        %v1127 = vsub.f32 %v1118, %v1115
        %v1128 = vsub.f32 %v1119, %v1116
        %v1129 = vsub.f32 %v1120, %v1117
        %v1130 = vsub.f32 %v1121, %v1118
        %v1131 = vmul.f32 %v1123, %v1127
        %v1132 = vmul.f32 %v1124, %v1126
        %v1133 = vsub.f32 %v1131, %v1132
        %v1134 = vmul.f32 %v1124, %v1125
        %v1135 = vmul.f32 %v1122, %v1127
        %v1136 = vsub.f32 %v1134, %v1135
        %v1137 = vmul.f32 %v1122, %v1126
        %v1138 = vmul.f32 %v1123, %v1125
        %v1139 = vsub.f32 %v1137, %v1138
        %v1140 = vmul.f32 %v1126, %v1130
        %v1141 = vmul.f32 %v1127, %v1129
        %v1142 = vsub.f32 %v1140, %v1141
        %v1143 = vmul.f32 %v1127, %v1128
        %v1144 = vmul.f32 %v1125, %v1130
        %v1145 = vsub.f32 %v1143, %v1144
        %v1146 = vmul.f32 %v1125, %v1129
        %v1147 = vmul.f32 %v1126, %v1128
        %v1148 = vsub.f32 %v1146, %v1147
        %v1149 = vmul.f32 %v1136, %v1127
        %v1150 = vmul.f32 %v1139, %v1126
        %v1151 = vsub.f32 %v1149, %v1150
        %v1152 = vmul.f32 %v1139, %v1125
        %v1153 = vmul.f32 %v1133, %v1127
        %v1154 = vsub.f32 %v1152, %v1153
        %v1155 = vmul.f32 %v1133, %v1126
        %v1156 = vmul.f32 %v1136, %v1125
        %v1157 = vsub.f32 %v1155, %v1156
        %v1158 = vmul.f32 %v1151, %v1142
        %v1159 = vmul.f32 %v1154, %v1145
        %v1160 = vadd.f32 %v1158, %v1159
        %v1161 = vmul.f32 %v1157, %v1148
        %v1162 = vadd.f32 %v1160, %v1161
        %v1163 = vmul.f32 %v1133, %v1142
        %v1164 = vmul.f32 %v1136, %v1145
        %v1165 = vadd.f32 %v1163, %v1164
        %v1166 = vmul.f32 %v1139, %v1148
        %v1167 = vadd.f32 %v1165, %v1166
        %v1168 = vmul.f32 %v1125, %v1125
        %v1169 = vmul.f32 %v1126, %v1126
        %v1170 = vadd.f32 %v1168, %v1169
        %v1171 = vmul.f32 %v1127, %v1127
        %v1172 = vadd.f32 %v1170, %v1171
        %v1173 = vmax.f32 %v1172, 1e-24
        %v1174 = vrsqrt.pop %v1173
        %v1175 = vmul.f32 %v1125, %v1174
        %v1176 = vmul.f32 %v1126, %v1174
        %v1177 = vmul.f32 %v1127, %v1174
        %v1178 = vmul.f32 %v1162, %v1174
        %v1179 = vmul.f32 %v1167, %v1167
        %v1180 = vmul.f32 %v1178, %v1178
        %v1181 = vadd.f32 %v1179, %v1180
        %v1182 = vmax.f32 %v1181, 1e-24
        %v1183 = vrsqrt.pop %v1182
        %vm1184 = vcmp.lt.f32.partialorder %v1181, 1e-24
        %v1185 = vmul.f32 %v1167, %v1183
        %v1186 = vsel %vm1184, 1.0, %v1185
        %v1187 = vmul.f32 %v1178, %v1183
        %v1188 = vsel %vm1184, 0.0, %v1187
        %v1190 = vrot.slane %v1186, 6
        %v1192 = vmul.f32 %v336, %v1190
        %v1194 = vrot.slane %v1188, 6
        %v1196 = vmul.f32 %v543, %v1194
        %v1197 = vsub.f32 %v1192, %v1196
        %v1198 = vmul.f32 %v543, %v1190
        %v1199 = vmul.f32 %v336, %v1194
        %v1200 = vadd.f32 %v1198, %v1199
        %v1201 = vsub.f32 1.0, %v1197
        %v1203 = vrot.slane %v1175, 6
        %v1205 = vmul.f32 %v1201, %v1203
        %v1207 = vrot.slane %v1176, 6
        %v1209 = vmul.f32 %v1201, %v1207
        %v1211 = vrot.slane %v1177, 6
        %v1213 = vmul.f32 %v1201, %v1211
        %v1214 = vmul.f32 %v1200, %v1203
        %v1215 = vmul.f32 %v1200, %v1207
        %v1216 = vmul.f32 %v1200, %v1211
        %v1217 = vmul.f32 %v1205, %v1207
        %v1218 = vmul.f32 %v1205, %v1211
        %v1219 = vmul.f32 %v1209, %v1211
        %v1220 = vmul.f32 %v1205, %v1203
        %v1221 = vadd.f32 %v1220, %v1197
        %v1222 = vsub.f32 %v1217, %v1216
        %v1223 = vadd.f32 %v1218, %v1215
        %v1224 = vadd.f32 %v1217, %v1216
        %v1225 = vmul.f32 %v1209, %v1207
        %v1226 = vadd.f32 %v1225, %v1197
        %v1227 = vsub.f32 %v1219, %v1214
        %v1228 = vsub.f32 %v1218, %v1215
        %v1229 = vadd.f32 %v1219, %v1214
        %v1230 = vmul.f32 %v1213, %v1211
        %v1231 = vadd.f32 %v1230, %v1197
        %v1232 = vld [vmem:[%s219] sm:$0xff]
        %v1233 = vld [vmem:[%s219 + $0x8] sm:$0xff]
        %v1234 = vld [vmem:[%s652] sm:$0xff]
        %v1235 = vld [vmem:[%s652 + $0x8] sm:$0xff]
        %v1236 = vld [vmem:[%s654] sm:$0xff]
        %v1237 = vld [vmem:[%s654 + $0x8] sm:$0xff]
        %v1238 = vlaneseq
        %v1239 = vshrl.u32 %v1238, 7
        %v1240 = vsub.s32 0, %v1239
        %v1241 = vrot.slane %v1113, %v1240
        %v1242 = vsub.f32 %v1232, %v1241
        %v1243 = vsub.f32 %v1233, %v1241
        %v1244 = vlaneseq
        %v1245 = vshrl.u32 %v1244, 7
        %v1246 = vsub.s32 0, %v1245
        %v1247 = vrot.slane %v1114, %v1246
        %v1248 = vsub.f32 %v1234, %v1247
        %v1249 = vsub.f32 %v1235, %v1247
        %v1250 = vlaneseq
        %v1251 = vshrl.u32 %v1250, 7
        %v1252 = vsub.s32 0, %v1251
        %v1253 = vrot.slane %v1115, %v1252
        %v1254 = vsub.f32 %v1236, %v1253
        %v1255 = vsub.f32 %v1237, %v1253
        %v1256 = vlaneseq
        %v1257 = vshrl.u32 %v1256, 7
        %v1258 = vsub.s32 2, %v1257
        %v1259 = vrot.slane %v1221, %v1258
        %v1260 = vmul.f32 %v1259, %v1242
        %v1261 = vmul.f32 %v1259, %v1243
        %v1262 = vlaneseq
        %v1263 = vshrl.u32 %v1262, 7
        %v1264 = vsub.s32 2, %v1263
        %v1265 = vrot.slane %v1222, %v1264
        %v1266 = vmul.f32 %v1265, %v1248
        %v1267 = vmul.f32 %v1265, %v1249
        %v1268 = vadd.f32 %v1260, %v1266
        %v1269 = vadd.f32 %v1261, %v1267
        %v1270 = vlaneseq
        %v1271 = vshrl.u32 %v1270, 7
        %v1272 = vsub.s32 2, %v1271
        %v1273 = vrot.slane %v1223, %v1272
        %v1274 = vmul.f32 %v1273, %v1254
        %v1275 = vmul.f32 %v1273, %v1255
        %v1276 = vadd.f32 %v1268, %v1274
        %v1277 = vadd.f32 %v1269, %v1275
        %v1278 = vadd.f32 %v1276, %v1241
        %v1279 = vadd.f32 %v1277, %v1241
        %v1280 = vlaneseq
        %v1281 = vshrl.u32 %v1280, 7
        %v1282 = vsub.s32 2, %v1281
        %v1283 = vrot.slane %v1224, %v1282
        %v1284 = vmul.f32 %v1283, %v1242
        %v1285 = vmul.f32 %v1283, %v1243
        %v1286 = vlaneseq
        %v1287 = vshrl.u32 %v1286, 7
        %v1288 = vsub.s32 2, %v1287
        %v1289 = vrot.slane %v1226, %v1288
        %v1290 = vmul.f32 %v1289, %v1248
        %v1291 = vmul.f32 %v1289, %v1249
        %v1292 = vadd.f32 %v1284, %v1290
        %v1293 = vadd.f32 %v1285, %v1291
        %v1294 = vlaneseq
        %v1295 = vshrl.u32 %v1294, 7
        %v1296 = vsub.s32 2, %v1295
        %v1297 = vrot.slane %v1227, %v1296
        %v1298 = vmul.f32 %v1297, %v1254
        %v1299 = vmul.f32 %v1297, %v1255
        %v1300 = vadd.f32 %v1292, %v1298
        %v1301 = vadd.f32 %v1293, %v1299
        %v1302 = vadd.f32 %v1300, %v1247
        %v1303 = vadd.f32 %v1301, %v1247
        %v1304 = vlaneseq
        %v1305 = vshrl.u32 %v1304, 7
        %v1306 = vsub.s32 2, %v1305
        %v1307 = vrot.slane %v1228, %v1306
        %v1308 = vmul.f32 %v1307, %v1242
        %v1309 = vmul.f32 %v1307, %v1243
        %v1310 = vlaneseq
        %v1311 = vshrl.u32 %v1310, 7
        %v1312 = vsub.s32 2, %v1311
        %v1313 = vrot.slane %v1229, %v1312
        %v1314 = vmul.f32 %v1313, %v1248
        %v1315 = vmul.f32 %v1313, %v1249
        %v1316 = vadd.f32 %v1308, %v1314
        %v1317 = vadd.f32 %v1309, %v1315
        %v1318 = vlaneseq
        %v1319 = vshrl.u32 %v1318, 7
        %v1320 = vsub.s32 2, %v1319
        %v1321 = vrot.slane %v1231, %v1320
        %v1322 = vmul.f32 %v1321, %v1254
        %v1323 = vmul.f32 %v1321, %v1255
        %v1324 = vadd.f32 %v1316, %v1322
        %v1325 = vadd.f32 %v1317, %v1323
        %v1326 = vadd.f32 %v1324, %v1253
        %v1327 = vadd.f32 %v1325, %v1253
        %vm1328 = vcmp.ge.s32.totalorder %v649, 5
        %vm1329 = vcmp.ge.s32.totalorder %v650, 5
        %v1330 = vsel %vm1328, 1, 0
        %v1331 = vsel %vm1329, 1, 0
        %vm1332 = vcmp.eq.s32.totalorder %v1330, 1
        %vm1333 = vcmp.eq.s32.totalorder %v1331, 1
        %v1334 = vsel %vm1332, %v1278, %v1232
        %v1335 = vsel %vm1333, %v1279, %v1233
        %v1336 = vsel %vm1332, %v1302, %v1234
        %v1337 = vsel %vm1333, %v1303, %v1235
        %v1338 = vsel %vm1332, %v1326, %v1236
        %v1339 = vsel %vm1333, %v1327, %v1237
        %1340 = vst [vmem:[%s219] sm:$0xff] %v1334
        %1341 = vst [vmem:[%s219 + $0x8] sm:$0xff] %v1335
        %1342 = vst [vmem:[%s652] sm:$0xff] %v1336
        %1343 = vst [vmem:[%s652 + $0x8] sm:$0xff] %v1337
        %1344 = vst [vmem:[%s654] sm:$0xff] %v1338
        %1345 = vst [vmem:[%s654 + $0x8] sm:$0xff] %v1339
        %v1346 = vld [vmem:[%s219 + $0x3] sm:$0x1]
        %v1347 = vld [vmem:[%s652 + $0x3] sm:$0x1]
        %v1348 = vld [vmem:[%s654 + $0x3] sm:$0x1]
        %v1349 = vld [vmem:[%s219 + $0x4] sm:$0x1]
        %v1350 = vld [vmem:[%s652 + $0x4] sm:$0x1]
        %v1351 = vld [vmem:[%s654 + $0x4] sm:$0x1]
        %v1352 = vld [vmem:[%s219 + $0x5] sm:$0x1]
        %v1353 = vld [vmem:[%s652 + $0x5] sm:$0x1]
        %v1354 = vld [vmem:[%s654 + $0x5] sm:$0x1]
        %v1355 = vld [vmem:[%s219 + $0x6] sm:$0x1]
        %v1356 = vld [vmem:[%s652 + $0x6] sm:$0x1]
        %v1357 = vld [vmem:[%s654 + $0x6] sm:$0x1]
        %v1358 = vsub.f32 %v1349, %v1346
        %v1359 = vsub.f32 %v1350, %v1347
        %v1360 = vsub.f32 %v1351, %v1348
        %v1361 = vsub.f32 %v1352, %v1349
        %v1362 = vsub.f32 %v1353, %v1350
        %v1363 = vsub.f32 %v1354, %v1351
        %v1364 = vsub.f32 %v1355, %v1352
        %v1365 = vsub.f32 %v1356, %v1353
        %v1366 = vsub.f32 %v1357, %v1354
        %v1367 = vmul.f32 %v1359, %v1363
        %v1368 = vmul.f32 %v1360, %v1362
        %v1369 = vsub.f32 %v1367, %v1368
        %v1370 = vmul.f32 %v1360, %v1361
        %v1371 = vmul.f32 %v1358, %v1363
        %v1372 = vsub.f32 %v1370, %v1371
        %v1373 = vmul.f32 %v1358, %v1362
        %v1374 = vmul.f32 %v1359, %v1361
        %v1375 = vsub.f32 %v1373, %v1374
        %v1376 = vmul.f32 %v1362, %v1366
        %v1377 = vmul.f32 %v1363, %v1365
        %v1378 = vsub.f32 %v1376, %v1377
        %v1379 = vmul.f32 %v1363, %v1364
        %v1380 = vmul.f32 %v1361, %v1366
        %v1381 = vsub.f32 %v1379, %v1380
        %v1382 = vmul.f32 %v1361, %v1365
        %v1383 = vmul.f32 %v1362, %v1364
        %v1384 = vsub.f32 %v1382, %v1383
        %v1385 = vmul.f32 %v1372, %v1363
        %v1386 = vmul.f32 %v1375, %v1362
        %v1387 = vsub.f32 %v1385, %v1386
        %v1388 = vmul.f32 %v1375, %v1361
        %v1389 = vmul.f32 %v1369, %v1363
        %v1390 = vsub.f32 %v1388, %v1389
        %v1391 = vmul.f32 %v1369, %v1362
        %v1392 = vmul.f32 %v1372, %v1361
        %v1393 = vsub.f32 %v1391, %v1392
        %v1394 = vmul.f32 %v1387, %v1378
        %v1395 = vmul.f32 %v1390, %v1381
        %v1396 = vadd.f32 %v1394, %v1395
        %v1397 = vmul.f32 %v1393, %v1384
        %v1398 = vadd.f32 %v1396, %v1397
        %v1399 = vmul.f32 %v1369, %v1378
        %v1400 = vmul.f32 %v1372, %v1381
        %v1401 = vadd.f32 %v1399, %v1400
        %v1402 = vmul.f32 %v1375, %v1384
        %v1403 = vadd.f32 %v1401, %v1402
        %v1404 = vmul.f32 %v1361, %v1361
        %v1405 = vmul.f32 %v1362, %v1362
        %v1406 = vadd.f32 %v1404, %v1405
        %v1407 = vmul.f32 %v1363, %v1363
        %v1408 = vadd.f32 %v1406, %v1407
        %v1409 = vmax.f32 %v1408, 1e-24
        %v1410 = vrsqrt.pop %v1409
        %v1411 = vmul.f32 %v1361, %v1410
        %v1412 = vmul.f32 %v1362, %v1410
        %v1413 = vmul.f32 %v1363, %v1410
        %v1414 = vmul.f32 %v1398, %v1410
        %v1415 = vmul.f32 %v1403, %v1403
        %v1416 = vmul.f32 %v1414, %v1414
        %v1417 = vadd.f32 %v1415, %v1416
        %v1418 = vmax.f32 %v1417, 1e-24
        %v1419 = vrsqrt.pop %v1418
        %vm1420 = vcmp.lt.f32.partialorder %v1417, 1e-24
        %v1421 = vmul.f32 %v1403, %v1419
        %v1422 = vsel %vm1420, 1.0, %v1421
        %v1423 = vmul.f32 %v1414, %v1419
        %v1424 = vsel %vm1420, 0.0, %v1423
        %v1426 = vrot.slane %v1422, 5
        %v1428 = vmul.f32 %v336, %v1426
        %v1430 = vrot.slane %v1424, 5
        %v1432 = vmul.f32 %v543, %v1430
        %v1433 = vsub.f32 %v1428, %v1432
        %v1434 = vmul.f32 %v543, %v1426
        %v1435 = vmul.f32 %v336, %v1430
        %v1436 = vadd.f32 %v1434, %v1435
        %v1437 = vsub.f32 1.0, %v1433
        %v1439 = vrot.slane %v1411, 5
        %v1441 = vmul.f32 %v1437, %v1439
        %v1443 = vrot.slane %v1412, 5
        %v1445 = vmul.f32 %v1437, %v1443
        %v1447 = vrot.slane %v1413, 5
        %v1449 = vmul.f32 %v1437, %v1447
        %v1450 = vmul.f32 %v1436, %v1439
        %v1451 = vmul.f32 %v1436, %v1443
        %v1452 = vmul.f32 %v1436, %v1447
        %v1453 = vmul.f32 %v1441, %v1443
        %v1454 = vmul.f32 %v1441, %v1447
        %v1455 = vmul.f32 %v1445, %v1447
        %v1456 = vmul.f32 %v1441, %v1439
        %v1457 = vadd.f32 %v1456, %v1433
        %v1458 = vsub.f32 %v1453, %v1452
        %v1459 = vadd.f32 %v1454, %v1451
        %v1460 = vadd.f32 %v1453, %v1452
        %v1461 = vmul.f32 %v1445, %v1443
        %v1462 = vadd.f32 %v1461, %v1433
        %v1463 = vsub.f32 %v1455, %v1450
        %v1464 = vsub.f32 %v1454, %v1451
        %v1465 = vadd.f32 %v1455, %v1450
        %v1466 = vmul.f32 %v1449, %v1447
        %v1467 = vadd.f32 %v1466, %v1433
        %v1468 = vld [vmem:[%s219] sm:$0xff]
        %v1469 = vld [vmem:[%s219 + $0x8] sm:$0xff]
        %v1470 = vld [vmem:[%s652] sm:$0xff]
        %v1471 = vld [vmem:[%s652 + $0x8] sm:$0xff]
        %v1472 = vld [vmem:[%s654] sm:$0xff]
        %v1473 = vld [vmem:[%s654 + $0x8] sm:$0xff]
        %v1474 = vlaneseq
        %v1475 = vshrl.u32 %v1474, 7
        %v1476 = vsub.s32 0, %v1475
        %v1477 = vrot.slane %v1349, %v1476
        %v1478 = vsub.f32 %v1468, %v1477
        %v1479 = vsub.f32 %v1469, %v1477
        %v1480 = vlaneseq
        %v1481 = vshrl.u32 %v1480, 7
        %v1482 = vsub.s32 0, %v1481
        %v1483 = vrot.slane %v1350, %v1482
        %v1484 = vsub.f32 %v1470, %v1483
        %v1485 = vsub.f32 %v1471, %v1483
        %v1486 = vlaneseq
        %v1487 = vshrl.u32 %v1486, 7
        %v1488 = vsub.s32 0, %v1487
        %v1489 = vrot.slane %v1351, %v1488
        %v1490 = vsub.f32 %v1472, %v1489
        %v1491 = vsub.f32 %v1473, %v1489
        %v1492 = vlaneseq
        %v1493 = vshrl.u32 %v1492, 7
        %v1494 = vsub.s32 3, %v1493
        %v1495 = vrot.slane %v1457, %v1494
        %v1496 = vmul.f32 %v1495, %v1478
        %v1497 = vmul.f32 %v1495, %v1479
        %v1498 = vlaneseq
        %v1499 = vshrl.u32 %v1498, 7
        %v1500 = vsub.s32 3, %v1499
        %v1501 = vrot.slane %v1458, %v1500
        %v1502 = vmul.f32 %v1501, %v1484
        %v1503 = vmul.f32 %v1501, %v1485
        %v1504 = vadd.f32 %v1496, %v1502
        %v1505 = vadd.f32 %v1497, %v1503
        %v1506 = vlaneseq
        %v1507 = vshrl.u32 %v1506, 7
        %v1508 = vsub.s32 3, %v1507
        %v1509 = vrot.slane %v1459, %v1508
        %v1510 = vmul.f32 %v1509, %v1490
        %v1511 = vmul.f32 %v1509, %v1491
        %v1512 = vadd.f32 %v1504, %v1510
        %v1513 = vadd.f32 %v1505, %v1511
        %v1514 = vadd.f32 %v1512, %v1477
        %v1515 = vadd.f32 %v1513, %v1477
        %v1516 = vlaneseq
        %v1517 = vshrl.u32 %v1516, 7
        %v1518 = vsub.s32 3, %v1517
        %v1519 = vrot.slane %v1460, %v1518
        %v1520 = vmul.f32 %v1519, %v1478
        %v1521 = vmul.f32 %v1519, %v1479
        %v1522 = vlaneseq
        %v1523 = vshrl.u32 %v1522, 7
        %v1524 = vsub.s32 3, %v1523
        %v1525 = vrot.slane %v1462, %v1524
        %v1526 = vmul.f32 %v1525, %v1484
        %v1527 = vmul.f32 %v1525, %v1485
        %v1528 = vadd.f32 %v1520, %v1526
        %v1529 = vadd.f32 %v1521, %v1527
        %v1530 = vlaneseq
        %v1531 = vshrl.u32 %v1530, 7
        %v1532 = vsub.s32 3, %v1531
        %v1533 = vrot.slane %v1463, %v1532
        %v1534 = vmul.f32 %v1533, %v1490
        %v1535 = vmul.f32 %v1533, %v1491
        %v1536 = vadd.f32 %v1528, %v1534
        %v1537 = vadd.f32 %v1529, %v1535
        %v1538 = vadd.f32 %v1536, %v1483
        %v1539 = vadd.f32 %v1537, %v1483
        %v1540 = vlaneseq
        %v1541 = vshrl.u32 %v1540, 7
        %v1542 = vsub.s32 3, %v1541
        %v1543 = vrot.slane %v1464, %v1542
        %v1544 = vmul.f32 %v1543, %v1478
        %v1545 = vmul.f32 %v1543, %v1479
        %v1546 = vlaneseq
        %v1547 = vshrl.u32 %v1546, 7
        %v1548 = vsub.s32 3, %v1547
        %v1549 = vrot.slane %v1465, %v1548
        %v1550 = vmul.f32 %v1549, %v1484
        %v1551 = vmul.f32 %v1549, %v1485
        %v1552 = vadd.f32 %v1544, %v1550
        %v1553 = vadd.f32 %v1545, %v1551
        %v1554 = vlaneseq
        %v1555 = vshrl.u32 %v1554, 7
        %v1556 = vsub.s32 3, %v1555
        %v1557 = vrot.slane %v1467, %v1556
        %v1558 = vmul.f32 %v1557, %v1490
        %v1559 = vmul.f32 %v1557, %v1491
        %v1560 = vadd.f32 %v1552, %v1558
        %v1561 = vadd.f32 %v1553, %v1559
        %v1562 = vadd.f32 %v1560, %v1489
        %v1563 = vadd.f32 %v1561, %v1489
        %vm1564 = vcmp.ge.s32.totalorder %v649, 6
        %vm1565 = vcmp.ge.s32.totalorder %v650, 6
        %v1566 = vsel %vm1564, 1, 0
        %v1567 = vsel %vm1565, 1, 0
        %vm1568 = vcmp.eq.s32.totalorder %v1566, 1
        %vm1569 = vcmp.eq.s32.totalorder %v1567, 1
        %v1570 = vsel %vm1568, %v1514, %v1468
        %v1571 = vsel %vm1569, %v1515, %v1469
        %v1572 = vsel %vm1568, %v1538, %v1470
        %v1573 = vsel %vm1569, %v1539, %v1471
        %v1574 = vsel %vm1568, %v1562, %v1472
        %v1575 = vsel %vm1569, %v1563, %v1473
        %1576 = vst [vmem:[%s219] sm:$0xff] %v1570
        %1577 = vst [vmem:[%s219 + $0x8] sm:$0xff] %v1571
        %1578 = vst [vmem:[%s652] sm:$0xff] %v1572
        %1579 = vst [vmem:[%s652 + $0x8] sm:$0xff] %v1573
        %1580 = vst [vmem:[%s654] sm:$0xff] %v1574
        %1581 = vst [vmem:[%s654 + $0x8] sm:$0xff] %v1575
        %v1582 = vld [vmem:[%s219 + $0x4] sm:$0x1]
        %v1583 = vld [vmem:[%s652 + $0x4] sm:$0x1]
        %v1584 = vld [vmem:[%s654 + $0x4] sm:$0x1]
        %v1585 = vld [vmem:[%s219 + $0x5] sm:$0x1]
        %v1586 = vld [vmem:[%s652 + $0x5] sm:$0x1]
        %v1587 = vld [vmem:[%s654 + $0x5] sm:$0x1]
        %v1588 = vld [vmem:[%s219 + $0x6] sm:$0x1]
        %v1589 = vld [vmem:[%s652 + $0x6] sm:$0x1]
        %v1590 = vld [vmem:[%s654 + $0x6] sm:$0x1]
        %v1591 = vld [vmem:[%s219 + $0x7] sm:$0x1]
        %v1592 = vld [vmem:[%s652 + $0x7] sm:$0x1]
        %v1593 = vld [vmem:[%s654 + $0x7] sm:$0x1]
        %v1594 = vsub.f32 %v1585, %v1582
        %v1595 = vsub.f32 %v1586, %v1583
        %v1596 = vsub.f32 %v1587, %v1584
        %v1597 = vsub.f32 %v1588, %v1585
        %v1598 = vsub.f32 %v1589, %v1586
        %v1599 = vsub.f32 %v1590, %v1587
        %v1600 = vsub.f32 %v1591, %v1588
        %v1601 = vsub.f32 %v1592, %v1589
        %v1602 = vsub.f32 %v1593, %v1590
        %v1603 = vmul.f32 %v1595, %v1599
        %v1604 = vmul.f32 %v1596, %v1598
        %v1605 = vsub.f32 %v1603, %v1604
        %v1606 = vmul.f32 %v1596, %v1597
        %v1607 = vmul.f32 %v1594, %v1599
        %v1608 = vsub.f32 %v1606, %v1607
        %v1609 = vmul.f32 %v1594, %v1598
        %v1610 = vmul.f32 %v1595, %v1597
        %v1611 = vsub.f32 %v1609, %v1610
        %v1612 = vmul.f32 %v1598, %v1602
        %v1613 = vmul.f32 %v1599, %v1601
        %v1614 = vsub.f32 %v1612, %v1613
        %v1615 = vmul.f32 %v1599, %v1600
        %v1616 = vmul.f32 %v1597, %v1602
        %v1617 = vsub.f32 %v1615, %v1616
        %v1618 = vmul.f32 %v1597, %v1601
        %v1619 = vmul.f32 %v1598, %v1600
        %v1620 = vsub.f32 %v1618, %v1619
        %v1621 = vmul.f32 %v1608, %v1599
        %v1622 = vmul.f32 %v1611, %v1598
        %v1623 = vsub.f32 %v1621, %v1622
        %v1624 = vmul.f32 %v1611, %v1597
        %v1625 = vmul.f32 %v1605, %v1599
        %v1626 = vsub.f32 %v1624, %v1625
        %v1627 = vmul.f32 %v1605, %v1598
        %v1628 = vmul.f32 %v1608, %v1597
        %v1629 = vsub.f32 %v1627, %v1628
        %v1630 = vmul.f32 %v1623, %v1614
        %v1631 = vmul.f32 %v1626, %v1617
        %v1632 = vadd.f32 %v1630, %v1631
        %v1633 = vmul.f32 %v1629, %v1620
        %v1634 = vadd.f32 %v1632, %v1633
        %v1635 = vmul.f32 %v1605, %v1614
        %v1636 = vmul.f32 %v1608, %v1617
        %v1637 = vadd.f32 %v1635, %v1636
        %v1638 = vmul.f32 %v1611, %v1620
        %v1639 = vadd.f32 %v1637, %v1638
        %v1640 = vmul.f32 %v1597, %v1597
        %v1641 = vmul.f32 %v1598, %v1598
        %v1642 = vadd.f32 %v1640, %v1641
        %v1643 = vmul.f32 %v1599, %v1599
        %v1644 = vadd.f32 %v1642, %v1643
        %v1645 = vmax.f32 %v1644, 1e-24
        %v1646 = vrsqrt.pop %v1645
        %v1647 = vmul.f32 %v1597, %v1646
        %v1648 = vmul.f32 %v1598, %v1646
        %v1649 = vmul.f32 %v1599, %v1646
        %v1650 = vmul.f32 %v1634, %v1646
        %v1651 = vmul.f32 %v1639, %v1639
        %v1652 = vmul.f32 %v1650, %v1650
        %v1653 = vadd.f32 %v1651, %v1652
        %v1654 = vmax.f32 %v1653, 1e-24
        %v1655 = vrsqrt.pop %v1654
        %vm1656 = vcmp.lt.f32.partialorder %v1653, 1e-24
        %v1657 = vmul.f32 %v1639, %v1655
        %v1658 = vsel %vm1656, 1.0, %v1657
        %v1659 = vmul.f32 %v1650, %v1655
        %v1660 = vsel %vm1656, 0.0, %v1659
        %v1662 = vrot.slane %v1658, 4
        %v1664 = vmul.f32 %v336, %v1662
        %v1666 = vrot.slane %v1660, 4
        %v1668 = vmul.f32 %v543, %v1666
        %v1669 = vsub.f32 %v1664, %v1668
        %v1670 = vmul.f32 %v543, %v1662
        %v1671 = vmul.f32 %v336, %v1666
        %v1672 = vadd.f32 %v1670, %v1671
        %v1673 = vsub.f32 1.0, %v1669
        %v1675 = vrot.slane %v1647, 4
        %v1677 = vmul.f32 %v1673, %v1675
        %v1679 = vrot.slane %v1648, 4
        %v1681 = vmul.f32 %v1673, %v1679
        %v1683 = vrot.slane %v1649, 4
        %v1685 = vmul.f32 %v1673, %v1683
        %v1686 = vmul.f32 %v1672, %v1675
        %v1687 = vmul.f32 %v1672, %v1679
        %v1688 = vmul.f32 %v1672, %v1683
        %v1689 = vmul.f32 %v1677, %v1679
        %v1690 = vmul.f32 %v1677, %v1683
        %v1691 = vmul.f32 %v1681, %v1683
        %v1692 = vmul.f32 %v1677, %v1675
        %v1693 = vadd.f32 %v1692, %v1669
        %v1694 = vsub.f32 %v1689, %v1688
        %v1695 = vadd.f32 %v1690, %v1687
        %v1696 = vadd.f32 %v1689, %v1688
        %v1697 = vmul.f32 %v1681, %v1679
        %v1698 = vadd.f32 %v1697, %v1669
        %v1699 = vsub.f32 %v1691, %v1686
        %v1700 = vsub.f32 %v1690, %v1687
        %v1701 = vadd.f32 %v1691, %v1686
        %v1702 = vmul.f32 %v1685, %v1683
        %v1703 = vadd.f32 %v1702, %v1669
        %v1704 = vld [vmem:[%s219] sm:$0xff]
        %v1705 = vld [vmem:[%s219 + $0x8] sm:$0xff]
        %v1706 = vld [vmem:[%s652] sm:$0xff]
        %v1707 = vld [vmem:[%s652 + $0x8] sm:$0xff]
        %v1708 = vld [vmem:[%s654] sm:$0xff]
        %v1709 = vld [vmem:[%s654 + $0x8] sm:$0xff]
        %v1710 = vlaneseq
        %v1711 = vshrl.u32 %v1710, 7
        %v1712 = vsub.s32 0, %v1711
        %v1713 = vrot.slane %v1585, %v1712
        %v1714 = vsub.f32 %v1704, %v1713
        %v1715 = vsub.f32 %v1705, %v1713
        %v1716 = vlaneseq
        %v1717 = vshrl.u32 %v1716, 7
        %v1718 = vsub.s32 0, %v1717
        %v1719 = vrot.slane %v1586, %v1718
        %v1720 = vsub.f32 %v1706, %v1719
        %v1721 = vsub.f32 %v1707, %v1719
        %v1722 = vlaneseq
        %v1723 = vshrl.u32 %v1722, 7
        %v1724 = vsub.s32 0, %v1723
        %v1725 = vrot.slane %v1587, %v1724
        %v1726 = vsub.f32 %v1708, %v1725
        %v1727 = vsub.f32 %v1709, %v1725
        %v1728 = vlaneseq
        %v1729 = vshrl.u32 %v1728, 7
        %v1730 = vsub.s32 4, %v1729
        %v1731 = vrot.slane %v1693, %v1730
        %v1732 = vmul.f32 %v1731, %v1714
        %v1733 = vmul.f32 %v1731, %v1715
        %v1734 = vlaneseq
        %v1735 = vshrl.u32 %v1734, 7
        %v1736 = vsub.s32 4, %v1735
        %v1737 = vrot.slane %v1694, %v1736
        %v1738 = vmul.f32 %v1737, %v1720
        %v1739 = vmul.f32 %v1737, %v1721
        %v1740 = vadd.f32 %v1732, %v1738
        %v1741 = vadd.f32 %v1733, %v1739
        %v1742 = vlaneseq
        %v1743 = vshrl.u32 %v1742, 7
        %v1744 = vsub.s32 4, %v1743
        %v1745 = vrot.slane %v1695, %v1744
        %v1746 = vmul.f32 %v1745, %v1726
        %v1747 = vmul.f32 %v1745, %v1727
        %v1748 = vadd.f32 %v1740, %v1746
        %v1749 = vadd.f32 %v1741, %v1747
        %v1750 = vadd.f32 %v1748, %v1713
        %v1751 = vadd.f32 %v1749, %v1713
        %v1752 = vlaneseq
        %v1753 = vshrl.u32 %v1752, 7
        %v1754 = vsub.s32 4, %v1753
        %v1755 = vrot.slane %v1696, %v1754
        %v1756 = vmul.f32 %v1755, %v1714
        %v1757 = vmul.f32 %v1755, %v1715
        %v1758 = vlaneseq
        %v1759 = vshrl.u32 %v1758, 7
        %v1760 = vsub.s32 4, %v1759
        %v1761 = vrot.slane %v1698, %v1760
        %v1762 = vmul.f32 %v1761, %v1720
        %v1763 = vmul.f32 %v1761, %v1721
        %v1764 = vadd.f32 %v1756, %v1762
        %v1765 = vadd.f32 %v1757, %v1763
        %v1766 = vlaneseq
        %v1767 = vshrl.u32 %v1766, 7
        %v1768 = vsub.s32 4, %v1767
        %v1769 = vrot.slane %v1699, %v1768
        %v1770 = vmul.f32 %v1769, %v1726
        %v1771 = vmul.f32 %v1769, %v1727
        %v1772 = vadd.f32 %v1764, %v1770
        %v1773 = vadd.f32 %v1765, %v1771
        %v1774 = vadd.f32 %v1772, %v1719
        %v1775 = vadd.f32 %v1773, %v1719
        %v1776 = vlaneseq
        %v1777 = vshrl.u32 %v1776, 7
        %v1778 = vsub.s32 4, %v1777
        %v1779 = vrot.slane %v1700, %v1778
        %v1780 = vmul.f32 %v1779, %v1714
        %v1781 = vmul.f32 %v1779, %v1715
        %v1782 = vlaneseq
        %v1783 = vshrl.u32 %v1782, 7
        %v1784 = vsub.s32 4, %v1783
        %v1785 = vrot.slane %v1701, %v1784
        %v1786 = vmul.f32 %v1785, %v1720
        %v1787 = vmul.f32 %v1785, %v1721
        %v1788 = vadd.f32 %v1780, %v1786
        %v1789 = vadd.f32 %v1781, %v1787
        %v1790 = vlaneseq
        %v1791 = vshrl.u32 %v1790, 7
        %v1792 = vsub.s32 4, %v1791
        %v1793 = vrot.slane %v1703, %v1792
        %v1794 = vmul.f32 %v1793, %v1726
        %v1795 = vmul.f32 %v1793, %v1727
        %v1796 = vadd.f32 %v1788, %v1794
        %v1797 = vadd.f32 %v1789, %v1795
        %v1798 = vadd.f32 %v1796, %v1725
        %v1799 = vadd.f32 %v1797, %v1725
        %vm1800 = vcmp.ge.s32.totalorder %v649, 7
        %vm1801 = vcmp.ge.s32.totalorder %v650, 7
        %v1802 = vsel %vm1800, 1, 0
        %v1803 = vsel %vm1801, 1, 0
        %vm1804 = vcmp.eq.s32.totalorder %v1802, 1
        %vm1805 = vcmp.eq.s32.totalorder %v1803, 1
        %v1806 = vsel %vm1804, %v1750, %v1704
        %v1807 = vsel %vm1805, %v1751, %v1705
        %v1808 = vsel %vm1804, %v1774, %v1706
        %v1809 = vsel %vm1805, %v1775, %v1707
        %v1810 = vsel %vm1804, %v1798, %v1708
        %v1811 = vsel %vm1805, %v1799, %v1709
        %1812 = vst [vmem:[%s219] sm:$0xff] %v1806
        %1813 = vst [vmem:[%s219 + $0x8] sm:$0xff] %v1807
        %1814 = vst [vmem:[%s652] sm:$0xff] %v1808
        %1815 = vst [vmem:[%s652 + $0x8] sm:$0xff] %v1809
        %1816 = vst [vmem:[%s654] sm:$0xff] %v1810
        %1817 = vst [vmem:[%s654 + $0x8] sm:$0xff] %v1811
        %v1818 = vld [vmem:[%s219 + $0x5] sm:$0x1]
        %v1819 = vld [vmem:[%s652 + $0x5] sm:$0x1]
        %v1820 = vld [vmem:[%s654 + $0x5] sm:$0x1]
        %v1821 = vld [vmem:[%s219 + $0x6] sm:$0x1]
        %v1822 = vld [vmem:[%s652 + $0x6] sm:$0x1]
        %v1823 = vld [vmem:[%s654 + $0x6] sm:$0x1]
        %v1824 = vld [vmem:[%s219 + $0x7] sm:$0x1]
        %v1825 = vld [vmem:[%s652 + $0x7] sm:$0x1]
        %v1826 = vld [vmem:[%s654 + $0x7] sm:$0x1]
        %v1827 = vld [vmem:[%s219 + $0x8] sm:$0x1]
        %v1828 = vld [vmem:[%s652 + $0x8] sm:$0x1]
        %v1829 = vld [vmem:[%s654 + $0x8] sm:$0x1]
        %v1830 = vsub.f32 %v1821, %v1818
        %v1831 = vsub.f32 %v1822, %v1819
        %v1832 = vsub.f32 %v1823, %v1820
        %v1833 = vsub.f32 %v1824, %v1821
        %v1834 = vsub.f32 %v1825, %v1822
        %v1835 = vsub.f32 %v1826, %v1823
        %v1836 = vsub.f32 %v1827, %v1824
        %v1837 = vsub.f32 %v1828, %v1825
        %v1838 = vsub.f32 %v1829, %v1826
        %v1839 = vmul.f32 %v1831, %v1835
        %v1840 = vmul.f32 %v1832, %v1834
        %v1841 = vsub.f32 %v1839, %v1840
        %v1842 = vmul.f32 %v1832, %v1833
        %v1843 = vmul.f32 %v1830, %v1835
        %v1844 = vsub.f32 %v1842, %v1843
        %v1845 = vmul.f32 %v1830, %v1834
        %v1846 = vmul.f32 %v1831, %v1833
        %v1847 = vsub.f32 %v1845, %v1846
        %v1848 = vmul.f32 %v1834, %v1838
        %v1849 = vmul.f32 %v1835, %v1837
        %v1850 = vsub.f32 %v1848, %v1849
        %v1851 = vmul.f32 %v1835, %v1836
        %v1852 = vmul.f32 %v1833, %v1838
        %v1853 = vsub.f32 %v1851, %v1852
        %v1854 = vmul.f32 %v1833, %v1837
        %v1855 = vmul.f32 %v1834, %v1836
        %v1856 = vsub.f32 %v1854, %v1855
        %v1857 = vmul.f32 %v1844, %v1835
        %v1858 = vmul.f32 %v1847, %v1834
        %v1859 = vsub.f32 %v1857, %v1858
        %v1860 = vmul.f32 %v1847, %v1833
        %v1861 = vmul.f32 %v1841, %v1835
        %v1862 = vsub.f32 %v1860, %v1861
        %v1863 = vmul.f32 %v1841, %v1834
        %v1864 = vmul.f32 %v1844, %v1833
        %v1865 = vsub.f32 %v1863, %v1864
        %v1866 = vmul.f32 %v1859, %v1850
        %v1867 = vmul.f32 %v1862, %v1853
        %v1868 = vadd.f32 %v1866, %v1867
        %v1869 = vmul.f32 %v1865, %v1856
        %v1870 = vadd.f32 %v1868, %v1869
        %v1871 = vmul.f32 %v1841, %v1850
        %v1872 = vmul.f32 %v1844, %v1853
        %v1873 = vadd.f32 %v1871, %v1872
        %v1874 = vmul.f32 %v1847, %v1856
        %v1875 = vadd.f32 %v1873, %v1874
        %v1876 = vmul.f32 %v1833, %v1833
        %v1877 = vmul.f32 %v1834, %v1834
        %v1878 = vadd.f32 %v1876, %v1877
        %v1879 = vmul.f32 %v1835, %v1835
        %v1880 = vadd.f32 %v1878, %v1879
        %v1881 = vmax.f32 %v1880, 1e-24
        %v1882 = vrsqrt.pop %v1881
        %v1883 = vmul.f32 %v1833, %v1882
        %v1884 = vmul.f32 %v1834, %v1882
        %v1885 = vmul.f32 %v1835, %v1882
        %v1886 = vmul.f32 %v1870, %v1882
        %v1887 = vmul.f32 %v1875, %v1875
        %v1888 = vmul.f32 %v1886, %v1886
        %v1889 = vadd.f32 %v1887, %v1888
        %v1890 = vmax.f32 %v1889, 1e-24
        %v1891 = vrsqrt.pop %v1890
        %vm1892 = vcmp.lt.f32.partialorder %v1889, 1e-24
        %v1893 = vmul.f32 %v1875, %v1891
        %v1894 = vsel %vm1892, 1.0, %v1893
        %v1895 = vmul.f32 %v1886, %v1891
        %v1896 = vsel %vm1892, 0.0, %v1895
        %v1898 = vrot.slane %v1894, 3
        %v1900 = vmul.f32 %v336, %v1898
        %v1902 = vrot.slane %v1896, 3
        %v1904 = vmul.f32 %v543, %v1902
        %v1905 = vsub.f32 %v1900, %v1904
        %v1906 = vmul.f32 %v543, %v1898
        %v1907 = vmul.f32 %v336, %v1902
        %v1908 = vadd.f32 %v1906, %v1907
        %v1909 = vsub.f32 1.0, %v1905
        %v1911 = vrot.slane %v1883, 3
        %v1913 = vmul.f32 %v1909, %v1911
        %v1915 = vrot.slane %v1884, 3
        %v1917 = vmul.f32 %v1909, %v1915
        %v1919 = vrot.slane %v1885, 3
        %v1921 = vmul.f32 %v1909, %v1919
        %v1922 = vmul.f32 %v1908, %v1911
        %v1923 = vmul.f32 %v1908, %v1915
        %v1924 = vmul.f32 %v1908, %v1919
        %v1925 = vmul.f32 %v1913, %v1915
        %v1926 = vmul.f32 %v1913, %v1919
        %v1927 = vmul.f32 %v1917, %v1919
        %v1928 = vmul.f32 %v1913, %v1911
        %v1929 = vadd.f32 %v1928, %v1905
        %v1930 = vsub.f32 %v1925, %v1924
        %v1931 = vadd.f32 %v1926, %v1923
        %v1932 = vadd.f32 %v1925, %v1924
        %v1933 = vmul.f32 %v1917, %v1915
        %v1934 = vadd.f32 %v1933, %v1905
        %v1935 = vsub.f32 %v1927, %v1922
        %v1936 = vsub.f32 %v1926, %v1923
        %v1937 = vadd.f32 %v1927, %v1922
        %v1938 = vmul.f32 %v1921, %v1919
        %v1939 = vadd.f32 %v1938, %v1905
        %v1940 = vld [vmem:[%s219 + $0x8] sm:$0xff]
        %v1941 = vld [vmem:[%s652 + $0x8] sm:$0xff]
        %v1942 = vld [vmem:[%s654 + $0x8] sm:$0xff]
        %v1943 = vlaneseq
        %v1944 = vshrl.u32 %v1943, 7
        %v1945 = vsub.s32 0, %v1944
        %v1946 = vrot.slane %v1821, %v1945
        %v1947 = vsub.f32 %v1940, %v1946
        %v1948 = vlaneseq
        %v1949 = vshrl.u32 %v1948, 7
        %v1950 = vsub.s32 0, %v1949
        %v1951 = vrot.slane %v1822, %v1950
        %v1952 = vsub.f32 %v1941, %v1951
        %v1953 = vlaneseq
        %v1954 = vshrl.u32 %v1953, 7
        %v1955 = vsub.s32 0, %v1954
        %v1956 = vrot.slane %v1823, %v1955
        %v1957 = vsub.f32 %v1942, %v1956
        %v1958 = vlaneseq
        %v1959 = vshrl.u32 %v1958, 7
        %v1960 = vsub.s32 5, %v1959
        %v1961 = vrot.slane %v1929, %v1960
        %v1962 = vmul.f32 %v1961, %v1947
        %v1963 = vlaneseq
        %v1964 = vshrl.u32 %v1963, 7
        %v1965 = vsub.s32 5, %v1964
        %v1966 = vrot.slane %v1930, %v1965
        %v1967 = vmul.f32 %v1966, %v1952
        %v1968 = vadd.f32 %v1962, %v1967
        %v1969 = vlaneseq
        %v1970 = vshrl.u32 %v1969, 7
        %v1971 = vsub.s32 5, %v1970
        %v1972 = vrot.slane %v1931, %v1971
        %v1973 = vmul.f32 %v1972, %v1957
        %v1974 = vadd.f32 %v1968, %v1973
        %v1975 = vadd.f32 %v1974, %v1946
        %v1976 = vlaneseq
        %v1977 = vshrl.u32 %v1976, 7
        %v1978 = vsub.s32 5, %v1977
        %v1979 = vrot.slane %v1932, %v1978
        %v1980 = vmul.f32 %v1979, %v1947
        %v1981 = vlaneseq
        %v1982 = vshrl.u32 %v1981, 7
        %v1983 = vsub.s32 5, %v1982
        %v1984 = vrot.slane %v1934, %v1983
        %v1985 = vmul.f32 %v1984, %v1952
        %v1986 = vadd.f32 %v1980, %v1985
        %v1987 = vlaneseq
        %v1988 = vshrl.u32 %v1987, 7
        %v1989 = vsub.s32 5, %v1988
        %v1990 = vrot.slane %v1935, %v1989
        %v1991 = vmul.f32 %v1990, %v1957
        %v1992 = vadd.f32 %v1986, %v1991
        %v1993 = vadd.f32 %v1992, %v1951
        %v1994 = vlaneseq
        %v1995 = vshrl.u32 %v1994, 7
        %v1996 = vsub.s32 5, %v1995
        %v1997 = vrot.slane %v1936, %v1996
        %v1998 = vmul.f32 %v1997, %v1947
        %v1999 = vlaneseq
        %v2000 = vshrl.u32 %v1999, 7
        %v2001 = vsub.s32 5, %v2000
        %v2002 = vrot.slane %v1937, %v2001
        %v2003 = vmul.f32 %v2002, %v1952
        %v2004 = vadd.f32 %v1998, %v2003
        %v2005 = vlaneseq
        %v2006 = vshrl.u32 %v2005, 7
        %v2007 = vsub.s32 5, %v2006
        %v2008 = vrot.slane %v1939, %v2007
        %v2009 = vmul.f32 %v2008, %v1957
        %v2010 = vadd.f32 %v2004, %v2009
        %v2011 = vadd.f32 %v2010, %v1956
        %2012 = vst [vmem:[%s219 + $0x8] sm:$0xff] %v1975
        %2013 = vst [vmem:[%s652 + $0x8] sm:$0xff] %v1993
        %2014 = vst [vmem:[%s654 + $0x8] sm:$0xff] %v2011
        %v2015 = vld [vmem:[%s219 + $0x6] sm:$0x1]
        %v2016 = vld [vmem:[%s652 + $0x6] sm:$0x1]
        %v2017 = vld [vmem:[%s654 + $0x6] sm:$0x1]
        %v2018 = vld [vmem:[%s219 + $0x7] sm:$0x1]
        %v2019 = vld [vmem:[%s652 + $0x7] sm:$0x1]
        %v2020 = vld [vmem:[%s654 + $0x7] sm:$0x1]
        %v2021 = vld [vmem:[%s219 + $0x8] sm:$0x1]
        %v2022 = vld [vmem:[%s652 + $0x8] sm:$0x1]
        %v2023 = vld [vmem:[%s654 + $0x8] sm:$0x1]
        %v2024 = vld [vmem:[%s219 + $0x9] sm:$0x1]
        %v2025 = vld [vmem:[%s652 + $0x9] sm:$0x1]
        %v2026 = vld [vmem:[%s654 + $0x9] sm:$0x1]
        %v2027 = vsub.f32 %v2018, %v2015
        %v2028 = vsub.f32 %v2019, %v2016
        %v2029 = vsub.f32 %v2020, %v2017
        %v2030 = vsub.f32 %v2021, %v2018
        %v2031 = vsub.f32 %v2022, %v2019
        %v2032 = vsub.f32 %v2023, %v2020
        %v2033 = vsub.f32 %v2024, %v2021
        %v2034 = vsub.f32 %v2025, %v2022
        %v2035 = vsub.f32 %v2026, %v2023
        %v2036 = vmul.f32 %v2028, %v2032
        %v2037 = vmul.f32 %v2029, %v2031
        %v2038 = vsub.f32 %v2036, %v2037
        %v2039 = vmul.f32 %v2029, %v2030
        %v2040 = vmul.f32 %v2027, %v2032
        %v2041 = vsub.f32 %v2039, %v2040
        %v2042 = vmul.f32 %v2027, %v2031
        %v2043 = vmul.f32 %v2028, %v2030
        %v2044 = vsub.f32 %v2042, %v2043
        %v2045 = vmul.f32 %v2031, %v2035
        %v2046 = vmul.f32 %v2032, %v2034
        %v2047 = vsub.f32 %v2045, %v2046
        %v2048 = vmul.f32 %v2032, %v2033
        %v2049 = vmul.f32 %v2030, %v2035
        %v2050 = vsub.f32 %v2048, %v2049
        %v2051 = vmul.f32 %v2030, %v2034
        %v2052 = vmul.f32 %v2031, %v2033
        %v2053 = vsub.f32 %v2051, %v2052
        %v2054 = vmul.f32 %v2041, %v2032
        %v2055 = vmul.f32 %v2044, %v2031
        %v2056 = vsub.f32 %v2054, %v2055
        %v2057 = vmul.f32 %v2044, %v2030
        %v2058 = vmul.f32 %v2038, %v2032
        %v2059 = vsub.f32 %v2057, %v2058
        %v2060 = vmul.f32 %v2038, %v2031
        %v2061 = vmul.f32 %v2041, %v2030
        %v2062 = vsub.f32 %v2060, %v2061
        %v2063 = vmul.f32 %v2056, %v2047
        %v2064 = vmul.f32 %v2059, %v2050
        %v2065 = vadd.f32 %v2063, %v2064
        %v2066 = vmul.f32 %v2062, %v2053
        %v2067 = vadd.f32 %v2065, %v2066
        %v2068 = vmul.f32 %v2038, %v2047
        %v2069 = vmul.f32 %v2041, %v2050
        %v2070 = vadd.f32 %v2068, %v2069
        %v2071 = vmul.f32 %v2044, %v2053
        %v2072 = vadd.f32 %v2070, %v2071
        %v2073 = vmul.f32 %v2030, %v2030
        %v2074 = vmul.f32 %v2031, %v2031
        %v2075 = vadd.f32 %v2073, %v2074
        %v2076 = vmul.f32 %v2032, %v2032
        %v2077 = vadd.f32 %v2075, %v2076
        %v2078 = vmax.f32 %v2077, 1e-24
        %v2079 = vrsqrt.pop %v2078
        %v2080 = vmul.f32 %v2030, %v2079
        %v2081 = vmul.f32 %v2031, %v2079
        %v2082 = vmul.f32 %v2032, %v2079
        %v2083 = vmul.f32 %v2067, %v2079
        %v2084 = vmul.f32 %v2072, %v2072
        %v2085 = vmul.f32 %v2083, %v2083
        %v2086 = vadd.f32 %v2084, %v2085
        %v2087 = vmax.f32 %v2086, 1e-24
        %v2088 = vrsqrt.pop %v2087
        %vm2089 = vcmp.lt.f32.partialorder %v2086, 1e-24
        %v2090 = vmul.f32 %v2072, %v2088
        %v2091 = vsel %vm2089, 1.0, %v2090
        %v2092 = vmul.f32 %v2083, %v2088
        %v2093 = vsel %vm2089, 0.0, %v2092
        %v2095 = vrot.slane %v2091, 2
        %v2097 = vmul.f32 %v336, %v2095
        %v2099 = vrot.slane %v2093, 2
        %v2101 = vmul.f32 %v543, %v2099
        %v2102 = vsub.f32 %v2097, %v2101
        %v2103 = vmul.f32 %v543, %v2095
        %v2104 = vmul.f32 %v336, %v2099
        %v2105 = vadd.f32 %v2103, %v2104
        %v2106 = vsub.f32 1.0, %v2102
        %v2108 = vrot.slane %v2080, 2
        %v2110 = vmul.f32 %v2106, %v2108
        %v2112 = vrot.slane %v2081, 2
        %v2114 = vmul.f32 %v2106, %v2112
        %v2116 = vrot.slane %v2082, 2
        %v2118 = vmul.f32 %v2106, %v2116
        %v2119 = vmul.f32 %v2105, %v2108
        %v2120 = vmul.f32 %v2105, %v2112
        %v2121 = vmul.f32 %v2105, %v2116
        %v2122 = vmul.f32 %v2110, %v2112
        %v2123 = vmul.f32 %v2110, %v2116
        %v2124 = vmul.f32 %v2114, %v2116
        %v2125 = vmul.f32 %v2110, %v2108
        %v2126 = vadd.f32 %v2125, %v2102
        %v2127 = vsub.f32 %v2122, %v2121
        %v2128 = vadd.f32 %v2123, %v2120
        %v2129 = vadd.f32 %v2122, %v2121
        %v2130 = vmul.f32 %v2114, %v2112
        %v2131 = vadd.f32 %v2130, %v2102
        %v2132 = vsub.f32 %v2124, %v2119
        %v2133 = vsub.f32 %v2123, %v2120
        %v2134 = vadd.f32 %v2124, %v2119
        %v2135 = vmul.f32 %v2118, %v2116
        %v2136 = vadd.f32 %v2135, %v2102
        %v2137 = vld [vmem:[%s219 + $0x8] sm:$0xff]
        %v2138 = vld [vmem:[%s652 + $0x8] sm:$0xff]
        %v2139 = vld [vmem:[%s654 + $0x8] sm:$0xff]
        %v2140 = vlaneseq
        %v2141 = vshrl.u32 %v2140, 7
        %v2142 = vsub.s32 0, %v2141
        %v2143 = vrot.slane %v2018, %v2142
        %v2144 = vsub.f32 %v2137, %v2143
        %v2145 = vlaneseq
        %v2146 = vshrl.u32 %v2145, 7
        %v2147 = vsub.s32 0, %v2146
        %v2148 = vrot.slane %v2019, %v2147
        %v2149 = vsub.f32 %v2138, %v2148
        %v2150 = vlaneseq
        %v2151 = vshrl.u32 %v2150, 7
        %v2152 = vsub.s32 0, %v2151
        %v2153 = vrot.slane %v2020, %v2152
        %v2154 = vsub.f32 %v2139, %v2153
        %v2155 = vlaneseq
        %v2156 = vshrl.u32 %v2155, 7
        %v2157 = vsub.s32 6, %v2156
        %v2158 = vrot.slane %v2126, %v2157
        %v2159 = vmul.f32 %v2158, %v2144
        %v2160 = vlaneseq
        %v2161 = vshrl.u32 %v2160, 7
        %v2162 = vsub.s32 6, %v2161
        %v2163 = vrot.slane %v2127, %v2162
        %v2164 = vmul.f32 %v2163, %v2149
        %v2165 = vadd.f32 %v2159, %v2164
        %v2166 = vlaneseq
        %v2167 = vshrl.u32 %v2166, 7
        %v2168 = vsub.s32 6, %v2167
        %v2169 = vrot.slane %v2128, %v2168
        %v2170 = vmul.f32 %v2169, %v2154
        %v2171 = vadd.f32 %v2165, %v2170
        %v2172 = vadd.f32 %v2171, %v2143
        %v2173 = vlaneseq
        %v2174 = vshrl.u32 %v2173, 7
        %v2175 = vsub.s32 6, %v2174
        %v2176 = vrot.slane %v2129, %v2175
        %v2177 = vmul.f32 %v2176, %v2144
        %v2178 = vlaneseq
        %v2179 = vshrl.u32 %v2178, 7
        %v2180 = vsub.s32 6, %v2179
        %v2181 = vrot.slane %v2131, %v2180
        %v2182 = vmul.f32 %v2181, %v2149
        %v2183 = vadd.f32 %v2177, %v2182
        %v2184 = vlaneseq
        %v2185 = vshrl.u32 %v2184, 7
        %v2186 = vsub.s32 6, %v2185
        %v2187 = vrot.slane %v2132, %v2186
        %v2188 = vmul.f32 %v2187, %v2154
        %v2189 = vadd.f32 %v2183, %v2188
        %v2190 = vadd.f32 %v2189, %v2148
        %v2191 = vlaneseq
        %v2192 = vshrl.u32 %v2191, 7
        %v2193 = vsub.s32 6, %v2192
        %v2194 = vrot.slane %v2133, %v2193
        %v2195 = vmul.f32 %v2194, %v2144
        %v2196 = vlaneseq
        %v2197 = vshrl.u32 %v2196, 7
        %v2198 = vsub.s32 6, %v2197
        %v2199 = vrot.slane %v2134, %v2198
        %v2200 = vmul.f32 %v2199, %v2149
        %v2201 = vadd.f32 %v2195, %v2200
        %v2202 = vlaneseq
        %v2203 = vshrl.u32 %v2202, 7
        %v2204 = vsub.s32 6, %v2203
        %v2205 = vrot.slane %v2136, %v2204
        %v2206 = vmul.f32 %v2205, %v2154
        %v2207 = vadd.f32 %v2201, %v2206
        %v2208 = vadd.f32 %v2207, %v2153
        %vm2209 = vcmp.ge.s32.totalorder %v650, 9
        %v2210 = vsel %vm2209, 1, 0
        %vm2211 = vcmp.eq.s32.totalorder %v2210, 1
        %v2212 = vsel %vm2211, %v2172, %v2137
        %v2213 = vsel %vm2211, %v2190, %v2138
        %v2214 = vsel %vm2211, %v2208, %v2139
        %2215 = vst [vmem:[%s219 + $0x8] sm:$0xff] %v2212
        %2216 = vst [vmem:[%s652 + $0x8] sm:$0xff] %v2213
        %2217 = vst [vmem:[%s654 + $0x8] sm:$0xff] %v2214
        %v2218 = vld [vmem:[%s219 + $0x7] sm:$0x1]
        %v2219 = vld [vmem:[%s652 + $0x7] sm:$0x1]
        %v2220 = vld [vmem:[%s654 + $0x7] sm:$0x1]
        %v2221 = vld [vmem:[%s219 + $0x8] sm:$0x1]
        %v2222 = vld [vmem:[%s652 + $0x8] sm:$0x1]
        %v2223 = vld [vmem:[%s654 + $0x8] sm:$0x1]
        %v2224 = vld [vmem:[%s219 + $0x9] sm:$0x1]
        %v2225 = vld [vmem:[%s652 + $0x9] sm:$0x1]
        %v2226 = vld [vmem:[%s654 + $0x9] sm:$0x1]
        %v2227 = vld [vmem:[%s219 + $0xa] sm:$0x1]
        %v2228 = vld [vmem:[%s652 + $0xa] sm:$0x1]
        %v2229 = vld [vmem:[%s654 + $0xa] sm:$0x1]
        %v2230 = vsub.f32 %v2221, %v2218
        %v2231 = vsub.f32 %v2222, %v2219
        %v2232 = vsub.f32 %v2223, %v2220
        %v2233 = vsub.f32 %v2224, %v2221
        %v2234 = vsub.f32 %v2225, %v2222
        %v2235 = vsub.f32 %v2226, %v2223
        %v2236 = vsub.f32 %v2227, %v2224
        %v2237 = vsub.f32 %v2228, %v2225
        %v2238 = vsub.f32 %v2229, %v2226
        %v2239 = vmul.f32 %v2231, %v2235
        %v2240 = vmul.f32 %v2232, %v2234
        %v2241 = vsub.f32 %v2239, %v2240
        %v2242 = vmul.f32 %v2232, %v2233
        %v2243 = vmul.f32 %v2230, %v2235
        %v2244 = vsub.f32 %v2242, %v2243
        %v2245 = vmul.f32 %v2230, %v2234
        %v2246 = vmul.f32 %v2231, %v2233
        %v2247 = vsub.f32 %v2245, %v2246
        %v2248 = vmul.f32 %v2234, %v2238
        %v2249 = vmul.f32 %v2235, %v2237
        %v2250 = vsub.f32 %v2248, %v2249
        %v2251 = vmul.f32 %v2235, %v2236
        %v2252 = vmul.f32 %v2233, %v2238
        %v2253 = vsub.f32 %v2251, %v2252
        %v2254 = vmul.f32 %v2233, %v2237
        %v2255 = vmul.f32 %v2234, %v2236
        %v2256 = vsub.f32 %v2254, %v2255
        %v2257 = vmul.f32 %v2244, %v2235
        %v2258 = vmul.f32 %v2247, %v2234
        %v2259 = vsub.f32 %v2257, %v2258
        %v2260 = vmul.f32 %v2247, %v2233
        %v2261 = vmul.f32 %v2241, %v2235
        %v2262 = vsub.f32 %v2260, %v2261
        %v2263 = vmul.f32 %v2241, %v2234
        %v2264 = vmul.f32 %v2244, %v2233
        %v2265 = vsub.f32 %v2263, %v2264
        %v2266 = vmul.f32 %v2259, %v2250
        %v2267 = vmul.f32 %v2262, %v2253
        %v2268 = vadd.f32 %v2266, %v2267
        %v2269 = vmul.f32 %v2265, %v2256
        %v2270 = vadd.f32 %v2268, %v2269
        %v2271 = vmul.f32 %v2241, %v2250
        %v2272 = vmul.f32 %v2244, %v2253
        %v2273 = vadd.f32 %v2271, %v2272
        %v2274 = vmul.f32 %v2247, %v2256
        %v2275 = vadd.f32 %v2273, %v2274
        %v2276 = vmul.f32 %v2233, %v2233
        %v2277 = vmul.f32 %v2234, %v2234
        %v2278 = vadd.f32 %v2276, %v2277
        %v2279 = vmul.f32 %v2235, %v2235
        %v2280 = vadd.f32 %v2278, %v2279
        %v2281 = vmax.f32 %v2280, 1e-24
        %v2282 = vrsqrt.pop %v2281
        %v2283 = vmul.f32 %v2233, %v2282
        %v2284 = vmul.f32 %v2234, %v2282
        %v2285 = vmul.f32 %v2235, %v2282
        %v2286 = vmul.f32 %v2270, %v2282
        %v2287 = vmul.f32 %v2275, %v2275
        %v2288 = vmul.f32 %v2286, %v2286
        %v2289 = vadd.f32 %v2287, %v2288
        %v2290 = vmax.f32 %v2289, 1e-24
        %v2291 = vrsqrt.pop %v2290
        %vm2292 = vcmp.lt.f32.partialorder %v2289, 1e-24
        %v2293 = vmul.f32 %v2275, %v2291
        %v2294 = vsel %vm2292, 1.0, %v2293
        %v2295 = vmul.f32 %v2286, %v2291
        %v2296 = vsel %vm2292, 0.0, %v2295
        %v2298 = vrot.slane %v2294, 1
        %v2300 = vmul.f32 %v336, %v2298
        %v2302 = vrot.slane %v2296, 1
        %v2304 = vmul.f32 %v543, %v2302
        %v2305 = vsub.f32 %v2300, %v2304
        %v2306 = vmul.f32 %v543, %v2298
        %v2307 = vmul.f32 %v336, %v2302
        %v2308 = vadd.f32 %v2306, %v2307
        %v2309 = vsub.f32 1.0, %v2305
        %v2311 = vrot.slane %v2283, 1
        %v2313 = vmul.f32 %v2309, %v2311
        %v2315 = vrot.slane %v2284, 1
        %v2317 = vmul.f32 %v2309, %v2315
        %v2319 = vrot.slane %v2285, 1
        %v2321 = vmul.f32 %v2309, %v2319
        %v2322 = vmul.f32 %v2308, %v2311
        %v2323 = vmul.f32 %v2308, %v2315
        %v2324 = vmul.f32 %v2308, %v2319
        %v2325 = vmul.f32 %v2313, %v2315
        %v2326 = vmul.f32 %v2313, %v2319
        %v2327 = vmul.f32 %v2317, %v2319
        %v2328 = vmul.f32 %v2313, %v2311
        %v2329 = vadd.f32 %v2328, %v2305
        %v2330 = vsub.f32 %v2325, %v2324
        %v2331 = vadd.f32 %v2326, %v2323
        %v2332 = vadd.f32 %v2325, %v2324
        %v2333 = vmul.f32 %v2317, %v2315
        %v2334 = vadd.f32 %v2333, %v2305
        %v2335 = vsub.f32 %v2327, %v2322
        %v2336 = vsub.f32 %v2326, %v2323
        %v2337 = vadd.f32 %v2327, %v2322
        %v2338 = vmul.f32 %v2321, %v2319
        %v2339 = vadd.f32 %v2338, %v2305
        %v2340 = vld [vmem:[%s219 + $0x8] sm:$0xff]
        %v2341 = vld [vmem:[%s652 + $0x8] sm:$0xff]
        %v2342 = vld [vmem:[%s654 + $0x8] sm:$0xff]
        %v2343 = vlaneseq
        %v2344 = vshrl.u32 %v2343, 7
        %v2345 = vsub.s32 0, %v2344
        %v2346 = vrot.slane %v2221, %v2345
        %v2347 = vsub.f32 %v2340, %v2346
        %v2348 = vlaneseq
        %v2349 = vshrl.u32 %v2348, 7
        %v2350 = vsub.s32 0, %v2349
        %v2351 = vrot.slane %v2222, %v2350
        %v2352 = vsub.f32 %v2341, %v2351
        %v2353 = vlaneseq
        %v2354 = vshrl.u32 %v2353, 7
        %v2355 = vsub.s32 0, %v2354
        %v2356 = vrot.slane %v2223, %v2355
        %v2357 = vsub.f32 %v2342, %v2356
        %v2358 = vlaneseq
        %v2359 = vshrl.u32 %v2358, 7
        %v2360 = vsub.s32 7, %v2359
        %v2361 = vrot.slane %v2329, %v2360
        %v2362 = vmul.f32 %v2361, %v2347
        %v2363 = vlaneseq
        %v2364 = vshrl.u32 %v2363, 7
        %v2365 = vsub.s32 7, %v2364
        %v2366 = vrot.slane %v2330, %v2365
        %v2367 = vmul.f32 %v2366, %v2352
        %v2368 = vadd.f32 %v2362, %v2367
        %v2369 = vlaneseq
        %v2370 = vshrl.u32 %v2369, 7
        %v2371 = vsub.s32 7, %v2370
        %v2372 = vrot.slane %v2331, %v2371
        %v2373 = vmul.f32 %v2372, %v2357
        %v2374 = vadd.f32 %v2368, %v2373
        %v2375 = vadd.f32 %v2374, %v2346
        %v2376 = vlaneseq
        %v2377 = vshrl.u32 %v2376, 7
        %v2378 = vsub.s32 7, %v2377
        %v2379 = vrot.slane %v2332, %v2378
        %v2380 = vmul.f32 %v2379, %v2347
        %v2381 = vlaneseq
        %v2382 = vshrl.u32 %v2381, 7
        %v2383 = vsub.s32 7, %v2382
        %v2384 = vrot.slane %v2334, %v2383
        %v2385 = vmul.f32 %v2384, %v2352
        %v2386 = vadd.f32 %v2380, %v2385
        %v2387 = vlaneseq
        %v2388 = vshrl.u32 %v2387, 7
        %v2389 = vsub.s32 7, %v2388
        %v2390 = vrot.slane %v2335, %v2389
        %v2391 = vmul.f32 %v2390, %v2357
        %v2392 = vadd.f32 %v2386, %v2391
        %v2393 = vadd.f32 %v2392, %v2351
        %v2394 = vlaneseq
        %v2395 = vshrl.u32 %v2394, 7
        %v2396 = vsub.s32 7, %v2395
        %v2397 = vrot.slane %v2336, %v2396
        %v2398 = vmul.f32 %v2397, %v2347
        %v2399 = vlaneseq
        %v2400 = vshrl.u32 %v2399, 7
        %v2401 = vsub.s32 7, %v2400
        %v2402 = vrot.slane %v2337, %v2401
        %v2403 = vmul.f32 %v2402, %v2352
        %v2404 = vadd.f32 %v2398, %v2403
        %v2405 = vlaneseq
        %v2406 = vshrl.u32 %v2405, 7
        %v2407 = vsub.s32 7, %v2406
        %v2408 = vrot.slane %v2339, %v2407
        %v2409 = vmul.f32 %v2408, %v2357
        %v2410 = vadd.f32 %v2404, %v2409
        %v2411 = vadd.f32 %v2410, %v2356
        %vm2412 = vcmp.ge.s32.totalorder %v650, 10
        %v2413 = vsel %vm2412, 1, 0
        %vm2414 = vcmp.eq.s32.totalorder %v2413, 1
        %v2415 = vsel %vm2414, %v2375, %v2340
        %v2416 = vsel %vm2414, %v2393, %v2341
        %v2417 = vsel %vm2414, %v2411, %v2342
        %2418 = vst [vmem:[%s219 + $0x8] sm:$0xff] %v2415
        %2419 = vst [vmem:[%s652 + $0x8] sm:$0xff] %v2416
        %2420 = vst [vmem:[%s654 + $0x8] sm:$0xff] %v2417
        %v2421 = vld [vmem:[%s219 + $0x8] sm:$0x1]
        %v2422 = vld [vmem:[%s652 + $0x8] sm:$0x1]
        %v2423 = vld [vmem:[%s654 + $0x8] sm:$0x1]
        %v2424 = vld [vmem:[%s219 + $0x9] sm:$0x1]
        %v2425 = vld [vmem:[%s652 + $0x9] sm:$0x1]
        %v2426 = vld [vmem:[%s654 + $0x9] sm:$0x1]
        %v2427 = vld [vmem:[%s219 + $0xa] sm:$0x1]
        %v2428 = vld [vmem:[%s652 + $0xa] sm:$0x1]
        %v2429 = vld [vmem:[%s654 + $0xa] sm:$0x1]
        %v2430 = vld [vmem:[%s219 + $0xb] sm:$0x1]
        %v2431 = vld [vmem:[%s652 + $0xb] sm:$0x1]
        %v2432 = vld [vmem:[%s654 + $0xb] sm:$0x1]
        %v2433 = vsub.f32 %v2424, %v2421
        %v2434 = vsub.f32 %v2425, %v2422
        %v2435 = vsub.f32 %v2426, %v2423
        %v2436 = vsub.f32 %v2427, %v2424
        %v2437 = vsub.f32 %v2428, %v2425
        %v2438 = vsub.f32 %v2429, %v2426
        %v2439 = vsub.f32 %v2430, %v2427
        %v2440 = vsub.f32 %v2431, %v2428
        %v2441 = vsub.f32 %v2432, %v2429
        %v2442 = vmul.f32 %v2434, %v2438
        %v2443 = vmul.f32 %v2435, %v2437
        %v2444 = vsub.f32 %v2442, %v2443
        %v2445 = vmul.f32 %v2435, %v2436
        %v2446 = vmul.f32 %v2433, %v2438
        %v2447 = vsub.f32 %v2445, %v2446
        %v2448 = vmul.f32 %v2433, %v2437
        %v2449 = vmul.f32 %v2434, %v2436
        %v2450 = vsub.f32 %v2448, %v2449
        %v2451 = vmul.f32 %v2437, %v2441
        %v2452 = vmul.f32 %v2438, %v2440
        %v2453 = vsub.f32 %v2451, %v2452
        %v2454 = vmul.f32 %v2438, %v2439
        %v2455 = vmul.f32 %v2436, %v2441
        %v2456 = vsub.f32 %v2454, %v2455
        %v2457 = vmul.f32 %v2436, %v2440
        %v2458 = vmul.f32 %v2437, %v2439
        %v2459 = vsub.f32 %v2457, %v2458
        %v2460 = vmul.f32 %v2447, %v2438
        %v2461 = vmul.f32 %v2450, %v2437
        %v2462 = vsub.f32 %v2460, %v2461
        %v2463 = vmul.f32 %v2450, %v2436
        %v2464 = vmul.f32 %v2444, %v2438
        %v2465 = vsub.f32 %v2463, %v2464
        %v2466 = vmul.f32 %v2444, %v2437
        %v2467 = vmul.f32 %v2447, %v2436
        %v2468 = vsub.f32 %v2466, %v2467
        %v2469 = vmul.f32 %v2462, %v2453
        %v2470 = vmul.f32 %v2465, %v2456
        %v2471 = vadd.f32 %v2469, %v2470
        %v2472 = vmul.f32 %v2468, %v2459
        %v2473 = vadd.f32 %v2471, %v2472
        %v2474 = vmul.f32 %v2444, %v2453
        %v2475 = vmul.f32 %v2447, %v2456
        %v2476 = vadd.f32 %v2474, %v2475
        %v2477 = vmul.f32 %v2450, %v2459
        %v2478 = vadd.f32 %v2476, %v2477
        %v2479 = vmul.f32 %v2436, %v2436
        %v2480 = vmul.f32 %v2437, %v2437
        %v2481 = vadd.f32 %v2479, %v2480
        %v2482 = vmul.f32 %v2438, %v2438
        %v2483 = vadd.f32 %v2481, %v2482
        %v2484 = vmax.f32 %v2483, 1e-24
        %v2485 = vrsqrt.pop %v2484
        %v2486 = vmul.f32 %v2436, %v2485
        %v2487 = vmul.f32 %v2437, %v2485
        %v2488 = vmul.f32 %v2438, %v2485
        %v2489 = vmul.f32 %v2473, %v2485
        %v2490 = vmul.f32 %v2478, %v2478
        %v2491 = vmul.f32 %v2489, %v2489
        %v2492 = vadd.f32 %v2490, %v2491
        %v2493 = vmax.f32 %v2492, 1e-24
        %v2494 = vrsqrt.pop %v2493
        %vm2495 = vcmp.lt.f32.partialorder %v2492, 1e-24
        %v2496 = vmul.f32 %v2478, %v2494
        %v2497 = vsel %vm2495, 1.0, %v2496
        %v2498 = vmul.f32 %v2489, %v2494
        %v2499 = vsel %vm2495, 0.0, %v2498
        %v2500 = vmul.f32 %v439, %v2497
        %v2501 = vmul.f32 %v647, %v2499
        %v2502 = vsub.f32 %v2500, %v2501
        %v2503 = vmul.f32 %v647, %v2497
        %v2504 = vmul.f32 %v439, %v2499
        %v2505 = vadd.f32 %v2503, %v2504
        %v2506 = vsub.f32 1.0, %v2502
        %v2507 = vmul.f32 %v2506, %v2486
        %v2508 = vmul.f32 %v2506, %v2487
        %v2509 = vmul.f32 %v2506, %v2488
        %v2510 = vmul.f32 %v2505, %v2486
        %v2511 = vmul.f32 %v2505, %v2487
        %v2512 = vmul.f32 %v2505, %v2488
        %v2513 = vmul.f32 %v2507, %v2487
        %v2514 = vmul.f32 %v2507, %v2488
        %v2515 = vmul.f32 %v2508, %v2488
        %v2516 = vmul.f32 %v2507, %v2486
        %v2517 = vadd.f32 %v2516, %v2502
        %v2518 = vsub.f32 %v2513, %v2512
        %v2519 = vadd.f32 %v2514, %v2511
        %v2520 = vadd.f32 %v2513, %v2512
        %v2521 = vmul.f32 %v2508, %v2487
        %v2522 = vadd.f32 %v2521, %v2502
        %v2523 = vsub.f32 %v2515, %v2510
        %v2524 = vsub.f32 %v2514, %v2511
        %v2525 = vadd.f32 %v2515, %v2510
        %v2526 = vmul.f32 %v2509, %v2488
        %v2527 = vadd.f32 %v2526, %v2502
        %v2528 = vld [vmem:[%s219 + $0x8] sm:$0xff]
        %v2529 = vld [vmem:[%s652 + $0x8] sm:$0xff]
        %v2530 = vld [vmem:[%s654 + $0x8] sm:$0xff]
        %v2531 = vlaneseq
        %v2532 = vshrl.u32 %v2531, 7
        %v2533 = vsub.s32 0, %v2532
        %v2534 = vrot.slane %v2424, %v2533
        %v2535 = vsub.f32 %v2528, %v2534
        %v2536 = vlaneseq
        %v2537 = vshrl.u32 %v2536, 7
        %v2538 = vsub.s32 0, %v2537
        %v2539 = vrot.slane %v2425, %v2538
        %v2540 = vsub.f32 %v2529, %v2539
        %v2541 = vlaneseq
        %v2542 = vshrl.u32 %v2541, 7
        %v2543 = vsub.s32 0, %v2542
        %v2544 = vrot.slane %v2426, %v2543
        %v2545 = vsub.f32 %v2530, %v2544
        %v2546 = vlaneseq
        %v2547 = vshrl.u32 %v2546, 7
        %v2548 = vsub.s32 0, %v2547
        %v2549 = vrot.slane %v2517, %v2548
        %v2550 = vmul.f32 %v2549, %v2535
        %v2551 = vlaneseq
        %v2552 = vshrl.u32 %v2551, 7
        %v2553 = vsub.s32 0, %v2552
        %v2554 = vrot.slane %v2518, %v2553
        %v2555 = vmul.f32 %v2554, %v2540
        %v2556 = vadd.f32 %v2550, %v2555
        %v2557 = vlaneseq
        %v2558 = vshrl.u32 %v2557, 7
        %v2559 = vsub.s32 0, %v2558
        %v2560 = vrot.slane %v2519, %v2559
        %v2561 = vmul.f32 %v2560, %v2545
        %v2562 = vadd.f32 %v2556, %v2561
        %v2563 = vadd.f32 %v2562, %v2534
        %v2564 = vlaneseq
        %v2565 = vshrl.u32 %v2564, 7
        %v2566 = vsub.s32 0, %v2565
        %v2567 = vrot.slane %v2520, %v2566
        %v2568 = vmul.f32 %v2567, %v2535
        %v2569 = vlaneseq
        %v2570 = vshrl.u32 %v2569, 7
        %v2571 = vsub.s32 0, %v2570
        %v2572 = vrot.slane %v2522, %v2571
        %v2573 = vmul.f32 %v2572, %v2540
        %v2574 = vadd.f32 %v2568, %v2573
        %v2575 = vlaneseq
        %v2576 = vshrl.u32 %v2575, 7
        %v2577 = vsub.s32 0, %v2576
        %v2578 = vrot.slane %v2523, %v2577
        %v2579 = vmul.f32 %v2578, %v2545
        %v2580 = vadd.f32 %v2574, %v2579
        %v2581 = vadd.f32 %v2580, %v2539
        %v2582 = vlaneseq
        %v2583 = vshrl.u32 %v2582, 7
        %v2584 = vsub.s32 0, %v2583
        %v2585 = vrot.slane %v2524, %v2584
        %v2586 = vmul.f32 %v2585, %v2535
        %v2587 = vlaneseq
        %v2588 = vshrl.u32 %v2587, 7
        %v2589 = vsub.s32 0, %v2588
        %v2590 = vrot.slane %v2525, %v2589
        %v2591 = vmul.f32 %v2590, %v2540
        %v2592 = vadd.f32 %v2586, %v2591
        %v2593 = vlaneseq
        %v2594 = vshrl.u32 %v2593, 7
        %v2595 = vsub.s32 0, %v2594
        %v2596 = vrot.slane %v2527, %v2595
        %v2597 = vmul.f32 %v2596, %v2545
        %v2598 = vadd.f32 %v2592, %v2597
        %v2599 = vadd.f32 %v2598, %v2544
        %vm2600 = vcmp.ge.s32.totalorder %v650, 11
        %v2601 = vsel %vm2600, 1, 0
        %vm2602 = vcmp.eq.s32.totalorder %v2601, 1
        %v2603 = vsel %vm2602, %v2563, %v2528
        %v2604 = vsel %vm2602, %v2581, %v2529
        %v2605 = vsel %vm2602, %v2599, %v2530
        %2606 = vst [vmem:[%s219 + $0x8] sm:$0xff] %v2603
        %2607 = vst [vmem:[%s652 + $0x8] sm:$0xff] %v2604
        %2608 = vst [vmem:[%s654 + $0x8] sm:$0xff] %v2605
        %v2609 = vld [vmem:[%s219 + $0x9] sm:$0x1]
        %v2610 = vld [vmem:[%s652 + $0x9] sm:$0x1]
        %v2611 = vld [vmem:[%s654 + $0x9] sm:$0x1]
        %v2612 = vld [vmem:[%s219 + $0xa] sm:$0x1]
        %v2613 = vld [vmem:[%s652 + $0xa] sm:$0x1]
        %v2614 = vld [vmem:[%s654 + $0xa] sm:$0x1]
        %v2615 = vld [vmem:[%s219 + $0xb] sm:$0x1]
        %v2616 = vld [vmem:[%s652 + $0xb] sm:$0x1]
        %v2617 = vld [vmem:[%s654 + $0xb] sm:$0x1]
        %v2618 = vld [vmem:[%s219 + $0xc] sm:$0x1]
        %v2619 = vld [vmem:[%s652 + $0xc] sm:$0x1]
        %v2620 = vld [vmem:[%s654 + $0xc] sm:$0x1]
        %v2621 = vsub.f32 %v2612, %v2609
        %v2622 = vsub.f32 %v2613, %v2610
        %v2623 = vsub.f32 %v2614, %v2611
        %v2624 = vsub.f32 %v2615, %v2612
        %v2625 = vsub.f32 %v2616, %v2613
        %v2626 = vsub.f32 %v2617, %v2614
        %v2627 = vsub.f32 %v2618, %v2615
        %v2628 = vsub.f32 %v2619, %v2616
        %v2629 = vsub.f32 %v2620, %v2617
        %v2630 = vmul.f32 %v2622, %v2626
        %v2631 = vmul.f32 %v2623, %v2625
        %v2632 = vsub.f32 %v2630, %v2631
        %v2633 = vmul.f32 %v2623, %v2624
        %v2634 = vmul.f32 %v2621, %v2626
        %v2635 = vsub.f32 %v2633, %v2634
        %v2636 = vmul.f32 %v2621, %v2625
        %v2637 = vmul.f32 %v2622, %v2624
        %v2638 = vsub.f32 %v2636, %v2637
        %v2639 = vmul.f32 %v2625, %v2629
        %v2640 = vmul.f32 %v2626, %v2628
        %v2641 = vsub.f32 %v2639, %v2640
        %v2642 = vmul.f32 %v2626, %v2627
        %v2643 = vmul.f32 %v2624, %v2629
        %v2644 = vsub.f32 %v2642, %v2643
        %v2645 = vmul.f32 %v2624, %v2628
        %v2646 = vmul.f32 %v2625, %v2627
        %v2647 = vsub.f32 %v2645, %v2646
        %v2648 = vmul.f32 %v2635, %v2626
        %v2649 = vmul.f32 %v2638, %v2625
        %v2650 = vsub.f32 %v2648, %v2649
        %v2651 = vmul.f32 %v2638, %v2624
        %v2652 = vmul.f32 %v2632, %v2626
        %v2653 = vsub.f32 %v2651, %v2652
        %v2654 = vmul.f32 %v2632, %v2625
        %v2655 = vmul.f32 %v2635, %v2624
        %v2656 = vsub.f32 %v2654, %v2655
        %v2657 = vmul.f32 %v2650, %v2641
        %v2658 = vmul.f32 %v2653, %v2644
        %v2659 = vadd.f32 %v2657, %v2658
        %v2660 = vmul.f32 %v2656, %v2647
        %v2661 = vadd.f32 %v2659, %v2660
        %v2662 = vmul.f32 %v2632, %v2641
        %v2663 = vmul.f32 %v2635, %v2644
        %v2664 = vadd.f32 %v2662, %v2663
        %v2665 = vmul.f32 %v2638, %v2647
        %v2666 = vadd.f32 %v2664, %v2665
        %v2667 = vmul.f32 %v2624, %v2624
        %v2668 = vmul.f32 %v2625, %v2625
        %v2669 = vadd.f32 %v2667, %v2668
        %v2670 = vmul.f32 %v2626, %v2626
        %v2671 = vadd.f32 %v2669, %v2670
        %v2672 = vmax.f32 %v2671, 1e-24
        %v2673 = vrsqrt.pop %v2672
        %v2674 = vmul.f32 %v2624, %v2673
        %v2675 = vmul.f32 %v2625, %v2673
        %v2676 = vmul.f32 %v2626, %v2673
        %v2677 = vmul.f32 %v2661, %v2673
        %v2678 = vmul.f32 %v2666, %v2666
        %v2679 = vmul.f32 %v2677, %v2677
        %v2680 = vadd.f32 %v2678, %v2679
        %v2681 = vmax.f32 %v2680, 1e-24
        %v2682 = vrsqrt.pop %v2681
        %vm2683 = vcmp.lt.f32.partialorder %v2680, 1e-24
        %v2684 = vmul.f32 %v2666, %v2682
        %v2685 = vsel %vm2683, 1.0, %v2684
        %v2686 = vmul.f32 %v2677, %v2682
        %v2687 = vsel %vm2683, 0.0, %v2686
        %v2689 = vrot.slane %v2685, 7
        %v2691 = vmul.f32 %v439, %v2689
        %v2693 = vrot.slane %v2687, 7
        %v2695 = vmul.f32 %v647, %v2693
        %v2696 = vsub.f32 %v2691, %v2695
        %v2697 = vmul.f32 %v647, %v2689
        %v2698 = vmul.f32 %v439, %v2693
        %v2699 = vadd.f32 %v2697, %v2698
        %v2700 = vsub.f32 1.0, %v2696
        %v2702 = vrot.slane %v2674, 7
        %v2704 = vmul.f32 %v2700, %v2702
        %v2706 = vrot.slane %v2675, 7
        %v2708 = vmul.f32 %v2700, %v2706
        %v2710 = vrot.slane %v2676, 7
        %v2712 = vmul.f32 %v2700, %v2710
        %v2713 = vmul.f32 %v2699, %v2702
        %v2714 = vmul.f32 %v2699, %v2706
        %v2715 = vmul.f32 %v2699, %v2710
        %v2716 = vmul.f32 %v2704, %v2706
        %v2717 = vmul.f32 %v2704, %v2710
        %v2718 = vmul.f32 %v2708, %v2710
        %v2719 = vmul.f32 %v2704, %v2702
        %v2720 = vadd.f32 %v2719, %v2696
        %v2721 = vsub.f32 %v2716, %v2715
        %v2722 = vadd.f32 %v2717, %v2714
        %v2723 = vadd.f32 %v2716, %v2715
        %v2724 = vmul.f32 %v2708, %v2706
        %v2725 = vadd.f32 %v2724, %v2696
        %v2726 = vsub.f32 %v2718, %v2713
        %v2727 = vsub.f32 %v2717, %v2714
        %v2728 = vadd.f32 %v2718, %v2713
        %v2729 = vmul.f32 %v2712, %v2710
        %v2730 = vadd.f32 %v2729, %v2696
        %v2731 = vld [vmem:[%s219 + $0x8] sm:$0xff]
        %v2732 = vld [vmem:[%s652 + $0x8] sm:$0xff]
        %v2733 = vld [vmem:[%s654 + $0x8] sm:$0xff]
        %v2734 = vlaneseq
        %v2735 = vshrl.u32 %v2734, 7
        %v2736 = vsub.s32 0, %v2735
        %v2737 = vrot.slane %v2612, %v2736
        %v2738 = vsub.f32 %v2731, %v2737
        %v2739 = vlaneseq
        %v2740 = vshrl.u32 %v2739, 7
        %v2741 = vsub.s32 0, %v2740
        %v2742 = vrot.slane %v2613, %v2741
        %v2743 = vsub.f32 %v2732, %v2742
        %v2744 = vlaneseq
        %v2745 = vshrl.u32 %v2744, 7
        %v2746 = vsub.s32 0, %v2745
        %v2747 = vrot.slane %v2614, %v2746
        %v2748 = vsub.f32 %v2733, %v2747
        %v2749 = vlaneseq
        %v2750 = vshrl.u32 %v2749, 7
        %v2751 = vsub.s32 1, %v2750
        %v2752 = vrot.slane %v2720, %v2751
        %v2753 = vmul.f32 %v2752, %v2738
        %v2754 = vlaneseq
        %v2755 = vshrl.u32 %v2754, 7
        %v2756 = vsub.s32 1, %v2755
        %v2757 = vrot.slane %v2721, %v2756
        %v2758 = vmul.f32 %v2757, %v2743
        %v2759 = vadd.f32 %v2753, %v2758
        %v2760 = vlaneseq
        %v2761 = vshrl.u32 %v2760, 7
        %v2762 = vsub.s32 1, %v2761
        %v2763 = vrot.slane %v2722, %v2762
        %v2764 = vmul.f32 %v2763, %v2748
        %v2765 = vadd.f32 %v2759, %v2764
        %v2766 = vadd.f32 %v2765, %v2737
        %v2767 = vlaneseq
        %v2768 = vshrl.u32 %v2767, 7
        %v2769 = vsub.s32 1, %v2768
        %v2770 = vrot.slane %v2723, %v2769
        %v2771 = vmul.f32 %v2770, %v2738
        %v2772 = vlaneseq
        %v2773 = vshrl.u32 %v2772, 7
        %v2774 = vsub.s32 1, %v2773
        %v2775 = vrot.slane %v2725, %v2774
        %v2776 = vmul.f32 %v2775, %v2743
        %v2777 = vadd.f32 %v2771, %v2776
        %v2778 = vlaneseq
        %v2779 = vshrl.u32 %v2778, 7
        %v2780 = vsub.s32 1, %v2779
        %v2781 = vrot.slane %v2726, %v2780
        %v2782 = vmul.f32 %v2781, %v2748
        %v2783 = vadd.f32 %v2777, %v2782
        %v2784 = vadd.f32 %v2783, %v2742
        %v2785 = vlaneseq
        %v2786 = vshrl.u32 %v2785, 7
        %v2787 = vsub.s32 1, %v2786
        %v2788 = vrot.slane %v2727, %v2787
        %v2789 = vmul.f32 %v2788, %v2738
        %v2790 = vlaneseq
        %v2791 = vshrl.u32 %v2790, 7
        %v2792 = vsub.s32 1, %v2791
        %v2793 = vrot.slane %v2728, %v2792
        %v2794 = vmul.f32 %v2793, %v2743
        %v2795 = vadd.f32 %v2789, %v2794
        %v2796 = vlaneseq
        %v2797 = vshrl.u32 %v2796, 7
        %v2798 = vsub.s32 1, %v2797
        %v2799 = vrot.slane %v2730, %v2798
        %v2800 = vmul.f32 %v2799, %v2748
        %v2801 = vadd.f32 %v2795, %v2800
        %v2802 = vadd.f32 %v2801, %v2747
        %vm2803 = vcmp.ge.s32.totalorder %v650, 12
        %v2804 = vsel %vm2803, 1, 0
        %vm2805 = vcmp.eq.s32.totalorder %v2804, 1
        %v2806 = vsel %vm2805, %v2766, %v2731
        %v2807 = vsel %vm2805, %v2784, %v2732
        %v2808 = vsel %vm2805, %v2802, %v2733
        %2809 = vst [vmem:[%s219 + $0x8] sm:$0xff] %v2806
        %2810 = vst [vmem:[%s652 + $0x8] sm:$0xff] %v2807
        %2811 = vst [vmem:[%s654 + $0x8] sm:$0xff] %v2808
        %v2812 = vld [vmem:[%s219 + $0xa] sm:$0x1]
        %v2813 = vld [vmem:[%s652 + $0xa] sm:$0x1]
        %v2814 = vld [vmem:[%s654 + $0xa] sm:$0x1]
        %v2815 = vld [vmem:[%s219 + $0xb] sm:$0x1]
        %v2816 = vld [vmem:[%s652 + $0xb] sm:$0x1]
        %v2817 = vld [vmem:[%s654 + $0xb] sm:$0x1]
        %v2818 = vld [vmem:[%s219 + $0xc] sm:$0x1]
        %v2819 = vld [vmem:[%s652 + $0xc] sm:$0x1]
        %v2820 = vld [vmem:[%s654 + $0xc] sm:$0x1]
        %v2821 = vld [vmem:[%s219 + $0xd] sm:$0x1]
        %v2822 = vld [vmem:[%s652 + $0xd] sm:$0x1]
        %v2823 = vld [vmem:[%s654 + $0xd] sm:$0x1]
        %v2824 = vsub.f32 %v2815, %v2812
        %v2825 = vsub.f32 %v2816, %v2813
        %v2826 = vsub.f32 %v2817, %v2814
        %v2827 = vsub.f32 %v2818, %v2815
        %v2828 = vsub.f32 %v2819, %v2816
        %v2829 = vsub.f32 %v2820, %v2817
        %v2830 = vsub.f32 %v2821, %v2818
        %v2831 = vsub.f32 %v2822, %v2819
        %v2832 = vsub.f32 %v2823, %v2820
        %v2833 = vmul.f32 %v2825, %v2829
        %v2834 = vmul.f32 %v2826, %v2828
        %v2835 = vsub.f32 %v2833, %v2834
        %v2836 = vmul.f32 %v2826, %v2827
        %v2837 = vmul.f32 %v2824, %v2829
        %v2838 = vsub.f32 %v2836, %v2837
        %v2839 = vmul.f32 %v2824, %v2828
        %v2840 = vmul.f32 %v2825, %v2827
        %v2841 = vsub.f32 %v2839, %v2840
        %v2842 = vmul.f32 %v2828, %v2832
        %v2843 = vmul.f32 %v2829, %v2831
        %v2844 = vsub.f32 %v2842, %v2843
        %v2845 = vmul.f32 %v2829, %v2830
        %v2846 = vmul.f32 %v2827, %v2832
        %v2847 = vsub.f32 %v2845, %v2846
        %v2848 = vmul.f32 %v2827, %v2831
        %v2849 = vmul.f32 %v2828, %v2830
        %v2850 = vsub.f32 %v2848, %v2849
        %v2851 = vmul.f32 %v2838, %v2829
        %v2852 = vmul.f32 %v2841, %v2828
        %v2853 = vsub.f32 %v2851, %v2852
        %v2854 = vmul.f32 %v2841, %v2827
        %v2855 = vmul.f32 %v2835, %v2829
        %v2856 = vsub.f32 %v2854, %v2855
        %v2857 = vmul.f32 %v2835, %v2828
        %v2858 = vmul.f32 %v2838, %v2827
        %v2859 = vsub.f32 %v2857, %v2858
        %v2860 = vmul.f32 %v2853, %v2844
        %v2861 = vmul.f32 %v2856, %v2847
        %v2862 = vadd.f32 %v2860, %v2861
        %v2863 = vmul.f32 %v2859, %v2850
        %v2864 = vadd.f32 %v2862, %v2863
        %v2865 = vmul.f32 %v2835, %v2844
        %v2866 = vmul.f32 %v2838, %v2847
        %v2867 = vadd.f32 %v2865, %v2866
        %v2868 = vmul.f32 %v2841, %v2850
        %v2869 = vadd.f32 %v2867, %v2868
        %v2870 = vmul.f32 %v2827, %v2827
        %v2871 = vmul.f32 %v2828, %v2828
        %v2872 = vadd.f32 %v2870, %v2871
        %v2873 = vmul.f32 %v2829, %v2829
        %v2874 = vadd.f32 %v2872, %v2873
        %v2875 = vmax.f32 %v2874, 1e-24
        %v2876 = vrsqrt.pop %v2875
        %v2877 = vmul.f32 %v2827, %v2876
        %v2878 = vmul.f32 %v2828, %v2876
        %v2879 = vmul.f32 %v2829, %v2876
        %v2880 = vmul.f32 %v2864, %v2876
        %v2881 = vmul.f32 %v2869, %v2869
        %v2882 = vmul.f32 %v2880, %v2880
        %v2883 = vadd.f32 %v2881, %v2882
        %v2884 = vmax.f32 %v2883, 1e-24
        %v2885 = vrsqrt.pop %v2884
        %vm2886 = vcmp.lt.f32.partialorder %v2883, 1e-24
        %v2887 = vmul.f32 %v2869, %v2885
        %v2888 = vsel %vm2886, 1.0, %v2887
        %v2889 = vmul.f32 %v2880, %v2885
        %v2890 = vsel %vm2886, 0.0, %v2889
        %v2892 = vrot.slane %v2888, 6
        %v2894 = vmul.f32 %v439, %v2892
        %v2896 = vrot.slane %v2890, 6
        %v2898 = vmul.f32 %v647, %v2896
        %v2899 = vsub.f32 %v2894, %v2898
        %v2900 = vmul.f32 %v647, %v2892
        %v2901 = vmul.f32 %v439, %v2896
        %v2902 = vadd.f32 %v2900, %v2901
        %v2903 = vsub.f32 1.0, %v2899
        %v2905 = vrot.slane %v2877, 6
        %v2907 = vmul.f32 %v2903, %v2905
        %v2909 = vrot.slane %v2878, 6
        %v2911 = vmul.f32 %v2903, %v2909
        %v2913 = vrot.slane %v2879, 6
        %v2915 = vmul.f32 %v2903, %v2913
        %v2916 = vmul.f32 %v2902, %v2905
        %v2917 = vmul.f32 %v2902, %v2909
        %v2918 = vmul.f32 %v2902, %v2913
        %v2919 = vmul.f32 %v2907, %v2909
        %v2920 = vmul.f32 %v2907, %v2913
        %v2921 = vmul.f32 %v2911, %v2913
        %v2922 = vmul.f32 %v2907, %v2905
        %v2923 = vadd.f32 %v2922, %v2899
        %v2924 = vsub.f32 %v2919, %v2918
        %v2925 = vadd.f32 %v2920, %v2917
        %v2926 = vadd.f32 %v2919, %v2918
        %v2927 = vmul.f32 %v2911, %v2909
        %v2928 = vadd.f32 %v2927, %v2899
        %v2929 = vsub.f32 %v2921, %v2916
        %v2930 = vsub.f32 %v2920, %v2917
        %v2931 = vadd.f32 %v2921, %v2916
        %v2932 = vmul.f32 %v2915, %v2913
        %v2933 = vadd.f32 %v2932, %v2899
        %v2934 = vld [vmem:[%s219 + $0x8] sm:$0xff]
        %v2935 = vld [vmem:[%s652 + $0x8] sm:$0xff]
        %v2936 = vld [vmem:[%s654 + $0x8] sm:$0xff]
        %v2937 = vlaneseq
        %v2938 = vshrl.u32 %v2937, 7
        %v2939 = vsub.s32 0, %v2938
        %v2940 = vrot.slane %v2815, %v2939
        %v2941 = vsub.f32 %v2934, %v2940
        %v2942 = vlaneseq
        %v2943 = vshrl.u32 %v2942, 7
        %v2944 = vsub.s32 0, %v2943
        %v2945 = vrot.slane %v2816, %v2944
        %v2946 = vsub.f32 %v2935, %v2945
        %v2947 = vlaneseq
        %v2948 = vshrl.u32 %v2947, 7
        %v2949 = vsub.s32 0, %v2948
        %v2950 = vrot.slane %v2817, %v2949
        %v2951 = vsub.f32 %v2936, %v2950
        %v2952 = vlaneseq
        %v2953 = vshrl.u32 %v2952, 7
        %v2954 = vsub.s32 2, %v2953
        %v2955 = vrot.slane %v2923, %v2954
        %v2956 = vmul.f32 %v2955, %v2941
        %v2957 = vlaneseq
        %v2958 = vshrl.u32 %v2957, 7
        %v2959 = vsub.s32 2, %v2958
        %v2960 = vrot.slane %v2924, %v2959
        %v2961 = vmul.f32 %v2960, %v2946
        %v2962 = vadd.f32 %v2956, %v2961
        %v2963 = vlaneseq
        %v2964 = vshrl.u32 %v2963, 7
        %v2965 = vsub.s32 2, %v2964
        %v2966 = vrot.slane %v2925, %v2965
        %v2967 = vmul.f32 %v2966, %v2951
        %v2968 = vadd.f32 %v2962, %v2967
        %v2969 = vadd.f32 %v2968, %v2940
        %v2970 = vlaneseq
        %v2971 = vshrl.u32 %v2970, 7
        %v2972 = vsub.s32 2, %v2971
        %v2973 = vrot.slane %v2926, %v2972
        %v2974 = vmul.f32 %v2973, %v2941
        %v2975 = vlaneseq
        %v2976 = vshrl.u32 %v2975, 7
        %v2977 = vsub.s32 2, %v2976
        %v2978 = vrot.slane %v2928, %v2977
        %v2979 = vmul.f32 %v2978, %v2946
        %v2980 = vadd.f32 %v2974, %v2979
        %v2981 = vlaneseq
        %v2982 = vshrl.u32 %v2981, 7
        %v2983 = vsub.s32 2, %v2982
        %v2984 = vrot.slane %v2929, %v2983
        %v2985 = vmul.f32 %v2984, %v2951
        %v2986 = vadd.f32 %v2980, %v2985
        %v2987 = vadd.f32 %v2986, %v2945
        %v2988 = vlaneseq
        %v2989 = vshrl.u32 %v2988, 7
        %v2990 = vsub.s32 2, %v2989
        %v2991 = vrot.slane %v2930, %v2990
        %v2992 = vmul.f32 %v2991, %v2941
        %v2993 = vlaneseq
        %v2994 = vshrl.u32 %v2993, 7
        %v2995 = vsub.s32 2, %v2994
        %v2996 = vrot.slane %v2931, %v2995
        %v2997 = vmul.f32 %v2996, %v2946
        %v2998 = vadd.f32 %v2992, %v2997
        %v2999 = vlaneseq
        %v3000 = vshrl.u32 %v2999, 7
        %v3001 = vsub.s32 2, %v3000
        %v3002 = vrot.slane %v2933, %v3001
        %v3003 = vmul.f32 %v3002, %v2951
        %v3004 = vadd.f32 %v2998, %v3003
        %v3005 = vadd.f32 %v3004, %v2950
        %vm3006 = vcmp.ge.s32.totalorder %v650, 13
        %v3007 = vsel %vm3006, 1, 0
        %vm3008 = vcmp.eq.s32.totalorder %v3007, 1
        %v3009 = vsel %vm3008, %v2969, %v2934
        %v3010 = vsel %vm3008, %v2987, %v2935
        %v3011 = vsel %vm3008, %v3005, %v2936
        %3012 = vst [vmem:[%s219 + $0x8] sm:$0xff] %v3009
        %3013 = vst [vmem:[%s652 + $0x8] sm:$0xff] %v3010
        %3014 = vst [vmem:[%s654 + $0x8] sm:$0xff] %v3011
        %v3015 = vld [vmem:[%s219 + $0xb] sm:$0x1]
        %v3016 = vld [vmem:[%s652 + $0xb] sm:$0x1]
        %v3017 = vld [vmem:[%s654 + $0xb] sm:$0x1]
        %v3018 = vld [vmem:[%s219 + $0xc] sm:$0x1]
        %v3019 = vld [vmem:[%s652 + $0xc] sm:$0x1]
        %v3020 = vld [vmem:[%s654 + $0xc] sm:$0x1]
        %v3021 = vld [vmem:[%s219 + $0xd] sm:$0x1]
        %v3022 = vld [vmem:[%s652 + $0xd] sm:$0x1]
        %v3023 = vld [vmem:[%s654 + $0xd] sm:$0x1]
        %v3024 = vld [vmem:[%s219 + $0xe] sm:$0x1]
        %v3025 = vld [vmem:[%s652 + $0xe] sm:$0x1]
        %v3026 = vld [vmem:[%s654 + $0xe] sm:$0x1]
        %v3027 = vsub.f32 %v3018, %v3015
        %v3028 = vsub.f32 %v3019, %v3016
        %v3029 = vsub.f32 %v3020, %v3017
        %v3030 = vsub.f32 %v3021, %v3018
        %v3031 = vsub.f32 %v3022, %v3019
        %v3032 = vsub.f32 %v3023, %v3020
        %v3033 = vsub.f32 %v3024, %v3021
        %v3034 = vsub.f32 %v3025, %v3022
        %v3035 = vsub.f32 %v3026, %v3023
        %v3036 = vmul.f32 %v3028, %v3032
        %v3037 = vmul.f32 %v3029, %v3031
        %v3038 = vsub.f32 %v3036, %v3037
        %v3039 = vmul.f32 %v3029, %v3030
        %v3040 = vmul.f32 %v3027, %v3032
        %v3041 = vsub.f32 %v3039, %v3040
        %v3042 = vmul.f32 %v3027, %v3031
        %v3043 = vmul.f32 %v3028, %v3030
        %v3044 = vsub.f32 %v3042, %v3043
        %v3045 = vmul.f32 %v3031, %v3035
        %v3046 = vmul.f32 %v3032, %v3034
        %v3047 = vsub.f32 %v3045, %v3046
        %v3048 = vmul.f32 %v3032, %v3033
        %v3049 = vmul.f32 %v3030, %v3035
        %v3050 = vsub.f32 %v3048, %v3049
        %v3051 = vmul.f32 %v3030, %v3034
        %v3052 = vmul.f32 %v3031, %v3033
        %v3053 = vsub.f32 %v3051, %v3052
        %v3054 = vmul.f32 %v3041, %v3032
        %v3055 = vmul.f32 %v3044, %v3031
        %v3056 = vsub.f32 %v3054, %v3055
        %v3057 = vmul.f32 %v3044, %v3030
        %v3058 = vmul.f32 %v3038, %v3032
        %v3059 = vsub.f32 %v3057, %v3058
        %v3060 = vmul.f32 %v3038, %v3031
        %v3061 = vmul.f32 %v3041, %v3030
        %v3062 = vsub.f32 %v3060, %v3061
        %v3063 = vmul.f32 %v3056, %v3047
        %v3064 = vmul.f32 %v3059, %v3050
        %v3065 = vadd.f32 %v3063, %v3064
        %v3066 = vmul.f32 %v3062, %v3053
        %v3067 = vadd.f32 %v3065, %v3066
        %v3068 = vmul.f32 %v3038, %v3047
        %v3069 = vmul.f32 %v3041, %v3050
        %v3070 = vadd.f32 %v3068, %v3069
        %v3071 = vmul.f32 %v3044, %v3053
        %v3072 = vadd.f32 %v3070, %v3071
        %v3073 = vmul.f32 %v3030, %v3030
        %v3074 = vmul.f32 %v3031, %v3031
        %v3075 = vadd.f32 %v3073, %v3074
        %v3076 = vmul.f32 %v3032, %v3032
        %v3077 = vadd.f32 %v3075, %v3076
        %v3078 = vmax.f32 %v3077, 1e-24
        %v3079 = vrsqrt.pop %v3078
        %v3080 = vmul.f32 %v3030, %v3079
        %v3081 = vmul.f32 %v3031, %v3079
        %v3082 = vmul.f32 %v3032, %v3079
        %v3083 = vmul.f32 %v3067, %v3079
        %v3084 = vmul.f32 %v3072, %v3072
        %v3085 = vmul.f32 %v3083, %v3083
        %v3086 = vadd.f32 %v3084, %v3085
        %v3087 = vmax.f32 %v3086, 1e-24
        %v3088 = vrsqrt.pop %v3087
        %vm3089 = vcmp.lt.f32.partialorder %v3086, 1e-24
        %v3090 = vmul.f32 %v3072, %v3088
        %v3091 = vsel %vm3089, 1.0, %v3090
        %v3092 = vmul.f32 %v3083, %v3088
        %v3093 = vsel %vm3089, 0.0, %v3092
        %v3095 = vrot.slane %v3091, 5
        %v3097 = vmul.f32 %v439, %v3095
        %v3099 = vrot.slane %v3093, 5
        %v3101 = vmul.f32 %v647, %v3099
        %v3102 = vsub.f32 %v3097, %v3101
        %v3103 = vmul.f32 %v647, %v3095
        %v3104 = vmul.f32 %v439, %v3099
        %v3105 = vadd.f32 %v3103, %v3104
        %v3106 = vsub.f32 1.0, %v3102
        %v3108 = vrot.slane %v3080, 5
        %v3110 = vmul.f32 %v3106, %v3108
        %v3112 = vrot.slane %v3081, 5
        %v3114 = vmul.f32 %v3106, %v3112
        %v3116 = vrot.slane %v3082, 5
        %v3118 = vmul.f32 %v3106, %v3116
        %v3119 = vmul.f32 %v3105, %v3108
        %v3120 = vmul.f32 %v3105, %v3112
        %v3121 = vmul.f32 %v3105, %v3116
        %v3122 = vmul.f32 %v3110, %v3112
        %v3123 = vmul.f32 %v3110, %v3116
        %v3124 = vmul.f32 %v3114, %v3116
        %v3125 = vmul.f32 %v3110, %v3108
        %v3126 = vadd.f32 %v3125, %v3102
        %v3127 = vsub.f32 %v3122, %v3121
        %v3128 = vadd.f32 %v3123, %v3120
        %v3129 = vadd.f32 %v3122, %v3121
        %v3130 = vmul.f32 %v3114, %v3112
        %v3131 = vadd.f32 %v3130, %v3102
        %v3132 = vsub.f32 %v3124, %v3119
        %v3133 = vsub.f32 %v3123, %v3120
        %v3134 = vadd.f32 %v3124, %v3119
        %v3135 = vmul.f32 %v3118, %v3116
        %v3136 = vadd.f32 %v3135, %v3102
        %v3137 = vld [vmem:[%s219 + $0x8] sm:$0xff]
        %v3138 = vld [vmem:[%s652 + $0x8] sm:$0xff]
        %v3139 = vld [vmem:[%s654 + $0x8] sm:$0xff]
        %v3140 = vlaneseq
        %v3141 = vshrl.u32 %v3140, 7
        %v3142 = vsub.s32 0, %v3141
        %v3143 = vrot.slane %v3018, %v3142
        %v3144 = vsub.f32 %v3137, %v3143
        %v3145 = vlaneseq
        %v3146 = vshrl.u32 %v3145, 7
        %v3147 = vsub.s32 0, %v3146
        %v3148 = vrot.slane %v3019, %v3147
        %v3149 = vsub.f32 %v3138, %v3148
        %v3150 = vlaneseq
        %v3151 = vshrl.u32 %v3150, 7
        %v3152 = vsub.s32 0, %v3151
        %v3153 = vrot.slane %v3020, %v3152
        %v3154 = vsub.f32 %v3139, %v3153
        %v3155 = vlaneseq
        %v3156 = vshrl.u32 %v3155, 7
        %v3157 = vsub.s32 3, %v3156
        %v3158 = vrot.slane %v3126, %v3157
        %v3159 = vmul.f32 %v3158, %v3144
        %v3160 = vlaneseq
        %v3161 = vshrl.u32 %v3160, 7
        %v3162 = vsub.s32 3, %v3161
        %v3163 = vrot.slane %v3127, %v3162
        %v3164 = vmul.f32 %v3163, %v3149
        %v3165 = vadd.f32 %v3159, %v3164
        %v3166 = vlaneseq
        %v3167 = vshrl.u32 %v3166, 7
        %v3168 = vsub.s32 3, %v3167
        %v3169 = vrot.slane %v3128, %v3168
        %v3170 = vmul.f32 %v3169, %v3154
        %v3171 = vadd.f32 %v3165, %v3170
        %v3172 = vadd.f32 %v3171, %v3143
        %v3173 = vlaneseq
        %v3174 = vshrl.u32 %v3173, 7
        %v3175 = vsub.s32 3, %v3174
        %v3176 = vrot.slane %v3129, %v3175
        %v3177 = vmul.f32 %v3176, %v3144
        %v3178 = vlaneseq
        %v3179 = vshrl.u32 %v3178, 7
        %v3180 = vsub.s32 3, %v3179
        %v3181 = vrot.slane %v3131, %v3180
        %v3182 = vmul.f32 %v3181, %v3149
        %v3183 = vadd.f32 %v3177, %v3182
        %v3184 = vlaneseq
        %v3185 = vshrl.u32 %v3184, 7
        %v3186 = vsub.s32 3, %v3185
        %v3187 = vrot.slane %v3132, %v3186
        %v3188 = vmul.f32 %v3187, %v3154
        %v3189 = vadd.f32 %v3183, %v3188
        %v3190 = vadd.f32 %v3189, %v3148
        %v3191 = vlaneseq
        %v3192 = vshrl.u32 %v3191, 7
        %v3193 = vsub.s32 3, %v3192
        %v3194 = vrot.slane %v3133, %v3193
        %v3195 = vmul.f32 %v3194, %v3144
        %v3196 = vlaneseq
        %v3197 = vshrl.u32 %v3196, 7
        %v3198 = vsub.s32 3, %v3197
        %v3199 = vrot.slane %v3134, %v3198
        %v3200 = vmul.f32 %v3199, %v3149
        %v3201 = vadd.f32 %v3195, %v3200
        %v3202 = vlaneseq
        %v3203 = vshrl.u32 %v3202, 7
        %v3204 = vsub.s32 3, %v3203
        %v3205 = vrot.slane %v3136, %v3204
        %v3206 = vmul.f32 %v3205, %v3154
        %v3207 = vadd.f32 %v3201, %v3206
        %v3208 = vadd.f32 %v3207, %v3153
        %vm3209 = vcmp.ge.s32.totalorder %v650, 14
        %v3210 = vsel %vm3209, 1, 0
        %vm3211 = vcmp.eq.s32.totalorder %v3210, 1
        %v3212 = vsel %vm3211, %v3172, %v3137
        %v3213 = vsel %vm3211, %v3190, %v3138
        %v3214 = vsel %vm3211, %v3208, %v3139
        %3215 = vst [vmem:[%s219 + $0x8] sm:$0xff] %v3212
        %3216 = vst [vmem:[%s652 + $0x8] sm:$0xff] %v3213
        %3217 = vst [vmem:[%s654 + $0x8] sm:$0xff] %v3214
        %v3218 = vld [vmem:[%s219 + $0xc] sm:$0x1]
        %v3219 = vld [vmem:[%s652 + $0xc] sm:$0x1]
        %v3220 = vld [vmem:[%s654 + $0xc] sm:$0x1]
        %v3221 = vld [vmem:[%s219 + $0xd] sm:$0x1]
        %v3222 = vld [vmem:[%s652 + $0xd] sm:$0x1]
        %v3223 = vld [vmem:[%s654 + $0xd] sm:$0x1]
        %v3224 = vld [vmem:[%s219 + $0xe] sm:$0x1]
        %v3225 = vld [vmem:[%s652 + $0xe] sm:$0x1]
        %v3226 = vld [vmem:[%s654 + $0xe] sm:$0x1]
        %v3227 = vld [vmem:[%s219 + $0xf] sm:$0x1]
        %v3228 = vld [vmem:[%s652 + $0xf] sm:$0x1]
        %v3229 = vld [vmem:[%s654 + $0xf] sm:$0x1]
        %v3230 = vsub.f32 %v3221, %v3218
        %v3231 = vsub.f32 %v3222, %v3219
        %v3232 = vsub.f32 %v3223, %v3220
        %v3233 = vsub.f32 %v3224, %v3221
        %v3234 = vsub.f32 %v3225, %v3222
        %v3235 = vsub.f32 %v3226, %v3223
        %v3236 = vsub.f32 %v3227, %v3224
        %v3237 = vsub.f32 %v3228, %v3225
        %v3238 = vsub.f32 %v3229, %v3226
        %v3239 = vmul.f32 %v3231, %v3235
        %v3240 = vmul.f32 %v3232, %v3234
        %v3241 = vsub.f32 %v3239, %v3240
        %v3242 = vmul.f32 %v3232, %v3233
        %v3243 = vmul.f32 %v3230, %v3235
        %v3244 = vsub.f32 %v3242, %v3243
        %v3245 = vmul.f32 %v3230, %v3234
        %v3246 = vmul.f32 %v3231, %v3233
        %v3247 = vsub.f32 %v3245, %v3246
        %v3248 = vmul.f32 %v3234, %v3238
        %v3249 = vmul.f32 %v3235, %v3237
        %v3250 = vsub.f32 %v3248, %v3249
        %v3251 = vmul.f32 %v3235, %v3236
        %v3252 = vmul.f32 %v3233, %v3238
        %v3253 = vsub.f32 %v3251, %v3252
        %v3254 = vmul.f32 %v3233, %v3237
        %v3255 = vmul.f32 %v3234, %v3236
        %v3256 = vsub.f32 %v3254, %v3255
        %v3257 = vmul.f32 %v3244, %v3235
        %v3258 = vmul.f32 %v3247, %v3234
        %v3259 = vsub.f32 %v3257, %v3258
        %v3260 = vmul.f32 %v3247, %v3233
        %v3261 = vmul.f32 %v3241, %v3235
        %v3262 = vsub.f32 %v3260, %v3261
        %v3263 = vmul.f32 %v3241, %v3234
        %v3264 = vmul.f32 %v3244, %v3233
        %v3265 = vsub.f32 %v3263, %v3264
        %v3266 = vmul.f32 %v3259, %v3250
        %v3267 = vmul.f32 %v3262, %v3253
        %v3268 = vadd.f32 %v3266, %v3267
        %v3269 = vmul.f32 %v3265, %v3256
        %v3270 = vadd.f32 %v3268, %v3269
        %v3271 = vmul.f32 %v3241, %v3250
        %v3272 = vmul.f32 %v3244, %v3253
        %v3273 = vadd.f32 %v3271, %v3272
        %v3274 = vmul.f32 %v3247, %v3256
        %v3275 = vadd.f32 %v3273, %v3274
        %v3276 = vmul.f32 %v3233, %v3233
        %v3277 = vmul.f32 %v3234, %v3234
        %v3278 = vadd.f32 %v3276, %v3277
        %v3279 = vmul.f32 %v3235, %v3235
        %v3280 = vadd.f32 %v3278, %v3279
        %v3281 = vmax.f32 %v3280, 1e-24
        %v3282 = vrsqrt.pop %v3281
        %v3283 = vmul.f32 %v3233, %v3282
        %v3284 = vmul.f32 %v3234, %v3282
        %v3285 = vmul.f32 %v3235, %v3282
        %v3286 = vmul.f32 %v3270, %v3282
        %v3287 = vmul.f32 %v3275, %v3275
        %v3288 = vmul.f32 %v3286, %v3286
        %v3289 = vadd.f32 %v3287, %v3288
        %v3290 = vmax.f32 %v3289, 1e-24
        %v3291 = vrsqrt.pop %v3290
        %vm3292 = vcmp.lt.f32.partialorder %v3289, 1e-24
        %v3293 = vmul.f32 %v3275, %v3291
        %v3294 = vsel %vm3292, 1.0, %v3293
        %v3295 = vmul.f32 %v3286, %v3291
        %v3296 = vsel %vm3292, 0.0, %v3295
        %v3298 = vrot.slane %v3294, 4
        %v3300 = vmul.f32 %v439, %v3298
        %v3302 = vrot.slane %v3296, 4
        %v3304 = vmul.f32 %v647, %v3302
        %v3305 = vsub.f32 %v3300, %v3304
        %v3306 = vmul.f32 %v647, %v3298
        %v3307 = vmul.f32 %v439, %v3302
        %v3308 = vadd.f32 %v3306, %v3307
        %v3309 = vsub.f32 1.0, %v3305
        %v3311 = vrot.slane %v3283, 4
        %v3313 = vmul.f32 %v3309, %v3311
        %v3315 = vrot.slane %v3284, 4
        %v3317 = vmul.f32 %v3309, %v3315
        %v3319 = vrot.slane %v3285, 4
        %v3321 = vmul.f32 %v3309, %v3319
        %v3322 = vmul.f32 %v3308, %v3311
        %v3323 = vmul.f32 %v3308, %v3315
        %v3324 = vmul.f32 %v3308, %v3319
        %v3325 = vmul.f32 %v3313, %v3315
        %v3326 = vmul.f32 %v3313, %v3319
        %v3327 = vmul.f32 %v3317, %v3319
        %v3328 = vmul.f32 %v3313, %v3311
        %v3329 = vadd.f32 %v3328, %v3305
        %v3330 = vsub.f32 %v3325, %v3324
        %v3331 = vadd.f32 %v3326, %v3323
        %v3332 = vadd.f32 %v3325, %v3324
        %v3333 = vmul.f32 %v3317, %v3315
        %v3334 = vadd.f32 %v3333, %v3305
        %v3335 = vsub.f32 %v3327, %v3322
        %v3336 = vsub.f32 %v3326, %v3323
        %v3337 = vadd.f32 %v3327, %v3322
        %v3338 = vmul.f32 %v3321, %v3319
        %v3339 = vadd.f32 %v3338, %v3305
        %v3340 = vld [vmem:[%s219 + $0x8] sm:$0xff]
        %v3341 = vld [vmem:[%s652 + $0x8] sm:$0xff]
        %v3342 = vld [vmem:[%s654 + $0x8] sm:$0xff]
        %v3343 = vlaneseq
        %v3344 = vshrl.u32 %v3343, 7
        %v3345 = vsub.s32 0, %v3344
        %v3346 = vrot.slane %v3221, %v3345
        %v3347 = vsub.f32 %v3340, %v3346
        %v3348 = vlaneseq
        %v3349 = vshrl.u32 %v3348, 7
        %v3350 = vsub.s32 0, %v3349
        %v3351 = vrot.slane %v3222, %v3350
        %v3352 = vsub.f32 %v3341, %v3351
        %v3353 = vlaneseq
        %v3354 = vshrl.u32 %v3353, 7
        %v3355 = vsub.s32 0, %v3354
        %v3356 = vrot.slane %v3223, %v3355
        %v3357 = vsub.f32 %v3342, %v3356
        %v3358 = vlaneseq
        %v3359 = vshrl.u32 %v3358, 7
        %v3360 = vsub.s32 4, %v3359
        %v3361 = vrot.slane %v3329, %v3360
        %v3362 = vmul.f32 %v3361, %v3347
        %v3363 = vlaneseq
        %v3364 = vshrl.u32 %v3363, 7
        %v3365 = vsub.s32 4, %v3364
        %v3366 = vrot.slane %v3330, %v3365
        %v3367 = vmul.f32 %v3366, %v3352
        %v3368 = vadd.f32 %v3362, %v3367
        %v3369 = vlaneseq
        %v3370 = vshrl.u32 %v3369, 7
        %v3371 = vsub.s32 4, %v3370
        %v3372 = vrot.slane %v3331, %v3371
        %v3373 = vmul.f32 %v3372, %v3357
        %v3374 = vadd.f32 %v3368, %v3373
        %v3375 = vadd.f32 %v3374, %v3346
        %v3376 = vlaneseq
        %v3377 = vshrl.u32 %v3376, 7
        %v3378 = vsub.s32 4, %v3377
        %v3379 = vrot.slane %v3332, %v3378
        %v3380 = vmul.f32 %v3379, %v3347
        %v3381 = vlaneseq
        %v3382 = vshrl.u32 %v3381, 7
        %v3383 = vsub.s32 4, %v3382
        %v3384 = vrot.slane %v3334, %v3383
        %v3385 = vmul.f32 %v3384, %v3352
        %v3386 = vadd.f32 %v3380, %v3385
        %v3387 = vlaneseq
        %v3388 = vshrl.u32 %v3387, 7
        %v3389 = vsub.s32 4, %v3388
        %v3390 = vrot.slane %v3335, %v3389
        %v3391 = vmul.f32 %v3390, %v3357
        %v3392 = vadd.f32 %v3386, %v3391
        %v3393 = vadd.f32 %v3392, %v3351
        %v3394 = vlaneseq
        %v3395 = vshrl.u32 %v3394, 7
        %v3396 = vsub.s32 4, %v3395
        %v3397 = vrot.slane %v3336, %v3396
        %v3398 = vmul.f32 %v3397, %v3347
        %v3399 = vlaneseq
        %v3400 = vshrl.u32 %v3399, 7
        %v3401 = vsub.s32 4, %v3400
        %v3402 = vrot.slane %v3337, %v3401
        %v3403 = vmul.f32 %v3402, %v3352
        %v3404 = vadd.f32 %v3398, %v3403
        %v3405 = vlaneseq
        %v3406 = vshrl.u32 %v3405, 7
        %v3407 = vsub.s32 4, %v3406
        %v3408 = vrot.slane %v3339, %v3407
        %v3409 = vmul.f32 %v3408, %v3357
        %v3410 = vadd.f32 %v3404, %v3409
        %v3411 = vadd.f32 %v3410, %v3356
        %vm3412 = vcmp.ge.s32.totalorder %v650, 15
        %v3413 = vsel %vm3412, 1, 0
        %vm3414 = vcmp.eq.s32.totalorder %v3413, 1
        %v3415 = vsel %vm3414, %v3375, %v3340
        %v3416 = vsel %vm3414, %v3393, %v3341
        %v3417 = vsel %vm3414, %v3411, %v3342
        %3418 = vst [vmem:[%s219 + $0x8] sm:$0xff] %v3415
        %3419 = vst [vmem:[%s652 + $0x8] sm:$0xff] %v3416
        %3420 = vst [vmem:[%s654 + $0x8] sm:$0xff] %v3417
        %s3421 = sand.u32 %s79, 1
        %s3422 = scalar_lea.sflag [#allocation5], %s3421
        %s3423 = sand.u32 %s79, 1
        %s3424 = smul.addr %s3423, 48
        %s3425 = scalar_lea.vmem [#allocation6], %s3424
        // Predicated region
        $region71: #{tpu_custom_call.1} parent=61 // pred_check
          %p3426 = pneg %p89
        $region72: #{tpu_custom_call.1} parent=61 // pred_check_branch
          %3428 = sbr.rel (%p3426) target = $region74
        $region73: #{tpu_custom_call.1} parent=61 // pred_region
          %s3430 = ssub.s32 768, 768
          %3431 = vsyncadd %s3422, %s3430
          %s3432 = smul.addr %s19, 128
          %s3433 = scalar_lea.hbm %s2, %s3432
          %s3434 = sshll.u32 %s3425, 4
          %s3435 = int_to_ptr.vmem [resolvable:$true] %s3434
          %3440 = dma.vmem_to_hbm [thread:$0]  %s3435, 768, %s3433, %s3422, 128, 256, 8
        $region74: #{tpu_custom_call.1} parent=61 // pred_fallthru
          _
      $region62: #{tpu_custom_call.1} parent=5 // pred_fallthru
        _
      %p3441 = scmp.le.s32.totalorder 2, %s14
      // Predicated region
      $region75: #{tpu_custom_call.1} parent=5 // pred_check
        %p3442 = pneg %p3441
      $region76: #{tpu_custom_call.1} parent=5 // pred_check_branch
        %3444 = sbr.rel (%p3442) target = $region78
      $region77: #{tpu_custom_call.1} parent=5 // pred_region
        %s3445 = ssub.s32 %s14, 2
        // Predicated region
        $region79: #{tpu_custom_call.1} parent=77 // pred_check
          %p3446 = pneg %p95
        $region80: #{tpu_custom_call.1} parent=77 // pred_check_branch
          %3448 = sbr.rel (%p3446) target = $region82
        $region81: #{tpu_custom_call.1} parent=77 // pred_region
          %s3449 = sand.u32 %s80, 1
          %s3450 = scalar_lea.sflag [#allocation5], %s3449
          %s3451 = sand.u32 %s80, 1
          %s3452 = smul.addr %s3451, 48
          %s3453 = scalar_lea.vmem [#allocation6], %s3452
          %3454 = dma.done %s3450, 768
        $region82: #{tpu_custom_call.1} parent=77 // pred_fallthru
          _
      $region78: #{tpu_custom_call.1} parent=5 // pred_fallthru
        _
    $region6: #{tpu_custom_call.1} parent=1 // loop_footer
      %s18 = sadd.s32 1, %s14
    $region7: #{tpu_custom_call.1} parent=1 // loop_footer_branch
      %13 = sbr.rel target = $region3
    $region8: #{tpu_custom_call.1} parent=1 // loop_exit
      _
    %3455 = vsyncpa [#allocation4], 1
    %s3456 = scalar_lea.sflag [#allocation4], 1
    %3457 = vsyncpa %s3456, 1
    %3458 = vsyncpa [#allocation5], 1
    %s3459 = scalar_lea.sflag [#allocation5], 1
    %3460 = vsyncpa %s3459, 1

</llo_original>
